<compile_context>
chip_gen: v7x
topology: tpu7x:2x2x1
jax: 0.10.0
libtpu: 0.0.40
codegen_flags: <defaults>
</compile_context>

<pallas_src>
import jax
import jax.numpy as jnp
from jax.experimental import pallas as pl
from jax.experimental.pallas import tpu as pltpu

BN_EPS = 1e-5
EXPANSION = 4
LANE = 128     # TPU lane width
SUBLANE = 8    # TPU sublane width


def _round_up(v, m):
    return (v + m - 1) // m * m


def bottleneck_kernel(x_ref, w1_ref, w2_ref, b2_ref, w3_ref, b3_ref, o_ref):
    """One batch tile per grid step.

    x_ref : (B, Hp, Wp, Cin_p)  f32   spatially pre-padded input (also residual);
                                      channel index Cin is an interior indicator
                                      that carries conv1's folded BN bias.
    w1_ref: (Cin_p, P_p)        bf16  1x1 conv (+ bias row), BN1 folded
    w2_ref: (9*P_p, P_p)        bf16  3x3 conv reshaped for im2col, BN2 folded
    b2_ref: (1, P_p)            f32
    w3_ref: (P_p, Cout_p)       bf16  1x1 conv, BN3 folded
    b3_ref: (1, Cout_p)         f32
    o_ref : (B, Hp, Wp, Cout_p) f32   padded output (wrapper slices the interior)
    """
    B, Hp, Wp, Cin_p = x_ref.shape
    P_p = w1_ref.shape[1]
    Cout_p = w3_ref.shape[1]
    R = B * Hp * Wp                                   # flattened (b, y, x) rows

    x_f32 = x_ref[...].reshape(R, Cin_p)              # residual stays f32
    x_b = x_f32.astype(jnp.bfloat16)                  # bf16 MXU operand

    # ---- conv1 (1x1) + bn1 + relu : one MXU matmul over channels ------------
    # The bias is folded into w1 via the indicator channel, so halo rows
    # (data == 0, indicator == 0) come out exactly 0 -> correct zero padding
    # for the 3x3 conv below.
    h1 = jnp.dot(x_b, w1_ref[...], preferred_element_type=jnp.float32)
    h1 = jnp.maximum(h1, 0.0).astype(jnp.bfloat16)               # (R, P_p)

    # ---- conv2 (3x3, stride=1, pad=1) + bn2 + relu : ONE matmul, K = 9*P_p ---
    # Build the (R, 9*P_p) im2col operand from the flattened, pre-padded h1.
    # dx = +/-1 shifts: extend h1 by 8 rows on each side (sublane-aligned
    # concat) so each horizontal shift becomes a plain static slice of length R.
    ext = jnp.concatenate([h1[R - 8:], h1, h1[:8]], axis=0)       # (R+16, P_p)
    hx = jnp.concatenate([ext[8 + dx:8 + dx + R] for dx in (-1, 0, 1)],
                         axis=1)                                  # (R, 3*P_p)

    # dy = +/-1 shifts move whole padded rows (Wp is a multiple of 8), so a
    # sublane-aligned rotation suffices.  Wrap-around rows only ever land on
    # halo rows, which the wrapper discards.
    def rotate_rows(a, k):
        # result[r] = a[(r + k) % R]
        k = k % R
        return a if k == 0 else jnp.concatenate([a[k:], a[:k]], axis=0)

    im2col = jnp.concatenate([rotate_rows(hx, dy * Wp) for dy in (-1, 0, 1)],
                             axis=1)                              # (R, 9*P_p)

    h2 = jnp.dot(im2col, w2_ref[...], preferred_element_type=jnp.float32)
    h2 = jnp.maximum(h2 + b2_ref[0], 0.0).astype(jnp.bfloat16)    # (R, P_p)

    # ---- conv3 (1x1) + bn3 + residual add + relu (f32 epilogue) --------------
    h3 = jnp.dot(h2, w3_ref[...], preferred_element_type=jnp.float32) + b3_ref[0]
    out = jnp.maximum(h3 + x_f32[:, :Cout_p], 0.0)
    o_ref[...] = out.reshape(B, Hp, Wp, Cout_p)


def bottleneck_forward(x_nchw, folded):
    """x_nchw: (N, Cin, H, W) f32 (NCHW, like PyTorch). Returns NCHW f32."""
    w1f, b1, w2f, b2, w3f, b3 = folded            # BN-folded, unpadded, f32
    N, Cin, H, W = x_nchw.shape
    P = w1f.shape[1]
    Cout = w3f.shape[1]
    assert Cout == P * EXPANSION
    # stride=1 + downsample=None in the reference module: the residual add
    # requires matching channel counts -- fail loudly instead of broadcasting.
    assert Cin == Cout, (
        f"Bottleneck(stride=1, downsample=None) needs inplanes == planes*4 "
        f"(got inplanes={Cin}, planes*4={Cout})")

    # Lane-dense channel padding (>=128) + one spare channel for conv1's bias.
    Cin_p = _round_up(Cin + 1, LANE)
    P_p = _round_up(P, LANE)
    Cout_p = _round_up(Cout, LANE)
    Hp = H + 2                                    # 3x3 halo: one row top/bottom
    Wp = _round_up(W + 2, SUBLANE)                # halo col + pad W to sublanes

    # ---- layout plumbing, done once in XLA outside the kernel ---------------
    x = jnp.transpose(x_nchw, (0, 2, 3, 1)).astype(jnp.float32)   # NHWC
    ind = jnp.ones((N, H, W, 1), jnp.float32)     # 1 on real pixels, 0 on halo
    x_aug = jnp.concatenate([x, ind], axis=-1)
    x_aug = jnp.pad(x_aug, ((0, 0), (1, 1), (1, Wp - W - 1),
                            (0, Cin_p - Cin - 1)))                # (N,Hp,Wp,Cin_p)

    w1a = jnp.zeros((Cin_p, P_p), jnp.float32)
    w1a = w1a.at[:Cin, :P].set(w1f).at[Cin, :P].set(b1)   # bias on indicator row
    w2r = jnp.zeros((3, 3, P_p, P_p), jnp.float32).at[:, :, :P, :P].set(w2f)
    w2r = w2r.reshape(9 * P_p, P_p)               # rows = (ky, kx, cin) row-major
    w3p = jnp.zeros((P_p, Cout_p), jnp.float32).at[:P, :Cout].set(w3f)
    w1a, w2r, w3p = (w.astype(jnp.bfloat16) for w in (w1a, w2r, w3p))
    b2p = jnp.zeros((1, P_p), jnp.float32).at[0, :P].set(b2)
    b3p = jnp.zeros((1, Cout_p), jnp.float32).at[0, :Cout].set(b3)

    # Batch tiling: several small images per grid step amortize the ~0.35us
    # per-step overhead; one image per step once the image itself is large.
    # TODO(synk): add spatial (row) tiling with a 1-row halo for very large H*W
    # so a double-buffered block also fits v7x's 64 MiB VMEM.
    b_tile = 1
    for d in range(N, 0, -1):
        if N % d == 0 and d * Hp * Wp <= max(2048, Hp * Wp):
            b_tile = d
            break
    grid = (N // b_tile,)

    flops = 2 * N * Hp * Wp * (Cin_p * P_p + 9 * P_p * P_p + P_p * Cout_p)
    bytes_accessed = (x_aug.size * 4 + N * Hp * Wp * Cout_p * 4
                      + (w1a.size + w2r.size + w3p.size) * 2
                      + (b2p.size + b3p.size) * 4)

    out_padded = pl.pallas_call(
        bottleneck_kernel,
        out_shape=jax.ShapeDtypeStruct((N, Hp, Wp, Cout_p), jnp.float32),
        grid_spec=pltpu.PrefetchScalarGridSpec(
            num_scalar_prefetch=0,
            grid=grid,
            in_specs=[
                pl.BlockSpec((b_tile, Hp, Wp, Cin_p), lambda n: (n, 0, 0, 0)),
                pl.BlockSpec((Cin_p, P_p), lambda n: (0, 0)),
                pl.BlockSpec((9 * P_p, P_p), lambda n: (0, 0)),
                pl.BlockSpec((1, P_p), lambda n: (0, 0)),
                pl.BlockSpec((P_p, Cout_p), lambda n: (0, 0)),
                pl.BlockSpec((1, Cout_p), lambda n: (0, 0)),
            ],
            out_specs=pl.BlockSpec((b_tile, Hp, Wp, Cout_p),
                                   lambda n: (n, 0, 0, 0)),
        ),
        compiler_params=pltpu.CompilerParams(
            dimension_semantics=("parallel",),       # batch tiles are independent
            vmem_limit_bytes=48 * 1024 * 1024,       # fits v7x 64MiB with headroom
        ),
        cost_estimate=pl.CostEstimate(flops=flops, transcendentals=0,
                                      bytes_accessed=bytes_accessed),
    )(x_aug, w1a, w2r, b2p, w3p, b3p)

    out = out_padded[:, 1:H + 1, 1:W + 1, :Cout]     # drop halo & channel padding
    return jnp.transpose(out, (0, 3, 1, 2))          # back to NCHW


# ---------------- parameter setup (deterministic, synthetic) ----------------
def init_params(key, inplanes, planes):
    outplanes = planes * EXPANSION
    ks = jax.random.split(key, 6)
    # conv weights in matmul-friendly layouts:
    #   1x1 convs: (Cin, Cout); 3x3 conv: (kh, kw, Cin, Cout) == HWIO
    w1 = 0.1 * jax.random.normal(ks[0], (inplanes, planes), jnp.float32)
    w2 = 0.1 * jax.random.normal(ks[1], (3, 3, planes, planes), jnp.float32)
    w3 = 0.1 * jax.random.normal(ks[2], (planes, outplanes), jnp.float32)

    def bn_params(k, c):
        k1, k2, k3, k4 = jax.random.split(k, 4)
        gamma = 1.0 + 0.1 * jax.random.normal(k1, (c,), jnp.float32)
        beta = 0.1 * jax.random.normal(k2, (c,), jnp.float32)
        mean = 0.1 * jax.random.normal(k3, (c,), jnp.float32)
        var = jnp.abs(jax.random.normal(k4, (c,), jnp.float32)) + 0.5
        return gamma, beta, mean, var

    return w1, w2, w3, bn_params(ks[3], planes), bn_params(ks[4], planes), \
        bn_params(ks[5], outplanes)


def fold_bn(w, bn):
    gamma, beta, mean, var = bn
    scale = gamma / jnp.sqrt(var + BN_EPS)      # per output channel
    return w * scale, beta - mean * scale       # broadcast over last (out) dim


# ---------------- pure-JAX reference (for correctness check) ----------------
def reference(x_nchw, raw):
    w1, w2, w3, bn1, bn2, bn3 = raw
    x = jnp.transpose(x_nchw, (0, 2, 3, 1))

    def bn(h, p):
        gamma, beta, mean, var = p
        return (h - mean) / jnp.sqrt(var + BN_EPS) * gamma + beta

    dn = ('NHWC', 'HWIO', 'NHWC')
    h = jax.lax.conv_general_dilated(x, w1[None, None], (1, 1), 'VALID',
                                     dimension_numbers=dn)
    h = jax.nn.relu(bn(h, bn1))
    h = jax.lax.conv_general_dilated(h, w2, (1, 1), 'SAME',
                                     dimension_numbers=dn)
    h = jax.nn.relu(bn(h, bn2))
    h = jax.lax.conv_general_dilated(h, w3[None, None], (1, 1), 'VALID',
                                     dimension_numbers=dn)
    out = jax.nn.relu(bn(h, bn3) + x)
    return jnp.transpose(out, (0, 3, 1, 2))


if __name__ == "__main__":
    key = jax.random.PRNGKey(0)
    kx, kp = jax.random.split(key)

    # downsample=None + residual add  =>  inplanes == planes * expansion
    inplanes, planes = 16, 4
    N, H, W = 2, 16, 16

    x = jax.random.normal(kx, (N, inplanes, H, W), jnp.float32)  # NCHW like PyTorch
    raw = init_params(kp, inplanes, planes)
    w1, w2, w3, bn1, bn2, bn3 = raw
    w1f, b1 = fold_bn(w1, bn1)
    w2f, b2 = fold_bn(w2, bn2)
    w3f, b3 = fold_bn(w3, bn3)
    folded = (w1f, b1, w2f, b2, w3f, b3)

    out = bottleneck_forward(x, folded)
    jax.block_until_ready(out)

    ref = reference(x, raw)
    assert out.shape == (N, planes * EXPANSION, H, W)
    max_err = float(jnp.max(jnp.abs(out - ref)))
    # bf16 MXU operands (f32 accumulation / epilogue) -> relaxed tolerance
    assert jnp.allclose(out, ref, atol=3e-2, rtol=3e-2), \
        f"mismatch vs JAX reference (max abs err {max_err})"
    print("KERNEL_OK")
</pallas_src>

<mosaic_0001>
module attributes {stable_mosaic.version = 11 : i64} {
  func.func @bottleneck_kernel(%arg0: i32, %arg1: memref<2x18x24x128xf32, #tpu.memory_space<vmem>>, %arg2: memref<128x128xbf16, #tpu.memory_space<vmem>>, %arg3: memref<1152x128xbf16, #tpu.memory_space<vmem>>, %arg4: memref<1x128xf32, #tpu.memory_space<vmem>>, %arg5: memref<128x128xbf16, #tpu.memory_space<vmem>>, %arg6: memref<1x128xf32, #tpu.memory_space<vmem>>, %arg7: memref<2x18x24x128xf32, #tpu.memory_space<vmem>>) attributes {dimension_semantics = [#tpu.dimension_semantics<parallel>], iteration_bounds = array<i64: 1>, scalar_prefetch = 0 : i64, scratch_operands = 0 : i64, tpu.core_type = #tpu.core_type<tc>, window_params = [{transform_indices = @transform_0, window_bounds = array<i64: 2, 18, 24, 128>}, {pipeline_mode = #tpu.pipeline_mode<synchronous>, transform_indices = @transform_1, window_bounds = array<i64: 128, 128>}, {pipeline_mode = #tpu.pipeline_mode<synchronous>, transform_indices = @transform_2, window_bounds = array<i64: 1152, 128>}, {pipeline_mode = #tpu.pipeline_mode<synchronous>, transform_indices = @transform_3, window_bounds = array<i64: 1, 128>}, {pipeline_mode = #tpu.pipeline_mode<synchronous>, transform_indices = @transform_4, window_bounds = array<i64: 128, 128>}, {pipeline_mode = #tpu.pipeline_mode<synchronous>, transform_indices = @transform_5, window_bounds = array<i64: 1, 128>}, {transform_indices = @transform_6, window_bounds = array<i64: 2, 18, 24, 128>}]} {
    %c0 = arith.constant 0 : index
    %c0_0 = arith.constant 0 : index
    %c0_1 = arith.constant 0 : index
    %c0_2 = arith.constant 0 : index
    %0 = vector.load %arg1[%c0, %c0_0, %c0_1, %c0_2] : memref<2x18x24x128xf32, #tpu.memory_space<vmem>>, vector<2x18x24x128xf32>
    %1 = vector.shape_cast %0 : vector<2x18x24x128xf32> to vector<864x128xf32>
    %2 = arith.truncf %1 : vector<864x128xf32> to vector<864x128xbf16>
    %c0_3 = arith.constant 0 : index
    %c0_4 = arith.constant 0 : index
    %3 = vector.load %arg2[%c0_3, %c0_4] : memref<128x128xbf16, #tpu.memory_space<vmem>>, vector<128x128xbf16>
    %cst = arith.constant dense<0.000000e+00> : vector<864x128xf32>
    %4 = tpu.matmul %2, %3, %cst {dimension_numbers = #tpu.dot_dimension_numbers<[1], [0], [0], [1], [0, 0, 1, 1], [], []>} : vector<864x128xbf16>, vector<128x128xbf16>, vector<864x128xf32> -> vector<864x128xf32>
    %cst_5 = arith.constant 0.000000e+00 : f32
    %5 = vector.broadcast %cst_5 : f32 to vector<864x128xf32>
    %6 = arith.maximumf %4, %5 : vector<864x128xf32>
    %7 = arith.truncf %6 : vector<864x128xf32> to vector<864x128xbf16>
    %8 = vector.extract_strided_slice %7 {offsets = [856, 0], sizes = [8, 128], strides = [1, 1]} : vector<864x128xbf16> to vector<8x128xbf16>
    %9 = vector.extract_strided_slice %7 {offsets = [0, 0], sizes = [8, 128], strides = [1, 1]} : vector<864x128xbf16> to vector<8x128xbf16>
    %10 = tpu.concatenate %8, %7, %9 in 0 : vector<8x128xbf16>, vector<864x128xbf16>, vector<8x128xbf16> -> vector<880x128xbf16>
    %11 = vector.extract_strided_slice %10 {offsets = [7, 0], sizes = [864, 128], strides = [1, 1]} : vector<880x128xbf16> to vector<864x128xbf16>
    %12 = vector.extract_strided_slice %10 {offsets = [8, 0], sizes = [864, 128], strides = [1, 1]} : vector<880x128xbf16> to vector<864x128xbf16>
    %13 = vector.extract_strided_slice %10 {offsets = [9, 0], sizes = [864, 128], strides = [1, 1]} : vector<880x128xbf16> to vector<864x128xbf16>
    %14 = tpu.concatenate %11, %12, %13 in 1 : vector<864x128xbf16>, vector<864x128xbf16>, vector<864x128xbf16> -> vector<864x384xbf16>
    %15 = vector.extract_strided_slice %14 {offsets = [840, 0], sizes = [24, 384], strides = [1, 1]} : vector<864x384xbf16> to vector<24x384xbf16>
    %16 = vector.extract_strided_slice %14 {offsets = [0, 0], sizes = [840, 384], strides = [1, 1]} : vector<864x384xbf16> to vector<840x384xbf16>
    %17 = tpu.concatenate %15, %16 in 0 : vector<24x384xbf16>, vector<840x384xbf16> -> vector<864x384xbf16>
    %18 = vector.extract_strided_slice %14 {offsets = [24, 0], sizes = [840, 384], strides = [1, 1]} : vector<864x384xbf16> to vector<840x384xbf16>
    %19 = vector.extract_strided_slice %14 {offsets = [0, 0], sizes = [24, 384], strides = [1, 1]} : vector<864x384xbf16> to vector<24x384xbf16>
    %20 = tpu.concatenate %18, %19 in 0 : vector<840x384xbf16>, vector<24x384xbf16> -> vector<864x384xbf16>
    %21 = tpu.concatenate %17, %14, %20 in 1 : vector<864x384xbf16>, vector<864x384xbf16>, vector<864x384xbf16> -> vector<864x1152xbf16>
    %c0_6 = arith.constant 0 : index
    %c0_7 = arith.constant 0 : index
    %22 = vector.load %arg3[%c0_6, %c0_7] : memref<1152x128xbf16, #tpu.memory_space<vmem>>, vector<1152x128xbf16>
    %cst_8 = arith.constant dense<0.000000e+00> : vector<864x128xf32>
    %23 = tpu.matmul %21, %22, %cst_8 {dimension_numbers = #tpu.dot_dimension_numbers<[1], [0], [0], [1], [0, 0, 1, 1], [], []>} : vector<864x1152xbf16>, vector<1152x128xbf16>, vector<864x128xf32> -> vector<864x128xf32>
    %c0_9 = arith.constant 0 : index
    %c0_10 = arith.constant 0 : index
    %24 = vector.load %arg4[%c0_9, %c0_10] : memref<1x128xf32, #tpu.memory_space<vmem>>, vector<1x128xf32>
    %25 = vector.shape_cast %24 : vector<1x128xf32> to vector<128xf32>
    %26 = vector.shape_cast %25 : vector<128xf32> to vector<1x128xf32>
    %27 = vector.broadcast %26 : vector<1x128xf32> to vector<864x128xf32>
    %28 = arith.addf %23, %27 : vector<864x128xf32>
    %cst_11 = arith.constant 0.000000e+00 : f32
    %29 = vector.broadcast %cst_11 : f32 to vector<864x128xf32>
    %30 = arith.maximumf %28, %29 : vector<864x128xf32>
    %31 = arith.truncf %30 : vector<864x128xf32> to vector<864x128xbf16>
    %c0_12 = arith.constant 0 : index
    %c0_13 = arith.constant 0 : index
    %32 = vector.load %arg5[%c0_12, %c0_13] : memref<128x128xbf16, #tpu.memory_space<vmem>>, vector<128x128xbf16>
    %cst_14 = arith.constant dense<0.000000e+00> : vector<864x128xf32>
    %33 = tpu.matmul %31, %32, %cst_14 {dimension_numbers = #tpu.dot_dimension_numbers<[1], [0], [0], [1], [0, 0, 1, 1], [], []>} : vector<864x128xbf16>, vector<128x128xbf16>, vector<864x128xf32> -> vector<864x128xf32>
    %c0_15 = arith.constant 0 : index
    %c0_16 = arith.constant 0 : index
    %34 = vector.load %arg6[%c0_15, %c0_16] : memref<1x128xf32, #tpu.memory_space<vmem>>, vector<1x128xf32>
    %35 = vector.shape_cast %34 : vector<1x128xf32> to vector<128xf32>
    %36 = vector.shape_cast %35 : vector<128xf32> to vector<1x128xf32>
    %37 = vector.broadcast %36 : vector<1x128xf32> to vector<864x128xf32>
    %38 = arith.addf %33, %37 : vector<864x128xf32>
    %39 = arith.addf %38, %1 : vector<864x128xf32>
    %cst_17 = arith.constant 0.000000e+00 : f32
    %40 = vector.broadcast %cst_17 : f32 to vector<864x128xf32>
    %41 = arith.maximumf %39, %40 : vector<864x128xf32>
    %42 = vector.shape_cast %41 : vector<864x128xf32> to vector<2x18x24x128xf32>
    %c0_18 = arith.constant 0 : index
    %c0_19 = arith.constant 0 : index
    %c0_20 = arith.constant 0 : index
    %c0_21 = arith.constant 0 : index
    %43 = vector.load %arg7[%c0_18, %c0_19, %c0_20, %c0_21] : memref<2x18x24x128xf32, #tpu.memory_space<vmem>>, vector<2x18x24x128xf32>
    tpu.vector_store %arg7[%c0_18, %c0_19, %c0_20, %c0_21], %42 {strides = array<i32>} : memref<2x18x24x128xf32, #tpu.memory_space<vmem>>, vector<2x18x24x128xf32>,
    return
  }
  func.func @transform_0(%arg0: i32) -> (i32, i32, i32, i32) {
    %c0_i32 = arith.constant 0 : i32
    %c0_i32_0 = arith.constant 0 : i32
    %c0_i32_1 = arith.constant 0 : i32
    %c0_i32_2 = arith.constant 0 : i32
    return %arg0, %c0_i32, %c0_i32_0, %c0_i32_1 : i32, i32, i32, i32
  }
  func.func @transform_1(%arg0: i32) -> (i32, i32) {
    %c0_i32 = arith.constant 0 : i32
    %c0_i32_0 = arith.constant 0 : i32
    %c0_i32_1 = arith.constant 0 : i32
    return %c0_i32, %c0_i32_0 : i32, i32
  }
  func.func @transform_2(%arg0: i32) -> (i32, i32) {
    %c0_i32 = arith.constant 0 : i32
    %c0_i32_0 = arith.constant 0 : i32
    %c0_i32_1 = arith.constant 0 : i32
    return %c0_i32, %c0_i32_0 : i32, i32
  }
  func.func @transform_3(%arg0: i32) -> (i32, i32) {
    %c0_i32 = arith.constant 0 : i32
    %c0_i32_0 = arith.constant 0 : i32
    %c0_i32_1 = arith.constant 0 : i32
    return %c0_i32, %c0_i32_0 : i32, i32
  }
  func.func @transform_4(%arg0: i32) -> (i32, i32) {
    %c0_i32 = arith.constant 0 : i32
    %c0_i32_0 = arith.constant 0 : i32
    %c0_i32_1 = arith.constant 0 : i32
    return %c0_i32, %c0_i32_0 : i32, i32
  }
  func.func @transform_5(%arg0: i32) -> (i32, i32) {
    %c0_i32 = arith.constant 0 : i32
    %c0_i32_0 = arith.constant 0 : i32
    %c0_i32_1 = arith.constant 0 : i32
    return %c0_i32, %c0_i32_0 : i32, i32
  }
  func.func @transform_6(%arg0: i32) -> (i32, i32, i32, i32) {
    %c0_i32 = arith.constant 0 : i32
    %c0_i32_0 = arith.constant 0 : i32
    %c0_i32_1 = arith.constant 0 : i32
    %c0_i32_2 = arith.constant 0 : i32
    return %arg0, %c0_i32, %c0_i32_0, %c0_i32_1 : i32, i32, i32, i32
  }
}

</mosaic_0001>

<llo_original>
// kernel: tpu_custom_call.1
$region0: #{tpu_custom_call.1}
  #allocation0 [shape = 'u32[]', space=smem, size = 0x4, offset = 0x4, fixed_abs, tag = 'smem constant byte address 0x4 - core index']
  #allocation1 [shape = 'u32[144,128]{1,0:T(1,128)}', space=vmem, size = 0x12000, scoped, tag = 'internal scratch']
  %s0 = inlined_call_operand.hbm [shape: f32[2,18,24,128], index: 0, kind: input, shape index: {}]
  %s1 = inlined_call_operand.hbm [shape: bf16[128,128], index: 1, kind: input, shape index: {}]
  %s2 = inlined_call_operand.hbm [shape: bf16[1152,128], index: 2, kind: input, shape index: {}]
  %s3 = inlined_call_operand.vmem [shape: f32[1,128], index: 3, kind: input, shape index: {}]
  %s4 = inlined_call_operand.hbm [shape: bf16[128,128], index: 4, kind: input, shape index: {}]
  %s5 = inlined_call_operand.vmem [shape: f32[1,128], index: 5, kind: input, shape index: {}]
  %s6 = inlined_call_operand.hbm [shape: f32[2,18,24,128], index: 6, kind: output, shape index: {}]
  %s7 = sld [smem:[#allocation0]]
  $region50: #{tpu_custom_call.1} parent=0
    _
  %s9 = ssub.s32 1, %s7
  %s10 = scalar_select 0, %s9, %s7
  $region1: #{tpu_custom_call.1} parent=0
    #allocation2 [shape = 'u8[442368]{0}', space=vmem, size = 0x6c000, scoped, tag = 'input window, operand 0, single buffered']
    #allocation3 [shape = 's32[1]{0}', space=sflag, size = 0x4, scoped, tag = 'scoped memory for tpu_custom_call.1']
    #allocation4 [shape = 's32[1]{0}', space=sflag, size = 0x4, scoped, tag = 'scoped memory for tpu_custom_call.1']
    #allocation5 [shape = 'u8[32768]{0}', space=vmem, size = 0x8000, scoped, tag = 'input window, operand 1, single buffered']
    #allocation6 [shape = 's32[1]{0}', space=sflag, size = 0x4, scoped, tag = 'scoped memory for tpu_custom_call.1']
    #allocation7 [shape = 'u8[294912]{0}', space=vmem, size = 0x48000, scoped, tag = 'input window, operand 2, single buffered']
    #allocation8 [shape = 'u8[32768]{0}', space=vmem, size = 0x8000, scoped, tag = 'input window, operand 4, single buffered']
    #allocation9 [shape = 's32[1]{0}', space=sflag, size = 0x4, scoped, tag = 'scoped memory for tpu_custom_call.1']
    #allocation10 [shape = 'u8[442368]{0}', space=vmem, size = 0x6c000, scoped, tag = 'output window, operand 0, single buffered']
    %11 = vsyncpa [#allocation3], 0
    %12 = vsyncpa [#allocation6], 0
    %13 = vsyncpa [#allocation9], 0
    %14 = vsyncpa [#allocation4], 0
    // Predicated region
    $region2: #{tpu_custom_call.1} parent=1 // pred_check
      _
    $region3: #{tpu_custom_call.1} parent=1 // pred_check_branch
      %16 = sbr.rel (0) target = $region5
    $region4: #{tpu_custom_call.1} parent=1 // pred_region
      %s18 = ssub.s32 13824, 13824
      %19 = vsyncadd [#allocation3], %s18
      %s20 = sshll.u32 [#allocation2], 4
      %s21 = int_to_ptr.vmem [resolvable:$true] %s20
      %26 = dma.hbm_to_vmem [thread:$0]  %s0, 13824, %s21, [#allocation3], 128, 128, 8
    $region5: #{tpu_custom_call.1} parent=1 // pred_fallthru
      _
    // Predicated region
    $region6: #{tpu_custom_call.1} parent=1 // pred_check
      _
    $region7: #{tpu_custom_call.1} parent=1 // pred_check_branch
      %28 = sbr.rel (0) target = $region9
    $region8: #{tpu_custom_call.1} parent=1 // pred_region
      %s30 = ssub.s32 1024, 1024
      %31 = vsyncadd [#allocation6], %s30
      %s32 = sshll.u32 [#allocation5], 4
      %s33 = int_to_ptr.vmem [resolvable:$true] %s32
      %38 = dma.hbm_to_vmem [thread:$0]  %s1, 1024, %s33, [#allocation6], 64, 64, 4
    $region9: #{tpu_custom_call.1} parent=1 // pred_fallthru
      _
    // Predicated region
    $region10: #{tpu_custom_call.1} parent=1 // pred_check
      _
    $region11: #{tpu_custom_call.1} parent=1 // pred_check_branch
      %40 = sbr.rel (0) target = $region13
    $region12: #{tpu_custom_call.1} parent=1 // pred_region
      %s42 = ssub.s32 9216, 9216
      %43 = vsyncadd [#allocation6], %s42
      %s44 = sshll.u32 [#allocation7], 4
      %s45 = int_to_ptr.vmem [resolvable:$true] %s44
      %50 = dma.hbm_to_vmem [thread:$0]  %s2, 9216, %s45, [#allocation6], 64, 64, 4
    $region13: #{tpu_custom_call.1} parent=1 // pred_fallthru
      _
    // Predicated region
    $region14: #{tpu_custom_call.1} parent=1 // pred_check
      _
    $region15: #{tpu_custom_call.1} parent=1 // pred_check_branch
      %52 = sbr.rel (0) target = $region17
    $region16: #{tpu_custom_call.1} parent=1 // pred_region
      _
    $region17: #{tpu_custom_call.1} parent=1 // pred_fallthru
      _
    // Predicated region
    $region18: #{tpu_custom_call.1} parent=1 // pred_check
      _
    $region19: #{tpu_custom_call.1} parent=1 // pred_check_branch
      %54 = sbr.rel (0) target = $region21
    $region20: #{tpu_custom_call.1} parent=1 // pred_region
      %s56 = ssub.s32 1024, 1024
      %57 = vsyncadd [#allocation9], %s56
      %s58 = sshll.u32 [#allocation8], 4
      %s59 = int_to_ptr.vmem [resolvable:$true] %s58
      %64 = dma.hbm_to_vmem [thread:$0]  %s4, 1024, %s59, [#allocation9], 64, 64, 4
    $region21: #{tpu_custom_call.1} parent=1 // pred_fallthru
      _
    // Predicated region
    $region22: #{tpu_custom_call.1} parent=1 // pred_check
      _
    $region23: #{tpu_custom_call.1} parent=1 // pred_check_branch
      %66 = sbr.rel (0) target = $region25
    $region24: #{tpu_custom_call.1} parent=1 // pred_region
      _
    $region25: #{tpu_custom_call.1} parent=1 // pred_fallthru
      _
    // Predicated region
    $region26: #{tpu_custom_call.1} parent=1 // pred_check
      _
    $region27: #{tpu_custom_call.1} parent=1 // pred_check_branch
      %68 = sbr.rel (0) target = $region29
    $region28: #{tpu_custom_call.1} parent=1 // pred_region
      %69 = dma.done [#allocation3], 13824
    $region29: #{tpu_custom_call.1} parent=1 // pred_fallthru
      _
    // Predicated region
    $region30: #{tpu_custom_call.1} parent=1 // pred_check
      _
    $region31: #{tpu_custom_call.1} parent=1 // pred_check_branch
      %71 = sbr.rel (0) target = $region33
    $region32: #{tpu_custom_call.1} parent=1 // pred_region
      %72 = dma.done [#allocation6], 1024
    $region33: #{tpu_custom_call.1} parent=1 // pred_fallthru
      _
    // Predicated region
    $region34: #{tpu_custom_call.1} parent=1 // pred_check
      _
    $region35: #{tpu_custom_call.1} parent=1 // pred_check_branch
      %74 = sbr.rel (0) target = $region37
    $region36: #{tpu_custom_call.1} parent=1 // pred_region
      %75 = dma.done [#allocation6], 9216
    $region37: #{tpu_custom_call.1} parent=1 // pred_fallthru
      _
    // Predicated region
    $region38: #{tpu_custom_call.1} parent=1 // pred_check
      _
    $region39: #{tpu_custom_call.1} parent=1 // pred_check_branch
      %77 = sbr.rel (0) target = $region41
    $region40: #{tpu_custom_call.1} parent=1 // pred_region
      %78 = dma.done [#allocation9], 1024
    $region41: #{tpu_custom_call.1} parent=1 // pred_fallthru
      _
    %v80 = vld [vmem:[#allocation2] sm:$0xff]
    %v81 = vld [vmem:[#allocation2 + $0x8] sm:$0xff]
    %v82 = vld [vmem:[#allocation2 + $0x10] sm:$0xff]
    %v83 = vld [vmem:[#allocation2 + $0x18] sm:$0xff]
    %v84 = vld [vmem:[#allocation2 + $0x20] sm:$0xff]
    %v85 = vld [vmem:[#allocation2 + $0x28] sm:$0xff]
    %v86 = vld [vmem:[#allocation2 + $0x30] sm:$0xff]
    %v87 = vld [vmem:[#allocation2 + $0x38] sm:$0xff]
    %v88 = vld [vmem:[#allocation2 + $0x40] sm:$0xff]
    %v89 = vld [vmem:[#allocation2 + $0x48] sm:$0xff]
    %v90 = vld [vmem:[#allocation2 + $0x50] sm:$0xff]
    %v91 = vld [vmem:[#allocation2 + $0x58] sm:$0xff]
    %v92 = vld [vmem:[#allocation2 + $0x60] sm:$0xff]
    %v93 = vld [vmem:[#allocation2 + $0x68] sm:$0xff]
    %v94 = vld [vmem:[#allocation2 + $0x70] sm:$0xff]
    %v95 = vld [vmem:[#allocation2 + $0x78] sm:$0xff]
    %v96 = vld [vmem:[#allocation2 + $0x80] sm:$0xff]
    %v97 = vld [vmem:[#allocation2 + $0x88] sm:$0xff]
    %v98 = vld [vmem:[#allocation2 + $0x90] sm:$0xff]
    %v99 = vld [vmem:[#allocation2 + $0x98] sm:$0xff]
    %v100 = vld [vmem:[#allocation2 + $0xa0] sm:$0xff]
    %v101 = vld [vmem:[#allocation2 + $0xa8] sm:$0xff]
    %v102 = vld [vmem:[#allocation2 + $0xb0] sm:$0xff]
    %v103 = vld [vmem:[#allocation2 + $0xb8] sm:$0xff]
    %v104 = vld [vmem:[#allocation2 + $0xc0] sm:$0xff]
    %v105 = vld [vmem:[#allocation2 + $0xc8] sm:$0xff]
    %v106 = vld [vmem:[#allocation2 + $0xd0] sm:$0xff]
    %v107 = vld [vmem:[#allocation2 + $0xd8] sm:$0xff]
    %v108 = vld [vmem:[#allocation2 + $0xe0] sm:$0xff]
    %v109 = vld [vmem:[#allocation2 + $0xe8] sm:$0xff]
    %v110 = vld [vmem:[#allocation2 + $0xf0] sm:$0xff]
    %v111 = vld [vmem:[#allocation2 + $0xf8] sm:$0xff]
    %v112 = vld [vmem:[#allocation2 + $0x100] sm:$0xff]
    %v113 = vld [vmem:[#allocation2 + $0x108] sm:$0xff]
    %v114 = vld [vmem:[#allocation2 + $0x110] sm:$0xff]
    %v115 = vld [vmem:[#allocation2 + $0x118] sm:$0xff]
    %v116 = vld [vmem:[#allocation2 + $0x120] sm:$0xff]
    %v117 = vld [vmem:[#allocation2 + $0x128] sm:$0xff]
    %v118 = vld [vmem:[#allocation2 + $0x130] sm:$0xff]
    %v119 = vld [vmem:[#allocation2 + $0x138] sm:$0xff]
    %v120 = vld [vmem:[#allocation2 + $0x140] sm:$0xff]
    %v121 = vld [vmem:[#allocation2 + $0x148] sm:$0xff]
    %v122 = vld [vmem:[#allocation2 + $0x150] sm:$0xff]
    %v123 = vld [vmem:[#allocation2 + $0x158] sm:$0xff]
    %v124 = vld [vmem:[#allocation2 + $0x160] sm:$0xff]
    %v125 = vld [vmem:[#allocation2 + $0x168] sm:$0xff]
    %v126 = vld [vmem:[#allocation2 + $0x170] sm:$0xff]
    %v127 = vld [vmem:[#allocation2 + $0x178] sm:$0xff]
    %v128 = vld [vmem:[#allocation2 + $0x180] sm:$0xff]
    %v129 = vld [vmem:[#allocation2 + $0x188] sm:$0xff]
    %v130 = vld [vmem:[#allocation2 + $0x190] sm:$0xff]
    %v131 = vld [vmem:[#allocation2 + $0x198] sm:$0xff]
    %v132 = vld [vmem:[#allocation2 + $0x1a0] sm:$0xff]
    %v133 = vld [vmem:[#allocation2 + $0x1a8] sm:$0xff]
    %v134 = vld [vmem:[#allocation2 + $0x1b0] sm:$0xff]
    %v135 = vld [vmem:[#allocation2 + $0x1b8] sm:$0xff]
    %v136 = vld [vmem:[#allocation2 + $0x1c0] sm:$0xff]
    %v137 = vld [vmem:[#allocation2 + $0x1c8] sm:$0xff]
    %v138 = vld [vmem:[#allocation2 + $0x1d0] sm:$0xff]
    %v139 = vld [vmem:[#allocation2 + $0x1d8] sm:$0xff]
    %v140 = vld [vmem:[#allocation2 + $0x1e0] sm:$0xff]
    %v141 = vld [vmem:[#allocation2 + $0x1e8] sm:$0xff]
    %v142 = vld [vmem:[#allocation2 + $0x1f0] sm:$0xff]
    %v143 = vld [vmem:[#allocation2 + $0x1f8] sm:$0xff]
    %v144 = vld [vmem:[#allocation2 + $0x200] sm:$0xff]
    %v145 = vld [vmem:[#allocation2 + $0x208] sm:$0xff]
    %v146 = vld [vmem:[#allocation2 + $0x210] sm:$0xff]
    %v147 = vld [vmem:[#allocation2 + $0x218] sm:$0xff]
    %v148 = vld [vmem:[#allocation2 + $0x220] sm:$0xff]
    %v149 = vld [vmem:[#allocation2 + $0x228] sm:$0xff]
    %v150 = vld [vmem:[#allocation2 + $0x230] sm:$0xff]
    %v151 = vld [vmem:[#allocation2 + $0x238] sm:$0xff]
    %v152 = vld [vmem:[#allocation2 + $0x240] sm:$0xff]
    %v153 = vld [vmem:[#allocation2 + $0x248] sm:$0xff]
    %v154 = vld [vmem:[#allocation2 + $0x250] sm:$0xff]
    %v155 = vld [vmem:[#allocation2 + $0x258] sm:$0xff]
    %v156 = vld [vmem:[#allocation2 + $0x260] sm:$0xff]
    %v157 = vld [vmem:[#allocation2 + $0x268] sm:$0xff]
    %v158 = vld [vmem:[#allocation2 + $0x270] sm:$0xff]
    %v159 = vld [vmem:[#allocation2 + $0x278] sm:$0xff]
    %v160 = vld [vmem:[#allocation2 + $0x280] sm:$0xff]
    %v161 = vld [vmem:[#allocation2 + $0x288] sm:$0xff]
    %v162 = vld [vmem:[#allocation2 + $0x290] sm:$0xff]
    %v163 = vld [vmem:[#allocation2 + $0x298] sm:$0xff]
    %v164 = vld [vmem:[#allocation2 + $0x2a0] sm:$0xff]
    %v165 = vld [vmem:[#allocation2 + $0x2a8] sm:$0xff]
    %v166 = vld [vmem:[#allocation2 + $0x2b0] sm:$0xff]
    %v167 = vld [vmem:[#allocation2 + $0x2b8] sm:$0xff]
    %v168 = vld [vmem:[#allocation2 + $0x2c0] sm:$0xff]
    %v169 = vld [vmem:[#allocation2 + $0x2c8] sm:$0xff]
    %v170 = vld [vmem:[#allocation2 + $0x2d0] sm:$0xff]
    %v171 = vld [vmem:[#allocation2 + $0x2d8] sm:$0xff]
    %v172 = vld [vmem:[#allocation2 + $0x2e0] sm:$0xff]
    %v173 = vld [vmem:[#allocation2 + $0x2e8] sm:$0xff]
    %v174 = vld [vmem:[#allocation2 + $0x2f0] sm:$0xff]
    %v175 = vld [vmem:[#allocation2 + $0x2f8] sm:$0xff]
    %v176 = vld [vmem:[#allocation2 + $0x300] sm:$0xff]
    %v177 = vld [vmem:[#allocation2 + $0x308] sm:$0xff]
    %v178 = vld [vmem:[#allocation2 + $0x310] sm:$0xff]
    %v179 = vld [vmem:[#allocation2 + $0x318] sm:$0xff]
    %v180 = vld [vmem:[#allocation2 + $0x320] sm:$0xff]
    %v181 = vld [vmem:[#allocation2 + $0x328] sm:$0xff]
    %v182 = vld [vmem:[#allocation2 + $0x330] sm:$0xff]
    %v183 = vld [vmem:[#allocation2 + $0x338] sm:$0xff]
    %v184 = vld [vmem:[#allocation2 + $0x340] sm:$0xff]
    %v185 = vld [vmem:[#allocation2 + $0x348] sm:$0xff]
    %v186 = vld [vmem:[#allocation2 + $0x350] sm:$0xff]
    %v187 = vld [vmem:[#allocation2 + $0x358] sm:$0xff]
    %v188 = vpack.c.bf16 %v81, %v80
    %v189 = vpack.c.bf16 %v83, %v82
    %v190 = vpack.c.bf16 %v85, %v84
    %v191 = vpack.c.bf16 %v87, %v86
    %v192 = vpack.c.bf16 %v89, %v88
    %v193 = vpack.c.bf16 %v91, %v90
    %v194 = vpack.c.bf16 %v93, %v92
    %v195 = vpack.c.bf16 %v95, %v94
    %v196 = vpack.c.bf16 %v97, %v96
    %v197 = vpack.c.bf16 %v99, %v98
    %v198 = vpack.c.bf16 %v101, %v100
    %v199 = vpack.c.bf16 %v103, %v102
    %v200 = vpack.c.bf16 %v105, %v104
    %v201 = vpack.c.bf16 %v107, %v106
    %v202 = vpack.c.bf16 %v109, %v108
    %v203 = vpack.c.bf16 %v111, %v110
    %v204 = vpack.c.bf16 %v113, %v112
    %v205 = vpack.c.bf16 %v115, %v114
    %v206 = vpack.c.bf16 %v117, %v116
    %v207 = vpack.c.bf16 %v119, %v118
    %v208 = vpack.c.bf16 %v121, %v120
    %v209 = vpack.c.bf16 %v123, %v122
    %v210 = vpack.c.bf16 %v125, %v124
    %v211 = vpack.c.bf16 %v127, %v126
    %v212 = vpack.c.bf16 %v129, %v128
    %v213 = vpack.c.bf16 %v131, %v130
    %v214 = vpack.c.bf16 %v133, %v132
    %v215 = vpack.c.bf16 %v135, %v134
    %v216 = vpack.c.bf16 %v137, %v136
    %v217 = vpack.c.bf16 %v139, %v138
    %v218 = vpack.c.bf16 %v141, %v140
    %v219 = vpack.c.bf16 %v143, %v142
    %v220 = vpack.c.bf16 %v145, %v144
    %v221 = vpack.c.bf16 %v147, %v146
    %v222 = vpack.c.bf16 %v149, %v148
    %v223 = vpack.c.bf16 %v151, %v150
    %v224 = vpack.c.bf16 %v153, %v152
    %v225 = vpack.c.bf16 %v155, %v154
    %v226 = vpack.c.bf16 %v157, %v156
    %v227 = vpack.c.bf16 %v159, %v158
    %v228 = vpack.c.bf16 %v161, %v160
    %v229 = vpack.c.bf16 %v163, %v162
    %v230 = vpack.c.bf16 %v165, %v164
    %v231 = vpack.c.bf16 %v167, %v166
    %v232 = vpack.c.bf16 %v169, %v168
    %v233 = vpack.c.bf16 %v171, %v170
    %v234 = vpack.c.bf16 %v173, %v172
    %v235 = vpack.c.bf16 %v175, %v174
    %v236 = vpack.c.bf16 %v177, %v176
    %v237 = vpack.c.bf16 %v179, %v178
    %v238 = vpack.c.bf16 %v181, %v180
    %v239 = vpack.c.bf16 %v183, %v182
    %v240 = vpack.c.bf16 %v185, %v184
    %v241 = vpack.c.bf16 %v187, %v186
    %v242 = vld [vmem:[#allocation5] sm:$0xf]
    %v243 = vld [vmem:[#allocation5 + $0x4] sm:$0xf]
    %v244 = vld [vmem:[#allocation5 + $0x8] sm:$0xf]
    %v245 = vld [vmem:[#allocation5 + $0xc] sm:$0xf]
    %v246 = vld [vmem:[#allocation5 + $0x10] sm:$0xf]
    %v247 = vld [vmem:[#allocation5 + $0x14] sm:$0xf]
    %v248 = vld [vmem:[#allocation5 + $0x18] sm:$0xf]
    %v249 = vld [vmem:[#allocation5 + $0x1c] sm:$0xf]
    %v250 = vld [vmem:[#allocation5 + $0x20] sm:$0xf]
    %v251 = vld [vmem:[#allocation5 + $0x24] sm:$0xf]
    %v252 = vld [vmem:[#allocation5 + $0x28] sm:$0xf]
    %v253 = vld [vmem:[#allocation5 + $0x2c] sm:$0xf]
    %v254 = vld [vmem:[#allocation5 + $0x30] sm:$0xf]
    %v255 = vld [vmem:[#allocation5 + $0x34] sm:$0xf]
    %v256 = vld [vmem:[#allocation5 + $0x38] sm:$0xf]
    %v257 = vld [vmem:[#allocation5 + $0x3c] sm:$0xf]
    %v274 = vunpack.c.l.b16 %v242
    %v275 = vunpack.c.l.b16 %v243
    %v276 = vunpack.c.l.b16 %v244
    %v277 = vunpack.c.l.b16 %v245
    %v278 = vunpack.c.l.b16 %v246
    %v279 = vunpack.c.l.b16 %v247
    %v280 = vunpack.c.l.b16 %v248
    %v281 = vunpack.c.l.b16 %v249
    %v282 = vunpack.c.l.b16 %v250
    %v283 = vunpack.c.l.b16 %v251
    %v284 = vunpack.c.l.b16 %v252
    %v285 = vunpack.c.l.b16 %v253
    %v286 = vunpack.c.l.b16 %v254
    %v287 = vunpack.c.l.b16 %v255
    %v288 = vunpack.c.l.b16 %v256
    %v289 = vunpack.c.l.b16 %v257
    %v290 = vpack.c.b16 %v275, %v274
    %v291 = vpack.c.b16 %v277, %v276
    %v292 = vpack.c.b16 %v279, %v278
    %v293 = vpack.c.b16 %v281, %v280
    %v294 = vpack.c.b16 %v283, %v282
    %v295 = vpack.c.b16 %v285, %v284
    %v296 = vpack.c.b16 %v287, %v286
    %v297 = vpack.c.b16 %v289, %v288
    %306 = vmatprep.subr.bf16.mxu0 0
    %307 = vmatpush1.bf16.msra.mxu0 %v290
    %308 = vmatprep.subr.bf16.mxu0 0
    %309 = vmatpush1.bf16.msra.mxu0 %v291
    %310 = vmatprep.subr.bf16.mxu0 0
    %311 = vmatpush1.bf16.msra.mxu0 %v292
    %312 = vmatprep.subr.bf16.mxu0 0
    %313 = vmatpush1.bf16.msra.mxu0 %v293
    %314 = vmatprep.subr.bf16.mxu0 0
    %315 = vmatpush1.bf16.msra.mxu0 %v294
    %316 = vmatprep.subr.bf16.mxu0 0
    %317 = vmatpush1.bf16.msra.mxu0 %v295
    %318 = vmatprep.subr.bf16.mxu0 0
    %319 = vmatpush1.bf16.msra.mxu0 %v296
    %320 = vmatprep.subr.bf16.mxu0 0
    %321 = vmatpush1.bf16.msra.mxu0 %v297
    %322 = vmatprep.subr.bf16.mxu0 0
    %323 = vmatpush1.bf16.msra.mxu0 0
    %324 = vmatprep.subr.bf16.mxu0 0
    %325 = vmatpush1.bf16.msra.mxu0 0
    %326 = vmatprep.subr.bf16.mxu0 0
    %327 = vmatpush1.bf16.msra.mxu0 0
    %328 = vmatprep.subr.bf16.mxu0 0
    %329 = vmatpush1.bf16.msra.mxu0 0
    %330 = vmatprep.subr.bf16.mxu0 0
    %331 = vmatpush1.bf16.msra.mxu0 0
    %332 = vmatprep.subr.bf16.mxu0 0
    %333 = vmatpush1.bf16.msra.mxu0 0
    %334 = vmatprep.subr.bf16.mxu0 0
    %335 = vmatpush1.bf16.msra.mxu0 0
    %336 = vmatprep.subr.bf16.mxu0 0
    %337 = vmatpush1.bf16.msra.mxu0 0
    %338 = vmatprep.mubr.bf16.mxu0 0
    %339 = vmatmul.mubr.bf16.gmra.mrb[0].mxu0 %v188
    %v340 = vpop.f32.mrb[0].mxu0
    %v341 = vadd.f32 0.0, %v340
    %v342 = vpop.f32.mrb[0].mxu0
    %v343 = vpop.f32.mrb[0].mxu0
    %v344 = vadd.f32 0.0, %v343
    %v345 = vpop.f32.mrb[0].mxu0
    %346 = vmatprep.mubr.bf16.mxu0 0
    %347 = vmatmul.mubr.bf16.gmra.mrb[0].mxu0 %v189
    %v348 = vpop.f32.mrb[0].mxu0
    %v349 = vadd.f32 0.0, %v348
    %v350 = vpop.f32.mrb[0].mxu0
    %v351 = vpop.f32.mrb[0].mxu0
    %v352 = vadd.f32 0.0, %v351
    %v353 = vpop.f32.mrb[0].mxu0
    %354 = vmatprep.mubr.bf16.mxu0 0
    %355 = vmatmul.mubr.bf16.gmra.mrb[0].mxu0 %v190
    %v356 = vpop.f32.mrb[0].mxu0
    %v357 = vadd.f32 0.0, %v356
    %v358 = vpop.f32.mrb[0].mxu0
    %v359 = vpop.f32.mrb[0].mxu0
    %v360 = vadd.f32 0.0, %v359
    %v361 = vpop.f32.mrb[0].mxu0
    %362 = vmatprep.mubr.bf16.mxu0 0
    %363 = vmatmul.mubr.bf16.gmra.mrb[0].mxu0 %v191
    %v364 = vpop.f32.mrb[0].mxu0
    %v365 = vadd.f32 0.0, %v364
    %v366 = vpop.f32.mrb[0].mxu0
    %v367 = vpop.f32.mrb[0].mxu0
    %v368 = vadd.f32 0.0, %v367
    %v369 = vpop.f32.mrb[0].mxu0
    %370 = vmatprep.mubr.bf16.mxu0 0
    %371 = vmatmul.mubr.bf16.gmra.mrb[0].mxu0 %v192
    %v372 = vpop.f32.mrb[0].mxu0
    %v373 = vadd.f32 0.0, %v372
    %v374 = vpop.f32.mrb[0].mxu0
    %v375 = vpop.f32.mrb[0].mxu0
    %v376 = vadd.f32 0.0, %v375
    %v377 = vpop.f32.mrb[0].mxu0
    %378 = vmatprep.mubr.bf16.mxu0 0
    %379 = vmatmul.mubr.bf16.gmra.mrb[0].mxu0 %v193
    %v380 = vpop.f32.mrb[0].mxu0
    %v381 = vadd.f32 0.0, %v380
    %v382 = vpop.f32.mrb[0].mxu0
    %v383 = vpop.f32.mrb[0].mxu0
    %v384 = vadd.f32 0.0, %v383
    %v385 = vpop.f32.mrb[0].mxu0
    %386 = vmatprep.mubr.bf16.mxu0 0
    %387 = vmatmul.mubr.bf16.gmra.mrb[0].mxu0 %v194
    %v388 = vpop.f32.mrb[0].mxu0
    %v389 = vadd.f32 0.0, %v388
    %v390 = vpop.f32.mrb[0].mxu0
    %v391 = vpop.f32.mrb[0].mxu0
    %v392 = vadd.f32 0.0, %v391
    %v393 = vpop.f32.mrb[0].mxu0
    %394 = vmatprep.mubr.bf16.mxu0 0
    %395 = vmatmul.mubr.bf16.gmra.mrb[0].mxu0 %v195
    %v396 = vpop.f32.mrb[0].mxu0
    %v397 = vadd.f32 0.0, %v396
    %v398 = vpop.f32.mrb[0].mxu0
    %v399 = vpop.f32.mrb[0].mxu0
    %v400 = vadd.f32 0.0, %v399
    %v401 = vpop.f32.mrb[0].mxu0
    %402 = vmatprep.mubr.bf16.mxu0 0
    %403 = vmatmul.mubr.bf16.gmra.mrb[0].mxu0 %v196
    %v404 = vpop.f32.mrb[0].mxu0
    %v405 = vadd.f32 0.0, %v404
    %v406 = vpop.f32.mrb[0].mxu0
    %v407 = vpop.f32.mrb[0].mxu0
    %v408 = vadd.f32 0.0, %v407
    %v409 = vpop.f32.mrb[0].mxu0
    %410 = vmatprep.mubr.bf16.mxu0 0
    %411 = vmatmul.mubr.bf16.gmra.mrb[0].mxu0 %v197
    %v412 = vpop.f32.mrb[0].mxu0
    %v413 = vadd.f32 0.0, %v412
    %v414 = vpop.f32.mrb[0].mxu0
    %v415 = vpop.f32.mrb[0].mxu0
    %v416 = vadd.f32 0.0, %v415
    %v417 = vpop.f32.mrb[0].mxu0
    %418 = vmatprep.mubr.bf16.mxu0 0
    %419 = vmatmul.mubr.bf16.gmra.mrb[0].mxu0 %v198
    %v420 = vpop.f32.mrb[0].mxu0
    %v421 = vadd.f32 0.0, %v420
    %v422 = vpop.f32.mrb[0].mxu0
    %v423 = vpop.f32.mrb[0].mxu0
    %v424 = vadd.f32 0.0, %v423
    %v425 = vpop.f32.mrb[0].mxu0
    %426 = vmatprep.mubr.bf16.mxu0 0
    %427 = vmatmul.mubr.bf16.gmra.mrb[0].mxu0 %v199
    %v428 = vpop.f32.mrb[0].mxu0
    %v429 = vadd.f32 0.0, %v428
    %v430 = vpop.f32.mrb[0].mxu0
    %v431 = vpop.f32.mrb[0].mxu0
    %v432 = vadd.f32 0.0, %v431
    %v433 = vpop.f32.mrb[0].mxu0
    %434 = vmatprep.mubr.bf16.mxu0 0
    %435 = vmatmul.mubr.bf16.gmra.mrb[0].mxu0 %v200
    %v436 = vpop.f32.mrb[0].mxu0
    %v437 = vadd.f32 0.0, %v436
    %v438 = vpop.f32.mrb[0].mxu0
    %v439 = vpop.f32.mrb[0].mxu0
    %v440 = vadd.f32 0.0, %v439
    %v441 = vpop.f32.mrb[0].mxu0
    %442 = vmatprep.mubr.bf16.mxu0 0
    %443 = vmatmul.mubr.bf16.gmra.mrb[0].mxu0 %v201
    %v444 = vpop.f32.mrb[0].mxu0
    %v445 = vadd.f32 0.0, %v444
    %v446 = vpop.f32.mrb[0].mxu0
    %v447 = vpop.f32.mrb[0].mxu0
    %v448 = vadd.f32 0.0, %v447
    %v449 = vpop.f32.mrb[0].mxu0
    %450 = vmatprep.mubr.bf16.mxu0 0
    %451 = vmatmul.mubr.bf16.gmra.mrb[0].mxu0 %v202
    %v452 = vpop.f32.mrb[0].mxu0
    %v453 = vadd.f32 0.0, %v452
    %v454 = vpop.f32.mrb[0].mxu0
    %v455 = vpop.f32.mrb[0].mxu0
    %v456 = vadd.f32 0.0, %v455
    %v457 = vpop.f32.mrb[0].mxu0
    %458 = vmatprep.mubr.bf16.mxu0 0
    %459 = vmatmul.mubr.bf16.gmra.mrb[0].mxu0 %v203
    %v460 = vpop.f32.mrb[0].mxu0
    %v461 = vadd.f32 0.0, %v460
    %v462 = vpop.f32.mrb[0].mxu0
    %v463 = vpop.f32.mrb[0].mxu0
    %v464 = vadd.f32 0.0, %v463
    %v465 = vpop.f32.mrb[0].mxu0
    %466 = vmatprep.mubr.bf16.mxu0 0
    %467 = vmatmul.mubr.bf16.gmra.mrb[0].mxu0 %v204
    %v468 = vpop.f32.mrb[0].mxu0
    %v469 = vadd.f32 0.0, %v468
    %v470 = vpop.f32.mrb[0].mxu0
    %v471 = vpop.f32.mrb[0].mxu0
    %v472 = vadd.f32 0.0, %v471
    %v473 = vpop.f32.mrb[0].mxu0
    %474 = vmatprep.mubr.bf16.mxu0 0
    %475 = vmatmul.mubr.bf16.gmra.mrb[0].mxu0 %v205
    %v476 = vpop.f32.mrb[0].mxu0
    %v477 = vadd.f32 0.0, %v476
    %v478 = vpop.f32.mrb[0].mxu0
    %v479 = vpop.f32.mrb[0].mxu0
    %v480 = vadd.f32 0.0, %v479
    %v481 = vpop.f32.mrb[0].mxu0
    %482 = vmatprep.mubr.bf16.mxu0 0
    %483 = vmatmul.mubr.bf16.gmra.mrb[0].mxu0 %v206
    %v484 = vpop.f32.mrb[0].mxu0
    %v485 = vadd.f32 0.0, %v484
    %v486 = vpop.f32.mrb[0].mxu0
    %v487 = vpop.f32.mrb[0].mxu0
    %v488 = vadd.f32 0.0, %v487
    %v489 = vpop.f32.mrb[0].mxu0
    %490 = vmatprep.mubr.bf16.mxu0 0
    %491 = vmatmul.mubr.bf16.gmra.mrb[0].mxu0 %v207
    %v492 = vpop.f32.mrb[0].mxu0
    %v493 = vadd.f32 0.0, %v492
    %v494 = vpop.f32.mrb[0].mxu0
    %v495 = vpop.f32.mrb[0].mxu0
    %v496 = vadd.f32 0.0, %v495
    %v497 = vpop.f32.mrb[0].mxu0
    %498 = vmatprep.mubr.bf16.mxu0 0
    %499 = vmatmul.mubr.bf16.gmra.mrb[0].mxu0 %v208
    %v500 = vpop.f32.mrb[0].mxu0
    %v501 = vadd.f32 0.0, %v500
    %v502 = vpop.f32.mrb[0].mxu0
    %v503 = vpop.f32.mrb[0].mxu0
    %v504 = vadd.f32 0.0, %v503
    %v505 = vpop.f32.mrb[0].mxu0
    %506 = vmatprep.mubr.bf16.mxu0 0
    %507 = vmatmul.mubr.bf16.gmra.mrb[0].mxu0 %v209
    %v508 = vpop.f32.mrb[0].mxu0
    %v509 = vadd.f32 0.0, %v508
    %v510 = vpop.f32.mrb[0].mxu0
    %v511 = vpop.f32.mrb[0].mxu0
    %v512 = vadd.f32 0.0, %v511
    %v513 = vpop.f32.mrb[0].mxu0
    %514 = vmatprep.mubr.bf16.mxu0 0
    %515 = vmatmul.mubr.bf16.gmra.mrb[0].mxu0 %v210
    %v516 = vpop.f32.mrb[0].mxu0
    %v517 = vadd.f32 0.0, %v516
    %v518 = vpop.f32.mrb[0].mxu0
    %v519 = vpop.f32.mrb[0].mxu0
    %v520 = vadd.f32 0.0, %v519
    %v521 = vpop.f32.mrb[0].mxu0
    %522 = vmatprep.mubr.bf16.mxu0 0
    %523 = vmatmul.mubr.bf16.gmra.mrb[0].mxu0 %v211
    %v524 = vpop.f32.mrb[0].mxu0
    %v525 = vadd.f32 0.0, %v524
    %v526 = vpop.f32.mrb[0].mxu0
    %v527 = vpop.f32.mrb[0].mxu0
    %v528 = vadd.f32 0.0, %v527
    %v529 = vpop.f32.mrb[0].mxu0
    %530 = vmatprep.mubr.bf16.mxu0 0
    %531 = vmatmul.mubr.bf16.gmra.mrb[0].mxu0 %v212
    %v532 = vpop.f32.mrb[0].mxu0
    %v533 = vadd.f32 0.0, %v532
    %v534 = vpop.f32.mrb[0].mxu0
    %v535 = vpop.f32.mrb[0].mxu0
    %v536 = vadd.f32 0.0, %v535
    %v537 = vpop.f32.mrb[0].mxu0
    %538 = vmatprep.mubr.bf16.mxu0 0
    %539 = vmatmul.mubr.bf16.gmra.mrb[0].mxu0 %v213
    %v540 = vpop.f32.mrb[0].mxu0
    %v541 = vadd.f32 0.0, %v540
    %v542 = vpop.f32.mrb[0].mxu0
    %v543 = vpop.f32.mrb[0].mxu0
    %v544 = vadd.f32 0.0, %v543
    %v545 = vpop.f32.mrb[0].mxu0
    %546 = vmatprep.mubr.bf16.mxu0 0
    %547 = vmatmul.mubr.bf16.gmra.mrb[0].mxu0 %v214
    %v548 = vpop.f32.mrb[0].mxu0
    %v549 = vadd.f32 0.0, %v548
    %v550 = vpop.f32.mrb[0].mxu0
    %v551 = vpop.f32.mrb[0].mxu0
    %v552 = vadd.f32 0.0, %v551
    %v553 = vpop.f32.mrb[0].mxu0
    %554 = vmatprep.mubr.bf16.mxu0 0
    %555 = vmatmul.mubr.bf16.gmra.mrb[0].mxu0 %v215
    %v556 = vpop.f32.mrb[0].mxu0
    %v557 = vadd.f32 0.0, %v556
    %v558 = vpop.f32.mrb[0].mxu0
    %v559 = vpop.f32.mrb[0].mxu0
    %v560 = vadd.f32 0.0, %v559
    %v561 = vpop.f32.mrb[0].mxu0
    %562 = vmatprep.mubr.bf16.mxu0 0
    %563 = vmatmul.mubr.bf16.gmra.mrb[0].mxu0 %v216
    %v564 = vpop.f32.mrb[0].mxu0
    %v565 = vadd.f32 0.0, %v564
    %v566 = vpop.f32.mrb[0].mxu0
    %v567 = vpop.f32.mrb[0].mxu0
    %v568 = vadd.f32 0.0, %v567
    %v569 = vpop.f32.mrb[0].mxu0
    %570 = vmatprep.mubr.bf16.mxu0 0
    %571 = vmatmul.mubr.bf16.gmra.mrb[0].mxu0 %v217
    %v572 = vpop.f32.mrb[0].mxu0
    %v573 = vadd.f32 0.0, %v572
    %v574 = vpop.f32.mrb[0].mxu0
    %v575 = vpop.f32.mrb[0].mxu0
    %v576 = vadd.f32 0.0, %v575
    %v577 = vpop.f32.mrb[0].mxu0
    %578 = vmatprep.mubr.bf16.mxu0 0
    %579 = vmatmul.mubr.bf16.gmra.mrb[0].mxu0 %v218
    %v580 = vpop.f32.mrb[0].mxu0
    %v581 = vadd.f32 0.0, %v580
    %v582 = vpop.f32.mrb[0].mxu0
    %v583 = vpop.f32.mrb[0].mxu0
    %v584 = vadd.f32 0.0, %v583
    %v585 = vpop.f32.mrb[0].mxu0
    %586 = vmatprep.mubr.bf16.mxu0 0
    %587 = vmatmul.mubr.bf16.gmra.mrb[0].mxu0 %v219
    %v588 = vpop.f32.mrb[0].mxu0
    %v589 = vadd.f32 0.0, %v588
    %v590 = vpop.f32.mrb[0].mxu0
    %v591 = vpop.f32.mrb[0].mxu0
    %v592 = vadd.f32 0.0, %v591
    %v593 = vpop.f32.mrb[0].mxu0
    %594 = vmatprep.mubr.bf16.mxu0 0
    %595 = vmatmul.mubr.bf16.gmra.mrb[0].mxu0 %v220
    %v596 = vpop.f32.mrb[0].mxu0
    %v597 = vadd.f32 0.0, %v596
    %v598 = vpop.f32.mrb[0].mxu0
    %v599 = vpop.f32.mrb[0].mxu0
    %v600 = vadd.f32 0.0, %v599
    %v601 = vpop.f32.mrb[0].mxu0
    %602 = vmatprep.mubr.bf16.mxu0 0
    %603 = vmatmul.mubr.bf16.gmra.mrb[0].mxu0 %v221
    %v604 = vpop.f32.mrb[0].mxu0
    %v605 = vadd.f32 0.0, %v604
    %v606 = vpop.f32.mrb[0].mxu0
    %v607 = vpop.f32.mrb[0].mxu0
    %v608 = vadd.f32 0.0, %v607
    %v609 = vpop.f32.mrb[0].mxu0
    %610 = vmatprep.mubr.bf16.mxu0 0
    %611 = vmatmul.mubr.bf16.gmra.mrb[0].mxu0 %v222
    %v612 = vpop.f32.mrb[0].mxu0
    %v613 = vadd.f32 0.0, %v612
    %v614 = vpop.f32.mrb[0].mxu0
    %v615 = vpop.f32.mrb[0].mxu0
    %v616 = vadd.f32 0.0, %v615
    %v617 = vpop.f32.mrb[0].mxu0
    %618 = vmatprep.mubr.bf16.mxu0 0
    %619 = vmatmul.mubr.bf16.gmra.mrb[0].mxu0 %v223
    %v620 = vpop.f32.mrb[0].mxu0
    %v621 = vadd.f32 0.0, %v620
    %v622 = vpop.f32.mrb[0].mxu0
    %v623 = vpop.f32.mrb[0].mxu0
    %v624 = vadd.f32 0.0, %v623
    %v625 = vpop.f32.mrb[0].mxu0
    %626 = vmatprep.mubr.bf16.mxu0 0
    %627 = vmatmul.mubr.bf16.gmra.mrb[0].mxu0 %v224
    %v628 = vpop.f32.mrb[0].mxu0
    %v629 = vadd.f32 0.0, %v628
    %v630 = vpop.f32.mrb[0].mxu0
    %v631 = vpop.f32.mrb[0].mxu0
    %v632 = vadd.f32 0.0, %v631
    %v633 = vpop.f32.mrb[0].mxu0
    %634 = vmatprep.mubr.bf16.mxu0 0
    %635 = vmatmul.mubr.bf16.gmra.mrb[0].mxu0 %v225
    %v636 = vpop.f32.mrb[0].mxu0
    %v637 = vadd.f32 0.0, %v636
    %v638 = vpop.f32.mrb[0].mxu0
    %v639 = vpop.f32.mrb[0].mxu0
    %v640 = vadd.f32 0.0, %v639
    %v641 = vpop.f32.mrb[0].mxu0
    %642 = vmatprep.mubr.bf16.mxu0 0
    %643 = vmatmul.mubr.bf16.gmra.mrb[0].mxu0 %v226
    %v644 = vpop.f32.mrb[0].mxu0
    %v645 = vadd.f32 0.0, %v644
    %v646 = vpop.f32.mrb[0].mxu0
    %v647 = vpop.f32.mrb[0].mxu0
    %v648 = vadd.f32 0.0, %v647
    %v649 = vpop.f32.mrb[0].mxu0
    %650 = vmatprep.mubr.bf16.mxu0 0
    %651 = vmatmul.mubr.bf16.gmra.mrb[0].mxu0 %v227
    %v652 = vpop.f32.mrb[0].mxu0
    %v653 = vadd.f32 0.0, %v652
    %v654 = vpop.f32.mrb[0].mxu0
    %v655 = vpop.f32.mrb[0].mxu0
    %v656 = vadd.f32 0.0, %v655
    %v657 = vpop.f32.mrb[0].mxu0
    %658 = vmatprep.mubr.bf16.mxu0 0
    %659 = vmatmul.mubr.bf16.gmra.mrb[0].mxu0 %v228
    %v660 = vpop.f32.mrb[0].mxu0
    %v661 = vadd.f32 0.0, %v660
    %v662 = vpop.f32.mrb[0].mxu0
    %v663 = vpop.f32.mrb[0].mxu0
    %v664 = vadd.f32 0.0, %v663
    %v665 = vpop.f32.mrb[0].mxu0
    %666 = vmatprep.mubr.bf16.mxu0 0
    %667 = vmatmul.mubr.bf16.gmra.mrb[0].mxu0 %v229
    %v668 = vpop.f32.mrb[0].mxu0
    %v669 = vadd.f32 0.0, %v668
    %v670 = vpop.f32.mrb[0].mxu0
    %v671 = vpop.f32.mrb[0].mxu0
    %v672 = vadd.f32 0.0, %v671
    %v673 = vpop.f32.mrb[0].mxu0
    %674 = vmatprep.mubr.bf16.mxu0 0
    %675 = vmatmul.mubr.bf16.gmra.mrb[0].mxu0 %v230
    %v676 = vpop.f32.mrb[0].mxu0
    %v677 = vadd.f32 0.0, %v676
    %v678 = vpop.f32.mrb[0].mxu0
    %v679 = vpop.f32.mrb[0].mxu0
    %v680 = vadd.f32 0.0, %v679
    %v681 = vpop.f32.mrb[0].mxu0
    %682 = vmatprep.mubr.bf16.mxu0 0
    %683 = vmatmul.mubr.bf16.gmra.mrb[0].mxu0 %v231
    %v684 = vpop.f32.mrb[0].mxu0
    %v685 = vadd.f32 0.0, %v684
    %v686 = vpop.f32.mrb[0].mxu0
    %v687 = vpop.f32.mrb[0].mxu0
    %v688 = vadd.f32 0.0, %v687
    %v689 = vpop.f32.mrb[0].mxu0
    %690 = vmatprep.mubr.bf16.mxu0 0
    %691 = vmatmul.mubr.bf16.gmra.mrb[0].mxu0 %v232
    %v692 = vpop.f32.mrb[0].mxu0
    %v693 = vadd.f32 0.0, %v692
    %v694 = vpop.f32.mrb[0].mxu0
    %v695 = vpop.f32.mrb[0].mxu0
    %v696 = vadd.f32 0.0, %v695
    %v697 = vpop.f32.mrb[0].mxu0
    %698 = vmatprep.mubr.bf16.mxu0 0
    %699 = vmatmul.mubr.bf16.gmra.mrb[0].mxu0 %v233
    %v700 = vpop.f32.mrb[0].mxu0
    %v701 = vadd.f32 0.0, %v700
    %v702 = vpop.f32.mrb[0].mxu0
    %v703 = vpop.f32.mrb[0].mxu0
    %v704 = vadd.f32 0.0, %v703
    %v705 = vpop.f32.mrb[0].mxu0
    %706 = vmatprep.mubr.bf16.mxu0 0
    %707 = vmatmul.mubr.bf16.gmra.mrb[0].mxu0 %v234
    %v708 = vpop.f32.mrb[0].mxu0
    %v709 = vadd.f32 0.0, %v708
    %v710 = vpop.f32.mrb[0].mxu0
    %v711 = vpop.f32.mrb[0].mxu0
    %v712 = vadd.f32 0.0, %v711
    %v713 = vpop.f32.mrb[0].mxu0
    %714 = vmatprep.mubr.bf16.mxu0 0
    %715 = vmatmul.mubr.bf16.gmra.mrb[0].mxu0 %v235
    %v716 = vpop.f32.mrb[0].mxu0
    %v717 = vadd.f32 0.0, %v716
    %v718 = vpop.f32.mrb[0].mxu0
    %v719 = vpop.f32.mrb[0].mxu0
    %v720 = vadd.f32 0.0, %v719
    %v721 = vpop.f32.mrb[0].mxu0
    %722 = vmatprep.mubr.bf16.mxu0 0
    %723 = vmatmul.mubr.bf16.gmra.mrb[0].mxu0 %v236
    %v724 = vpop.f32.mrb[0].mxu0
    %v725 = vadd.f32 0.0, %v724
    %v726 = vpop.f32.mrb[0].mxu0
    %v727 = vpop.f32.mrb[0].mxu0
    %v728 = vadd.f32 0.0, %v727
    %v729 = vpop.f32.mrb[0].mxu0
    %730 = vmatprep.mubr.bf16.mxu0 0
    %731 = vmatmul.mubr.bf16.gmra.mrb[0].mxu0 %v237
    %v732 = vpop.f32.mrb[0].mxu0
    %v733 = vadd.f32 0.0, %v732
    %v734 = vpop.f32.mrb[0].mxu0
    %v735 = vpop.f32.mrb[0].mxu0
    %v736 = vadd.f32 0.0, %v735
    %v737 = vpop.f32.mrb[0].mxu0
    %738 = vmatprep.mubr.bf16.mxu0 0
    %739 = vmatmul.mubr.bf16.gmra.mrb[0].mxu0 %v238
    %v740 = vpop.f32.mrb[0].mxu0
    %v741 = vadd.f32 0.0, %v740
    %v742 = vpop.f32.mrb[0].mxu0
    %v743 = vpop.f32.mrb[0].mxu0
    %v744 = vadd.f32 0.0, %v743
    %v745 = vpop.f32.mrb[0].mxu0
    %746 = vmatprep.mubr.bf16.mxu0 0
    %747 = vmatmul.mubr.bf16.gmra.mrb[0].mxu0 %v239
    %v748 = vpop.f32.mrb[0].mxu0
    %v749 = vadd.f32 0.0, %v748
    %v750 = vpop.f32.mrb[0].mxu0
    %v751 = vpop.f32.mrb[0].mxu0
    %v752 = vadd.f32 0.0, %v751
    %v753 = vpop.f32.mrb[0].mxu0
    %754 = vmatprep.mubr.bf16.mxu0 0
    %755 = vmatmul.mubr.bf16.gmra.mrb[0].mxu0 %v240
    %v756 = vpop.f32.mrb[0].mxu0
    %v757 = vadd.f32 0.0, %v756
    %v758 = vpop.f32.mrb[0].mxu0
    %v759 = vpop.f32.mrb[0].mxu0
    %v760 = vadd.f32 0.0, %v759
    %v761 = vpop.f32.mrb[0].mxu0
    %762 = vmatprep.mubr.bf16.mxu0 0
    %763 = vmatmul.mubr.bf16.gmra.mrb[0].mxu0 %v241
    %v764 = vpop.f32.mrb[0].mxu0
    %v765 = vadd.f32 0.0, %v764
    %v766 = vpop.f32.mrb[0].mxu0
    %v767 = vpop.f32.mrb[0].mxu0
    %v768 = vadd.f32 0.0, %v767
    %v769 = vpop.f32.mrb[0].mxu0
    %770 = vdwg.mxu0
    %v771 = vmax.f32 %v341, 0.0
    %v772 = vmax.f32 %v344, 0.0
    %v773 = vmax.f32 %v349, 0.0
    %v774 = vmax.f32 %v352, 0.0
    %v775 = vmax.f32 %v357, 0.0
    %v776 = vmax.f32 %v360, 0.0
    %v777 = vmax.f32 %v365, 0.0
    %v778 = vmax.f32 %v368, 0.0
    %v779 = vmax.f32 %v373, 0.0
    %v780 = vmax.f32 %v376, 0.0
    %v781 = vmax.f32 %v381, 0.0
    %v782 = vmax.f32 %v384, 0.0
    %v783 = vmax.f32 %v389, 0.0
    %v784 = vmax.f32 %v392, 0.0
    %v785 = vmax.f32 %v397, 0.0
    %v786 = vmax.f32 %v400, 0.0
    %v787 = vmax.f32 %v405, 0.0
    %v788 = vmax.f32 %v408, 0.0
    %v789 = vmax.f32 %v413, 0.0
    %v790 = vmax.f32 %v416, 0.0
    %v791 = vmax.f32 %v421, 0.0
    %v792 = vmax.f32 %v424, 0.0
    %v793 = vmax.f32 %v429, 0.0
    %v794 = vmax.f32 %v432, 0.0
    %v795 = vmax.f32 %v437, 0.0
    %v796 = vmax.f32 %v440, 0.0
    %v797 = vmax.f32 %v445, 0.0
    %v798 = vmax.f32 %v448, 0.0
    %v799 = vmax.f32 %v453, 0.0
    %v800 = vmax.f32 %v456, 0.0
    %v801 = vmax.f32 %v461, 0.0
    %v802 = vmax.f32 %v464, 0.0
    %v803 = vmax.f32 %v469, 0.0
    %v804 = vmax.f32 %v472, 0.0
    %v805 = vmax.f32 %v477, 0.0
    %v806 = vmax.f32 %v480, 0.0
    %v807 = vmax.f32 %v485, 0.0
    %v808 = vmax.f32 %v488, 0.0
    %v809 = vmax.f32 %v493, 0.0
    %v810 = vmax.f32 %v496, 0.0
    %v811 = vmax.f32 %v501, 0.0
    %v812 = vmax.f32 %v504, 0.0
    %v813 = vmax.f32 %v509, 0.0
    %v814 = vmax.f32 %v512, 0.0
    %v815 = vmax.f32 %v517, 0.0
    %v816 = vmax.f32 %v520, 0.0
    %v817 = vmax.f32 %v525, 0.0
    %v818 = vmax.f32 %v528, 0.0
    %v819 = vmax.f32 %v533, 0.0
    %v820 = vmax.f32 %v536, 0.0
    %v821 = vmax.f32 %v541, 0.0
    %v822 = vmax.f32 %v544, 0.0
    %v823 = vmax.f32 %v549, 0.0
    %v824 = vmax.f32 %v552, 0.0
    %v825 = vmax.f32 %v557, 0.0
    %v826 = vmax.f32 %v560, 0.0
    %v827 = vmax.f32 %v565, 0.0
    %v828 = vmax.f32 %v568, 0.0
    %v829 = vmax.f32 %v573, 0.0
    %v830 = vmax.f32 %v576, 0.0
    %v831 = vmax.f32 %v581, 0.0
    %v832 = vmax.f32 %v584, 0.0
    %v833 = vmax.f32 %v589, 0.0
    %v834 = vmax.f32 %v592, 0.0
    %v835 = vmax.f32 %v597, 0.0
    %v836 = vmax.f32 %v600, 0.0
    %v837 = vmax.f32 %v605, 0.0
    %v838 = vmax.f32 %v608, 0.0
    %v839 = vmax.f32 %v613, 0.0
    %v840 = vmax.f32 %v616, 0.0
    %v841 = vmax.f32 %v621, 0.0
    %v842 = vmax.f32 %v624, 0.0
    %v843 = vmax.f32 %v629, 0.0
    %v844 = vmax.f32 %v632, 0.0
    %v845 = vmax.f32 %v637, 0.0
    %v846 = vmax.f32 %v640, 0.0
    %v847 = vmax.f32 %v645, 0.0
    %v848 = vmax.f32 %v648, 0.0
    %v849 = vmax.f32 %v653, 0.0
    %v850 = vmax.f32 %v656, 0.0
    %v851 = vmax.f32 %v661, 0.0
    %v852 = vmax.f32 %v664, 0.0
    %v853 = vmax.f32 %v669, 0.0
    %v854 = vmax.f32 %v672, 0.0
    %v855 = vmax.f32 %v677, 0.0
    %v856 = vmax.f32 %v680, 0.0
    %v857 = vmax.f32 %v685, 0.0
    %v858 = vmax.f32 %v688, 0.0
    %v859 = vmax.f32 %v693, 0.0
    %v860 = vmax.f32 %v696, 0.0
    %v861 = vmax.f32 %v701, 0.0
    %v862 = vmax.f32 %v704, 0.0
    %v863 = vmax.f32 %v709, 0.0
    %v864 = vmax.f32 %v712, 0.0
    %v865 = vmax.f32 %v717, 0.0
    %v866 = vmax.f32 %v720, 0.0
    %v867 = vmax.f32 %v725, 0.0
    %v868 = vmax.f32 %v728, 0.0
    %v869 = vmax.f32 %v733, 0.0
    %v870 = vmax.f32 %v736, 0.0
    %v871 = vmax.f32 %v741, 0.0
    %v872 = vmax.f32 %v744, 0.0
    %v873 = vmax.f32 %v749, 0.0
    %v874 = vmax.f32 %v752, 0.0
    %v875 = vmax.f32 %v757, 0.0
    %v876 = vmax.f32 %v760, 0.0
    %v877 = vmax.f32 %v765, 0.0
    %v878 = vmax.f32 %v768, 0.0
    %v879 = vpack.c.bf16 %v772, %v771
    %v880 = vpack.c.bf16 %v774, %v773
    %v881 = vpack.c.bf16 %v776, %v775
    %v882 = vpack.c.bf16 %v778, %v777
    %v883 = vpack.c.bf16 %v780, %v779
    %v884 = vpack.c.bf16 %v782, %v781
    %v885 = vpack.c.bf16 %v784, %v783
    %v886 = vpack.c.bf16 %v786, %v785
    %v887 = vpack.c.bf16 %v788, %v787
    %v888 = vpack.c.bf16 %v790, %v789
    %v889 = vpack.c.bf16 %v792, %v791
    %v890 = vpack.c.bf16 %v794, %v793
    %v891 = vpack.c.bf16 %v796, %v795
    %v892 = vpack.c.bf16 %v798, %v797
    %v893 = vpack.c.bf16 %v800, %v799
    %v894 = vpack.c.bf16 %v802, %v801
    %v895 = vpack.c.bf16 %v804, %v803
    %v896 = vpack.c.bf16 %v806, %v805
    %v897 = vpack.c.bf16 %v808, %v807
    %v898 = vpack.c.bf16 %v810, %v809
    %v899 = vpack.c.bf16 %v812, %v811
    %v900 = vpack.c.bf16 %v814, %v813
    %v901 = vpack.c.bf16 %v816, %v815
    %v902 = vpack.c.bf16 %v818, %v817
    %v903 = vpack.c.bf16 %v820, %v819
    %v904 = vpack.c.bf16 %v822, %v821
    %v905 = vpack.c.bf16 %v824, %v823
    %v906 = vpack.c.bf16 %v826, %v825
    %v907 = vpack.c.bf16 %v828, %v827
    %v908 = vpack.c.bf16 %v830, %v829
    %v909 = vpack.c.bf16 %v832, %v831
    %v910 = vpack.c.bf16 %v834, %v833
    %v911 = vpack.c.bf16 %v836, %v835
    %v912 = vpack.c.bf16 %v838, %v837
    %v913 = vpack.c.bf16 %v840, %v839
    %v914 = vpack.c.bf16 %v842, %v841
    %v915 = vpack.c.bf16 %v844, %v843
    %v916 = vpack.c.bf16 %v846, %v845
    %v917 = vpack.c.bf16 %v848, %v847
    %v918 = vpack.c.bf16 %v850, %v849
    %v919 = vpack.c.bf16 %v852, %v851
    %v920 = vpack.c.bf16 %v854, %v853
    %v921 = vpack.c.bf16 %v856, %v855
    %v922 = vpack.c.bf16 %v858, %v857
    %v923 = vpack.c.bf16 %v860, %v859
    %v924 = vpack.c.bf16 %v862, %v861
    %v925 = vpack.c.bf16 %v864, %v863
    %v926 = vpack.c.bf16 %v866, %v865
    %v927 = vpack.c.bf16 %v868, %v867
    %v928 = vpack.c.bf16 %v870, %v869
    %v929 = vpack.c.bf16 %v872, %v871
    %v930 = vpack.c.bf16 %v874, %v873
    %v931 = vpack.c.bf16 %v876, %v875
    %v932 = vpack.c.bf16 %v878, %v877
    %v934 = vrot.slane %v932, 4
    %vm988 = vcmask 1043456
    %v989 = vrot.slane %v879, 4
    %v990 = vrot.slane %v880, 4
    %v991 = vsel %vm988, %v989, %v990
    %v992 = vrot.slane %v881, 4
    %v993 = vsel %vm988, %v990, %v992
    %v994 = vrot.slane %v882, 4
    %v995 = vsel %vm988, %v992, %v994
    %v996 = vrot.slane %v883, 4
    %v997 = vsel %vm988, %v994, %v996
    %v998 = vrot.slane %v884, 4
    %v999 = vsel %vm988, %v996, %v998
    %v1000 = vrot.slane %v885, 4
    %v1001 = vsel %vm988, %v998, %v1000
    %v1002 = vrot.slane %v886, 4
    %v1003 = vsel %vm988, %v1000, %v1002
    %v1004 = vrot.slane %v887, 4
    %v1005 = vsel %vm988, %v1002, %v1004
    %v1006 = vrot.slane %v888, 4
    %v1007 = vsel %vm988, %v1004, %v1006
    %v1008 = vrot.slane %v889, 4
    %v1009 = vsel %vm988, %v1006, %v1008
    %v1010 = vrot.slane %v890, 4
    %v1011 = vsel %vm988, %v1008, %v1010
    %v1012 = vrot.slane %v891, 4
    %v1013 = vsel %vm988, %v1010, %v1012
    %v1014 = vrot.slane %v892, 4
    %v1015 = vsel %vm988, %v1012, %v1014
    %v1016 = vrot.slane %v893, 4
    %v1017 = vsel %vm988, %v1014, %v1016
    %v1018 = vrot.slane %v894, 4
    %v1019 = vsel %vm988, %v1016, %v1018
    %v1020 = vrot.slane %v895, 4
    %v1021 = vsel %vm988, %v1018, %v1020
    %v1022 = vrot.slane %v896, 4
    %v1023 = vsel %vm988, %v1020, %v1022
    %v1024 = vrot.slane %v897, 4
    %v1025 = vsel %vm988, %v1022, %v1024
    %v1026 = vrot.slane %v898, 4
    %v1027 = vsel %vm988, %v1024, %v1026
    %v1028 = vrot.slane %v899, 4
    %v1029 = vsel %vm988, %v1026, %v1028
    %v1030 = vrot.slane %v900, 4
    %v1031 = vsel %vm988, %v1028, %v1030
    %v1032 = vrot.slane %v901, 4
    %v1033 = vsel %vm988, %v1030, %v1032
    %v1034 = vrot.slane %v902, 4
    %v1035 = vsel %vm988, %v1032, %v1034
    %v1036 = vrot.slane %v903, 4
    %v1037 = vsel %vm988, %v1034, %v1036
    %v1038 = vrot.slane %v904, 4
    %v1039 = vsel %vm988, %v1036, %v1038
    %v1040 = vrot.slane %v905, 4
    %v1041 = vsel %vm988, %v1038, %v1040
    %v1042 = vrot.slane %v906, 4
    %v1043 = vsel %vm988, %v1040, %v1042
    %v1044 = vrot.slane %v907, 4
    %v1045 = vsel %vm988, %v1042, %v1044
    %v1046 = vrot.slane %v908, 4
    %v1047 = vsel %vm988, %v1044, %v1046
    %v1048 = vrot.slane %v909, 4
    %v1049 = vsel %vm988, %v1046, %v1048
    %v1050 = vrot.slane %v910, 4
    %v1051 = vsel %vm988, %v1048, %v1050
    %v1052 = vrot.slane %v911, 4
    %v1053 = vsel %vm988, %v1050, %v1052
    %v1054 = vrot.slane %v912, 4
    %v1055 = vsel %vm988, %v1052, %v1054
    %v1056 = vrot.slane %v913, 4
    %v1057 = vsel %vm988, %v1054, %v1056
    %v1058 = vrot.slane %v914, 4
    %v1059 = vsel %vm988, %v1056, %v1058
    %v1060 = vrot.slane %v915, 4
    %v1061 = vsel %vm988, %v1058, %v1060
    %v1062 = vrot.slane %v916, 4
    %v1063 = vsel %vm988, %v1060, %v1062
    %v1064 = vrot.slane %v917, 4
    %v1065 = vsel %vm988, %v1062, %v1064
    %v1066 = vrot.slane %v918, 4
    %v1067 = vsel %vm988, %v1064, %v1066
    %v1068 = vrot.slane %v919, 4
    %v1069 = vsel %vm988, %v1066, %v1068
    %v1070 = vrot.slane %v920, 4
    %v1071 = vsel %vm988, %v1068, %v1070
    %v1072 = vrot.slane %v921, 4
    %v1073 = vsel %vm988, %v1070, %v1072
    %v1074 = vrot.slane %v922, 4
    %v1075 = vsel %vm988, %v1072, %v1074
    %v1076 = vrot.slane %v923, 4
    %v1077 = vsel %vm988, %v1074, %v1076
    %v1078 = vrot.slane %v924, 4
    %v1079 = vsel %vm988, %v1076, %v1078
    %v1080 = vrot.slane %v925, 4
    %v1081 = vsel %vm988, %v1078, %v1080
    %v1082 = vrot.slane %v926, 4
    %v1083 = vsel %vm988, %v1080, %v1082
    %v1084 = vrot.slane %v927, 4
    %v1085 = vsel %vm988, %v1082, %v1084
    %v1086 = vrot.slane %v928, 4
    %v1087 = vsel %vm988, %v1084, %v1086
    %v1088 = vrot.slane %v929, 4
    %v1089 = vsel %vm988, %v1086, %v1088
    %v1090 = vrot.slane %v930, 4
    %v1091 = vsel %vm988, %v1088, %v1090
    %v1092 = vrot.slane %v931, 4
    %v1093 = vsel %vm988, %v1090, %v1092
    %v1094 = vsel %vm988, %v1092, %v934
    %vm1095 = vcmask 1043456
    %v1098 = vsel %vm1095, %v934, %v989
    %vm1099 = vsmask.f32 7424
    %v1100 = vshrl.u32 %v1098, 16
    %v1102 = vshll.u32 %v1098, 16
    %v1104 = vrot.slane %v1102, 1
    %v1105 = vor.u32 %v1100, %v1104
    %v1107 = vshll.u32 %v991, 16
    %v1109 = vrot.slane %v1107, 1
    %v1110 = vsel %vm1099, %v1105, %v1109
    %v1111 = vshrl.u32 %v991, 16
    %v1113 = vor.u32 %v1111, %v1109
    %v1115 = vshll.u32 %v993, 16
    %v1117 = vrot.slane %v1115, 1
    %v1118 = vsel %vm1099, %v1113, %v1117
    %v1119 = vshrl.u32 %v993, 16
    %v1121 = vor.u32 %v1119, %v1117
    %v1123 = vshll.u32 %v995, 16
    %v1125 = vrot.slane %v1123, 1
    %v1126 = vsel %vm1099, %v1121, %v1125
    %v1127 = vshrl.u32 %v995, 16
    %v1129 = vor.u32 %v1127, %v1125
    %v1131 = vshll.u32 %v997, 16
    %v1133 = vrot.slane %v1131, 1
    %v1134 = vsel %vm1099, %v1129, %v1133
    %v1135 = vshrl.u32 %v997, 16
    %v1137 = vor.u32 %v1135, %v1133
    %v1139 = vshll.u32 %v999, 16
    %v1141 = vrot.slane %v1139, 1
    %v1142 = vsel %vm1099, %v1137, %v1141
    %v1143 = vshrl.u32 %v999, 16
    %v1145 = vor.u32 %v1143, %v1141
    %v1147 = vshll.u32 %v1001, 16
    %v1149 = vrot.slane %v1147, 1
    %v1150 = vsel %vm1099, %v1145, %v1149
    %v1151 = vshrl.u32 %v1001, 16
    %v1153 = vor.u32 %v1151, %v1149
    %v1155 = vshll.u32 %v1003, 16
    %v1157 = vrot.slane %v1155, 1
    %v1158 = vsel %vm1099, %v1153, %v1157
    %v1159 = vshrl.u32 %v1003, 16
    %v1161 = vor.u32 %v1159, %v1157
    %v1163 = vshll.u32 %v1005, 16
    %v1165 = vrot.slane %v1163, 1
    %v1166 = vsel %vm1099, %v1161, %v1165
    %v1167 = vshrl.u32 %v1005, 16
    %v1169 = vor.u32 %v1167, %v1165
    %v1171 = vshll.u32 %v1007, 16
    %v1173 = vrot.slane %v1171, 1
    %v1174 = vsel %vm1099, %v1169, %v1173
    %v1175 = vshrl.u32 %v1007, 16
    %v1177 = vor.u32 %v1175, %v1173
    %v1179 = vshll.u32 %v1009, 16
    %v1181 = vrot.slane %v1179, 1
    %v1182 = vsel %vm1099, %v1177, %v1181
    %v1183 = vshrl.u32 %v1009, 16
    %v1185 = vor.u32 %v1183, %v1181
    %v1187 = vshll.u32 %v1011, 16
    %v1189 = vrot.slane %v1187, 1
    %v1190 = vsel %vm1099, %v1185, %v1189
    %v1191 = vshrl.u32 %v1011, 16
    %v1193 = vor.u32 %v1191, %v1189
    %v1195 = vshll.u32 %v1013, 16
    %v1197 = vrot.slane %v1195, 1
    %v1198 = vsel %vm1099, %v1193, %v1197
    %v1199 = vshrl.u32 %v1013, 16
    %v1201 = vor.u32 %v1199, %v1197
    %v1203 = vshll.u32 %v1015, 16
    %v1205 = vrot.slane %v1203, 1
    %v1206 = vsel %vm1099, %v1201, %v1205
    %v1207 = vshrl.u32 %v1015, 16
    %v1209 = vor.u32 %v1207, %v1205
    %v1211 = vshll.u32 %v1017, 16
    %v1213 = vrot.slane %v1211, 1
    %v1214 = vsel %vm1099, %v1209, %v1213
    %v1215 = vshrl.u32 %v1017, 16
    %v1217 = vor.u32 %v1215, %v1213
    %v1219 = vshll.u32 %v1019, 16
    %v1221 = vrot.slane %v1219, 1
    %v1222 = vsel %vm1099, %v1217, %v1221
    %v1223 = vshrl.u32 %v1019, 16
    %v1225 = vor.u32 %v1223, %v1221
    %v1227 = vshll.u32 %v1021, 16
    %v1229 = vrot.slane %v1227, 1
    %v1230 = vsel %vm1099, %v1225, %v1229
    %v1231 = vshrl.u32 %v1021, 16
    %v1233 = vor.u32 %v1231, %v1229
    %v1235 = vshll.u32 %v1023, 16
    %v1237 = vrot.slane %v1235, 1
    %v1238 = vsel %vm1099, %v1233, %v1237
    %v1239 = vshrl.u32 %v1023, 16
    %v1241 = vor.u32 %v1239, %v1237
    %v1243 = vshll.u32 %v1025, 16
    %v1245 = vrot.slane %v1243, 1
    %v1246 = vsel %vm1099, %v1241, %v1245
    %v1247 = vshrl.u32 %v1025, 16
    %v1249 = vor.u32 %v1247, %v1245
    %v1251 = vshll.u32 %v1027, 16
    %v1253 = vrot.slane %v1251, 1
    %v1254 = vsel %vm1099, %v1249, %v1253
    %v1255 = vshrl.u32 %v1027, 16
    %v1257 = vor.u32 %v1255, %v1253
    %v1259 = vshll.u32 %v1029, 16
    %v1261 = vrot.slane %v1259, 1
    %v1262 = vsel %vm1099, %v1257, %v1261
    %v1263 = vshrl.u32 %v1029, 16
    %v1265 = vor.u32 %v1263, %v1261
    %v1267 = vshll.u32 %v1031, 16
    %v1269 = vrot.slane %v1267, 1
    %v1270 = vsel %vm1099, %v1265, %v1269
    %v1271 = vshrl.u32 %v1031, 16
    %v1273 = vor.u32 %v1271, %v1269
    %v1275 = vshll.u32 %v1033, 16
    %v1277 = vrot.slane %v1275, 1
    %v1278 = vsel %vm1099, %v1273, %v1277
    %v1279 = vshrl.u32 %v1033, 16
    %v1281 = vor.u32 %v1279, %v1277
    %v1283 = vshll.u32 %v1035, 16
    %v1285 = vrot.slane %v1283, 1
    %v1286 = vsel %vm1099, %v1281, %v1285
    %v1287 = vshrl.u32 %v1035, 16
    %v1289 = vor.u32 %v1287, %v1285
    %v1291 = vshll.u32 %v1037, 16
    %v1293 = vrot.slane %v1291, 1
    %v1294 = vsel %vm1099, %v1289, %v1293
    %v1295 = vshrl.u32 %v1037, 16
    %v1297 = vor.u32 %v1295, %v1293
    %v1299 = vshll.u32 %v1039, 16
    %v1301 = vrot.slane %v1299, 1
    %v1302 = vsel %vm1099, %v1297, %v1301
    %v1303 = vshrl.u32 %v1039, 16
    %v1305 = vor.u32 %v1303, %v1301
    %v1307 = vshll.u32 %v1041, 16
    %v1309 = vrot.slane %v1307, 1
    %v1310 = vsel %vm1099, %v1305, %v1309
    %v1311 = vshrl.u32 %v1041, 16
    %v1313 = vor.u32 %v1311, %v1309
    %v1315 = vshll.u32 %v1043, 16
    %v1317 = vrot.slane %v1315, 1
    %v1318 = vsel %vm1099, %v1313, %v1317
    %v1319 = vshrl.u32 %v1043, 16
    %v1321 = vor.u32 %v1319, %v1317
    %v1323 = vshll.u32 %v1045, 16
    %v1325 = vrot.slane %v1323, 1
    %v1326 = vsel %vm1099, %v1321, %v1325
    %v1327 = vshrl.u32 %v1045, 16
    %v1329 = vor.u32 %v1327, %v1325
    %v1331 = vshll.u32 %v1047, 16
    %v1333 = vrot.slane %v1331, 1
    %v1334 = vsel %vm1099, %v1329, %v1333
    %v1335 = vshrl.u32 %v1047, 16
    %v1337 = vor.u32 %v1335, %v1333
    %v1339 = vshll.u32 %v1049, 16
    %v1341 = vrot.slane %v1339, 1
    %v1342 = vsel %vm1099, %v1337, %v1341
    %v1343 = vshrl.u32 %v1049, 16
    %v1345 = vor.u32 %v1343, %v1341
    %v1347 = vshll.u32 %v1051, 16
    %v1349 = vrot.slane %v1347, 1
    %v1350 = vsel %vm1099, %v1345, %v1349
    %v1351 = vshrl.u32 %v1051, 16
    %v1353 = vor.u32 %v1351, %v1349
    %v1355 = vshll.u32 %v1053, 16
    %v1357 = vrot.slane %v1355, 1
    %v1358 = vsel %vm1099, %v1353, %v1357
    %v1359 = vshrl.u32 %v1053, 16
    %v1361 = vor.u32 %v1359, %v1357
    %v1363 = vshll.u32 %v1055, 16
    %v1365 = vrot.slane %v1363, 1
    %v1366 = vsel %vm1099, %v1361, %v1365
    %v1367 = vshrl.u32 %v1055, 16
    %v1369 = vor.u32 %v1367, %v1365
    %v1371 = vshll.u32 %v1057, 16
    %v1373 = vrot.slane %v1371, 1
    %v1374 = vsel %vm1099, %v1369, %v1373
    %v1375 = vshrl.u32 %v1057, 16
    %v1377 = vor.u32 %v1375, %v1373
    %v1379 = vshll.u32 %v1059, 16
    %v1381 = vrot.slane %v1379, 1
    %v1382 = vsel %vm1099, %v1377, %v1381
    %v1383 = vshrl.u32 %v1059, 16
    %v1385 = vor.u32 %v1383, %v1381
    %v1387 = vshll.u32 %v1061, 16
    %v1389 = vrot.slane %v1387, 1
    %v1390 = vsel %vm1099, %v1385, %v1389
    %v1391 = vshrl.u32 %v1061, 16
    %v1393 = vor.u32 %v1391, %v1389
    %v1395 = vshll.u32 %v1063, 16
    %v1397 = vrot.slane %v1395, 1
    %v1398 = vsel %vm1099, %v1393, %v1397
    %v1399 = vshrl.u32 %v1063, 16
    %v1401 = vor.u32 %v1399, %v1397
    %v1403 = vshll.u32 %v1065, 16
    %v1405 = vrot.slane %v1403, 1
    %v1406 = vsel %vm1099, %v1401, %v1405
    %v1407 = vshrl.u32 %v1065, 16
    %v1409 = vor.u32 %v1407, %v1405
    %v1411 = vshll.u32 %v1067, 16
    %v1413 = vrot.slane %v1411, 1
    %v1414 = vsel %vm1099, %v1409, %v1413
    %v1415 = vshrl.u32 %v1067, 16
    %v1417 = vor.u32 %v1415, %v1413
    %v1419 = vshll.u32 %v1069, 16
    %v1421 = vrot.slane %v1419, 1
    %v1422 = vsel %vm1099, %v1417, %v1421
    %v1423 = vshrl.u32 %v1069, 16
    %v1425 = vor.u32 %v1423, %v1421
    %v1427 = vshll.u32 %v1071, 16
    %v1429 = vrot.slane %v1427, 1
    %v1430 = vsel %vm1099, %v1425, %v1429
    %v1431 = vshrl.u32 %v1071, 16
    %v1433 = vor.u32 %v1431, %v1429
    %v1435 = vshll.u32 %v1073, 16
    %v1437 = vrot.slane %v1435, 1
    %v1438 = vsel %vm1099, %v1433, %v1437
    %v1439 = vshrl.u32 %v1073, 16
    %v1441 = vor.u32 %v1439, %v1437
    %v1443 = vshll.u32 %v1075, 16
    %v1445 = vrot.slane %v1443, 1
    %v1446 = vsel %vm1099, %v1441, %v1445
    %v1447 = vshrl.u32 %v1075, 16
    %v1449 = vor.u32 %v1447, %v1445
    %v1451 = vshll.u32 %v1077, 16
    %v1453 = vrot.slane %v1451, 1
    %v1454 = vsel %vm1099, %v1449, %v1453
    %v1455 = vshrl.u32 %v1077, 16
    %v1457 = vor.u32 %v1455, %v1453
    %v1459 = vshll.u32 %v1079, 16
    %v1461 = vrot.slane %v1459, 1
    %v1462 = vsel %vm1099, %v1457, %v1461
    %v1463 = vshrl.u32 %v1079, 16
    %v1465 = vor.u32 %v1463, %v1461
    %v1467 = vshll.u32 %v1081, 16
    %v1469 = vrot.slane %v1467, 1
    %v1470 = vsel %vm1099, %v1465, %v1469
    %v1471 = vshrl.u32 %v1081, 16
    %v1473 = vor.u32 %v1471, %v1469
    %v1475 = vshll.u32 %v1083, 16
    %v1477 = vrot.slane %v1475, 1
    %v1478 = vsel %vm1099, %v1473, %v1477
    %v1479 = vshrl.u32 %v1083, 16
    %v1481 = vor.u32 %v1479, %v1477
    %v1483 = vshll.u32 %v1085, 16
    %v1485 = vrot.slane %v1483, 1
    %v1486 = vsel %vm1099, %v1481, %v1485
    %v1487 = vshrl.u32 %v1085, 16
    %v1489 = vor.u32 %v1487, %v1485
    %v1491 = vshll.u32 %v1087, 16
    %v1493 = vrot.slane %v1491, 1
    %v1494 = vsel %vm1099, %v1489, %v1493
    %v1495 = vshrl.u32 %v1087, 16
    %v1497 = vor.u32 %v1495, %v1493
    %v1499 = vshll.u32 %v1089, 16
    %v1501 = vrot.slane %v1499, 1
    %v1502 = vsel %vm1099, %v1497, %v1501
    %v1503 = vshrl.u32 %v1089, 16
    %v1505 = vor.u32 %v1503, %v1501
    %v1507 = vshll.u32 %v1091, 16
    %v1509 = vrot.slane %v1507, 1
    %v1510 = vsel %vm1099, %v1505, %v1509
    %v1511 = vshrl.u32 %v1091, 16
    %v1513 = vor.u32 %v1511, %v1509
    %v1515 = vshll.u32 %v1093, 16
    %v1517 = vrot.slane %v1515, 1
    %v1518 = vsel %vm1099, %v1513, %v1517
    %v1519 = vshrl.u32 %v1093, 16
    %v1521 = vor.u32 %v1519, %v1517
    %v1523 = vshll.u32 %v1094, 16
    %v1525 = vrot.slane %v1523, 1
    %v1526 = vsel %vm1099, %v1521, %v1525
    %v1527 = vshrl.u32 %v1094, 16
    %v1529 = vor.u32 %v1527, %v1525
    %v1530 = vsel %vm1099, %v1529, %v1104
    %vm1532 = vcmask 1046528
    %v1533 = vrot.slane %v1098, 1
    %v1534 = vrot.slane %v991, 1
    %v1535 = vsel %vm1532, %v1533, %v1534
    %v1536 = vrot.slane %v993, 1
    %v1537 = vsel %vm1532, %v1534, %v1536
    %v1538 = vrot.slane %v995, 1
    %v1539 = vsel %vm1532, %v1536, %v1538
    %v1540 = vrot.slane %v997, 1
    %v1541 = vsel %vm1532, %v1538, %v1540
    %v1542 = vrot.slane %v999, 1
    %v1543 = vsel %vm1532, %v1540, %v1542
    %v1544 = vrot.slane %v1001, 1
    %v1545 = vsel %vm1532, %v1542, %v1544
    %v1546 = vrot.slane %v1003, 1
    %v1547 = vsel %vm1532, %v1544, %v1546
    %v1548 = vrot.slane %v1005, 1
    %v1549 = vsel %vm1532, %v1546, %v1548
    %v1550 = vrot.slane %v1007, 1
    %v1551 = vsel %vm1532, %v1548, %v1550
    %v1552 = vrot.slane %v1009, 1
    %v1553 = vsel %vm1532, %v1550, %v1552
    %v1554 = vrot.slane %v1011, 1
    %v1555 = vsel %vm1532, %v1552, %v1554
    %v1556 = vrot.slane %v1013, 1
    %v1557 = vsel %vm1532, %v1554, %v1556
    %v1558 = vrot.slane %v1015, 1
    %v1559 = vsel %vm1532, %v1556, %v1558
    %v1560 = vrot.slane %v1017, 1
    %v1561 = vsel %vm1532, %v1558, %v1560
    %v1562 = vrot.slane %v1019, 1
    %v1563 = vsel %vm1532, %v1560, %v1562
    %v1564 = vrot.slane %v1021, 1
    %v1565 = vsel %vm1532, %v1562, %v1564
    %v1566 = vrot.slane %v1023, 1
    %v1567 = vsel %vm1532, %v1564, %v1566
    %v1568 = vrot.slane %v1025, 1
    %v1569 = vsel %vm1532, %v1566, %v1568
    %v1570 = vrot.slane %v1027, 1
    %v1571 = vsel %vm1532, %v1568, %v1570
    %v1572 = vrot.slane %v1029, 1
    %v1573 = vsel %vm1532, %v1570, %v1572
    %v1574 = vrot.slane %v1031, 1
    %v1575 = vsel %vm1532, %v1572, %v1574
    %v1576 = vrot.slane %v1033, 1
    %v1577 = vsel %vm1532, %v1574, %v1576
    %v1578 = vrot.slane %v1035, 1
    %v1579 = vsel %vm1532, %v1576, %v1578
    %v1580 = vrot.slane %v1037, 1
    %v1581 = vsel %vm1532, %v1578, %v1580
    %v1582 = vrot.slane %v1039, 1
    %v1583 = vsel %vm1532, %v1580, %v1582
    %v1584 = vrot.slane %v1041, 1
    %v1585 = vsel %vm1532, %v1582, %v1584
    %v1586 = vrot.slane %v1043, 1
    %v1587 = vsel %vm1532, %v1584, %v1586
    %v1588 = vrot.slane %v1045, 1
    %v1589 = vsel %vm1532, %v1586, %v1588
    %v1590 = vrot.slane %v1047, 1
    %v1591 = vsel %vm1532, %v1588, %v1590
    %v1592 = vrot.slane %v1049, 1
    %v1593 = vsel %vm1532, %v1590, %v1592
    %v1594 = vrot.slane %v1051, 1
    %v1595 = vsel %vm1532, %v1592, %v1594
    %v1596 = vrot.slane %v1053, 1
    %v1597 = vsel %vm1532, %v1594, %v1596
    %v1598 = vrot.slane %v1055, 1
    %v1599 = vsel %vm1532, %v1596, %v1598
    %v1600 = vrot.slane %v1057, 1
    %v1601 = vsel %vm1532, %v1598, %v1600
    %v1602 = vrot.slane %v1059, 1
    %v1603 = vsel %vm1532, %v1600, %v1602
    %v1604 = vrot.slane %v1061, 1
    %v1605 = vsel %vm1532, %v1602, %v1604
    %v1606 = vrot.slane %v1063, 1
    %v1607 = vsel %vm1532, %v1604, %v1606
    %v1608 = vrot.slane %v1065, 1
    %v1609 = vsel %vm1532, %v1606, %v1608
    %v1610 = vrot.slane %v1067, 1
    %v1611 = vsel %vm1532, %v1608, %v1610
    %v1612 = vrot.slane %v1069, 1
    %v1613 = vsel %vm1532, %v1610, %v1612
    %v1614 = vrot.slane %v1071, 1
    %v1615 = vsel %vm1532, %v1612, %v1614
    %v1616 = vrot.slane %v1073, 1
    %v1617 = vsel %vm1532, %v1614, %v1616
    %v1618 = vrot.slane %v1075, 1
    %v1619 = vsel %vm1532, %v1616, %v1618
    %v1620 = vrot.slane %v1077, 1
    %v1621 = vsel %vm1532, %v1618, %v1620
    %v1622 = vrot.slane %v1079, 1
    %v1623 = vsel %vm1532, %v1620, %v1622
    %v1624 = vrot.slane %v1081, 1
    %v1625 = vsel %vm1532, %v1622, %v1624
    %v1626 = vrot.slane %v1083, 1
    %v1627 = vsel %vm1532, %v1624, %v1626
    %v1628 = vrot.slane %v1085, 1
    %v1629 = vsel %vm1532, %v1626, %v1628
    %v1630 = vrot.slane %v1087, 1
    %v1631 = vsel %vm1532, %v1628, %v1630
    %v1632 = vrot.slane %v1089, 1
    %v1633 = vsel %vm1532, %v1630, %v1632
    %v1634 = vrot.slane %v1091, 1
    %v1635 = vsel %vm1532, %v1632, %v1634
    %v1636 = vrot.slane %v1093, 1
    %v1637 = vsel %vm1532, %v1634, %v1636
    %v1638 = vrot.slane %v1094, 1
    %v1639 = vsel %vm1532, %v1636, %v1638
    %v1640 = vsel %vm1532, %v1638, %v1533
    %vm1641 = vsmask.f32 256
    %v1642 = vrot.slane %v1519, 7
    %v1643 = vrot.slane %v1527, 7
    %v1644 = vor.u32 %v1643, %v1523
    %v1645 = vsel %vm1641, %v1642, %v1644
    %v1647 = vshrl.u32 %v1526, 16
    %v1649 = vrot.slane %v1647, 7
    %v1651 = vshrl.u32 %v1530, 16
    %v1653 = vrot.slane %v1651, 7
    %v1654 = vshll.u32 %v1530, 16
    %v1656 = vor.u32 %v1653, %v1654
    %v1657 = vsel %vm1641, %v1649, %v1656
    %v1659 = vshrl.u32 %v1639, 16
    %v1661 = vrot.slane %v1659, 7
    %v1663 = vshrl.u32 %v1640, 16
    %v1665 = vrot.slane %v1663, 7
    %v1666 = vshll.u32 %v1640, 16
    %v1668 = vor.u32 %v1665, %v1666
    %v1669 = vsel %vm1641, %v1661, %v1668
    %v1670 = vrot.slane %v1100, 7
    %v1671 = vor.u32 %v1670, %v1102
    %v1672 = vsel %vm1641, %v1643, %v1671
    %v1674 = vshrl.u32 %v1105, 16
    %v1676 = vrot.slane %v1674, 7
    %v1677 = vshll.u32 %v1105, 16
    %v1679 = vor.u32 %v1676, %v1677
    %v1680 = vsel %vm1641, %v1653, %v1679
    %v1682 = vshrl.u32 %v1533, 16
    %v1684 = vrot.slane %v1682, 7
    %v1685 = vshll.u32 %v1533, 16
    %v1687 = vor.u32 %v1684, %v1685
    %v1688 = vsel %vm1641, %v1665, %v1687
    %v1693 = vshrl.u32 %v1110, 16
    %v1695 = vrot.slane %v1693, 7
    %v1696 = vshll.u32 %v1110, 16
    %v1698 = vor.u32 %v1695, %v1696
    %v1700 = vshrl.u32 %v1535, 16
    %v1702 = vrot.slane %v1700, 7
    %v1703 = vshll.u32 %v1535, 16
    %v1705 = vor.u32 %v1702, %v1703
    %v1706 = vrot.slane %v1111, 7
    %v1707 = vor.u32 %v1706, %v1107
    %v1708 = vsel %vm1641, %v1670, %v1707
    %v1710 = vshrl.u32 %v1118, 16
    %v1712 = vrot.slane %v1710, 7
    %v1713 = vshll.u32 %v1118, 16
    %v1715 = vor.u32 %v1712, %v1713
    %v1716 = vsel %vm1641, %v1695, %v1715
    %v1718 = vshrl.u32 %v1537, 16
    %v1720 = vrot.slane %v1718, 7
    %v1721 = vshll.u32 %v1537, 16
    %v1723 = vor.u32 %v1720, %v1721
    %v1724 = vsel %vm1641, %v1702, %v1723
    %v1725 = vrot.slane %v1119, 7
    %v1726 = vor.u32 %v1725, %v1115
    %v1727 = vsel %vm1641, %v1706, %v1726
    %v1729 = vshrl.u32 %v1126, 16
    %v1731 = vrot.slane %v1729, 7
    %v1732 = vshll.u32 %v1126, 16
    %v1734 = vor.u32 %v1731, %v1732
    %v1735 = vsel %vm1641, %v1712, %v1734
    %v1737 = vshrl.u32 %v1539, 16
    %v1739 = vrot.slane %v1737, 7
    %v1740 = vshll.u32 %v1539, 16
    %v1742 = vor.u32 %v1739, %v1740
    %v1743 = vsel %vm1641, %v1720, %v1742
    %v1744 = vrot.slane %v1127, 7
    %v1745 = vor.u32 %v1744, %v1123
    %v1746 = vsel %vm1641, %v1725, %v1745
    %v1748 = vshrl.u32 %v1134, 16
    %v1750 = vrot.slane %v1748, 7
    %v1751 = vshll.u32 %v1134, 16
    %v1753 = vor.u32 %v1750, %v1751
    %v1754 = vsel %vm1641, %v1731, %v1753
    %v1756 = vshrl.u32 %v1541, 16
    %v1758 = vrot.slane %v1756, 7
    %v1759 = vshll.u32 %v1541, 16
    %v1761 = vor.u32 %v1758, %v1759
    %v1762 = vsel %vm1641, %v1739, %v1761
    %v1763 = vrot.slane %v1135, 7
    %v1764 = vor.u32 %v1763, %v1131
    %v1765 = vsel %vm1641, %v1744, %v1764
    %v1767 = vshrl.u32 %v1142, 16
    %v1769 = vrot.slane %v1767, 7
    %v1770 = vshll.u32 %v1142, 16
    %v1772 = vor.u32 %v1769, %v1770
    %v1773 = vsel %vm1641, %v1750, %v1772
    %v1775 = vshrl.u32 %v1543, 16
    %v1777 = vrot.slane %v1775, 7
    %v1778 = vshll.u32 %v1543, 16
    %v1780 = vor.u32 %v1777, %v1778
    %v1781 = vsel %vm1641, %v1758, %v1780
    %v1782 = vrot.slane %v1143, 7
    %v1783 = vor.u32 %v1782, %v1139
    %v1784 = vsel %vm1641, %v1763, %v1783
    %v1786 = vshrl.u32 %v1150, 16
    %v1788 = vrot.slane %v1786, 7
    %v1789 = vshll.u32 %v1150, 16
    %v1791 = vor.u32 %v1788, %v1789
    %v1792 = vsel %vm1641, %v1769, %v1791
    %v1794 = vshrl.u32 %v1545, 16
    %v1796 = vrot.slane %v1794, 7
    %v1797 = vshll.u32 %v1545, 16
    %v1799 = vor.u32 %v1796, %v1797
    %v1800 = vsel %vm1641, %v1777, %v1799
    %v1801 = vrot.slane %v1151, 7
    %v1802 = vor.u32 %v1801, %v1147
    %v1803 = vsel %vm1641, %v1782, %v1802
    %v1805 = vshrl.u32 %v1158, 16
    %v1807 = vrot.slane %v1805, 7
    %v1808 = vshll.u32 %v1158, 16
    %v1810 = vor.u32 %v1807, %v1808
    %v1811 = vsel %vm1641, %v1788, %v1810
    %v1813 = vshrl.u32 %v1547, 16
    %v1815 = vrot.slane %v1813, 7
    %v1816 = vshll.u32 %v1547, 16
    %v1818 = vor.u32 %v1815, %v1816
    %v1819 = vsel %vm1641, %v1796, %v1818
    %v1820 = vrot.slane %v1159, 7
    %v1821 = vor.u32 %v1820, %v1155
    %v1822 = vsel %vm1641, %v1801, %v1821
    %v1824 = vshrl.u32 %v1166, 16
    %v1826 = vrot.slane %v1824, 7
    %v1827 = vshll.u32 %v1166, 16
    %v1829 = vor.u32 %v1826, %v1827
    %v1830 = vsel %vm1641, %v1807, %v1829
    %v1832 = vshrl.u32 %v1549, 16
    %v1834 = vrot.slane %v1832, 7
    %v1835 = vshll.u32 %v1549, 16
    %v1837 = vor.u32 %v1834, %v1835
    %v1838 = vsel %vm1641, %v1815, %v1837
    %v1839 = vrot.slane %v1167, 7
    %v1840 = vor.u32 %v1839, %v1163
    %v1841 = vsel %vm1641, %v1820, %v1840
    %v1843 = vshrl.u32 %v1174, 16
    %v1845 = vrot.slane %v1843, 7
    %v1846 = vshll.u32 %v1174, 16
    %v1848 = vor.u32 %v1845, %v1846
    %v1849 = vsel %vm1641, %v1826, %v1848
    %v1851 = vshrl.u32 %v1551, 16
    %v1853 = vrot.slane %v1851, 7
    %v1854 = vshll.u32 %v1551, 16
    %v1856 = vor.u32 %v1853, %v1854
    %v1857 = vsel %vm1641, %v1834, %v1856
    %v1858 = vrot.slane %v1175, 7
    %v1859 = vor.u32 %v1858, %v1171
    %v1860 = vsel %vm1641, %v1839, %v1859
    %v1862 = vshrl.u32 %v1182, 16
    %v1864 = vrot.slane %v1862, 7
    %v1865 = vshll.u32 %v1182, 16
    %v1867 = vor.u32 %v1864, %v1865
    %v1868 = vsel %vm1641, %v1845, %v1867
    %v1870 = vshrl.u32 %v1553, 16
    %v1872 = vrot.slane %v1870, 7
    %v1873 = vshll.u32 %v1553, 16
    %v1875 = vor.u32 %v1872, %v1873
    %v1876 = vsel %vm1641, %v1853, %v1875
    %v1877 = vrot.slane %v1183, 7
    %v1878 = vor.u32 %v1877, %v1179
    %v1879 = vsel %vm1641, %v1858, %v1878
    %v1881 = vshrl.u32 %v1190, 16
    %v1883 = vrot.slane %v1881, 7
    %v1884 = vshll.u32 %v1190, 16
    %v1886 = vor.u32 %v1883, %v1884
    %v1887 = vsel %vm1641, %v1864, %v1886
    %v1889 = vshrl.u32 %v1555, 16
    %v1891 = vrot.slane %v1889, 7
    %v1892 = vshll.u32 %v1555, 16
    %v1894 = vor.u32 %v1891, %v1892
    %v1895 = vsel %vm1641, %v1872, %v1894
    %v1896 = vrot.slane %v1191, 7
    %v1897 = vor.u32 %v1896, %v1187
    %v1898 = vsel %vm1641, %v1877, %v1897
    %v1900 = vshrl.u32 %v1198, 16
    %v1902 = vrot.slane %v1900, 7
    %v1903 = vshll.u32 %v1198, 16
    %v1905 = vor.u32 %v1902, %v1903
    %v1906 = vsel %vm1641, %v1883, %v1905
    %v1908 = vshrl.u32 %v1557, 16
    %v1910 = vrot.slane %v1908, 7
    %v1911 = vshll.u32 %v1557, 16
    %v1913 = vor.u32 %v1910, %v1911
    %v1914 = vsel %vm1641, %v1891, %v1913
    %v1915 = vrot.slane %v1199, 7
    %v1916 = vor.u32 %v1915, %v1195
    %v1917 = vsel %vm1641, %v1896, %v1916
    %v1919 = vshrl.u32 %v1206, 16
    %v1921 = vrot.slane %v1919, 7
    %v1922 = vshll.u32 %v1206, 16
    %v1924 = vor.u32 %v1921, %v1922
    %v1925 = vsel %vm1641, %v1902, %v1924
    %v1927 = vshrl.u32 %v1559, 16
    %v1929 = vrot.slane %v1927, 7
    %v1930 = vshll.u32 %v1559, 16
    %v1932 = vor.u32 %v1929, %v1930
    %v1933 = vsel %vm1641, %v1910, %v1932
    %v1934 = vrot.slane %v1207, 7
    %v1935 = vor.u32 %v1934, %v1203
    %v1936 = vsel %vm1641, %v1915, %v1935
    %v1938 = vshrl.u32 %v1214, 16
    %v1940 = vrot.slane %v1938, 7
    %v1941 = vshll.u32 %v1214, 16
    %v1943 = vor.u32 %v1940, %v1941
    %v1944 = vsel %vm1641, %v1921, %v1943
    %v1946 = vshrl.u32 %v1561, 16
    %v1948 = vrot.slane %v1946, 7
    %v1949 = vshll.u32 %v1561, 16
    %v1951 = vor.u32 %v1948, %v1949
    %v1952 = vsel %vm1641, %v1929, %v1951
    %v1953 = vrot.slane %v1215, 7
    %v1954 = vor.u32 %v1953, %v1211
    %v1955 = vsel %vm1641, %v1934, %v1954
    %v1957 = vshrl.u32 %v1222, 16
    %v1959 = vrot.slane %v1957, 7
    %v1960 = vshll.u32 %v1222, 16
    %v1962 = vor.u32 %v1959, %v1960
    %v1963 = vsel %vm1641, %v1940, %v1962
    %v1965 = vshrl.u32 %v1563, 16
    %v1967 = vrot.slane %v1965, 7
    %v1968 = vshll.u32 %v1563, 16
    %v1970 = vor.u32 %v1967, %v1968
    %v1971 = vsel %vm1641, %v1948, %v1970
    %v1972 = vrot.slane %v1223, 7
    %v1973 = vor.u32 %v1972, %v1219
    %v1974 = vsel %vm1641, %v1953, %v1973
    %v1976 = vshrl.u32 %v1230, 16
    %v1978 = vrot.slane %v1976, 7
    %v1979 = vshll.u32 %v1230, 16
    %v1981 = vor.u32 %v1978, %v1979
    %v1982 = vsel %vm1641, %v1959, %v1981
    %v1984 = vshrl.u32 %v1565, 16
    %v1986 = vrot.slane %v1984, 7
    %v1987 = vshll.u32 %v1565, 16
    %v1989 = vor.u32 %v1986, %v1987
    %v1990 = vsel %vm1641, %v1967, %v1989
    %v1991 = vrot.slane %v1231, 7
    %v1992 = vor.u32 %v1991, %v1227
    %v1993 = vsel %vm1641, %v1972, %v1992
    %v1995 = vshrl.u32 %v1238, 16
    %v1997 = vrot.slane %v1995, 7
    %v1998 = vshll.u32 %v1238, 16
    %v2000 = vor.u32 %v1997, %v1998
    %v2001 = vsel %vm1641, %v1978, %v2000
    %v2003 = vshrl.u32 %v1567, 16
    %v2005 = vrot.slane %v2003, 7
    %v2006 = vshll.u32 %v1567, 16
    %v2008 = vor.u32 %v2005, %v2006
    %v2009 = vsel %vm1641, %v1986, %v2008
    %v2010 = vrot.slane %v1239, 7
    %v2011 = vor.u32 %v2010, %v1235
    %v2012 = vsel %vm1641, %v1991, %v2011
    %v2014 = vshrl.u32 %v1246, 16
    %v2016 = vrot.slane %v2014, 7
    %v2017 = vshll.u32 %v1246, 16
    %v2019 = vor.u32 %v2016, %v2017
    %v2020 = vsel %vm1641, %v1997, %v2019
    %v2022 = vshrl.u32 %v1569, 16
    %v2024 = vrot.slane %v2022, 7
    %v2025 = vshll.u32 %v1569, 16
    %v2027 = vor.u32 %v2024, %v2025
    %v2028 = vsel %vm1641, %v2005, %v2027
    %v2029 = vrot.slane %v1247, 7
    %v2030 = vor.u32 %v2029, %v1243
    %v2031 = vsel %vm1641, %v2010, %v2030
    %v2033 = vshrl.u32 %v1254, 16
    %v2035 = vrot.slane %v2033, 7
    %v2036 = vshll.u32 %v1254, 16
    %v2038 = vor.u32 %v2035, %v2036
    %v2039 = vsel %vm1641, %v2016, %v2038
    %v2041 = vshrl.u32 %v1571, 16
    %v2043 = vrot.slane %v2041, 7
    %v2044 = vshll.u32 %v1571, 16
    %v2046 = vor.u32 %v2043, %v2044
    %v2047 = vsel %vm1641, %v2024, %v2046
    %v2048 = vrot.slane %v1255, 7
    %v2049 = vor.u32 %v2048, %v1251
    %v2050 = vsel %vm1641, %v2029, %v2049
    %v2052 = vshrl.u32 %v1262, 16
    %v2054 = vrot.slane %v2052, 7
    %v2055 = vshll.u32 %v1262, 16
    %v2057 = vor.u32 %v2054, %v2055
    %v2058 = vsel %vm1641, %v2035, %v2057
    %v2060 = vshrl.u32 %v1573, 16
    %v2062 = vrot.slane %v2060, 7
    %v2063 = vshll.u32 %v1573, 16
    %v2065 = vor.u32 %v2062, %v2063
    %v2066 = vsel %vm1641, %v2043, %v2065
    %v2067 = vrot.slane %v1263, 7
    %v2068 = vor.u32 %v2067, %v1259
    %v2069 = vsel %vm1641, %v2048, %v2068
    %v2071 = vshrl.u32 %v1270, 16
    %v2073 = vrot.slane %v2071, 7
    %v2074 = vshll.u32 %v1270, 16
    %v2076 = vor.u32 %v2073, %v2074
    %v2077 = vsel %vm1641, %v2054, %v2076
    %v2079 = vshrl.u32 %v1575, 16
    %v2081 = vrot.slane %v2079, 7
    %v2082 = vshll.u32 %v1575, 16
    %v2084 = vor.u32 %v2081, %v2082
    %v2085 = vsel %vm1641, %v2062, %v2084
    %v2086 = vrot.slane %v1271, 7
    %v2087 = vor.u32 %v2086, %v1267
    %v2088 = vsel %vm1641, %v2067, %v2087
    %v2090 = vshrl.u32 %v1278, 16
    %v2092 = vrot.slane %v2090, 7
    %v2093 = vshll.u32 %v1278, 16
    %v2095 = vor.u32 %v2092, %v2093
    %v2096 = vsel %vm1641, %v2073, %v2095
    %v2098 = vshrl.u32 %v1577, 16
    %v2100 = vrot.slane %v2098, 7
    %v2101 = vshll.u32 %v1577, 16
    %v2103 = vor.u32 %v2100, %v2101
    %v2104 = vsel %vm1641, %v2081, %v2103
    %v2105 = vrot.slane %v1279, 7
    %v2106 = vor.u32 %v2105, %v1275
    %v2107 = vsel %vm1641, %v2086, %v2106
    %v2109 = vshrl.u32 %v1286, 16
    %v2111 = vrot.slane %v2109, 7
    %v2112 = vshll.u32 %v1286, 16
    %v2114 = vor.u32 %v2111, %v2112
    %v2115 = vsel %vm1641, %v2092, %v2114
    %v2117 = vshrl.u32 %v1579, 16
    %v2119 = vrot.slane %v2117, 7
    %v2120 = vshll.u32 %v1579, 16
    %v2122 = vor.u32 %v2119, %v2120
    %v2123 = vsel %vm1641, %v2100, %v2122
    %v2124 = vrot.slane %v1287, 7
    %v2125 = vor.u32 %v2124, %v1283
    %v2126 = vsel %vm1641, %v2105, %v2125
    %v2128 = vshrl.u32 %v1294, 16
    %v2130 = vrot.slane %v2128, 7
    %v2131 = vshll.u32 %v1294, 16
    %v2133 = vor.u32 %v2130, %v2131
    %v2134 = vsel %vm1641, %v2111, %v2133
    %v2136 = vshrl.u32 %v1581, 16
    %v2138 = vrot.slane %v2136, 7
    %v2139 = vshll.u32 %v1581, 16
    %v2141 = vor.u32 %v2138, %v2139
    %v2142 = vsel %vm1641, %v2119, %v2141
    %v2143 = vrot.slane %v1295, 7
    %v2144 = vor.u32 %v2143, %v1291
    %v2145 = vsel %vm1641, %v2124, %v2144
    %v2147 = vshrl.u32 %v1302, 16
    %v2149 = vrot.slane %v2147, 7
    %v2150 = vshll.u32 %v1302, 16
    %v2152 = vor.u32 %v2149, %v2150
    %v2153 = vsel %vm1641, %v2130, %v2152
    %v2155 = vshrl.u32 %v1583, 16
    %v2157 = vrot.slane %v2155, 7
    %v2158 = vshll.u32 %v1583, 16
    %v2160 = vor.u32 %v2157, %v2158
    %v2161 = vsel %vm1641, %v2138, %v2160
    %v2162 = vrot.slane %v1303, 7
    %v2163 = vor.u32 %v2162, %v1299
    %v2164 = vsel %vm1641, %v2143, %v2163
    %v2166 = vshrl.u32 %v1310, 16
    %v2168 = vrot.slane %v2166, 7
    %v2169 = vshll.u32 %v1310, 16
    %v2171 = vor.u32 %v2168, %v2169
    %v2172 = vsel %vm1641, %v2149, %v2171
    %v2174 = vshrl.u32 %v1585, 16
    %v2176 = vrot.slane %v2174, 7
    %v2177 = vshll.u32 %v1585, 16
    %v2179 = vor.u32 %v2176, %v2177
    %v2180 = vsel %vm1641, %v2157, %v2179
    %v2181 = vrot.slane %v1311, 7
    %v2182 = vor.u32 %v2181, %v1307
    %v2183 = vsel %vm1641, %v2162, %v2182
    %v2185 = vshrl.u32 %v1318, 16
    %v2187 = vrot.slane %v2185, 7
    %v2188 = vshll.u32 %v1318, 16
    %v2190 = vor.u32 %v2187, %v2188
    %v2191 = vsel %vm1641, %v2168, %v2190
    %v2193 = vshrl.u32 %v1587, 16
    %v2195 = vrot.slane %v2193, 7
    %v2196 = vshll.u32 %v1587, 16
    %v2198 = vor.u32 %v2195, %v2196
    %v2199 = vsel %vm1641, %v2176, %v2198
    %v2200 = vrot.slane %v1319, 7
    %v2201 = vor.u32 %v2200, %v1315
    %v2202 = vsel %vm1641, %v2181, %v2201
    %v2204 = vshrl.u32 %v1326, 16
    %v2206 = vrot.slane %v2204, 7
    %v2207 = vshll.u32 %v1326, 16
    %v2209 = vor.u32 %v2206, %v2207
    %v2210 = vsel %vm1641, %v2187, %v2209
    %v2212 = vshrl.u32 %v1589, 16
    %v2214 = vrot.slane %v2212, 7
    %v2215 = vshll.u32 %v1589, 16
    %v2217 = vor.u32 %v2214, %v2215
    %v2218 = vsel %vm1641, %v2195, %v2217
    %v2219 = vrot.slane %v1327, 7
    %v2220 = vor.u32 %v2219, %v1323
    %v2221 = vsel %vm1641, %v2200, %v2220
    %v2223 = vshrl.u32 %v1334, 16
    %v2225 = vrot.slane %v2223, 7
    %v2226 = vshll.u32 %v1334, 16
    %v2228 = vor.u32 %v2225, %v2226
    %v2229 = vsel %vm1641, %v2206, %v2228
    %v2231 = vshrl.u32 %v1591, 16
    %v2233 = vrot.slane %v2231, 7
    %v2234 = vshll.u32 %v1591, 16
    %v2236 = vor.u32 %v2233, %v2234
    %v2237 = vsel %vm1641, %v2214, %v2236
    %v2238 = vrot.slane %v1335, 7
    %v2239 = vor.u32 %v2238, %v1331
    %v2240 = vsel %vm1641, %v2219, %v2239
    %v2242 = vshrl.u32 %v1342, 16
    %v2244 = vrot.slane %v2242, 7
    %v2245 = vshll.u32 %v1342, 16
    %v2247 = vor.u32 %v2244, %v2245
    %v2248 = vsel %vm1641, %v2225, %v2247
    %v2250 = vshrl.u32 %v1593, 16
    %v2252 = vrot.slane %v2250, 7
    %v2253 = vshll.u32 %v1593, 16
    %v2255 = vor.u32 %v2252, %v2253
    %v2256 = vsel %vm1641, %v2233, %v2255
    %v2257 = vrot.slane %v1343, 7
    %v2258 = vor.u32 %v2257, %v1339
    %v2259 = vsel %vm1641, %v2238, %v2258
    %v2261 = vshrl.u32 %v1350, 16
    %v2263 = vrot.slane %v2261, 7
    %v2264 = vshll.u32 %v1350, 16
    %v2266 = vor.u32 %v2263, %v2264
    %v2267 = vsel %vm1641, %v2244, %v2266
    %v2269 = vshrl.u32 %v1595, 16
    %v2271 = vrot.slane %v2269, 7
    %v2272 = vshll.u32 %v1595, 16
    %v2274 = vor.u32 %v2271, %v2272
    %v2275 = vsel %vm1641, %v2252, %v2274
    %v2276 = vrot.slane %v1351, 7
    %v2277 = vor.u32 %v2276, %v1347
    %v2278 = vsel %vm1641, %v2257, %v2277
    %v2280 = vshrl.u32 %v1358, 16
    %v2282 = vrot.slane %v2280, 7
    %v2283 = vshll.u32 %v1358, 16
    %v2285 = vor.u32 %v2282, %v2283
    %v2286 = vsel %vm1641, %v2263, %v2285
    %v2288 = vshrl.u32 %v1597, 16
    %v2290 = vrot.slane %v2288, 7
    %v2291 = vshll.u32 %v1597, 16
    %v2293 = vor.u32 %v2290, %v2291
    %v2294 = vsel %vm1641, %v2271, %v2293
    %v2295 = vrot.slane %v1359, 7
    %v2296 = vor.u32 %v2295, %v1355
    %v2297 = vsel %vm1641, %v2276, %v2296
    %v2299 = vshrl.u32 %v1366, 16
    %v2301 = vrot.slane %v2299, 7
    %v2302 = vshll.u32 %v1366, 16
    %v2304 = vor.u32 %v2301, %v2302
    %v2305 = vsel %vm1641, %v2282, %v2304
    %v2307 = vshrl.u32 %v1599, 16
    %v2309 = vrot.slane %v2307, 7
    %v2310 = vshll.u32 %v1599, 16
    %v2312 = vor.u32 %v2309, %v2310
    %v2313 = vsel %vm1641, %v2290, %v2312
    %v2314 = vrot.slane %v1367, 7
    %v2315 = vor.u32 %v2314, %v1363
    %v2316 = vsel %vm1641, %v2295, %v2315
    %v2318 = vshrl.u32 %v1374, 16
    %v2320 = vrot.slane %v2318, 7
    %v2321 = vshll.u32 %v1374, 16
    %v2323 = vor.u32 %v2320, %v2321
    %v2324 = vsel %vm1641, %v2301, %v2323
    %v2326 = vshrl.u32 %v1601, 16
    %v2328 = vrot.slane %v2326, 7
    %v2329 = vshll.u32 %v1601, 16
    %v2331 = vor.u32 %v2328, %v2329
    %v2332 = vsel %vm1641, %v2309, %v2331
    %v2333 = vrot.slane %v1375, 7
    %v2334 = vor.u32 %v2333, %v1371
    %v2335 = vsel %vm1641, %v2314, %v2334
    %v2337 = vshrl.u32 %v1382, 16
    %v2339 = vrot.slane %v2337, 7
    %v2340 = vshll.u32 %v1382, 16
    %v2342 = vor.u32 %v2339, %v2340
    %v2343 = vsel %vm1641, %v2320, %v2342
    %v2345 = vshrl.u32 %v1603, 16
    %v2347 = vrot.slane %v2345, 7
    %v2348 = vshll.u32 %v1603, 16
    %v2350 = vor.u32 %v2347, %v2348
    %v2351 = vsel %vm1641, %v2328, %v2350
    %v2352 = vrot.slane %v1383, 7
    %v2353 = vor.u32 %v2352, %v1379
    %v2354 = vsel %vm1641, %v2333, %v2353
    %v2356 = vshrl.u32 %v1390, 16
    %v2358 = vrot.slane %v2356, 7
    %v2359 = vshll.u32 %v1390, 16
    %v2361 = vor.u32 %v2358, %v2359
    %v2362 = vsel %vm1641, %v2339, %v2361
    %v2364 = vshrl.u32 %v1605, 16
    %v2366 = vrot.slane %v2364, 7
    %v2367 = vshll.u32 %v1605, 16
    %v2369 = vor.u32 %v2366, %v2367
    %v2370 = vsel %vm1641, %v2347, %v2369
    %v2371 = vrot.slane %v1391, 7
    %v2372 = vor.u32 %v2371, %v1387
    %v2373 = vsel %vm1641, %v2352, %v2372
    %v2375 = vshrl.u32 %v1398, 16
    %v2377 = vrot.slane %v2375, 7
    %v2378 = vshll.u32 %v1398, 16
    %v2380 = vor.u32 %v2377, %v2378
    %v2381 = vsel %vm1641, %v2358, %v2380
    %v2383 = vshrl.u32 %v1607, 16
    %v2385 = vrot.slane %v2383, 7
    %v2386 = vshll.u32 %v1607, 16
    %v2388 = vor.u32 %v2385, %v2386
    %v2389 = vsel %vm1641, %v2366, %v2388
    %v2390 = vrot.slane %v1399, 7
    %v2391 = vor.u32 %v2390, %v1395
    %v2392 = vsel %vm1641, %v2371, %v2391
    %v2394 = vshrl.u32 %v1406, 16
    %v2396 = vrot.slane %v2394, 7
    %v2397 = vshll.u32 %v1406, 16
    %v2399 = vor.u32 %v2396, %v2397
    %v2400 = vsel %vm1641, %v2377, %v2399
    %v2402 = vshrl.u32 %v1609, 16
    %v2404 = vrot.slane %v2402, 7
    %v2405 = vshll.u32 %v1609, 16
    %v2407 = vor.u32 %v2404, %v2405
    %v2408 = vsel %vm1641, %v2385, %v2407
    %v2409 = vrot.slane %v1407, 7
    %v2410 = vor.u32 %v2409, %v1403
    %v2411 = vsel %vm1641, %v2390, %v2410
    %v2413 = vshrl.u32 %v1414, 16
    %v2415 = vrot.slane %v2413, 7
    %v2416 = vshll.u32 %v1414, 16
    %v2418 = vor.u32 %v2415, %v2416
    %v2419 = vsel %vm1641, %v2396, %v2418
    %v2421 = vshrl.u32 %v1611, 16
    %v2423 = vrot.slane %v2421, 7
    %v2424 = vshll.u32 %v1611, 16
    %v2426 = vor.u32 %v2423, %v2424
    %v2427 = vsel %vm1641, %v2404, %v2426
    %v2428 = vrot.slane %v1415, 7
    %v2429 = vor.u32 %v2428, %v1411
    %v2430 = vsel %vm1641, %v2409, %v2429
    %v2432 = vshrl.u32 %v1422, 16
    %v2434 = vrot.slane %v2432, 7
    %v2435 = vshll.u32 %v1422, 16
    %v2437 = vor.u32 %v2434, %v2435
    %v2438 = vsel %vm1641, %v2415, %v2437
    %v2440 = vshrl.u32 %v1613, 16
    %v2442 = vrot.slane %v2440, 7
    %v2443 = vshll.u32 %v1613, 16
    %v2445 = vor.u32 %v2442, %v2443
    %v2446 = vsel %vm1641, %v2423, %v2445
    %v2447 = vrot.slane %v1423, 7
    %v2448 = vor.u32 %v2447, %v1419
    %v2449 = vsel %vm1641, %v2428, %v2448
    %v2451 = vshrl.u32 %v1430, 16
    %v2453 = vrot.slane %v2451, 7
    %v2454 = vshll.u32 %v1430, 16
    %v2456 = vor.u32 %v2453, %v2454
    %v2457 = vsel %vm1641, %v2434, %v2456
    %v2459 = vshrl.u32 %v1615, 16
    %v2461 = vrot.slane %v2459, 7
    %v2462 = vshll.u32 %v1615, 16
    %v2464 = vor.u32 %v2461, %v2462
    %v2465 = vsel %vm1641, %v2442, %v2464
    %v2466 = vrot.slane %v1431, 7
    %v2467 = vor.u32 %v2466, %v1427
    %v2468 = vsel %vm1641, %v2447, %v2467
    %v2470 = vshrl.u32 %v1438, 16
    %v2472 = vrot.slane %v2470, 7
    %v2473 = vshll.u32 %v1438, 16
    %v2475 = vor.u32 %v2472, %v2473
    %v2476 = vsel %vm1641, %v2453, %v2475
    %v2478 = vshrl.u32 %v1617, 16
    %v2480 = vrot.slane %v2478, 7
    %v2481 = vshll.u32 %v1617, 16
    %v2483 = vor.u32 %v2480, %v2481
    %v2484 = vsel %vm1641, %v2461, %v2483
    %v2485 = vrot.slane %v1439, 7
    %v2486 = vor.u32 %v2485, %v1435
    %v2487 = vsel %vm1641, %v2466, %v2486
    %v2489 = vshrl.u32 %v1446, 16
    %v2491 = vrot.slane %v2489, 7
    %v2492 = vshll.u32 %v1446, 16
    %v2494 = vor.u32 %v2491, %v2492
    %v2495 = vsel %vm1641, %v2472, %v2494
    %v2497 = vshrl.u32 %v1619, 16
    %v2499 = vrot.slane %v2497, 7
    %v2500 = vshll.u32 %v1619, 16
    %v2502 = vor.u32 %v2499, %v2500
    %v2503 = vsel %vm1641, %v2480, %v2502
    %v2504 = vrot.slane %v1447, 7
    %v2505 = vor.u32 %v2504, %v1443
    %v2506 = vsel %vm1641, %v2485, %v2505
    %v2508 = vshrl.u32 %v1454, 16
    %v2510 = vrot.slane %v2508, 7
    %v2511 = vshll.u32 %v1454, 16
    %v2513 = vor.u32 %v2510, %v2511
    %v2514 = vsel %vm1641, %v2491, %v2513
    %v2516 = vshrl.u32 %v1621, 16
    %v2518 = vrot.slane %v2516, 7
    %v2519 = vshll.u32 %v1621, 16
    %v2521 = vor.u32 %v2518, %v2519
    %v2522 = vsel %vm1641, %v2499, %v2521
    %v2523 = vrot.slane %v1455, 7
    %v2524 = vor.u32 %v2523, %v1451
    %v2525 = vsel %vm1641, %v2504, %v2524
    %v2527 = vshrl.u32 %v1462, 16
    %v2529 = vrot.slane %v2527, 7
    %v2530 = vshll.u32 %v1462, 16
    %v2532 = vor.u32 %v2529, %v2530
    %v2533 = vsel %vm1641, %v2510, %v2532
    %v2535 = vshrl.u32 %v1623, 16
    %v2537 = vrot.slane %v2535, 7
    %v2538 = vshll.u32 %v1623, 16
    %v2540 = vor.u32 %v2537, %v2538
    %v2541 = vsel %vm1641, %v2518, %v2540
    %v2542 = vrot.slane %v1463, 7
    %v2543 = vor.u32 %v2542, %v1459
    %v2544 = vsel %vm1641, %v2523, %v2543
    %v2546 = vshrl.u32 %v1470, 16
    %v2548 = vrot.slane %v2546, 7
    %v2549 = vshll.u32 %v1470, 16
    %v2551 = vor.u32 %v2548, %v2549
    %v2552 = vsel %vm1641, %v2529, %v2551
    %v2554 = vshrl.u32 %v1625, 16
    %v2556 = vrot.slane %v2554, 7
    %v2557 = vshll.u32 %v1625, 16
    %v2559 = vor.u32 %v2556, %v2557
    %v2560 = vsel %vm1641, %v2537, %v2559
    %v2561 = vrot.slane %v1471, 7
    %v2562 = vor.u32 %v2561, %v1467
    %v2563 = vsel %vm1641, %v2542, %v2562
    %v2565 = vshrl.u32 %v1478, 16
    %v2567 = vrot.slane %v2565, 7
    %v2568 = vshll.u32 %v1478, 16
    %v2570 = vor.u32 %v2567, %v2568
    %v2571 = vsel %vm1641, %v2548, %v2570
    %v2573 = vshrl.u32 %v1627, 16
    %v2575 = vrot.slane %v2573, 7
    %v2576 = vshll.u32 %v1627, 16
    %v2578 = vor.u32 %v2575, %v2576
    %v2579 = vsel %vm1641, %v2556, %v2578
    %v2580 = vrot.slane %v1479, 7
    %v2581 = vor.u32 %v2580, %v1475
    %v2582 = vsel %vm1641, %v2561, %v2581
    %v2584 = vshrl.u32 %v1486, 16
    %v2586 = vrot.slane %v2584, 7
    %v2587 = vshll.u32 %v1486, 16
    %v2589 = vor.u32 %v2586, %v2587
    %v2590 = vsel %vm1641, %v2567, %v2589
    %v2592 = vshrl.u32 %v1629, 16
    %v2594 = vrot.slane %v2592, 7
    %v2595 = vshll.u32 %v1629, 16
    %v2597 = vor.u32 %v2594, %v2595
    %v2598 = vsel %vm1641, %v2575, %v2597
    %v2599 = vrot.slane %v1487, 7
    %v2600 = vor.u32 %v2599, %v1483
    %v2601 = vsel %vm1641, %v2580, %v2600
    %v2603 = vshrl.u32 %v1494, 16
    %v2605 = vrot.slane %v2603, 7
    %v2606 = vshll.u32 %v1494, 16
    %v2608 = vor.u32 %v2605, %v2606
    %v2609 = vsel %vm1641, %v2586, %v2608
    %v2611 = vshrl.u32 %v1631, 16
    %v2613 = vrot.slane %v2611, 7
    %v2614 = vshll.u32 %v1631, 16
    %v2616 = vor.u32 %v2613, %v2614
    %v2617 = vsel %vm1641, %v2594, %v2616
    %v2618 = vrot.slane %v1495, 7
    %v2619 = vor.u32 %v2618, %v1491
    %v2620 = vsel %vm1641, %v2599, %v2619
    %v2622 = vshrl.u32 %v1502, 16
    %v2624 = vrot.slane %v2622, 7
    %v2625 = vshll.u32 %v1502, 16
    %v2627 = vor.u32 %v2624, %v2625
    %v2628 = vsel %vm1641, %v2605, %v2627
    %v2630 = vshrl.u32 %v1633, 16
    %v2632 = vrot.slane %v2630, 7
    %v2633 = vshll.u32 %v1633, 16
    %v2635 = vor.u32 %v2632, %v2633
    %v2636 = vsel %vm1641, %v2613, %v2635
    %v2637 = vrot.slane %v1503, 7
    %v2638 = vor.u32 %v2637, %v1499
    %v2639 = vsel %vm1641, %v2618, %v2638
    %v2641 = vshrl.u32 %v1510, 16
    %v2643 = vrot.slane %v2641, 7
    %v2644 = vshll.u32 %v1510, 16
    %v2646 = vor.u32 %v2643, %v2644
    %v2647 = vsel %vm1641, %v2624, %v2646
    %v2649 = vshrl.u32 %v1635, 16
    %v2651 = vrot.slane %v2649, 7
    %v2652 = vshll.u32 %v1635, 16
    %v2654 = vor.u32 %v2651, %v2652
    %v2655 = vsel %vm1641, %v2632, %v2654
    %v2656 = vrot.slane %v1511, 7
    %v2657 = vor.u32 %v2656, %v1507
    %v2658 = vsel %vm1641, %v2637, %v2657
    %v2660 = vshrl.u32 %v1518, 16
    %v2662 = vrot.slane %v2660, 7
    %v2663 = vshll.u32 %v1518, 16
    %v2665 = vor.u32 %v2662, %v2663
    %v2666 = vsel %vm1641, %v2643, %v2665
    %v2668 = vshrl.u32 %v1637, 16
    %v2670 = vrot.slane %v2668, 7
    %v2671 = vshll.u32 %v1637, 16
    %v2673 = vor.u32 %v2670, %v2671
    %v2674 = vsel %vm1641, %v2651, %v2673
    %v2675 = vor.u32 %v1642, %v1515
    %v2676 = vsel %vm1641, %v2656, %v2675
    %v2677 = vshll.u32 %v1526, 16
    %v2679 = vor.u32 %v1649, %v2677
    %v2680 = vsel %vm1641, %v2662, %v2679
    %v2681 = vshll.u32 %v1639, 16
    %v2683 = vor.u32 %v1661, %v2681
    %v2684 = vsel %vm1641, %v2670, %v2683
    %v2843 = vsel %vm1095, %v1672, %v1671
    %v2847 = vsel %vm1095, %v1680, %v1698
    %v2851 = vsel %vm1095, %v1688, %v1705
    %vm2853 = vsmask.f32 4352
    %v2854 = vrot.slane %v1100, 3
    %v2855 = vrot.slane %v1102, 4
    %v2856 = vor.u32 %v2854, %v2855
    %v2857 = vrot.slane %v1111, 3
    %v2858 = vrot.slane %v1107, 4
    %v2859 = vor.u32 %v2857, %v2858
    %v2860 = vsel %vm2853, %v2856, %v2859
    %v2861 = vrot.slane %v1693, 3
    %v2862 = vrot.slane %v1696, 4
    %v2863 = vor.u32 %v2861, %v2862
    %v2864 = vrot.slane %v1710, 3
    %v2865 = vrot.slane %v1713, 4
    %v2866 = vor.u32 %v2864, %v2865
    %v2867 = vsel %vm2853, %v2863, %v2866
    %v2868 = vrot.slane %v1700, 3
    %v2869 = vrot.slane %v1703, 4
    %v2870 = vor.u32 %v2868, %v2869
    %v2871 = vrot.slane %v1718, 3
    %v2872 = vrot.slane %v1721, 4
    %v2873 = vor.u32 %v2871, %v2872
    %v2874 = vsel %vm2853, %v2870, %v2873
    %v2875 = vrot.slane %v1119, 3
    %v2876 = vrot.slane %v1115, 4
    %v2877 = vor.u32 %v2875, %v2876
    %v2878 = vsel %vm2853, %v2859, %v2877
    %v2879 = vrot.slane %v1729, 3
    %v2880 = vrot.slane %v1732, 4
    %v2881 = vor.u32 %v2879, %v2880
    %v2882 = vsel %vm2853, %v2866, %v2881
    %v2883 = vrot.slane %v1737, 3
    %v2884 = vrot.slane %v1740, 4
    %v2885 = vor.u32 %v2883, %v2884
    %v2886 = vsel %vm2853, %v2873, %v2885
    %v2887 = vrot.slane %v1127, 3
    %v2888 = vrot.slane %v1123, 4
    %v2889 = vor.u32 %v2887, %v2888
    %v2890 = vsel %vm2853, %v2877, %v2889
    %v2891 = vrot.slane %v1748, 3
    %v2892 = vrot.slane %v1751, 4
    %v2893 = vor.u32 %v2891, %v2892
    %v2894 = vsel %vm2853, %v2881, %v2893
    %v2895 = vrot.slane %v1756, 3
    %v2896 = vrot.slane %v1759, 4
    %v2897 = vor.u32 %v2895, %v2896
    %v2898 = vsel %vm2853, %v2885, %v2897
    %v2899 = vrot.slane %v1135, 3
    %v2900 = vrot.slane %v1131, 4
    %v2901 = vor.u32 %v2899, %v2900
    %v2902 = vsel %vm2853, %v2889, %v2901
    %v2903 = vrot.slane %v1767, 3
    %v2904 = vrot.slane %v1770, 4
    %v2905 = vor.u32 %v2903, %v2904
    %v2906 = vsel %vm2853, %v2893, %v2905
    %v2907 = vrot.slane %v1775, 3
    %v2908 = vrot.slane %v1778, 4
    %v2909 = vor.u32 %v2907, %v2908
    %v2910 = vsel %vm2853, %v2897, %v2909
    %v2911 = vrot.slane %v1143, 3
    %v2912 = vrot.slane %v1139, 4
    %v2913 = vor.u32 %v2911, %v2912
    %v2914 = vsel %vm2853, %v2901, %v2913
    %v2915 = vrot.slane %v1786, 3
    %v2916 = vrot.slane %v1789, 4
    %v2917 = vor.u32 %v2915, %v2916
    %v2918 = vsel %vm2853, %v2905, %v2917
    %v2919 = vrot.slane %v1794, 3
    %v2920 = vrot.slane %v1797, 4
    %v2921 = vor.u32 %v2919, %v2920
    %v2922 = vsel %vm2853, %v2909, %v2921
    %v2923 = vrot.slane %v1151, 3
    %v2924 = vrot.slane %v1147, 4
    %v2925 = vor.u32 %v2923, %v2924
    %v2926 = vsel %vm2853, %v2913, %v2925
    %v2927 = vrot.slane %v1805, 3
    %v2928 = vrot.slane %v1808, 4
    %v2929 = vor.u32 %v2927, %v2928
    %v2930 = vsel %vm2853, %v2917, %v2929
    %v2931 = vrot.slane %v1813, 3
    %v2932 = vrot.slane %v1816, 4
    %v2933 = vor.u32 %v2931, %v2932
    %v2934 = vsel %vm2853, %v2921, %v2933
    %v2935 = vrot.slane %v1159, 3
    %v2936 = vrot.slane %v1155, 4
    %v2937 = vor.u32 %v2935, %v2936
    %v2938 = vsel %vm2853, %v2925, %v2937
    %v2939 = vrot.slane %v1824, 3
    %v2940 = vrot.slane %v1827, 4
    %v2941 = vor.u32 %v2939, %v2940
    %v2942 = vsel %vm2853, %v2929, %v2941
    %v2943 = vrot.slane %v1832, 3
    %v2944 = vrot.slane %v1835, 4
    %v2945 = vor.u32 %v2943, %v2944
    %v2946 = vsel %vm2853, %v2933, %v2945
    %v2947 = vrot.slane %v1167, 3
    %v2948 = vrot.slane %v1163, 4
    %v2949 = vor.u32 %v2947, %v2948
    %v2950 = vsel %vm2853, %v2937, %v2949
    %v2951 = vrot.slane %v1843, 3
    %v2952 = vrot.slane %v1846, 4
    %v2953 = vor.u32 %v2951, %v2952
    %v2954 = vsel %vm2853, %v2941, %v2953
    %v2955 = vrot.slane %v1851, 3
    %v2956 = vrot.slane %v1854, 4
    %v2957 = vor.u32 %v2955, %v2956
    %v2958 = vsel %vm2853, %v2945, %v2957
    %v2959 = vrot.slane %v1175, 3
    %v2960 = vrot.slane %v1171, 4
    %v2961 = vor.u32 %v2959, %v2960
    %v2962 = vsel %vm2853, %v2949, %v2961
    %v2963 = vrot.slane %v1862, 3
    %v2964 = vrot.slane %v1865, 4
    %v2965 = vor.u32 %v2963, %v2964
    %v2966 = vsel %vm2853, %v2953, %v2965
    %v2967 = vrot.slane %v1870, 3
    %v2968 = vrot.slane %v1873, 4
    %v2969 = vor.u32 %v2967, %v2968
    %v2970 = vsel %vm2853, %v2957, %v2969
    %v2971 = vrot.slane %v1183, 3
    %v2972 = vrot.slane %v1179, 4
    %v2973 = vor.u32 %v2971, %v2972
    %v2974 = vsel %vm2853, %v2961, %v2973
    %v2975 = vrot.slane %v1881, 3
    %v2976 = vrot.slane %v1884, 4
    %v2977 = vor.u32 %v2975, %v2976
    %v2978 = vsel %vm2853, %v2965, %v2977
    %v2979 = vrot.slane %v1889, 3
    %v2980 = vrot.slane %v1892, 4
    %v2981 = vor.u32 %v2979, %v2980
    %v2982 = vsel %vm2853, %v2969, %v2981
    %v2983 = vrot.slane %v1191, 3
    %v2984 = vrot.slane %v1187, 4
    %v2985 = vor.u32 %v2983, %v2984
    %v2986 = vsel %vm2853, %v2973, %v2985
    %v2987 = vrot.slane %v1900, 3
    %v2988 = vrot.slane %v1903, 4
    %v2989 = vor.u32 %v2987, %v2988
    %v2990 = vsel %vm2853, %v2977, %v2989
    %v2991 = vrot.slane %v1908, 3
    %v2992 = vrot.slane %v1911, 4
    %v2993 = vor.u32 %v2991, %v2992
    %v2994 = vsel %vm2853, %v2981, %v2993
    %v2995 = vrot.slane %v1199, 3
    %v2996 = vrot.slane %v1195, 4
    %v2997 = vor.u32 %v2995, %v2996
    %v2998 = vsel %vm2853, %v2985, %v2997
    %v2999 = vrot.slane %v1919, 3
    %v3000 = vrot.slane %v1922, 4
    %v3001 = vor.u32 %v2999, %v3000
    %v3002 = vsel %vm2853, %v2989, %v3001
    %v3003 = vrot.slane %v1927, 3
    %v3004 = vrot.slane %v1930, 4
    %v3005 = vor.u32 %v3003, %v3004
    %v3006 = vsel %vm2853, %v2993, %v3005
    %v3007 = vrot.slane %v1207, 3
    %v3008 = vrot.slane %v1203, 4
    %v3009 = vor.u32 %v3007, %v3008
    %v3010 = vsel %vm2853, %v2997, %v3009
    %v3011 = vrot.slane %v1938, 3
    %v3012 = vrot.slane %v1941, 4
    %v3013 = vor.u32 %v3011, %v3012
    %v3014 = vsel %vm2853, %v3001, %v3013
    %v3015 = vrot.slane %v1946, 3
    %v3016 = vrot.slane %v1949, 4
    %v3017 = vor.u32 %v3015, %v3016
    %v3018 = vsel %vm2853, %v3005, %v3017
    %v3019 = vrot.slane %v1215, 3
    %v3020 = vrot.slane %v1211, 4
    %v3021 = vor.u32 %v3019, %v3020
    %v3022 = vsel %vm2853, %v3009, %v3021
    %v3023 = vrot.slane %v1957, 3
    %v3024 = vrot.slane %v1960, 4
    %v3025 = vor.u32 %v3023, %v3024
    %v3026 = vsel %vm2853, %v3013, %v3025
    %v3027 = vrot.slane %v1965, 3
    %v3028 = vrot.slane %v1968, 4
    %v3029 = vor.u32 %v3027, %v3028
    %v3030 = vsel %vm2853, %v3017, %v3029
    %v3031 = vrot.slane %v1223, 3
    %v3032 = vrot.slane %v1219, 4
    %v3033 = vor.u32 %v3031, %v3032
    %v3034 = vsel %vm2853, %v3021, %v3033
    %v3035 = vrot.slane %v1976, 3
    %v3036 = vrot.slane %v1979, 4
    %v3037 = vor.u32 %v3035, %v3036
    %v3038 = vsel %vm2853, %v3025, %v3037
    %v3039 = vrot.slane %v1984, 3
    %v3040 = vrot.slane %v1987, 4
    %v3041 = vor.u32 %v3039, %v3040
    %v3042 = vsel %vm2853, %v3029, %v3041
    %v3043 = vrot.slane %v1231, 3
    %v3044 = vrot.slane %v1227, 4
    %v3045 = vor.u32 %v3043, %v3044
    %v3046 = vsel %vm2853, %v3033, %v3045
    %v3047 = vrot.slane %v1995, 3
    %v3048 = vrot.slane %v1998, 4
    %v3049 = vor.u32 %v3047, %v3048
    %v3050 = vsel %vm2853, %v3037, %v3049
    %v3051 = vrot.slane %v2003, 3
    %v3052 = vrot.slane %v2006, 4
    %v3053 = vor.u32 %v3051, %v3052
    %v3054 = vsel %vm2853, %v3041, %v3053
    %v3055 = vrot.slane %v1239, 3
    %v3056 = vrot.slane %v1235, 4
    %v3057 = vor.u32 %v3055, %v3056
    %v3058 = vsel %vm2853, %v3045, %v3057
    %v3059 = vrot.slane %v2014, 3
    %v3060 = vrot.slane %v2017, 4
    %v3061 = vor.u32 %v3059, %v3060
    %v3062 = vsel %vm2853, %v3049, %v3061
    %v3063 = vrot.slane %v2022, 3
    %v3064 = vrot.slane %v2025, 4
    %v3065 = vor.u32 %v3063, %v3064
    %v3066 = vsel %vm2853, %v3053, %v3065
    %v3067 = vrot.slane %v1247, 3
    %v3068 = vrot.slane %v1243, 4
    %v3069 = vor.u32 %v3067, %v3068
    %v3070 = vsel %vm2853, %v3057, %v3069
    %v3071 = vrot.slane %v2033, 3
    %v3072 = vrot.slane %v2036, 4
    %v3073 = vor.u32 %v3071, %v3072
    %v3074 = vsel %vm2853, %v3061, %v3073
    %v3075 = vrot.slane %v2041, 3
    %v3076 = vrot.slane %v2044, 4
    %v3077 = vor.u32 %v3075, %v3076
    %v3078 = vsel %vm2853, %v3065, %v3077
    %v3079 = vrot.slane %v1255, 3
    %v3080 = vrot.slane %v1251, 4
    %v3081 = vor.u32 %v3079, %v3080
    %v3082 = vsel %vm2853, %v3069, %v3081
    %v3083 = vrot.slane %v2052, 3
    %v3084 = vrot.slane %v2055, 4
    %v3085 = vor.u32 %v3083, %v3084
    %v3086 = vsel %vm2853, %v3073, %v3085
    %v3087 = vrot.slane %v2060, 3
    %v3088 = vrot.slane %v2063, 4
    %v3089 = vor.u32 %v3087, %v3088
    %v3090 = vsel %vm2853, %v3077, %v3089
    %v3091 = vrot.slane %v1263, 3
    %v3092 = vrot.slane %v1259, 4
    %v3093 = vor.u32 %v3091, %v3092
    %v3094 = vsel %vm2853, %v3081, %v3093
    %v3095 = vrot.slane %v2071, 3
    %v3096 = vrot.slane %v2074, 4
    %v3097 = vor.u32 %v3095, %v3096
    %v3098 = vsel %vm2853, %v3085, %v3097
    %v3099 = vrot.slane %v2079, 3
    %v3100 = vrot.slane %v2082, 4
    %v3101 = vor.u32 %v3099, %v3100
    %v3102 = vsel %vm2853, %v3089, %v3101
    %v3103 = vrot.slane %v1271, 3
    %v3104 = vrot.slane %v1267, 4
    %v3105 = vor.u32 %v3103, %v3104
    %v3106 = vsel %vm2853, %v3093, %v3105
    %v3107 = vrot.slane %v2090, 3
    %v3108 = vrot.slane %v2093, 4
    %v3109 = vor.u32 %v3107, %v3108
    %v3110 = vsel %vm2853, %v3097, %v3109
    %v3111 = vrot.slane %v2098, 3
    %v3112 = vrot.slane %v2101, 4
    %v3113 = vor.u32 %v3111, %v3112
    %v3114 = vsel %vm2853, %v3101, %v3113
    %v3115 = vrot.slane %v1279, 3
    %v3116 = vrot.slane %v1275, 4
    %v3117 = vor.u32 %v3115, %v3116
    %v3118 = vsel %vm2853, %v3105, %v3117
    %v3119 = vrot.slane %v2109, 3
    %v3120 = vrot.slane %v2112, 4
    %v3121 = vor.u32 %v3119, %v3120
    %v3122 = vsel %vm2853, %v3109, %v3121
    %v3123 = vrot.slane %v2117, 3
    %v3124 = vrot.slane %v2120, 4
    %v3125 = vor.u32 %v3123, %v3124
    %v3126 = vsel %vm2853, %v3113, %v3125
    %v3127 = vrot.slane %v1287, 3
    %v3128 = vrot.slane %v1283, 4
    %v3129 = vor.u32 %v3127, %v3128
    %v3130 = vsel %vm2853, %v3117, %v3129
    %v3131 = vrot.slane %v2128, 3
    %v3132 = vrot.slane %v2131, 4
    %v3133 = vor.u32 %v3131, %v3132
    %v3134 = vsel %vm2853, %v3121, %v3133
    %v3135 = vrot.slane %v2136, 3
    %v3136 = vrot.slane %v2139, 4
    %v3137 = vor.u32 %v3135, %v3136
    %v3138 = vsel %vm2853, %v3125, %v3137
    %v3139 = vrot.slane %v1295, 3
    %v3140 = vrot.slane %v1291, 4
    %v3141 = vor.u32 %v3139, %v3140
    %v3142 = vsel %vm2853, %v3129, %v3141
    %v3143 = vrot.slane %v2147, 3
    %v3144 = vrot.slane %v2150, 4
    %v3145 = vor.u32 %v3143, %v3144
    %v3146 = vsel %vm2853, %v3133, %v3145
    %v3147 = vrot.slane %v2155, 3
    %v3148 = vrot.slane %v2158, 4
    %v3149 = vor.u32 %v3147, %v3148
    %v3150 = vsel %vm2853, %v3137, %v3149
    %v3151 = vrot.slane %v1303, 3
    %v3152 = vrot.slane %v1299, 4
    %v3153 = vor.u32 %v3151, %v3152
    %v3154 = vsel %vm2853, %v3141, %v3153
    %v3155 = vrot.slane %v2166, 3
    %v3156 = vrot.slane %v2169, 4
    %v3157 = vor.u32 %v3155, %v3156
    %v3158 = vsel %vm2853, %v3145, %v3157
    %v3159 = vrot.slane %v2174, 3
    %v3160 = vrot.slane %v2177, 4
    %v3161 = vor.u32 %v3159, %v3160
    %v3162 = vsel %vm2853, %v3149, %v3161
    %v3163 = vrot.slane %v1311, 3
    %v3164 = vrot.slane %v1307, 4
    %v3165 = vor.u32 %v3163, %v3164
    %v3166 = vsel %vm2853, %v3153, %v3165
    %v3167 = vrot.slane %v2185, 3
    %v3168 = vrot.slane %v2188, 4
    %v3169 = vor.u32 %v3167, %v3168
    %v3170 = vsel %vm2853, %v3157, %v3169
    %v3171 = vrot.slane %v2193, 3
    %v3172 = vrot.slane %v2196, 4
    %v3173 = vor.u32 %v3171, %v3172
    %v3174 = vsel %vm2853, %v3161, %v3173
    %v3175 = vrot.slane %v1319, 3
    %v3176 = vrot.slane %v1315, 4
    %v3177 = vor.u32 %v3175, %v3176
    %v3178 = vsel %vm2853, %v3165, %v3177
    %v3179 = vrot.slane %v2204, 3
    %v3180 = vrot.slane %v2207, 4
    %v3181 = vor.u32 %v3179, %v3180
    %v3182 = vsel %vm2853, %v3169, %v3181
    %v3183 = vrot.slane %v2212, 3
    %v3184 = vrot.slane %v2215, 4
    %v3185 = vor.u32 %v3183, %v3184
    %v3186 = vsel %vm2853, %v3173, %v3185
    %v3187 = vrot.slane %v1327, 3
    %v3188 = vrot.slane %v1323, 4
    %v3189 = vor.u32 %v3187, %v3188
    %v3190 = vsel %vm2853, %v3177, %v3189
    %v3191 = vrot.slane %v2223, 3
    %v3192 = vrot.slane %v2226, 4
    %v3193 = vor.u32 %v3191, %v3192
    %v3194 = vsel %vm2853, %v3181, %v3193
    %v3195 = vrot.slane %v2231, 3
    %v3196 = vrot.slane %v2234, 4
    %v3197 = vor.u32 %v3195, %v3196
    %v3198 = vsel %vm2853, %v3185, %v3197
    %v3199 = vrot.slane %v1335, 3
    %v3200 = vrot.slane %v1331, 4
    %v3201 = vor.u32 %v3199, %v3200
    %v3202 = vsel %vm2853, %v3189, %v3201
    %v3203 = vrot.slane %v2242, 3
    %v3204 = vrot.slane %v2245, 4
    %v3205 = vor.u32 %v3203, %v3204
    %v3206 = vsel %vm2853, %v3193, %v3205
    %v3207 = vrot.slane %v2250, 3
    %v3208 = vrot.slane %v2253, 4
    %v3209 = vor.u32 %v3207, %v3208
    %v3210 = vsel %vm2853, %v3197, %v3209
    %v3211 = vrot.slane %v1343, 3
    %v3212 = vrot.slane %v1339, 4
    %v3213 = vor.u32 %v3211, %v3212
    %v3214 = vsel %vm2853, %v3201, %v3213
    %v3215 = vrot.slane %v2261, 3
    %v3216 = vrot.slane %v2264, 4
    %v3217 = vor.u32 %v3215, %v3216
    %v3218 = vsel %vm2853, %v3205, %v3217
    %v3219 = vrot.slane %v2269, 3
    %v3220 = vrot.slane %v2272, 4
    %v3221 = vor.u32 %v3219, %v3220
    %v3222 = vsel %vm2853, %v3209, %v3221
    %v3223 = vrot.slane %v1351, 3
    %v3224 = vrot.slane %v1347, 4
    %v3225 = vor.u32 %v3223, %v3224
    %v3226 = vsel %vm2853, %v3213, %v3225
    %v3227 = vrot.slane %v2280, 3
    %v3228 = vrot.slane %v2283, 4
    %v3229 = vor.u32 %v3227, %v3228
    %v3230 = vsel %vm2853, %v3217, %v3229
    %v3231 = vrot.slane %v2288, 3
    %v3232 = vrot.slane %v2291, 4
    %v3233 = vor.u32 %v3231, %v3232
    %v3234 = vsel %vm2853, %v3221, %v3233
    %v3235 = vrot.slane %v1359, 3
    %v3236 = vrot.slane %v1355, 4
    %v3237 = vor.u32 %v3235, %v3236
    %v3238 = vsel %vm2853, %v3225, %v3237
    %v3239 = vrot.slane %v2299, 3
    %v3240 = vrot.slane %v2302, 4
    %v3241 = vor.u32 %v3239, %v3240
    %v3242 = vsel %vm2853, %v3229, %v3241
    %v3243 = vrot.slane %v2307, 3
    %v3244 = vrot.slane %v2310, 4
    %v3245 = vor.u32 %v3243, %v3244
    %v3246 = vsel %vm2853, %v3233, %v3245
    %v3247 = vrot.slane %v1367, 3
    %v3248 = vrot.slane %v1363, 4
    %v3249 = vor.u32 %v3247, %v3248
    %v3250 = vsel %vm2853, %v3237, %v3249
    %v3251 = vrot.slane %v2318, 3
    %v3252 = vrot.slane %v2321, 4
    %v3253 = vor.u32 %v3251, %v3252
    %v3254 = vsel %vm2853, %v3241, %v3253
    %v3255 = vrot.slane %v2326, 3
    %v3256 = vrot.slane %v2329, 4
    %v3257 = vor.u32 %v3255, %v3256
    %v3258 = vsel %vm2853, %v3245, %v3257
    %v3259 = vrot.slane %v1375, 3
    %v3260 = vrot.slane %v1371, 4
    %v3261 = vor.u32 %v3259, %v3260
    %v3262 = vsel %vm2853, %v3249, %v3261
    %v3263 = vrot.slane %v2337, 3
    %v3264 = vrot.slane %v2340, 4
    %v3265 = vor.u32 %v3263, %v3264
    %v3266 = vsel %vm2853, %v3253, %v3265
    %v3267 = vrot.slane %v2345, 3
    %v3268 = vrot.slane %v2348, 4
    %v3269 = vor.u32 %v3267, %v3268
    %v3270 = vsel %vm2853, %v3257, %v3269
    %v3271 = vrot.slane %v1383, 3
    %v3272 = vrot.slane %v1379, 4
    %v3273 = vor.u32 %v3271, %v3272
    %v3274 = vsel %vm2853, %v3261, %v3273
    %v3275 = vrot.slane %v2356, 3
    %v3276 = vrot.slane %v2359, 4
    %v3277 = vor.u32 %v3275, %v3276
    %v3278 = vsel %vm2853, %v3265, %v3277
    %v3279 = vrot.slane %v2364, 3
    %v3280 = vrot.slane %v2367, 4
    %v3281 = vor.u32 %v3279, %v3280
    %v3282 = vsel %vm2853, %v3269, %v3281
    %v3283 = vrot.slane %v1391, 3
    %v3284 = vrot.slane %v1387, 4
    %v3285 = vor.u32 %v3283, %v3284
    %v3286 = vsel %vm2853, %v3273, %v3285
    %v3287 = vrot.slane %v2375, 3
    %v3288 = vrot.slane %v2378, 4
    %v3289 = vor.u32 %v3287, %v3288
    %v3290 = vsel %vm2853, %v3277, %v3289
    %v3291 = vrot.slane %v2383, 3
    %v3292 = vrot.slane %v2386, 4
    %v3293 = vor.u32 %v3291, %v3292
    %v3294 = vsel %vm2853, %v3281, %v3293
    %v3295 = vrot.slane %v1399, 3
    %v3296 = vrot.slane %v1395, 4
    %v3297 = vor.u32 %v3295, %v3296
    %v3298 = vsel %vm2853, %v3285, %v3297
    %v3299 = vrot.slane %v2394, 3
    %v3300 = vrot.slane %v2397, 4
    %v3301 = vor.u32 %v3299, %v3300
    %v3302 = vsel %vm2853, %v3289, %v3301
    %v3303 = vrot.slane %v2402, 3
    %v3304 = vrot.slane %v2405, 4
    %v3305 = vor.u32 %v3303, %v3304
    %v3306 = vsel %vm2853, %v3293, %v3305
    %v3307 = vrot.slane %v1407, 3
    %v3308 = vrot.slane %v1403, 4
    %v3309 = vor.u32 %v3307, %v3308
    %v3310 = vsel %vm2853, %v3297, %v3309
    %v3311 = vrot.slane %v2413, 3
    %v3312 = vrot.slane %v2416, 4
    %v3313 = vor.u32 %v3311, %v3312
    %v3314 = vsel %vm2853, %v3301, %v3313
    %v3315 = vrot.slane %v2421, 3
    %v3316 = vrot.slane %v2424, 4
    %v3317 = vor.u32 %v3315, %v3316
    %v3318 = vsel %vm2853, %v3305, %v3317
    %v3319 = vrot.slane %v1415, 3
    %v3320 = vrot.slane %v1411, 4
    %v3321 = vor.u32 %v3319, %v3320
    %v3322 = vsel %vm2853, %v3309, %v3321
    %v3323 = vrot.slane %v2432, 3
    %v3324 = vrot.slane %v2435, 4
    %v3325 = vor.u32 %v3323, %v3324
    %v3326 = vsel %vm2853, %v3313, %v3325
    %v3327 = vrot.slane %v2440, 3
    %v3328 = vrot.slane %v2443, 4
    %v3329 = vor.u32 %v3327, %v3328
    %v3330 = vsel %vm2853, %v3317, %v3329
    %v3331 = vrot.slane %v1423, 3
    %v3332 = vrot.slane %v1419, 4
    %v3333 = vor.u32 %v3331, %v3332
    %v3334 = vsel %vm2853, %v3321, %v3333
    %v3335 = vrot.slane %v2451, 3
    %v3336 = vrot.slane %v2454, 4
    %v3337 = vor.u32 %v3335, %v3336
    %v3338 = vsel %vm2853, %v3325, %v3337
    %v3339 = vrot.slane %v2459, 3
    %v3340 = vrot.slane %v2462, 4
    %v3341 = vor.u32 %v3339, %v3340
    %v3342 = vsel %vm2853, %v3329, %v3341
    %v3343 = vrot.slane %v1431, 3
    %v3344 = vrot.slane %v1427, 4
    %v3345 = vor.u32 %v3343, %v3344
    %v3346 = vsel %vm2853, %v3333, %v3345
    %v3347 = vrot.slane %v2470, 3
    %v3348 = vrot.slane %v2473, 4
    %v3349 = vor.u32 %v3347, %v3348
    %v3350 = vsel %vm2853, %v3337, %v3349
    %v3351 = vrot.slane %v2478, 3
    %v3352 = vrot.slane %v2481, 4
    %v3353 = vor.u32 %v3351, %v3352
    %v3354 = vsel %vm2853, %v3341, %v3353
    %v3355 = vrot.slane %v1439, 3
    %v3356 = vrot.slane %v1435, 4
    %v3357 = vor.u32 %v3355, %v3356
    %v3358 = vsel %vm2853, %v3345, %v3357
    %v3359 = vrot.slane %v2489, 3
    %v3360 = vrot.slane %v2492, 4
    %v3361 = vor.u32 %v3359, %v3360
    %v3362 = vsel %vm2853, %v3349, %v3361
    %v3363 = vrot.slane %v2497, 3
    %v3364 = vrot.slane %v2500, 4
    %v3365 = vor.u32 %v3363, %v3364
    %v3366 = vsel %vm2853, %v3353, %v3365
    %v3367 = vrot.slane %v1447, 3
    %v3368 = vrot.slane %v1443, 4
    %v3369 = vor.u32 %v3367, %v3368
    %v3370 = vsel %vm2853, %v3357, %v3369
    %v3371 = vrot.slane %v2508, 3
    %v3372 = vrot.slane %v2511, 4
    %v3373 = vor.u32 %v3371, %v3372
    %v3374 = vsel %vm2853, %v3361, %v3373
    %v3375 = vrot.slane %v2516, 3
    %v3376 = vrot.slane %v2519, 4
    %v3377 = vor.u32 %v3375, %v3376
    %v3378 = vsel %vm2853, %v3365, %v3377
    %v3379 = vrot.slane %v1455, 3
    %v3380 = vrot.slane %v1451, 4
    %v3381 = vor.u32 %v3379, %v3380
    %v3382 = vsel %vm2853, %v3369, %v3381
    %v3383 = vrot.slane %v2527, 3
    %v3384 = vrot.slane %v2530, 4
    %v3385 = vor.u32 %v3383, %v3384
    %v3386 = vsel %vm2853, %v3373, %v3385
    %v3387 = vrot.slane %v2535, 3
    %v3388 = vrot.slane %v2538, 4
    %v3389 = vor.u32 %v3387, %v3388
    %v3390 = vsel %vm2853, %v3377, %v3389
    %v3391 = vrot.slane %v1463, 3
    %v3392 = vrot.slane %v1459, 4
    %v3393 = vor.u32 %v3391, %v3392
    %v3394 = vsel %vm2853, %v3381, %v3393
    %v3395 = vrot.slane %v2546, 3
    %v3396 = vrot.slane %v2549, 4
    %v3397 = vor.u32 %v3395, %v3396
    %v3398 = vsel %vm2853, %v3385, %v3397
    %v3399 = vrot.slane %v2554, 3
    %v3400 = vrot.slane %v2557, 4
    %v3401 = vor.u32 %v3399, %v3400
    %v3402 = vsel %vm2853, %v3389, %v3401
    %v3403 = vrot.slane %v1471, 3
    %v3404 = vrot.slane %v1467, 4
    %v3405 = vor.u32 %v3403, %v3404
    %v3406 = vsel %vm2853, %v3393, %v3405
    %v3407 = vrot.slane %v2565, 3
    %v3408 = vrot.slane %v2568, 4
    %v3409 = vor.u32 %v3407, %v3408
    %v3410 = vsel %vm2853, %v3397, %v3409
    %v3411 = vrot.slane %v2573, 3
    %v3412 = vrot.slane %v2576, 4
    %v3413 = vor.u32 %v3411, %v3412
    %v3414 = vsel %vm2853, %v3401, %v3413
    %v3415 = vrot.slane %v1479, 3
    %v3416 = vrot.slane %v1475, 4
    %v3417 = vor.u32 %v3415, %v3416
    %v3418 = vsel %vm2853, %v3405, %v3417
    %v3419 = vrot.slane %v2584, 3
    %v3420 = vrot.slane %v2587, 4
    %v3421 = vor.u32 %v3419, %v3420
    %v3422 = vsel %vm2853, %v3409, %v3421
    %v3423 = vrot.slane %v2592, 3
    %v3424 = vrot.slane %v2595, 4
    %v3425 = vor.u32 %v3423, %v3424
    %v3426 = vsel %vm2853, %v3413, %v3425
    %v3427 = vrot.slane %v1487, 3
    %v3428 = vrot.slane %v1483, 4
    %v3429 = vor.u32 %v3427, %v3428
    %v3430 = vsel %vm2853, %v3417, %v3429
    %v3431 = vrot.slane %v2603, 3
    %v3432 = vrot.slane %v2606, 4
    %v3433 = vor.u32 %v3431, %v3432
    %v3434 = vsel %vm2853, %v3421, %v3433
    %v3435 = vrot.slane %v2611, 3
    %v3436 = vrot.slane %v2614, 4
    %v3437 = vor.u32 %v3435, %v3436
    %v3438 = vsel %vm2853, %v3425, %v3437
    %v3439 = vrot.slane %v1495, 3
    %v3440 = vrot.slane %v1491, 4
    %v3441 = vor.u32 %v3439, %v3440
    %v3442 = vsel %vm2853, %v3429, %v3441
    %v3443 = vrot.slane %v2622, 3
    %v3444 = vrot.slane %v2625, 4
    %v3445 = vor.u32 %v3443, %v3444
    %v3446 = vsel %vm2853, %v3433, %v3445
    %v3447 = vrot.slane %v2630, 3
    %v3448 = vrot.slane %v2633, 4
    %v3449 = vor.u32 %v3447, %v3448
    %v3450 = vsel %vm2853, %v3437, %v3449
    %v3451 = vrot.slane %v1503, 3
    %v3452 = vrot.slane %v1499, 4
    %v3453 = vor.u32 %v3451, %v3452
    %v3454 = vsel %vm2853, %v3441, %v3453
    %v3455 = vrot.slane %v2641, 3
    %v3456 = vrot.slane %v2644, 4
    %v3457 = vor.u32 %v3455, %v3456
    %v3458 = vsel %vm2853, %v3445, %v3457
    %v3459 = vrot.slane %v2649, 3
    %v3460 = vrot.slane %v2652, 4
    %v3461 = vor.u32 %v3459, %v3460
    %v3462 = vsel %vm2853, %v3449, %v3461
    %v3463 = vrot.slane %v1511, 3
    %v3464 = vrot.slane %v1507, 4
    %v3465 = vor.u32 %v3463, %v3464
    %v3466 = vsel %vm2853, %v3453, %v3465
    %v3467 = vrot.slane %v2660, 3
    %v3468 = vrot.slane %v2663, 4
    %v3469 = vor.u32 %v3467, %v3468
    %v3470 = vsel %vm2853, %v3457, %v3469
    %v3471 = vrot.slane %v2668, 3
    %v3472 = vrot.slane %v2671, 4
    %v3473 = vor.u32 %v3471, %v3472
    %v3474 = vsel %vm2853, %v3461, %v3473
    %v3475 = vrot.slane %v1519, 3
    %v3476 = vrot.slane %v1515, 4
    %v3477 = vor.u32 %v3475, %v3476
    %v3478 = vsel %vm2853, %v3465, %v3477
    %v3479 = vrot.slane %v1647, 3
    %v3480 = vrot.slane %v2677, 4
    %v3481 = vor.u32 %v3479, %v3480
    %v3482 = vsel %vm2853, %v3469, %v3481
    %v3483 = vrot.slane %v1659, 3
    %v3484 = vrot.slane %v2681, 4
    %v3485 = vor.u32 %v3483, %v3484
    %v3486 = vsel %vm2853, %v3473, %v3485
    %v3487 = vrot.slane %v1527, 3
    %v3488 = vrot.slane %v1523, 4
    %v3489 = vor.u32 %v3487, %v3488
    %v3490 = vsel %vm2853, %v3477, %v3489
    %v3491 = vrot.slane %v1651, 3
    %v3492 = vrot.slane %v1654, 4
    %v3493 = vor.u32 %v3491, %v3492
    %v3494 = vsel %vm2853, %v3481, %v3493
    %v3495 = vrot.slane %v1663, 3
    %v3496 = vrot.slane %v1666, 4
    %v3497 = vor.u32 %v3495, %v3496
    %v3498 = vsel %vm2853, %v3485, %v3497
    %v3499 = vsel %vm2853, %v3489, %v2856
    %v3500 = vrot.slane %v1674, 3
    %v3501 = vrot.slane %v1677, 4
    %v3502 = vor.u32 %v3500, %v3501
    %v3503 = vsel %vm2853, %v3493, %v3502
    %v3504 = vrot.slane %v1682, 3
    %v3505 = vrot.slane %v1685, 4
    %v3506 = vor.u32 %v3504, %v3505
    %v3507 = vsel %vm2853, %v3497, %v3506
    %v3670 = vld [vmem:[#allocation7] sm:$0xf]
    %v3671 = vld [vmem:[#allocation7 + $0x4] sm:$0xf]
    %v3672 = vld [vmem:[#allocation7 + $0x8] sm:$0xf]
    %v3673 = vld [vmem:[#allocation7 + $0xc] sm:$0xf]
    %v3674 = vld [vmem:[#allocation7 + $0x10] sm:$0xf]
    %v3675 = vld [vmem:[#allocation7 + $0x14] sm:$0xf]
    %v3676 = vld [vmem:[#allocation7 + $0x18] sm:$0xf]
    %v3677 = vld [vmem:[#allocation7 + $0x1c] sm:$0xf]
    %v3678 = vld [vmem:[#allocation7 + $0x20] sm:$0xf]
    %v3679 = vld [vmem:[#allocation7 + $0x24] sm:$0xf]
    %v3680 = vld [vmem:[#allocation7 + $0x28] sm:$0xf]
    %v3681 = vld [vmem:[#allocation7 + $0x2c] sm:$0xf]
    %v3682 = vld [vmem:[#allocation7 + $0x30] sm:$0xf]
    %v3683 = vld [vmem:[#allocation7 + $0x34] sm:$0xf]
    %v3684 = vld [vmem:[#allocation7 + $0x38] sm:$0xf]
    %v3685 = vld [vmem:[#allocation7 + $0x3c] sm:$0xf]
    %v3686 = vld [vmem:[#allocation7 + $0x40] sm:$0xf]
    %v3687 = vld [vmem:[#allocation7 + $0x44] sm:$0xf]
    %v3688 = vld [vmem:[#allocation7 + $0x48] sm:$0xf]
    %v3689 = vld [vmem:[#allocation7 + $0x4c] sm:$0xf]
    %v3690 = vld [vmem:[#allocation7 + $0x50] sm:$0xf]
    %v3691 = vld [vmem:[#allocation7 + $0x54] sm:$0xf]
    %v3692 = vld [vmem:[#allocation7 + $0x58] sm:$0xf]
    %v3693 = vld [vmem:[#allocation7 + $0x5c] sm:$0xf]
    %v3694 = vld [vmem:[#allocation7 + $0x60] sm:$0xf]
    %v3695 = vld [vmem:[#allocation7 + $0x64] sm:$0xf]
    %v3696 = vld [vmem:[#allocation7 + $0x68] sm:$0xf]
    %v3697 = vld [vmem:[#allocation7 + $0x6c] sm:$0xf]
    %v3698 = vld [vmem:[#allocation7 + $0x70] sm:$0xf]
    %v3699 = vld [vmem:[#allocation7 + $0x74] sm:$0xf]
    %v3700 = vld [vmem:[#allocation7 + $0x78] sm:$0xf]
    %v3701 = vld [vmem:[#allocation7 + $0x7c] sm:$0xf]
    %v3702 = vld [vmem:[#allocation7 + $0x80] sm:$0xf]
    %v3703 = vld [vmem:[#allocation7 + $0x84] sm:$0xf]
    %v3704 = vld [vmem:[#allocation7 + $0x88] sm:$0xf]
    %v3705 = vld [vmem:[#allocation7 + $0x8c] sm:$0xf]
    %v3706 = vld [vmem:[#allocation7 + $0x90] sm:$0xf]
    %v3707 = vld [vmem:[#allocation7 + $0x94] sm:$0xf]
    %v3708 = vld [vmem:[#allocation7 + $0x98] sm:$0xf]
    %v3709 = vld [vmem:[#allocation7 + $0x9c] sm:$0xf]
    %v3710 = vld [vmem:[#allocation7 + $0xa0] sm:$0xf]
    %v3711 = vld [vmem:[#allocation7 + $0xa4] sm:$0xf]
    %v3712 = vld [vmem:[#allocation7 + $0xa8] sm:$0xf]
    %v3713 = vld [vmem:[#allocation7 + $0xac] sm:$0xf]
    %v3714 = vld [vmem:[#allocation7 + $0xb0] sm:$0xf]
    %v3715 = vld [vmem:[#allocation7 + $0xb4] sm:$0xf]
    %v3716 = vld [vmem:[#allocation7 + $0xb8] sm:$0xf]
    %v3717 = vld [vmem:[#allocation7 + $0xbc] sm:$0xf]
    %v3718 = vld [vmem:[#allocation7 + $0xc0] sm:$0xf]
    %v3719 = vld [vmem:[#allocation7 + $0xc4] sm:$0xf]
    %v3720 = vld [vmem:[#allocation7 + $0xc8] sm:$0xf]
    %v3721 = vld [vmem:[#allocation7 + $0xcc] sm:$0xf]
    %v3722 = vld [vmem:[#allocation7 + $0xd0] sm:$0xf]
    %v3723 = vld [vmem:[#allocation7 + $0xd4] sm:$0xf]
    %v3724 = vld [vmem:[#allocation7 + $0xd8] sm:$0xf]
    %v3725 = vld [vmem:[#allocation7 + $0xdc] sm:$0xf]
    %v3726 = vld [vmem:[#allocation7 + $0xe0] sm:$0xf]
    %v3727 = vld [vmem:[#allocation7 + $0xe4] sm:$0xf]
    %v3728 = vld [vmem:[#allocation7 + $0xe8] sm:$0xf]
    %v3729 = vld [vmem:[#allocation7 + $0xec] sm:$0xf]
    %v3730 = vld [vmem:[#allocation7 + $0xf0] sm:$0xf]
    %v3731 = vld [vmem:[#allocation7 + $0xf4] sm:$0xf]
    %v3732 = vld [vmem:[#allocation7 + $0xf8] sm:$0xf]
    %v3733 = vld [vmem:[#allocation7 + $0xfc] sm:$0xf]
    %v3734 = vld [vmem:[#allocation7 + $0x100] sm:$0xf]
    %v3735 = vld [vmem:[#allocation7 + $0x104] sm:$0xf]
    %v3736 = vld [vmem:[#allocation7 + $0x108] sm:$0xf]
    %v3737 = vld [vmem:[#allocation7 + $0x10c] sm:$0xf]
    %v3738 = vld [vmem:[#allocation7 + $0x110] sm:$0xf]
    %v3739 = vld [vmem:[#allocation7 + $0x114] sm:$0xf]
    %v3740 = vld [vmem:[#allocation7 + $0x118] sm:$0xf]
    %v3741 = vld [vmem:[#allocation7 + $0x11c] sm:$0xf]
    %v3742 = vld [vmem:[#allocation7 + $0x120] sm:$0xf]
    %v3743 = vld [vmem:[#allocation7 + $0x124] sm:$0xf]
    %v3744 = vld [vmem:[#allocation7 + $0x128] sm:$0xf]
    %v3745 = vld [vmem:[#allocation7 + $0x12c] sm:$0xf]
    %v3746 = vld [vmem:[#allocation7 + $0x130] sm:$0xf]
    %v3747 = vld [vmem:[#allocation7 + $0x134] sm:$0xf]
    %v3748 = vld [vmem:[#allocation7 + $0x138] sm:$0xf]
    %v3749 = vld [vmem:[#allocation7 + $0x13c] sm:$0xf]
    %v3750 = vld [vmem:[#allocation7 + $0x140] sm:$0xf]
    %v3751 = vld [vmem:[#allocation7 + $0x144] sm:$0xf]
    %v3752 = vld [vmem:[#allocation7 + $0x148] sm:$0xf]
    %v3753 = vld [vmem:[#allocation7 + $0x14c] sm:$0xf]
    %v3754 = vld [vmem:[#allocation7 + $0x150] sm:$0xf]
    %v3755 = vld [vmem:[#allocation7 + $0x154] sm:$0xf]
    %v3756 = vld [vmem:[#allocation7 + $0x158] sm:$0xf]
    %v3757 = vld [vmem:[#allocation7 + $0x15c] sm:$0xf]
    %v3758 = vld [vmem:[#allocation7 + $0x160] sm:$0xf]
    %v3759 = vld [vmem:[#allocation7 + $0x164] sm:$0xf]
    %v3760 = vld [vmem:[#allocation7 + $0x168] sm:$0xf]
    %v3761 = vld [vmem:[#allocation7 + $0x16c] sm:$0xf]
    %v3762 = vld [vmem:[#allocation7 + $0x170] sm:$0xf]
    %v3763 = vld [vmem:[#allocation7 + $0x174] sm:$0xf]
    %v3764 = vld [vmem:[#allocation7 + $0x178] sm:$0xf]
    %v3765 = vld [vmem:[#allocation7 + $0x17c] sm:$0xf]
    %v3766 = vld [vmem:[#allocation7 + $0x180] sm:$0xf]
    %v3767 = vld [vmem:[#allocation7 + $0x184] sm:$0xf]
    %v3768 = vld [vmem:[#allocation7 + $0x188] sm:$0xf]
    %v3769 = vld [vmem:[#allocation7 + $0x18c] sm:$0xf]
    %v3770 = vld [vmem:[#allocation7 + $0x190] sm:$0xf]
    %v3771 = vld [vmem:[#allocation7 + $0x194] sm:$0xf]
    %v3772 = vld [vmem:[#allocation7 + $0x198] sm:$0xf]
    %v3773 = vld [vmem:[#allocation7 + $0x19c] sm:$0xf]
    %v3774 = vld [vmem:[#allocation7 + $0x1a0] sm:$0xf]
    %v3775 = vld [vmem:[#allocation7 + $0x1a4] sm:$0xf]
    %v3776 = vld [vmem:[#allocation7 + $0x1a8] sm:$0xf]
    %v3777 = vld [vmem:[#allocation7 + $0x1ac] sm:$0xf]
    %v3778 = vld [vmem:[#allocation7 + $0x1b0] sm:$0xf]
    %v3779 = vld [vmem:[#allocation7 + $0x1b4] sm:$0xf]
    %v3780 = vld [vmem:[#allocation7 + $0x1b8] sm:$0xf]
    %v3781 = vld [vmem:[#allocation7 + $0x1bc] sm:$0xf]
    %v3782 = vld [vmem:[#allocation7 + $0x1c0] sm:$0xf]
    %v3783 = vld [vmem:[#allocation7 + $0x1c4] sm:$0xf]
    %v3784 = vld [vmem:[#allocation7 + $0x1c8] sm:$0xf]
    %v3785 = vld [vmem:[#allocation7 + $0x1cc] sm:$0xf]
    %v3786 = vld [vmem:[#allocation7 + $0x1d0] sm:$0xf]
    %v3787 = vld [vmem:[#allocation7 + $0x1d4] sm:$0xf]
    %v3788 = vld [vmem:[#allocation7 + $0x1d8] sm:$0xf]
    %v3789 = vld [vmem:[#allocation7 + $0x1dc] sm:$0xf]
    %v3790 = vld [vmem:[#allocation7 + $0x1e0] sm:$0xf]
    %v3791 = vld [vmem:[#allocation7 + $0x1e4] sm:$0xf]
    %v3792 = vld [vmem:[#allocation7 + $0x1e8] sm:$0xf]
    %v3793 = vld [vmem:[#allocation7 + $0x1ec] sm:$0xf]
    %v3794 = vld [vmem:[#allocation7 + $0x1f0] sm:$0xf]
    %v3795 = vld [vmem:[#allocation7 + $0x1f4] sm:$0xf]
    %v3796 = vld [vmem:[#allocation7 + $0x1f8] sm:$0xf]
    %v3797 = vld [vmem:[#allocation7 + $0x1fc] sm:$0xf]
    %v3798 = vld [vmem:[#allocation7 + $0x200] sm:$0xf]
    %v3799 = vld [vmem:[#allocation7 + $0x204] sm:$0xf]
    %v3800 = vld [vmem:[#allocation7 + $0x208] sm:$0xf]
    %v3801 = vld [vmem:[#allocation7 + $0x20c] sm:$0xf]
    %v3802 = vld [vmem:[#allocation7 + $0x210] sm:$0xf]
    %v3803 = vld [vmem:[#allocation7 + $0x214] sm:$0xf]
    %v3804 = vld [vmem:[#allocation7 + $0x218] sm:$0xf]
    %v3805 = vld [vmem:[#allocation7 + $0x21c] sm:$0xf]
    %v3806 = vld [vmem:[#allocation7 + $0x220] sm:$0xf]
    %v3807 = vld [vmem:[#allocation7 + $0x224] sm:$0xf]
    %v3808 = vld [vmem:[#allocation7 + $0x228] sm:$0xf]
    %v3809 = vld [vmem:[#allocation7 + $0x22c] sm:$0xf]
    %v3810 = vld [vmem:[#allocation7 + $0x230] sm:$0xf]
    %v3811 = vld [vmem:[#allocation7 + $0x234] sm:$0xf]
    %v3812 = vld [vmem:[#allocation7 + $0x238] sm:$0xf]
    %v3813 = vld [vmem:[#allocation7 + $0x23c] sm:$0xf]
    %v3814 = vld [vmem:[%s3] sm:$0x1]
    %v3816 = vlaneseq
    %v3817 = vshrl.u32 %v3816, 7
    %v3818 = vsub.s32 0, %v3817
    %v3819 = vrot.slane %v3814, %v3818
    %v3965 = vunpack.c.l.b16 %v3670
    %v3966 = vunpack.c.l.b16 %v3671
    %v3967 = vunpack.c.l.b16 %v3672
    %v3968 = vunpack.c.l.b16 %v3673
    %v3969 = vunpack.c.l.b16 %v3674
    %v3970 = vunpack.c.l.b16 %v3675
    %v3971 = vunpack.c.l.b16 %v3676
    %v3972 = vunpack.c.l.b16 %v3677
    %v3973 = vunpack.c.l.b16 %v3678
    %v3974 = vunpack.c.l.b16 %v3679
    %v3975 = vunpack.c.l.b16 %v3680
    %v3976 = vunpack.c.l.b16 %v3681
    %v3977 = vunpack.c.l.b16 %v3682
    %v3978 = vunpack.c.l.b16 %v3683
    %v3979 = vunpack.c.l.b16 %v3684
    %v3980 = vunpack.c.l.b16 %v3685
    %v3981 = vunpack.c.l.b16 %v3686
    %v3982 = vunpack.c.l.b16 %v3687
    %v3983 = vunpack.c.l.b16 %v3688
    %v3984 = vunpack.c.l.b16 %v3689
    %v3985 = vunpack.c.l.b16 %v3690
    %v3986 = vunpack.c.l.b16 %v3691
    %v3987 = vunpack.c.l.b16 %v3692
    %v3988 = vunpack.c.l.b16 %v3693
    %v3989 = vunpack.c.l.b16 %v3694
    %v3990 = vunpack.c.l.b16 %v3695
    %v3991 = vunpack.c.l.b16 %v3696
    %v3992 = vunpack.c.l.b16 %v3697
    %v3993 = vunpack.c.l.b16 %v3698
    %v3994 = vunpack.c.l.b16 %v3699
    %v3995 = vunpack.c.l.b16 %v3700
    %v3996 = vunpack.c.l.b16 %v3701
    %v3997 = vunpack.c.l.b16 %v3702
    %v3998 = vunpack.c.l.b16 %v3703
    %v3999 = vunpack.c.l.b16 %v3704
    %v4000 = vunpack.c.l.b16 %v3705
    %v4001 = vunpack.c.l.b16 %v3706
    %v4002 = vunpack.c.l.b16 %v3707
    %v4003 = vunpack.c.l.b16 %v3708
    %v4004 = vunpack.c.l.b16 %v3709
    %v4005 = vunpack.c.l.b16 %v3710
    %v4006 = vunpack.c.l.b16 %v3711
    %v4007 = vunpack.c.l.b16 %v3712
    %v4008 = vunpack.c.l.b16 %v3713
    %v4009 = vunpack.c.l.b16 %v3714
    %v4010 = vunpack.c.l.b16 %v3715
    %v4011 = vunpack.c.l.b16 %v3716
    %v4012 = vunpack.c.l.b16 %v3717
    %v4013 = vunpack.c.l.b16 %v3718
    %v4014 = vunpack.c.l.b16 %v3719
    %v4015 = vunpack.c.l.b16 %v3720
    %v4016 = vunpack.c.l.b16 %v3721
    %v4017 = vunpack.c.l.b16 %v3722
    %v4018 = vunpack.c.l.b16 %v3723
    %v4019 = vunpack.c.l.b16 %v3724
    %v4020 = vunpack.c.l.b16 %v3725
    %v4021 = vunpack.c.l.b16 %v3726
    %v4022 = vunpack.c.l.b16 %v3727
    %v4023 = vunpack.c.l.b16 %v3728
    %v4024 = vunpack.c.l.b16 %v3729
    %v4025 = vunpack.c.l.b16 %v3730
    %v4026 = vunpack.c.l.b16 %v3731
    %v4027 = vunpack.c.l.b16 %v3732
    %v4028 = vunpack.c.l.b16 %v3733
    %v4029 = vunpack.c.l.b16 %v3734
    %v4030 = vunpack.c.l.b16 %v3735
    %v4031 = vunpack.c.l.b16 %v3736
    %v4032 = vunpack.c.l.b16 %v3737
    %v4033 = vunpack.c.l.b16 %v3738
    %v4034 = vunpack.c.l.b16 %v3739
    %v4035 = vunpack.c.l.b16 %v3740
    %v4036 = vunpack.c.l.b16 %v3741
    %v4037 = vunpack.c.l.b16 %v3742
    %v4038 = vunpack.c.l.b16 %v3743
    %v4039 = vunpack.c.l.b16 %v3744
    %v4040 = vunpack.c.l.b16 %v3745
    %v4041 = vunpack.c.l.b16 %v3746
    %v4042 = vunpack.c.l.b16 %v3747
    %v4043 = vunpack.c.l.b16 %v3748
    %v4044 = vunpack.c.l.b16 %v3749
    %v4045 = vunpack.c.l.b16 %v3750
    %v4046 = vunpack.c.l.b16 %v3751
    %v4047 = vunpack.c.l.b16 %v3752
    %v4048 = vunpack.c.l.b16 %v3753
    %v4049 = vunpack.c.l.b16 %v3754
    %v4050 = vunpack.c.l.b16 %v3755
    %v4051 = vunpack.c.l.b16 %v3756
    %v4052 = vunpack.c.l.b16 %v3757
    %v4053 = vunpack.c.l.b16 %v3758
    %v4054 = vunpack.c.l.b16 %v3759
    %v4055 = vunpack.c.l.b16 %v3760
    %v4056 = vunpack.c.l.b16 %v3761
    %v4057 = vunpack.c.l.b16 %v3762
    %v4058 = vunpack.c.l.b16 %v3763
    %v4059 = vunpack.c.l.b16 %v3764
    %v4060 = vunpack.c.l.b16 %v3765
    %v4061 = vunpack.c.l.b16 %v3766
    %v4062 = vunpack.c.l.b16 %v3767
    %v4063 = vunpack.c.l.b16 %v3768
    %v4064 = vunpack.c.l.b16 %v3769
    %v4065 = vunpack.c.l.b16 %v3770
    %v4066 = vunpack.c.l.b16 %v3771
    %v4067 = vunpack.c.l.b16 %v3772
    %v4068 = vunpack.c.l.b16 %v3773
    %v4069 = vunpack.c.l.b16 %v3774
    %v4070 = vunpack.c.l.b16 %v3775
    %v4071 = vunpack.c.l.b16 %v3776
    %v4072 = vunpack.c.l.b16 %v3777
    %v4073 = vunpack.c.l.b16 %v3778
    %v4074 = vunpack.c.l.b16 %v3779
    %v4075 = vunpack.c.l.b16 %v3780
    %v4076 = vunpack.c.l.b16 %v3781
    %v4077 = vunpack.c.l.b16 %v3782
    %v4078 = vunpack.c.l.b16 %v3783
    %v4079 = vunpack.c.l.b16 %v3784
    %v4080 = vunpack.c.l.b16 %v3785
    %v4081 = vunpack.c.l.b16 %v3786
    %v4082 = vunpack.c.l.b16 %v3787
    %v4083 = vunpack.c.l.b16 %v3788
    %v4084 = vunpack.c.l.b16 %v3789
    %v4085 = vunpack.c.l.b16 %v3790
    %v4086 = vunpack.c.l.b16 %v3791
    %v4087 = vunpack.c.l.b16 %v3792
    %v4088 = vunpack.c.l.b16 %v3793
    %v4089 = vunpack.c.l.b16 %v3794
    %v4090 = vunpack.c.l.b16 %v3795
    %v4091 = vunpack.c.l.b16 %v3796
    %v4092 = vunpack.c.l.b16 %v3797
    %v4093 = vunpack.c.l.b16 %v3798
    %v4094 = vunpack.c.l.b16 %v3799
    %v4095 = vunpack.c.l.b16 %v3800
    %v4096 = vunpack.c.l.b16 %v3801
    %v4097 = vunpack.c.l.b16 %v3802
    %v4098 = vunpack.c.l.b16 %v3803
    %v4099 = vunpack.c.l.b16 %v3804
    %v4100 = vunpack.c.l.b16 %v3805
    %v4101 = vunpack.c.l.b16 %v3806
    %v4102 = vunpack.c.l.b16 %v3807
    %v4103 = vunpack.c.l.b16 %v3808
    %v4104 = vunpack.c.l.b16 %v3809
    %v4105 = vunpack.c.l.b16 %v3810
    %v4106 = vunpack.c.l.b16 %v3811
    %v4107 = vunpack.c.l.b16 %v3812
    %v4108 = vunpack.c.l.b16 %v3813
    %v4109 = vpack.c.b16 %v3966, %v3965
    %v4110 = vpack.c.b16 %v3968, %v3967
    %v4111 = vpack.c.b16 %v3970, %v3969
    %v4112 = vpack.c.b16 %v3972, %v3971
    %v4113 = vpack.c.b16 %v3974, %v3973
    %v4114 = vpack.c.b16 %v3976, %v3975
    %v4115 = vpack.c.b16 %v3978, %v3977
    %v4116 = vpack.c.b16 %v3980, %v3979
    %v4117 = vpack.c.b16 %v3982, %v3981
    %v4118 = vpack.c.b16 %v3984, %v3983
    %v4119 = vpack.c.b16 %v3986, %v3985
    %v4120 = vpack.c.b16 %v3988, %v3987
    %v4121 = vpack.c.b16 %v3990, %v3989
    %v4122 = vpack.c.b16 %v3992, %v3991
    %v4123 = vpack.c.b16 %v3994, %v3993
    %v4124 = vpack.c.b16 %v3996, %v3995
    %v4125 = vpack.c.b16 %v3998, %v3997
    %v4126 = vpack.c.b16 %v4000, %v3999
    %v4127 = vpack.c.b16 %v4002, %v4001
    %v4128 = vpack.c.b16 %v4004, %v4003
    %v4129 = vpack.c.b16 %v4006, %v4005
    %v4130 = vpack.c.b16 %v4008, %v4007
    %v4131 = vpack.c.b16 %v4010, %v4009
    %v4132 = vpack.c.b16 %v4012, %v4011
    %v4133 = vpack.c.b16 %v4014, %v4013
    %v4134 = vpack.c.b16 %v4016, %v4015
    %v4135 = vpack.c.b16 %v4018, %v4017
    %v4136 = vpack.c.b16 %v4020, %v4019
    %v4137 = vpack.c.b16 %v4022, %v4021
    %v4138 = vpack.c.b16 %v4024, %v4023
    %v4139 = vpack.c.b16 %v4026, %v4025
    %v4140 = vpack.c.b16 %v4028, %v4027
    %v4141 = vpack.c.b16 %v4030, %v4029
    %v4142 = vpack.c.b16 %v4032, %v4031
    %v4143 = vpack.c.b16 %v4034, %v4033
    %v4144 = vpack.c.b16 %v4036, %v4035
    %v4145 = vpack.c.b16 %v4038, %v4037
    %v4146 = vpack.c.b16 %v4040, %v4039
    %v4147 = vpack.c.b16 %v4042, %v4041
    %v4148 = vpack.c.b16 %v4044, %v4043
    %v4149 = vpack.c.b16 %v4046, %v4045
    %v4150 = vpack.c.b16 %v4048, %v4047
    %v4151 = vpack.c.b16 %v4050, %v4049
    %v4152 = vpack.c.b16 %v4052, %v4051
    %v4153 = vpack.c.b16 %v4054, %v4053
    %v4154 = vpack.c.b16 %v4056, %v4055
    %v4155 = vpack.c.b16 %v4058, %v4057
    %v4156 = vpack.c.b16 %v4060, %v4059
    %v4157 = vpack.c.b16 %v4062, %v4061
    %v4158 = vpack.c.b16 %v4064, %v4063
    %v4159 = vpack.c.b16 %v4066, %v4065
    %v4160 = vpack.c.b16 %v4068, %v4067
    %v4161 = vpack.c.b16 %v4070, %v4069
    %v4162 = vpack.c.b16 %v4072, %v4071
    %v4163 = vpack.c.b16 %v4074, %v4073
    %v4164 = vpack.c.b16 %v4076, %v4075
    %v4165 = vpack.c.b16 %v4078, %v4077
    %v4166 = vpack.c.b16 %v4080, %v4079
    %v4167 = vpack.c.b16 %v4082, %v4081
    %v4168 = vpack.c.b16 %v4084, %v4083
    %v4169 = vpack.c.b16 %v4086, %v4085
    %v4170 = vpack.c.b16 %v4088, %v4087
    %v4171 = vpack.c.b16 %v4090, %v4089
    %v4172 = vpack.c.b16 %v4092, %v4091
    %v4173 = vpack.c.b16 %v4094, %v4093
    %v4174 = vpack.c.b16 %v4096, %v4095
    %v4175 = vpack.c.b16 %v4098, %v4097
    %v4176 = vpack.c.b16 %v4100, %v4099
    %v4177 = vpack.c.b16 %v4102, %v4101
    %v4178 = vpack.c.b16 %v4104, %v4103
    %v4179 = vpack.c.b16 %v4106, %v4105
    %v4180 = vpack.c.b16 %v4108, %v4107
    %4253 = vmatprep.subr.bf16.mxu0 0
    %4254 = vmatpush1.bf16.msra.mxu0 %v4109
    %4255 = vmatprep.subr.bf16.mxu0 0
    %4256 = vmatpush1.bf16.msra.mxu0 %v4110
    %4257 = vmatprep.subr.bf16.mxu0 0
    %4258 = vmatpush1.bf16.msra.mxu0 %v4111
    %4259 = vmatprep.subr.bf16.mxu0 0
    %4260 = vmatpush1.bf16.msra.mxu0 %v4112
    %4261 = vmatprep.subr.bf16.mxu0 0
    %4262 = vmatpush1.bf16.msra.mxu0 %v4113
    %4263 = vmatprep.subr.bf16.mxu0 0
    %4264 = vmatpush1.bf16.msra.mxu0 %v4114
    %4265 = vmatprep.subr.bf16.mxu0 0
    %4266 = vmatpush1.bf16.msra.mxu0 %v4115
    %4267 = vmatprep.subr.bf16.mxu0 0
    %4268 = vmatpush1.bf16.msra.mxu0 %v4116
    %4269 = vmatprep.subr.bf16.mxu0 0
    %4270 = vmatpush1.bf16.msra.mxu0 %v4117
    %4271 = vmatprep.subr.bf16.mxu0 0
    %4272 = vmatpush1.bf16.msra.mxu0 %v4118
    %4273 = vmatprep.subr.bf16.mxu0 0
    %4274 = vmatpush1.bf16.msra.mxu0 %v4119
    %4275 = vmatprep.subr.bf16.mxu0 0
    %4276 = vmatpush1.bf16.msra.mxu0 %v4120
    %4277 = vmatprep.subr.bf16.mxu0 0
    %4278 = vmatpush1.bf16.msra.mxu0 %v4121
    %4279 = vmatprep.subr.bf16.mxu0 0
    %4280 = vmatpush1.bf16.msra.mxu0 %v4122
    %4281 = vmatprep.subr.bf16.mxu0 0
    %4282 = vmatpush1.bf16.msra.mxu0 %v4123
    %4283 = vmatprep.subr.bf16.mxu0 0
    %4284 = vmatpush1.bf16.msra.mxu0 %v4124
    %4285 = vmatprep.mubr.bf16.mxu0 %v1657
    %4286 = vmatmul.mubr.bf16.gmra.mrb[0].mxu0 %v1645
    %v4287 = vpop.f32.mrb[0].mxu0
    %v4288 = vadd.f32 %v3819, %v4287
    %v4289 = vpop.f32.mrb[0].mxu0
    %v4290 = vpop.f32.mrb[0].mxu0
    %v4291 = vadd.f32 %v3819, %v4290
    %v4292 = vpop.f32.mrb[0].mxu0
    %4293 = vmatprep.mubr.bf16.mxu0 %v2847
    %4294 = vmatmul.mubr.bf16.gmra.mrb[0].mxu0 %v2843
    %v4295 = vpop.f32.mrb[0].mxu0
    %v4296 = vadd.f32 %v3819, %v4295
    %v4297 = vpop.f32.mrb[0].mxu0
    %v4298 = vpop.f32.mrb[0].mxu0
    %v4299 = vadd.f32 %v3819, %v4298
    %v4300 = vpop.f32.mrb[0].mxu0
    %4301 = vmatprep.mubr.bf16.mxu0 %v1716
    %4302 = vmatmul.mubr.bf16.gmra.mrb[0].mxu0 %v1708
    %v4303 = vpop.f32.mrb[0].mxu0
    %v4304 = vadd.f32 %v3819, %v4303
    %v4305 = vpop.f32.mrb[0].mxu0
    %v4306 = vpop.f32.mrb[0].mxu0
    %v4307 = vadd.f32 %v3819, %v4306
    %v4308 = vpop.f32.mrb[0].mxu0
    %4309 = vmatprep.mubr.bf16.mxu0 %v1735
    %4310 = vmatmul.mubr.bf16.gmra.mrb[0].mxu0 %v1727
    %v4311 = vpop.f32.mrb[0].mxu0
    %v4312 = vadd.f32 %v3819, %v4311
    %v4313 = vpop.f32.mrb[0].mxu0
    %v4314 = vpop.f32.mrb[0].mxu0
    %v4315 = vadd.f32 %v3819, %v4314
    %v4316 = vpop.f32.mrb[0].mxu0
    %4317 = vmatprep.mubr.bf16.mxu0 %v1754
    %4318 = vmatmul.mubr.bf16.gmra.mrb[0].mxu0 %v1746
    %v4319 = vpop.f32.mrb[0].mxu0
    %v4320 = vadd.f32 %v3819, %v4319
    %v4321 = vpop.f32.mrb[0].mxu0
    %v4322 = vpop.f32.mrb[0].mxu0
    %v4323 = vadd.f32 %v3819, %v4322
    %v4324 = vpop.f32.mrb[0].mxu0
    %4325 = vmatprep.mubr.bf16.mxu0 %v1773
    %4326 = vmatmul.mubr.bf16.gmra.mrb[0].mxu0 %v1765
    %v4327 = vpop.f32.mrb[0].mxu0
    %v4328 = vadd.f32 %v3819, %v4327
    %v4329 = vpop.f32.mrb[0].mxu0
    %v4330 = vpop.f32.mrb[0].mxu0
    %v4331 = vadd.f32 %v3819, %v4330
    %v4332 = vpop.f32.mrb[0].mxu0
    %4333 = vmatprep.mubr.bf16.mxu0 %v1792
    %4334 = vmatmul.mubr.bf16.gmra.mrb[0].mxu0 %v1784
    %v4335 = vpop.f32.mrb[0].mxu0
    %v4336 = vadd.f32 %v3819, %v4335
    %v4337 = vpop.f32.mrb[0].mxu0
    %v4338 = vpop.f32.mrb[0].mxu0
    %v4339 = vadd.f32 %v3819, %v4338
    %v4340 = vpop.f32.mrb[0].mxu0
    %4341 = vmatprep.mubr.bf16.mxu0 %v1811
    %4342 = vmatmul.mubr.bf16.gmra.mrb[0].mxu0 %v1803
    %v4343 = vpop.f32.mrb[0].mxu0
    %v4344 = vadd.f32 %v3819, %v4343
    %v4345 = vpop.f32.mrb[0].mxu0
    %v4346 = vpop.f32.mrb[0].mxu0
    %v4347 = vadd.f32 %v3819, %v4346
    %v4348 = vpop.f32.mrb[0].mxu0
    %4349 = vmatprep.mubr.bf16.mxu0 %v1830
    %4350 = vmatmul.mubr.bf16.gmra.mrb[0].mxu0 %v1822
    %v4351 = vpop.f32.mrb[0].mxu0
    %v4352 = vadd.f32 %v3819, %v4351
    %v4353 = vpop.f32.mrb[0].mxu0
    %v4354 = vpop.f32.mrb[0].mxu0
    %v4355 = vadd.f32 %v3819, %v4354
    %v4356 = vpop.f32.mrb[0].mxu0
    %4357 = vmatprep.mubr.bf16.mxu0 %v1849
    %4358 = vmatmul.mubr.bf16.gmra.mrb[0].mxu0 %v1841
    %v4359 = vpop.f32.mrb[0].mxu0
    %v4360 = vadd.f32 %v3819, %v4359
    %v4361 = vpop.f32.mrb[0].mxu0
    %v4362 = vpop.f32.mrb[0].mxu0
    %v4363 = vadd.f32 %v3819, %v4362
    %v4364 = vpop.f32.mrb[0].mxu0
    %4365 = vmatprep.mubr.bf16.mxu0 %v1868
    %4366 = vmatmul.mubr.bf16.gmra.mrb[0].mxu0 %v1860
    %v4367 = vpop.f32.mrb[0].mxu0
    %v4368 = vadd.f32 %v3819, %v4367
    %v4369 = vpop.f32.mrb[0].mxu0
    %v4370 = vpop.f32.mrb[0].mxu0
    %v4371 = vadd.f32 %v3819, %v4370
    %v4372 = vpop.f32.mrb[0].mxu0
    %4373 = vmatprep.mubr.bf16.mxu0 %v1887
    %4374 = vmatmul.mubr.bf16.gmra.mrb[0].mxu0 %v1879
    %v4375 = vpop.f32.mrb[0].mxu0
    %v4376 = vadd.f32 %v3819, %v4375
    %v4377 = vpop.f32.mrb[0].mxu0
    %v4378 = vpop.f32.mrb[0].mxu0
    %v4379 = vadd.f32 %v3819, %v4378
    %v4380 = vpop.f32.mrb[0].mxu0
    %4381 = vmatprep.mubr.bf16.mxu0 %v1906
    %4382 = vmatmul.mubr.bf16.gmra.mrb[0].mxu0 %v1898
    %v4383 = vpop.f32.mrb[0].mxu0
    %v4384 = vadd.f32 %v3819, %v4383
    %v4385 = vpop.f32.mrb[0].mxu0
    %v4386 = vpop.f32.mrb[0].mxu0
    %v4387 = vadd.f32 %v3819, %v4386
    %v4388 = vpop.f32.mrb[0].mxu0
    %4389 = vmatprep.mubr.bf16.mxu0 %v1925
    %4390 = vmatmul.mubr.bf16.gmra.mrb[0].mxu0 %v1917
    %v4391 = vpop.f32.mrb[0].mxu0
    %v4392 = vadd.f32 %v3819, %v4391
    %v4393 = vpop.f32.mrb[0].mxu0
    %v4394 = vpop.f32.mrb[0].mxu0
    %v4395 = vadd.f32 %v3819, %v4394
    %v4396 = vpop.f32.mrb[0].mxu0
    %4397 = vmatprep.mubr.bf16.mxu0 %v1944
    %4398 = vmatmul.mubr.bf16.gmra.mrb[0].mxu0 %v1936
    %v4399 = vpop.f32.mrb[0].mxu0
    %v4400 = vadd.f32 %v3819, %v4399
    %v4401 = vpop.f32.mrb[0].mxu0
    %v4402 = vpop.f32.mrb[0].mxu0
    %v4403 = vadd.f32 %v3819, %v4402
    %v4404 = vpop.f32.mrb[0].mxu0
    %4405 = vmatprep.mubr.bf16.mxu0 %v1963
    %4406 = vmatmul.mubr.bf16.gmra.mrb[0].mxu0 %v1955
    %v4407 = vpop.f32.mrb[0].mxu0
    %v4408 = vadd.f32 %v3819, %v4407
    %v4409 = vpop.f32.mrb[0].mxu0
    %v4410 = vpop.f32.mrb[0].mxu0
    %v4411 = vadd.f32 %v3819, %v4410
    %v4412 = vpop.f32.mrb[0].mxu0
    %4413 = vmatprep.mubr.bf16.mxu0 %v1982
    %4414 = vmatmul.mubr.bf16.gmra.mrb[0].mxu0 %v1974
    %v4415 = vpop.f32.mrb[0].mxu0
    %v4416 = vadd.f32 %v3819, %v4415
    %v4417 = vpop.f32.mrb[0].mxu0
    %v4418 = vpop.f32.mrb[0].mxu0
    %v4419 = vadd.f32 %v3819, %v4418
    %v4420 = vpop.f32.mrb[0].mxu0
    %4421 = vmatprep.mubr.bf16.mxu0 %v2001
    %4422 = vmatmul.mubr.bf16.gmra.mrb[0].mxu0 %v1993
    %v4423 = vpop.f32.mrb[0].mxu0
    %v4424 = vadd.f32 %v3819, %v4423
    %v4425 = vpop.f32.mrb[0].mxu0
    %v4426 = vpop.f32.mrb[0].mxu0
    %v4427 = vadd.f32 %v3819, %v4426
    %v4428 = vpop.f32.mrb[0].mxu0
    %4429 = vmatprep.mubr.bf16.mxu0 %v2020
    %4430 = vmatmul.mubr.bf16.gmra.mrb[0].mxu0 %v2012
    %v4431 = vpop.f32.mrb[0].mxu0
    %v4432 = vadd.f32 %v3819, %v4431
    %v4433 = vpop.f32.mrb[0].mxu0
    %v4434 = vpop.f32.mrb[0].mxu0
    %v4435 = vadd.f32 %v3819, %v4434
    %v4436 = vpop.f32.mrb[0].mxu0
    %4437 = vmatprep.mubr.bf16.mxu0 %v2039
    %4438 = vmatmul.mubr.bf16.gmra.mrb[0].mxu0 %v2031
    %v4439 = vpop.f32.mrb[0].mxu0
    %v4440 = vadd.f32 %v3819, %v4439
    %v4441 = vpop.f32.mrb[0].mxu0
    %v4442 = vpop.f32.mrb[0].mxu0
    %v4443 = vadd.f32 %v3819, %v4442
    %v4444 = vpop.f32.mrb[0].mxu0
    %4445 = vmatprep.mubr.bf16.mxu0 %v2058
    %4446 = vmatmul.mubr.bf16.gmra.mrb[0].mxu0 %v2050
    %v4447 = vpop.f32.mrb[0].mxu0
    %v4448 = vadd.f32 %v3819, %v4447
    %v4449 = vpop.f32.mrb[0].mxu0
    %v4450 = vpop.f32.mrb[0].mxu0
    %v4451 = vadd.f32 %v3819, %v4450
    %v4452 = vpop.f32.mrb[0].mxu0
    %4453 = vmatprep.mubr.bf16.mxu0 %v2077
    %4454 = vmatmul.mubr.bf16.gmra.mrb[0].mxu0 %v2069
    %v4455 = vpop.f32.mrb[0].mxu0
    %v4456 = vadd.f32 %v3819, %v4455
    %v4457 = vpop.f32.mrb[0].mxu0
    %v4458 = vpop.f32.mrb[0].mxu0
    %v4459 = vadd.f32 %v3819, %v4458
    %v4460 = vpop.f32.mrb[0].mxu0
    %4461 = vmatprep.mubr.bf16.mxu0 %v2096
    %4462 = vmatmul.mubr.bf16.gmra.mrb[0].mxu0 %v2088
    %v4463 = vpop.f32.mrb[0].mxu0
    %v4464 = vadd.f32 %v3819, %v4463
    %v4465 = vpop.f32.mrb[0].mxu0
    %v4466 = vpop.f32.mrb[0].mxu0
    %v4467 = vadd.f32 %v3819, %v4466
    %v4468 = vpop.f32.mrb[0].mxu0
    %4469 = vmatprep.mubr.bf16.mxu0 %v2115
    %4470 = vmatmul.mubr.bf16.gmra.mrb[0].mxu0 %v2107
    %v4471 = vpop.f32.mrb[0].mxu0
    %v4472 = vadd.f32 %v3819, %v4471
    %v4473 = vpop.f32.mrb[0].mxu0
    %v4474 = vpop.f32.mrb[0].mxu0
    %v4475 = vadd.f32 %v3819, %v4474
    %v4476 = vpop.f32.mrb[0].mxu0
    %4477 = vmatprep.mubr.bf16.mxu0 %v2134
    %4478 = vmatmul.mubr.bf16.gmra.mrb[0].mxu0 %v2126
    %v4479 = vpop.f32.mrb[0].mxu0
    %v4480 = vadd.f32 %v3819, %v4479
    %v4481 = vpop.f32.mrb[0].mxu0
    %v4482 = vpop.f32.mrb[0].mxu0
    %v4483 = vadd.f32 %v3819, %v4482
    %v4484 = vpop.f32.mrb[0].mxu0
    %4485 = vmatprep.mubr.bf16.mxu0 %v2153
    %4486 = vmatmul.mubr.bf16.gmra.mrb[0].mxu0 %v2145
    %v4487 = vpop.f32.mrb[0].mxu0
    %v4488 = vadd.f32 %v3819, %v4487
    %v4489 = vpop.f32.mrb[0].mxu0
    %v4490 = vpop.f32.mrb[0].mxu0
    %v4491 = vadd.f32 %v3819, %v4490
    %v4492 = vpop.f32.mrb[0].mxu0
    %4493 = vmatprep.mubr.bf16.mxu0 %v2172
    %4494 = vmatmul.mubr.bf16.gmra.mrb[0].mxu0 %v2164
    %v4495 = vpop.f32.mrb[0].mxu0
    %v4496 = vadd.f32 %v3819, %v4495
    %v4497 = vpop.f32.mrb[0].mxu0
    %v4498 = vpop.f32.mrb[0].mxu0
    %v4499 = vadd.f32 %v3819, %v4498
    %v4500 = vpop.f32.mrb[0].mxu0
    %4501 = vmatprep.mubr.bf16.mxu0 %v2191
    %4502 = vmatmul.mubr.bf16.gmra.mrb[0].mxu0 %v2183
    %v4503 = vpop.f32.mrb[0].mxu0
    %v4504 = vadd.f32 %v3819, %v4503
    %v4505 = vpop.f32.mrb[0].mxu0
    %v4506 = vpop.f32.mrb[0].mxu0
    %v4507 = vadd.f32 %v3819, %v4506
    %v4508 = vpop.f32.mrb[0].mxu0
    %4509 = vmatprep.mubr.bf16.mxu0 %v2210
    %4510 = vmatmul.mubr.bf16.gmra.mrb[0].mxu0 %v2202
    %v4511 = vpop.f32.mrb[0].mxu0
    %v4512 = vadd.f32 %v3819, %v4511
    %v4513 = vpop.f32.mrb[0].mxu0
    %v4514 = vpop.f32.mrb[0].mxu0
    %v4515 = vadd.f32 %v3819, %v4514
    %v4516 = vpop.f32.mrb[0].mxu0
    %4517 = vmatprep.mubr.bf16.mxu0 %v2229
    %4518 = vmatmul.mubr.bf16.gmra.mrb[0].mxu0 %v2221
    %v4519 = vpop.f32.mrb[0].mxu0
    %v4520 = vadd.f32 %v3819, %v4519
    %v4521 = vpop.f32.mrb[0].mxu0
    %v4522 = vpop.f32.mrb[0].mxu0
    %v4523 = vadd.f32 %v3819, %v4522
    %v4524 = vpop.f32.mrb[0].mxu0
    %4525 = vmatprep.mubr.bf16.mxu0 %v2248
    %4526 = vmatmul.mubr.bf16.gmra.mrb[0].mxu0 %v2240
    %v4527 = vpop.f32.mrb[0].mxu0
    %v4528 = vadd.f32 %v3819, %v4527
    %v4529 = vpop.f32.mrb[0].mxu0
    %v4530 = vpop.f32.mrb[0].mxu0
    %v4531 = vadd.f32 %v3819, %v4530
    %v4532 = vpop.f32.mrb[0].mxu0
    %4533 = vmatprep.mubr.bf16.mxu0 %v2267
    %4534 = vmatmul.mubr.bf16.gmra.mrb[0].mxu0 %v2259
    %v4535 = vpop.f32.mrb[0].mxu0
    %v4536 = vadd.f32 %v3819, %v4535
    %v4537 = vpop.f32.mrb[0].mxu0
    %v4538 = vpop.f32.mrb[0].mxu0
    %v4539 = vadd.f32 %v3819, %v4538
    %v4540 = vpop.f32.mrb[0].mxu0
    %4541 = vmatprep.mubr.bf16.mxu0 %v2286
    %4542 = vmatmul.mubr.bf16.gmra.mrb[0].mxu0 %v2278
    %v4543 = vpop.f32.mrb[0].mxu0
    %v4544 = vadd.f32 %v3819, %v4543
    %v4545 = vpop.f32.mrb[0].mxu0
    %v4546 = vpop.f32.mrb[0].mxu0
    %v4547 = vadd.f32 %v3819, %v4546
    %v4548 = vpop.f32.mrb[0].mxu0
    %4549 = vmatprep.mubr.bf16.mxu0 %v2305
    %4550 = vmatmul.mubr.bf16.gmra.mrb[0].mxu0 %v2297
    %v4551 = vpop.f32.mrb[0].mxu0
    %v4552 = vadd.f32 %v3819, %v4551
    %v4553 = vpop.f32.mrb[0].mxu0
    %v4554 = vpop.f32.mrb[0].mxu0
    %v4555 = vadd.f32 %v3819, %v4554
    %v4556 = vpop.f32.mrb[0].mxu0
    %4557 = vmatprep.mubr.bf16.mxu0 %v2324
    %4558 = vmatmul.mubr.bf16.gmra.mrb[0].mxu0 %v2316
    %v4559 = vpop.f32.mrb[0].mxu0
    %v4560 = vadd.f32 %v3819, %v4559
    %v4561 = vpop.f32.mrb[0].mxu0
    %v4562 = vpop.f32.mrb[0].mxu0
    %v4563 = vadd.f32 %v3819, %v4562
    %v4564 = vpop.f32.mrb[0].mxu0
    %4565 = vmatprep.mubr.bf16.mxu0 %v2343
    %4566 = vmatmul.mubr.bf16.gmra.mrb[0].mxu0 %v2335
    %v4567 = vpop.f32.mrb[0].mxu0
    %v4568 = vadd.f32 %v3819, %v4567
    %v4569 = vpop.f32.mrb[0].mxu0
    %v4570 = vpop.f32.mrb[0].mxu0
    %v4571 = vadd.f32 %v3819, %v4570
    %v4572 = vpop.f32.mrb[0].mxu0
    %4573 = vmatprep.mubr.bf16.mxu0 %v2362
    %4574 = vmatmul.mubr.bf16.gmra.mrb[0].mxu0 %v2354
    %v4575 = vpop.f32.mrb[0].mxu0
    %v4576 = vadd.f32 %v3819, %v4575
    %v4577 = vpop.f32.mrb[0].mxu0
    %v4578 = vpop.f32.mrb[0].mxu0
    %v4579 = vadd.f32 %v3819, %v4578
    %v4580 = vpop.f32.mrb[0].mxu0
    %4581 = vmatprep.mubr.bf16.mxu0 %v2381
    %4582 = vmatmul.mubr.bf16.gmra.mrb[0].mxu0 %v2373
    %v4583 = vpop.f32.mrb[0].mxu0
    %v4584 = vadd.f32 %v3819, %v4583
    %v4585 = vpop.f32.mrb[0].mxu0
    %v4586 = vpop.f32.mrb[0].mxu0
    %v4587 = vadd.f32 %v3819, %v4586
    %v4588 = vpop.f32.mrb[0].mxu0
    %4589 = vmatprep.mubr.bf16.mxu0 %v2400
    %4590 = vmatmul.mubr.bf16.gmra.mrb[0].mxu0 %v2392
    %v4591 = vpop.f32.mrb[0].mxu0
    %v4592 = vadd.f32 %v3819, %v4591
    %v4593 = vpop.f32.mrb[0].mxu0
    %v4594 = vpop.f32.mrb[0].mxu0
    %v4595 = vadd.f32 %v3819, %v4594
    %v4596 = vpop.f32.mrb[0].mxu0
    %4597 = vmatprep.mubr.bf16.mxu0 %v2419
    %4598 = vmatmul.mubr.bf16.gmra.mrb[0].mxu0 %v2411
    %v4599 = vpop.f32.mrb[0].mxu0
    %v4600 = vadd.f32 %v3819, %v4599
    %v4601 = vpop.f32.mrb[0].mxu0
    %v4602 = vpop.f32.mrb[0].mxu0
    %v4603 = vadd.f32 %v3819, %v4602
    %v4604 = vpop.f32.mrb[0].mxu0
    %4605 = vmatprep.mubr.bf16.mxu0 %v2438
    %4606 = vmatmul.mubr.bf16.gmra.mrb[0].mxu0 %v2430
    %v4607 = vpop.f32.mrb[0].mxu0
    %v4608 = vadd.f32 %v3819, %v4607
    %v4609 = vpop.f32.mrb[0].mxu0
    %v4610 = vpop.f32.mrb[0].mxu0
    %v4611 = vadd.f32 %v3819, %v4610
    %v4612 = vpop.f32.mrb[0].mxu0
    %4613 = vmatprep.mubr.bf16.mxu0 %v2457
    %4614 = vmatmul.mubr.bf16.gmra.mrb[0].mxu0 %v2449
    %v4615 = vpop.f32.mrb[0].mxu0
    %v4616 = vadd.f32 %v3819, %v4615
    %v4617 = vpop.f32.mrb[0].mxu0
    %v4618 = vpop.f32.mrb[0].mxu0
    %v4619 = vadd.f32 %v3819, %v4618
    %v4620 = vpop.f32.mrb[0].mxu0
    %4621 = vmatprep.mubr.bf16.mxu0 %v2476
    %4622 = vmatmul.mubr.bf16.gmra.mrb[0].mxu0 %v2468
    %v4623 = vpop.f32.mrb[0].mxu0
    %v4624 = vadd.f32 %v3819, %v4623
    %v4625 = vpop.f32.mrb[0].mxu0
    %v4626 = vpop.f32.mrb[0].mxu0
    %v4627 = vadd.f32 %v3819, %v4626
    %v4628 = vpop.f32.mrb[0].mxu0
    %4629 = vmatprep.mubr.bf16.mxu0 %v2495
    %4630 = vmatmul.mubr.bf16.gmra.mrb[0].mxu0 %v2487
    %v4631 = vpop.f32.mrb[0].mxu0
    %v4632 = vadd.f32 %v3819, %v4631
    %v4633 = vpop.f32.mrb[0].mxu0
    %v4634 = vpop.f32.mrb[0].mxu0
    %v4635 = vadd.f32 %v3819, %v4634
    %v4636 = vpop.f32.mrb[0].mxu0
    %4637 = vmatprep.mubr.bf16.mxu0 %v2514
    %4638 = vmatmul.mubr.bf16.gmra.mrb[0].mxu0 %v2506
    %v4639 = vpop.f32.mrb[0].mxu0
    %v4640 = vadd.f32 %v3819, %v4639
    %v4641 = vpop.f32.mrb[0].mxu0
    %v4642 = vpop.f32.mrb[0].mxu0
    %v4643 = vadd.f32 %v3819, %v4642
    %v4644 = vpop.f32.mrb[0].mxu0
    %4645 = vmatprep.mubr.bf16.mxu0 %v2533
    %4646 = vmatmul.mubr.bf16.gmra.mrb[0].mxu0 %v2525
    %v4647 = vpop.f32.mrb[0].mxu0
    %v4648 = vadd.f32 %v3819, %v4647
    %v4649 = vpop.f32.mrb[0].mxu0
    %v4650 = vpop.f32.mrb[0].mxu0
    %v4651 = vadd.f32 %v3819, %v4650
    %v4652 = vpop.f32.mrb[0].mxu0
    %4653 = vmatprep.mubr.bf16.mxu0 %v2552
    %4654 = vmatmul.mubr.bf16.gmra.mrb[0].mxu0 %v2544
    %v4655 = vpop.f32.mrb[0].mxu0
    %v4656 = vadd.f32 %v3819, %v4655
    %v4657 = vpop.f32.mrb[0].mxu0
    %v4658 = vpop.f32.mrb[0].mxu0
    %v4659 = vadd.f32 %v3819, %v4658
    %v4660 = vpop.f32.mrb[0].mxu0
    %4661 = vmatprep.mubr.bf16.mxu0 %v2571
    %4662 = vmatmul.mubr.bf16.gmra.mrb[0].mxu0 %v2563
    %v4663 = vpop.f32.mrb[0].mxu0
    %v4664 = vadd.f32 %v3819, %v4663
    %v4665 = vpop.f32.mrb[0].mxu0
    %v4666 = vpop.f32.mrb[0].mxu0
    %v4667 = vadd.f32 %v3819, %v4666
    %v4668 = vpop.f32.mrb[0].mxu0
    %4669 = vmatprep.mubr.bf16.mxu0 %v2590
    %4670 = vmatmul.mubr.bf16.gmra.mrb[0].mxu0 %v2582
    %v4671 = vpop.f32.mrb[0].mxu0
    %v4672 = vadd.f32 %v3819, %v4671
    %v4673 = vpop.f32.mrb[0].mxu0
    %v4674 = vpop.f32.mrb[0].mxu0
    %v4675 = vadd.f32 %v3819, %v4674
    %v4676 = vpop.f32.mrb[0].mxu0
    %4677 = vmatprep.mubr.bf16.mxu0 %v2609
    %4678 = vmatmul.mubr.bf16.gmra.mrb[0].mxu0 %v2601
    %v4679 = vpop.f32.mrb[0].mxu0
    %v4680 = vadd.f32 %v3819, %v4679
    %v4681 = vpop.f32.mrb[0].mxu0
    %v4682 = vpop.f32.mrb[0].mxu0
    %v4683 = vadd.f32 %v3819, %v4682
    %v4684 = vpop.f32.mrb[0].mxu0
    %4685 = vmatprep.mubr.bf16.mxu0 %v2628
    %4686 = vmatmul.mubr.bf16.gmra.mrb[0].mxu0 %v2620
    %v4687 = vpop.f32.mrb[0].mxu0
    %v4688 = vadd.f32 %v3819, %v4687
    %v4689 = vpop.f32.mrb[0].mxu0
    %v4690 = vpop.f32.mrb[0].mxu0
    %v4691 = vadd.f32 %v3819, %v4690
    %v4692 = vpop.f32.mrb[0].mxu0
    %4693 = vmatprep.mubr.bf16.mxu0 %v2647
    %4694 = vmatmul.mubr.bf16.gmra.mrb[0].mxu0 %v2639
    %v4695 = vpop.f32.mrb[0].mxu0
    %v4696 = vadd.f32 %v3819, %v4695
    %v4697 = vpop.f32.mrb[0].mxu0
    %v4698 = vpop.f32.mrb[0].mxu0
    %v4699 = vadd.f32 %v3819, %v4698
    %v4700 = vpop.f32.mrb[0].mxu0
    %4701 = vmatprep.mubr.bf16.mxu0 %v2666
    %4702 = vmatmul.mubr.bf16.gmra.mrb[0].mxu0 %v2658
    %v4703 = vpop.f32.mrb[0].mxu0
    %v4704 = vadd.f32 %v3819, %v4703
    %v4705 = vpop.f32.mrb[0].mxu0
    %v4706 = vpop.f32.mrb[0].mxu0
    %v4707 = vadd.f32 %v3819, %v4706
    %v4708 = vpop.f32.mrb[0].mxu0
    %4709 = vmatprep.mubr.bf16.mxu0 %v2680
    %4710 = vmatmul.mubr.bf16.gmra.mrb[0].mxu0 %v2676
    %v4711 = vpop.f32.mrb[0].mxu0
    %v4712 = vadd.f32 %v3819, %v4711
    %v4713 = vpop.f32.mrb[0].mxu0
    %v4714 = vpop.f32.mrb[0].mxu0
    %v4715 = vadd.f32 %v3819, %v4714
    %v4716 = vpop.f32.mrb[0].mxu0
    %4717 = vdwg.mxu0
    %4718 = vmatprep.subr.bf16.mxu0 0
    %4719 = vmatpush1.bf16.msra.mxu0 %v4125
    %4720 = vmatprep.subr.bf16.mxu0 0
    %4721 = vmatpush1.bf16.msra.mxu0 %v4126
    %4722 = vmatprep.subr.bf16.mxu0 0
    %4723 = vmatpush1.bf16.msra.mxu0 %v4127
    %4724 = vmatprep.subr.bf16.mxu0 0
    %4725 = vmatpush1.bf16.msra.mxu0 %v4128
    %4726 = vmatprep.subr.bf16.mxu0 0
    %4727 = vmatpush1.bf16.msra.mxu0 %v4129
    %4728 = vmatprep.subr.bf16.mxu0 0
    %4729 = vmatpush1.bf16.msra.mxu0 %v4130
    %4730 = vmatprep.subr.bf16.mxu0 0
    %4731 = vmatpush1.bf16.msra.mxu0 %v4131
    %4732 = vmatprep.subr.bf16.mxu0 0
    %4733 = vmatpush1.bf16.msra.mxu0 %v4132
    %4734 = vmatprep.subr.bf16.mxu0 0
    %4735 = vmatpush1.bf16.msra.mxu0 %v4133
    %4736 = vmatprep.subr.bf16.mxu0 0
    %4737 = vmatpush1.bf16.msra.mxu0 %v4134
    %4738 = vmatprep.subr.bf16.mxu0 0
    %4739 = vmatpush1.bf16.msra.mxu0 %v4135
    %4740 = vmatprep.subr.bf16.mxu0 0
    %4741 = vmatpush1.bf16.msra.mxu0 %v4136
    %4742 = vmatprep.subr.bf16.mxu0 0
    %4743 = vmatpush1.bf16.msra.mxu0 %v4137
    %4744 = vmatprep.subr.bf16.mxu0 0
    %4745 = vmatpush1.bf16.msra.mxu0 %v4138
    %4746 = vmatprep.subr.bf16.mxu0 0
    %4747 = vmatpush1.bf16.msra.mxu0 %v4139
    %4748 = vmatprep.subr.bf16.mxu0 0
    %4749 = vmatpush1.bf16.msra.mxu0 %v4140
    %4750 = vmatprep.mubr.bf16.mxu0 %v2860
    %4751 = vmatmul.mubr.bf16.gmra.mrb[0].mxu0 %v1669
    %v4752 = vpop.f32.mrb[0].mxu0
    %v4753 = vadd.f32 %v4288, %v4752
    %v4754 = vpop.f32.mrb[0].mxu0
    %v4755 = vpop.f32.mrb[0].mxu0
    %v4756 = vadd.f32 %v4291, %v4755
    %v4757 = vpop.f32.mrb[0].mxu0
    %4758 = vmatprep.mubr.bf16.mxu0 %v2878
    %4759 = vmatmul.mubr.bf16.gmra.mrb[0].mxu0 %v2851
    %v4760 = vpop.f32.mrb[0].mxu0
    %v4761 = vadd.f32 %v4296, %v4760
    %v4762 = vpop.f32.mrb[0].mxu0
    %v4763 = vpop.f32.mrb[0].mxu0
    %v4764 = vadd.f32 %v4299, %v4763
    %v4765 = vpop.f32.mrb[0].mxu0
    %4766 = vmatprep.mubr.bf16.mxu0 %v2890
    %4767 = vmatmul.mubr.bf16.gmra.mrb[0].mxu0 %v1724
    %v4768 = vpop.f32.mrb[0].mxu0
    %v4769 = vadd.f32 %v4304, %v4768
    %v4770 = vpop.f32.mrb[0].mxu0
    %v4771 = vpop.f32.mrb[0].mxu0
    %v4772 = vadd.f32 %v4307, %v4771
    %v4773 = vpop.f32.mrb[0].mxu0
    %4774 = vmatprep.mubr.bf16.mxu0 %v2902
    %4775 = vmatmul.mubr.bf16.gmra.mrb[0].mxu0 %v1743
    %v4776 = vpop.f32.mrb[0].mxu0
    %v4777 = vadd.f32 %v4312, %v4776
    %v4778 = vpop.f32.mrb[0].mxu0
    %v4779 = vpop.f32.mrb[0].mxu0
    %v4780 = vadd.f32 %v4315, %v4779
    %v4781 = vpop.f32.mrb[0].mxu0
    %4782 = vmatprep.mubr.bf16.mxu0 %v2914
    %4783 = vmatmul.mubr.bf16.gmra.mrb[0].mxu0 %v1762
    %v4784 = vpop.f32.mrb[0].mxu0
    %v4785 = vadd.f32 %v4320, %v4784
    %v4786 = vpop.f32.mrb[0].mxu0
    %v4787 = vpop.f32.mrb[0].mxu0
    %v4788 = vadd.f32 %v4323, %v4787
    %v4789 = vpop.f32.mrb[0].mxu0
    %4790 = vmatprep.mubr.bf16.mxu0 %v2926
    %4791 = vmatmul.mubr.bf16.gmra.mrb[0].mxu0 %v1781
    %v4792 = vpop.f32.mrb[0].mxu0
    %v4793 = vadd.f32 %v4328, %v4792
    %v4794 = vpop.f32.mrb[0].mxu0
    %v4795 = vpop.f32.mrb[0].mxu0
    %v4796 = vadd.f32 %v4331, %v4795
    %v4797 = vpop.f32.mrb[0].mxu0
    %4798 = vmatprep.mubr.bf16.mxu0 %v2938
    %4799 = vmatmul.mubr.bf16.gmra.mrb[0].mxu0 %v1800
    %v4800 = vpop.f32.mrb[0].mxu0
    %v4801 = vadd.f32 %v4336, %v4800
    %v4802 = vpop.f32.mrb[0].mxu0
    %v4803 = vpop.f32.mrb[0].mxu0
    %v4804 = vadd.f32 %v4339, %v4803
    %v4805 = vpop.f32.mrb[0].mxu0
    %4806 = vmatprep.mubr.bf16.mxu0 %v2950
    %4807 = vmatmul.mubr.bf16.gmra.mrb[0].mxu0 %v1819
    %v4808 = vpop.f32.mrb[0].mxu0
    %v4809 = vadd.f32 %v4344, %v4808
    %v4810 = vpop.f32.mrb[0].mxu0
    %v4811 = vpop.f32.mrb[0].mxu0
    %v4812 = vadd.f32 %v4347, %v4811
    %v4813 = vpop.f32.mrb[0].mxu0
    %4814 = vmatprep.mubr.bf16.mxu0 %v2962
    %4815 = vmatmul.mubr.bf16.gmra.mrb[0].mxu0 %v1838
    %v4816 = vpop.f32.mrb[0].mxu0
    %v4817 = vadd.f32 %v4352, %v4816
    %v4818 = vpop.f32.mrb[0].mxu0
    %v4819 = vpop.f32.mrb[0].mxu0
    %v4820 = vadd.f32 %v4355, %v4819
    %v4821 = vpop.f32.mrb[0].mxu0
    %4822 = vmatprep.mubr.bf16.mxu0 %v2974
    %4823 = vmatmul.mubr.bf16.gmra.mrb[0].mxu0 %v1857
    %v4824 = vpop.f32.mrb[0].mxu0
    %v4825 = vadd.f32 %v4360, %v4824
    %v4826 = vpop.f32.mrb[0].mxu0
    %v4827 = vpop.f32.mrb[0].mxu0
    %v4828 = vadd.f32 %v4363, %v4827
    %v4829 = vpop.f32.mrb[0].mxu0
    %4830 = vmatprep.mubr.bf16.mxu0 %v2986
    %4831 = vmatmul.mubr.bf16.gmra.mrb[0].mxu0 %v1876
    %v4832 = vpop.f32.mrb[0].mxu0
    %v4833 = vadd.f32 %v4368, %v4832
    %v4834 = vpop.f32.mrb[0].mxu0
    %v4835 = vpop.f32.mrb[0].mxu0
    %v4836 = vadd.f32 %v4371, %v4835
    %v4837 = vpop.f32.mrb[0].mxu0
    %4838 = vmatprep.mubr.bf16.mxu0 %v2998
    %4839 = vmatmul.mubr.bf16.gmra.mrb[0].mxu0 %v1895
    %v4840 = vpop.f32.mrb[0].mxu0
    %v4841 = vadd.f32 %v4376, %v4840
    %v4842 = vpop.f32.mrb[0].mxu0
    %v4843 = vpop.f32.mrb[0].mxu0
    %v4844 = vadd.f32 %v4379, %v4843
    %v4845 = vpop.f32.mrb[0].mxu0
    %4846 = vmatprep.mubr.bf16.mxu0 %v3010
    %4847 = vmatmul.mubr.bf16.gmra.mrb[0].mxu0 %v1914
    %v4848 = vpop.f32.mrb[0].mxu0
    %v4849 = vadd.f32 %v4384, %v4848
    %v4850 = vpop.f32.mrb[0].mxu0
    %v4851 = vpop.f32.mrb[0].mxu0
    %v4852 = vadd.f32 %v4387, %v4851
    %v4853 = vpop.f32.mrb[0].mxu0
    %4854 = vmatprep.mubr.bf16.mxu0 %v3022
    %4855 = vmatmul.mubr.bf16.gmra.mrb[0].mxu0 %v1933
    %v4856 = vpop.f32.mrb[0].mxu0
    %v4857 = vadd.f32 %v4392, %v4856
    %v4858 = vpop.f32.mrb[0].mxu0
    %v4859 = vpop.f32.mrb[0].mxu0
    %v4860 = vadd.f32 %v4395, %v4859
    %v4861 = vpop.f32.mrb[0].mxu0
    %4862 = vmatprep.mubr.bf16.mxu0 %v3034
    %4863 = vmatmul.mubr.bf16.gmra.mrb[0].mxu0 %v1952
    %v4864 = vpop.f32.mrb[0].mxu0
    %v4865 = vadd.f32 %v4400, %v4864
    %v4866 = vpop.f32.mrb[0].mxu0
    %v4867 = vpop.f32.mrb[0].mxu0
    %v4868 = vadd.f32 %v4403, %v4867
    %v4869 = vpop.f32.mrb[0].mxu0
    %4870 = vmatprep.mubr.bf16.mxu0 %v3046
    %4871 = vmatmul.mubr.bf16.gmra.mrb[0].mxu0 %v1971
    %v4872 = vpop.f32.mrb[0].mxu0
    %v4873 = vadd.f32 %v4408, %v4872
    %v4874 = vpop.f32.mrb[0].mxu0
    %v4875 = vpop.f32.mrb[0].mxu0
    %v4876 = vadd.f32 %v4411, %v4875
    %v4877 = vpop.f32.mrb[0].mxu0
    %4878 = vmatprep.mubr.bf16.mxu0 %v3058
    %4879 = vmatmul.mubr.bf16.gmra.mrb[0].mxu0 %v1990
    %v4880 = vpop.f32.mrb[0].mxu0
    %v4881 = vadd.f32 %v4416, %v4880
    %v4882 = vpop.f32.mrb[0].mxu0
    %v4883 = vpop.f32.mrb[0].mxu0
    %v4884 = vadd.f32 %v4419, %v4883
    %v4885 = vpop.f32.mrb[0].mxu0
    %4886 = vmatprep.mubr.bf16.mxu0 %v3070
    %4887 = vmatmul.mubr.bf16.gmra.mrb[0].mxu0 %v2009
    %v4888 = vpop.f32.mrb[0].mxu0
    %v4889 = vadd.f32 %v4424, %v4888
    %v4890 = vpop.f32.mrb[0].mxu0
    %v4891 = vpop.f32.mrb[0].mxu0
    %v4892 = vadd.f32 %v4427, %v4891
    %v4893 = vpop.f32.mrb[0].mxu0
    %4894 = vmatprep.mubr.bf16.mxu0 %v3082
    %4895 = vmatmul.mubr.bf16.gmra.mrb[0].mxu0 %v2028
    %v4896 = vpop.f32.mrb[0].mxu0
    %v4897 = vadd.f32 %v4432, %v4896
    %v4898 = vpop.f32.mrb[0].mxu0
    %v4899 = vpop.f32.mrb[0].mxu0
    %v4900 = vadd.f32 %v4435, %v4899
    %v4901 = vpop.f32.mrb[0].mxu0
    %4902 = vmatprep.mubr.bf16.mxu0 %v3094
    %4903 = vmatmul.mubr.bf16.gmra.mrb[0].mxu0 %v2047
    %v4904 = vpop.f32.mrb[0].mxu0
    %v4905 = vadd.f32 %v4440, %v4904
    %v4906 = vpop.f32.mrb[0].mxu0
    %v4907 = vpop.f32.mrb[0].mxu0
    %v4908 = vadd.f32 %v4443, %v4907
    %v4909 = vpop.f32.mrb[0].mxu0
    %4910 = vmatprep.mubr.bf16.mxu0 %v3106
    %4911 = vmatmul.mubr.bf16.gmra.mrb[0].mxu0 %v2066
    %v4912 = vpop.f32.mrb[0].mxu0
    %v4913 = vadd.f32 %v4448, %v4912
    %v4914 = vpop.f32.mrb[0].mxu0
    %v4915 = vpop.f32.mrb[0].mxu0
    %v4916 = vadd.f32 %v4451, %v4915
    %v4917 = vpop.f32.mrb[0].mxu0
    %4918 = vmatprep.mubr.bf16.mxu0 %v3118
    %4919 = vmatmul.mubr.bf16.gmra.mrb[0].mxu0 %v2085
    %v4920 = vpop.f32.mrb[0].mxu0
    %v4921 = vadd.f32 %v4456, %v4920
    %v4922 = vpop.f32.mrb[0].mxu0
    %v4923 = vpop.f32.mrb[0].mxu0
    %v4924 = vadd.f32 %v4459, %v4923
    %v4925 = vpop.f32.mrb[0].mxu0
    %4926 = vmatprep.mubr.bf16.mxu0 %v3130
    %4927 = vmatmul.mubr.bf16.gmra.mrb[0].mxu0 %v2104
    %v4928 = vpop.f32.mrb[0].mxu0
    %v4929 = vadd.f32 %v4464, %v4928
    %v4930 = vpop.f32.mrb[0].mxu0
    %v4931 = vpop.f32.mrb[0].mxu0
    %v4932 = vadd.f32 %v4467, %v4931
    %v4933 = vpop.f32.mrb[0].mxu0
    %4934 = vmatprep.mubr.bf16.mxu0 %v3142
    %4935 = vmatmul.mubr.bf16.gmra.mrb[0].mxu0 %v2123
    %v4936 = vpop.f32.mrb[0].mxu0
    %v4937 = vadd.f32 %v4472, %v4936
    %v4938 = vpop.f32.mrb[0].mxu0
    %v4939 = vpop.f32.mrb[0].mxu0
    %v4940 = vadd.f32 %v4475, %v4939
    %v4941 = vpop.f32.mrb[0].mxu0
    %4942 = vmatprep.mubr.bf16.mxu0 %v3154
    %4943 = vmatmul.mubr.bf16.gmra.mrb[0].mxu0 %v2142
    %v4944 = vpop.f32.mrb[0].mxu0
    %v4945 = vadd.f32 %v4480, %v4944
    %v4946 = vpop.f32.mrb[0].mxu0
    %v4947 = vpop.f32.mrb[0].mxu0
    %v4948 = vadd.f32 %v4483, %v4947
    %v4949 = vpop.f32.mrb[0].mxu0
    %4950 = vmatprep.mubr.bf16.mxu0 %v3166
    %4951 = vmatmul.mubr.bf16.gmra.mrb[0].mxu0 %v2161
    %v4952 = vpop.f32.mrb[0].mxu0
    %v4953 = vadd.f32 %v4488, %v4952
    %v4954 = vpop.f32.mrb[0].mxu0
    %v4955 = vpop.f32.mrb[0].mxu0
    %v4956 = vadd.f32 %v4491, %v4955
    %v4957 = vpop.f32.mrb[0].mxu0
    %4958 = vmatprep.mubr.bf16.mxu0 %v3178
    %4959 = vmatmul.mubr.bf16.gmra.mrb[0].mxu0 %v2180
    %v4960 = vpop.f32.mrb[0].mxu0
    %v4961 = vadd.f32 %v4496, %v4960
    %v4962 = vpop.f32.mrb[0].mxu0
    %v4963 = vpop.f32.mrb[0].mxu0
    %v4964 = vadd.f32 %v4499, %v4963
    %v4965 = vpop.f32.mrb[0].mxu0
    %4966 = vmatprep.mubr.bf16.mxu0 %v3190
    %4967 = vmatmul.mubr.bf16.gmra.mrb[0].mxu0 %v2199
    %v4968 = vpop.f32.mrb[0].mxu0
    %v4969 = vadd.f32 %v4504, %v4968
    %v4970 = vpop.f32.mrb[0].mxu0
    %v4971 = vpop.f32.mrb[0].mxu0
    %v4972 = vadd.f32 %v4507, %v4971
    %v4973 = vpop.f32.mrb[0].mxu0
    %4974 = vmatprep.mubr.bf16.mxu0 %v3202
    %4975 = vmatmul.mubr.bf16.gmra.mrb[0].mxu0 %v2218
    %v4976 = vpop.f32.mrb[0].mxu0
    %v4977 = vadd.f32 %v4512, %v4976
    %v4978 = vpop.f32.mrb[0].mxu0
    %v4979 = vpop.f32.mrb[0].mxu0
    %v4980 = vadd.f32 %v4515, %v4979
    %v4981 = vpop.f32.mrb[0].mxu0
    %4982 = vmatprep.mubr.bf16.mxu0 %v3214
    %4983 = vmatmul.mubr.bf16.gmra.mrb[0].mxu0 %v2237
    %v4984 = vpop.f32.mrb[0].mxu0
    %v4985 = vadd.f32 %v4520, %v4984
    %v4986 = vpop.f32.mrb[0].mxu0
    %v4987 = vpop.f32.mrb[0].mxu0
    %v4988 = vadd.f32 %v4523, %v4987
    %v4989 = vpop.f32.mrb[0].mxu0
    %4990 = vmatprep.mubr.bf16.mxu0 %v3226
    %4991 = vmatmul.mubr.bf16.gmra.mrb[0].mxu0 %v2256
    %v4992 = vpop.f32.mrb[0].mxu0
    %v4993 = vadd.f32 %v4528, %v4992
    %v4994 = vpop.f32.mrb[0].mxu0
    %v4995 = vpop.f32.mrb[0].mxu0
    %v4996 = vadd.f32 %v4531, %v4995
    %v4997 = vpop.f32.mrb[0].mxu0
    %4998 = vmatprep.mubr.bf16.mxu0 %v3238
    %4999 = vmatmul.mubr.bf16.gmra.mrb[0].mxu0 %v2275
    %v5000 = vpop.f32.mrb[0].mxu0
    %v5001 = vadd.f32 %v4536, %v5000
    %v5002 = vpop.f32.mrb[0].mxu0
    %v5003 = vpop.f32.mrb[0].mxu0
    %v5004 = vadd.f32 %v4539, %v5003
    %v5005 = vpop.f32.mrb[0].mxu0
    %5006 = vmatprep.mubr.bf16.mxu0 %v3250
    %5007 = vmatmul.mubr.bf16.gmra.mrb[0].mxu0 %v2294
    %v5008 = vpop.f32.mrb[0].mxu0
    %v5009 = vadd.f32 %v4544, %v5008
    %v5010 = vpop.f32.mrb[0].mxu0
    %v5011 = vpop.f32.mrb[0].mxu0
    %v5012 = vadd.f32 %v4547, %v5011
    %v5013 = vpop.f32.mrb[0].mxu0
    %5014 = vmatprep.mubr.bf16.mxu0 %v3262
    %5015 = vmatmul.mubr.bf16.gmra.mrb[0].mxu0 %v2313
    %v5016 = vpop.f32.mrb[0].mxu0
    %v5017 = vadd.f32 %v4552, %v5016
    %v5018 = vpop.f32.mrb[0].mxu0
    %v5019 = vpop.f32.mrb[0].mxu0
    %v5020 = vadd.f32 %v4555, %v5019
    %v5021 = vpop.f32.mrb[0].mxu0
    %5022 = vmatprep.mubr.bf16.mxu0 %v3274
    %5023 = vmatmul.mubr.bf16.gmra.mrb[0].mxu0 %v2332
    %v5024 = vpop.f32.mrb[0].mxu0
    %v5025 = vadd.f32 %v4560, %v5024
    %v5026 = vpop.f32.mrb[0].mxu0
    %v5027 = vpop.f32.mrb[0].mxu0
    %v5028 = vadd.f32 %v4563, %v5027
    %v5029 = vpop.f32.mrb[0].mxu0
    %5030 = vmatprep.mubr.bf16.mxu0 %v3286
    %5031 = vmatmul.mubr.bf16.gmra.mrb[0].mxu0 %v2351
    %v5032 = vpop.f32.mrb[0].mxu0
    %v5033 = vadd.f32 %v4568, %v5032
    %v5034 = vpop.f32.mrb[0].mxu0
    %v5035 = vpop.f32.mrb[0].mxu0
    %v5036 = vadd.f32 %v4571, %v5035
    %v5037 = vpop.f32.mrb[0].mxu0
    %5038 = vmatprep.mubr.bf16.mxu0 %v3298
    %5039 = vmatmul.mubr.bf16.gmra.mrb[0].mxu0 %v2370
    %v5040 = vpop.f32.mrb[0].mxu0
    %v5041 = vadd.f32 %v4576, %v5040
    %v5042 = vpop.f32.mrb[0].mxu0
    %v5043 = vpop.f32.mrb[0].mxu0
    %v5044 = vadd.f32 %v4579, %v5043
    %v5045 = vpop.f32.mrb[0].mxu0
    %5046 = vmatprep.mubr.bf16.mxu0 %v3310
    %5047 = vmatmul.mubr.bf16.gmra.mrb[0].mxu0 %v2389
    %v5048 = vpop.f32.mrb[0].mxu0
    %v5049 = vadd.f32 %v4584, %v5048
    %v5050 = vpop.f32.mrb[0].mxu0
    %v5051 = vpop.f32.mrb[0].mxu0
    %v5052 = vadd.f32 %v4587, %v5051
    %v5053 = vpop.f32.mrb[0].mxu0
    %5054 = vmatprep.mubr.bf16.mxu0 %v3322
    %5055 = vmatmul.mubr.bf16.gmra.mrb[0].mxu0 %v2408
    %v5056 = vpop.f32.mrb[0].mxu0
    %v5057 = vadd.f32 %v4592, %v5056
    %v5058 = vpop.f32.mrb[0].mxu0
    %v5059 = vpop.f32.mrb[0].mxu0
    %v5060 = vadd.f32 %v4595, %v5059
    %v5061 = vpop.f32.mrb[0].mxu0
    %5062 = vmatprep.mubr.bf16.mxu0 %v3334
    %5063 = vmatmul.mubr.bf16.gmra.mrb[0].mxu0 %v2427
    %v5064 = vpop.f32.mrb[0].mxu0
    %v5065 = vadd.f32 %v4600, %v5064
    %v5066 = vpop.f32.mrb[0].mxu0
    %v5067 = vpop.f32.mrb[0].mxu0
    %v5068 = vadd.f32 %v4603, %v5067
    %v5069 = vpop.f32.mrb[0].mxu0
    %5070 = vmatprep.mubr.bf16.mxu0 %v3346
    %5071 = vmatmul.mubr.bf16.gmra.mrb[0].mxu0 %v2446
    %v5072 = vpop.f32.mrb[0].mxu0
    %v5073 = vadd.f32 %v4608, %v5072
    %v5074 = vpop.f32.mrb[0].mxu0
    %v5075 = vpop.f32.mrb[0].mxu0
    %v5076 = vadd.f32 %v4611, %v5075
    %v5077 = vpop.f32.mrb[0].mxu0
    %5078 = vmatprep.mubr.bf16.mxu0 %v3358
    %5079 = vmatmul.mubr.bf16.gmra.mrb[0].mxu0 %v2465
    %v5080 = vpop.f32.mrb[0].mxu0
    %v5081 = vadd.f32 %v4616, %v5080
    %v5082 = vpop.f32.mrb[0].mxu0
    %v5083 = vpop.f32.mrb[0].mxu0
    %v5084 = vadd.f32 %v4619, %v5083
    %v5085 = vpop.f32.mrb[0].mxu0
    %5086 = vmatprep.mubr.bf16.mxu0 %v3370
    %5087 = vmatmul.mubr.bf16.gmra.mrb[0].mxu0 %v2484
    %v5088 = vpop.f32.mrb[0].mxu0
    %v5089 = vadd.f32 %v4624, %v5088
    %v5090 = vpop.f32.mrb[0].mxu0
    %v5091 = vpop.f32.mrb[0].mxu0
    %v5092 = vadd.f32 %v4627, %v5091
    %v5093 = vpop.f32.mrb[0].mxu0
    %5094 = vmatprep.mubr.bf16.mxu0 %v3382
    %5095 = vmatmul.mubr.bf16.gmra.mrb[0].mxu0 %v2503
    %v5096 = vpop.f32.mrb[0].mxu0
    %v5097 = vadd.f32 %v4632, %v5096
    %v5098 = vpop.f32.mrb[0].mxu0
    %v5099 = vpop.f32.mrb[0].mxu0
    %v5100 = vadd.f32 %v4635, %v5099
    %v5101 = vpop.f32.mrb[0].mxu0
    %5102 = vmatprep.mubr.bf16.mxu0 %v3394
    %5103 = vmatmul.mubr.bf16.gmra.mrb[0].mxu0 %v2522
    %v5104 = vpop.f32.mrb[0].mxu0
    %v5105 = vadd.f32 %v4640, %v5104
    %v5106 = vpop.f32.mrb[0].mxu0
    %v5107 = vpop.f32.mrb[0].mxu0
    %v5108 = vadd.f32 %v4643, %v5107
    %v5109 = vpop.f32.mrb[0].mxu0
    %5110 = vmatprep.mubr.bf16.mxu0 %v3406
    %5111 = vmatmul.mubr.bf16.gmra.mrb[0].mxu0 %v2541
    %v5112 = vpop.f32.mrb[0].mxu0
    %v5113 = vadd.f32 %v4648, %v5112
    %v5114 = vpop.f32.mrb[0].mxu0
    %v5115 = vpop.f32.mrb[0].mxu0
    %v5116 = vadd.f32 %v4651, %v5115
    %v5117 = vpop.f32.mrb[0].mxu0
    %5118 = vmatprep.mubr.bf16.mxu0 %v3418
    %5119 = vmatmul.mubr.bf16.gmra.mrb[0].mxu0 %v2560
    %v5120 = vpop.f32.mrb[0].mxu0
    %v5121 = vadd.f32 %v4656, %v5120
    %v5122 = vpop.f32.mrb[0].mxu0
    %v5123 = vpop.f32.mrb[0].mxu0
    %v5124 = vadd.f32 %v4659, %v5123
    %v5125 = vpop.f32.mrb[0].mxu0
    %5126 = vmatprep.mubr.bf16.mxu0 %v3430
    %5127 = vmatmul.mubr.bf16.gmra.mrb[0].mxu0 %v2579
    %v5128 = vpop.f32.mrb[0].mxu0
    %v5129 = vadd.f32 %v4664, %v5128
    %v5130 = vpop.f32.mrb[0].mxu0
    %v5131 = vpop.f32.mrb[0].mxu0
    %v5132 = vadd.f32 %v4667, %v5131
    %v5133 = vpop.f32.mrb[0].mxu0
    %5134 = vmatprep.mubr.bf16.mxu0 %v3442
    %5135 = vmatmul.mubr.bf16.gmra.mrb[0].mxu0 %v2598
    %v5136 = vpop.f32.mrb[0].mxu0
    %v5137 = vadd.f32 %v4672, %v5136
    %v5138 = vpop.f32.mrb[0].mxu0
    %v5139 = vpop.f32.mrb[0].mxu0
    %v5140 = vadd.f32 %v4675, %v5139
    %v5141 = vpop.f32.mrb[0].mxu0
    %5142 = vmatprep.mubr.bf16.mxu0 %v3454
    %5143 = vmatmul.mubr.bf16.gmra.mrb[0].mxu0 %v2617
    %v5144 = vpop.f32.mrb[0].mxu0
    %v5145 = vadd.f32 %v4680, %v5144
    %v5146 = vpop.f32.mrb[0].mxu0
    %v5147 = vpop.f32.mrb[0].mxu0
    %v5148 = vadd.f32 %v4683, %v5147
    %v5149 = vpop.f32.mrb[0].mxu0
    %5150 = vmatprep.mubr.bf16.mxu0 %v3466
    %5151 = vmatmul.mubr.bf16.gmra.mrb[0].mxu0 %v2636
    %v5152 = vpop.f32.mrb[0].mxu0
    %v5153 = vadd.f32 %v4688, %v5152
    %v5154 = vpop.f32.mrb[0].mxu0
    %v5155 = vpop.f32.mrb[0].mxu0
    %v5156 = vadd.f32 %v4691, %v5155
    %v5157 = vpop.f32.mrb[0].mxu0
    %5158 = vmatprep.mubr.bf16.mxu0 %v3478
    %5159 = vmatmul.mubr.bf16.gmra.mrb[0].mxu0 %v2655
    %v5160 = vpop.f32.mrb[0].mxu0
    %v5161 = vadd.f32 %v4696, %v5160
    %v5162 = vpop.f32.mrb[0].mxu0
    %v5163 = vpop.f32.mrb[0].mxu0
    %v5164 = vadd.f32 %v4699, %v5163
    %v5165 = vpop.f32.mrb[0].mxu0
    %5166 = vmatprep.mubr.bf16.mxu0 %v3490
    %5167 = vmatmul.mubr.bf16.gmra.mrb[0].mxu0 %v2674
    %v5168 = vpop.f32.mrb[0].mxu0
    %v5169 = vadd.f32 %v4704, %v5168
    %v5170 = vpop.f32.mrb[0].mxu0
    %v5171 = vpop.f32.mrb[0].mxu0
    %v5172 = vadd.f32 %v4707, %v5171
    %v5173 = vpop.f32.mrb[0].mxu0
    %5174 = vmatprep.mubr.bf16.mxu0 %v3499
    %5175 = vmatmul.mubr.bf16.gmra.mrb[0].mxu0 %v2684
    %v5176 = vpop.f32.mrb[0].mxu0
    %v5177 = vadd.f32 %v4712, %v5176
    %v5178 = vpop.f32.mrb[0].mxu0
    %v5179 = vpop.f32.mrb[0].mxu0
    %v5180 = vadd.f32 %v4715, %v5179
    %v5181 = vpop.f32.mrb[0].mxu0
    %5182 = vdwg.mxu0
    %5183 = vmatprep.subr.bf16.mxu0 0
    %5184 = vmatpush1.bf16.msra.mxu0 %v4141
    %5185 = vmatprep.subr.bf16.mxu0 0
    %5186 = vmatpush1.bf16.msra.mxu0 %v4142
    %5187 = vmatprep.subr.bf16.mxu0 0
    %5188 = vmatpush1.bf16.msra.mxu0 %v4143
    %5189 = vmatprep.subr.bf16.mxu0 0
    %5190 = vmatpush1.bf16.msra.mxu0 %v4144
    %5191 = vmatprep.subr.bf16.mxu0 0
    %5192 = vmatpush1.bf16.msra.mxu0 %v4145
    %5193 = vmatprep.subr.bf16.mxu0 0
    %5194 = vmatpush1.bf16.msra.mxu0 %v4146
    %5195 = vmatprep.subr.bf16.mxu0 0
    %5196 = vmatpush1.bf16.msra.mxu0 %v4147
    %5197 = vmatprep.subr.bf16.mxu0 0
    %5198 = vmatpush1.bf16.msra.mxu0 %v4148
    %5199 = vmatprep.subr.bf16.mxu0 0
    %5200 = vmatpush1.bf16.msra.mxu0 %v4149
    %5201 = vmatprep.subr.bf16.mxu0 0
    %5202 = vmatpush1.bf16.msra.mxu0 %v4150
    %5203 = vmatprep.subr.bf16.mxu0 0
    %5204 = vmatpush1.bf16.msra.mxu0 %v4151
    %5205 = vmatprep.subr.bf16.mxu0 0
    %5206 = vmatpush1.bf16.msra.mxu0 %v4152
    %5207 = vmatprep.subr.bf16.mxu0 0
    %5208 = vmatpush1.bf16.msra.mxu0 %v4153
    %5209 = vmatprep.subr.bf16.mxu0 0
    %5210 = vmatpush1.bf16.msra.mxu0 %v4154
    %5211 = vmatprep.subr.bf16.mxu0 0
    %5212 = vmatpush1.bf16.msra.mxu0 %v4155
    %5213 = vmatprep.subr.bf16.mxu0 0
    %5214 = vmatpush1.bf16.msra.mxu0 %v4156
    %5215 = vmatprep.mubr.bf16.mxu0 %v2874
    %5216 = vmatmul.mubr.bf16.gmra.mrb[0].mxu0 %v2867
    %v5217 = vpop.f32.mrb[0].mxu0
    %v5218 = vadd.f32 %v4753, %v5217
    %v5219 = vpop.f32.mrb[0].mxu0
    %v5220 = vpop.f32.mrb[0].mxu0
    %v5221 = vadd.f32 %v4756, %v5220
    %v5222 = vpop.f32.mrb[0].mxu0
    %5223 = vmatprep.mubr.bf16.mxu0 %v2886
    %5224 = vmatmul.mubr.bf16.gmra.mrb[0].mxu0 %v2882
    %v5225 = vpop.f32.mrb[0].mxu0
    %v5226 = vadd.f32 %v4761, %v5225
    %v5227 = vpop.f32.mrb[0].mxu0
    %v5228 = vpop.f32.mrb[0].mxu0
    %v5229 = vadd.f32 %v4764, %v5228
    %v5230 = vpop.f32.mrb[0].mxu0
    %5231 = vmatprep.mubr.bf16.mxu0 %v2898
    %5232 = vmatmul.mubr.bf16.gmra.mrb[0].mxu0 %v2894
    %v5233 = vpop.f32.mrb[0].mxu0
    %v5234 = vadd.f32 %v4769, %v5233
    %v5235 = vpop.f32.mrb[0].mxu0
    %v5236 = vpop.f32.mrb[0].mxu0
    %v5237 = vadd.f32 %v4772, %v5236
    %v5238 = vpop.f32.mrb[0].mxu0
    %5239 = vmatprep.mubr.bf16.mxu0 %v2910
    %5240 = vmatmul.mubr.bf16.gmra.mrb[0].mxu0 %v2906
    %v5241 = vpop.f32.mrb[0].mxu0
    %v5242 = vadd.f32 %v4777, %v5241
    %v5243 = vpop.f32.mrb[0].mxu0
    %v5244 = vpop.f32.mrb[0].mxu0
    %v5245 = vadd.f32 %v4780, %v5244
    %v5246 = vpop.f32.mrb[0].mxu0
    %5247 = vmatprep.mubr.bf16.mxu0 %v2922
    %5248 = vmatmul.mubr.bf16.gmra.mrb[0].mxu0 %v2918
    %v5249 = vpop.f32.mrb[0].mxu0
    %v5250 = vadd.f32 %v4785, %v5249
    %v5251 = vpop.f32.mrb[0].mxu0
    %v5252 = vpop.f32.mrb[0].mxu0
    %v5253 = vadd.f32 %v4788, %v5252
    %v5254 = vpop.f32.mrb[0].mxu0
    %5255 = vmatprep.mubr.bf16.mxu0 %v2934
    %5256 = vmatmul.mubr.bf16.gmra.mrb[0].mxu0 %v2930
    %v5257 = vpop.f32.mrb[0].mxu0
    %v5258 = vadd.f32 %v4793, %v5257
    %v5259 = vpop.f32.mrb[0].mxu0
    %v5260 = vpop.f32.mrb[0].mxu0
    %v5261 = vadd.f32 %v4796, %v5260
    %v5262 = vpop.f32.mrb[0].mxu0
    %5263 = vmatprep.mubr.bf16.mxu0 %v2946
    %5264 = vmatmul.mubr.bf16.gmra.mrb[0].mxu0 %v2942
    %v5265 = vpop.f32.mrb[0].mxu0
    %v5266 = vadd.f32 %v4801, %v5265
    %v5267 = vpop.f32.mrb[0].mxu0
    %v5268 = vpop.f32.mrb[0].mxu0
    %v5269 = vadd.f32 %v4804, %v5268
    %v5270 = vpop.f32.mrb[0].mxu0
    %5271 = vmatprep.mubr.bf16.mxu0 %v2958
    %5272 = vmatmul.mubr.bf16.gmra.mrb[0].mxu0 %v2954
    %v5273 = vpop.f32.mrb[0].mxu0
    %v5274 = vadd.f32 %v4809, %v5273
    %v5275 = vpop.f32.mrb[0].mxu0
    %v5276 = vpop.f32.mrb[0].mxu0
    %v5277 = vadd.f32 %v4812, %v5276
    %v5278 = vpop.f32.mrb[0].mxu0
    %5279 = vmatprep.mubr.bf16.mxu0 %v2970
    %5280 = vmatmul.mubr.bf16.gmra.mrb[0].mxu0 %v2966
    %v5281 = vpop.f32.mrb[0].mxu0
    %v5282 = vadd.f32 %v4817, %v5281
    %v5283 = vpop.f32.mrb[0].mxu0
    %v5284 = vpop.f32.mrb[0].mxu0
    %v5285 = vadd.f32 %v4820, %v5284
    %v5286 = vpop.f32.mrb[0].mxu0
    %5287 = vmatprep.mubr.bf16.mxu0 %v2982
    %5288 = vmatmul.mubr.bf16.gmra.mrb[0].mxu0 %v2978
    %v5289 = vpop.f32.mrb[0].mxu0
    %v5290 = vadd.f32 %v4825, %v5289
    %v5291 = vpop.f32.mrb[0].mxu0
    %v5292 = vpop.f32.mrb[0].mxu0
    %v5293 = vadd.f32 %v4828, %v5292
    %v5294 = vpop.f32.mrb[0].mxu0
    %5295 = vmatprep.mubr.bf16.mxu0 %v2994
    %5296 = vmatmul.mubr.bf16.gmra.mrb[0].mxu0 %v2990
    %v5297 = vpop.f32.mrb[0].mxu0
    %v5298 = vadd.f32 %v4833, %v5297
    %v5299 = vpop.f32.mrb[0].mxu0
    %v5300 = vpop.f32.mrb[0].mxu0
    %v5301 = vadd.f32 %v4836, %v5300
    %v5302 = vpop.f32.mrb[0].mxu0
    %5303 = vmatprep.mubr.bf16.mxu0 %v3006
    %5304 = vmatmul.mubr.bf16.gmra.mrb[0].mxu0 %v3002
    %v5305 = vpop.f32.mrb[0].mxu0
    %v5306 = vadd.f32 %v4841, %v5305
    %v5307 = vpop.f32.mrb[0].mxu0
    %v5308 = vpop.f32.mrb[0].mxu0
    %v5309 = vadd.f32 %v4844, %v5308
    %v5310 = vpop.f32.mrb[0].mxu0
    %5311 = vmatprep.mubr.bf16.mxu0 %v3018
    %5312 = vmatmul.mubr.bf16.gmra.mrb[0].mxu0 %v3014
    %v5313 = vpop.f32.mrb[0].mxu0
    %v5314 = vadd.f32 %v4849, %v5313
    %v5315 = vpop.f32.mrb[0].mxu0
    %v5316 = vpop.f32.mrb[0].mxu0
    %v5317 = vadd.f32 %v4852, %v5316
    %v5318 = vpop.f32.mrb[0].mxu0
    %5319 = vmatprep.mubr.bf16.mxu0 %v3030
    %5320 = vmatmul.mubr.bf16.gmra.mrb[0].mxu0 %v3026
    %v5321 = vpop.f32.mrb[0].mxu0
    %v5322 = vadd.f32 %v4857, %v5321
    %v5323 = vpop.f32.mrb[0].mxu0
    %v5324 = vpop.f32.mrb[0].mxu0
    %v5325 = vadd.f32 %v4860, %v5324
    %v5326 = vpop.f32.mrb[0].mxu0
    %5327 = vmatprep.mubr.bf16.mxu0 %v3042
    %5328 = vmatmul.mubr.bf16.gmra.mrb[0].mxu0 %v3038
    %v5329 = vpop.f32.mrb[0].mxu0
    %v5330 = vadd.f32 %v4865, %v5329
    %v5331 = vpop.f32.mrb[0].mxu0
    %v5332 = vpop.f32.mrb[0].mxu0
    %v5333 = vadd.f32 %v4868, %v5332
    %v5334 = vpop.f32.mrb[0].mxu0
    %5335 = vmatprep.mubr.bf16.mxu0 %v3054
    %5336 = vmatmul.mubr.bf16.gmra.mrb[0].mxu0 %v3050
    %v5337 = vpop.f32.mrb[0].mxu0
    %v5338 = vadd.f32 %v4873, %v5337
    %v5339 = vpop.f32.mrb[0].mxu0
    %v5340 = vpop.f32.mrb[0].mxu0
    %v5341 = vadd.f32 %v4876, %v5340
    %v5342 = vpop.f32.mrb[0].mxu0
    %5343 = vmatprep.mubr.bf16.mxu0 %v3066
    %5344 = vmatmul.mubr.bf16.gmra.mrb[0].mxu0 %v3062
    %v5345 = vpop.f32.mrb[0].mxu0
    %v5346 = vadd.f32 %v4881, %v5345
    %v5347 = vpop.f32.mrb[0].mxu0
    %v5348 = vpop.f32.mrb[0].mxu0
    %v5349 = vadd.f32 %v4884, %v5348
    %v5350 = vpop.f32.mrb[0].mxu0
    %5351 = vmatprep.mubr.bf16.mxu0 %v3078
    %5352 = vmatmul.mubr.bf16.gmra.mrb[0].mxu0 %v3074
    %v5353 = vpop.f32.mrb[0].mxu0
    %v5354 = vadd.f32 %v4889, %v5353
    %v5355 = vpop.f32.mrb[0].mxu0
    %v5356 = vpop.f32.mrb[0].mxu0
    %v5357 = vadd.f32 %v4892, %v5356
    %v5358 = vpop.f32.mrb[0].mxu0
    %5359 = vmatprep.mubr.bf16.mxu0 %v3090
    %5360 = vmatmul.mubr.bf16.gmra.mrb[0].mxu0 %v3086
    %v5361 = vpop.f32.mrb[0].mxu0
    %v5362 = vadd.f32 %v4897, %v5361
    %v5363 = vpop.f32.mrb[0].mxu0
    %v5364 = vpop.f32.mrb[0].mxu0
    %v5365 = vadd.f32 %v4900, %v5364
    %v5366 = vpop.f32.mrb[0].mxu0
    %5367 = vmatprep.mubr.bf16.mxu0 %v3102
    %5368 = vmatmul.mubr.bf16.gmra.mrb[0].mxu0 %v3098
    %v5369 = vpop.f32.mrb[0].mxu0
    %v5370 = vadd.f32 %v4905, %v5369
    %v5371 = vpop.f32.mrb[0].mxu0
    %v5372 = vpop.f32.mrb[0].mxu0
    %v5373 = vadd.f32 %v4908, %v5372
    %v5374 = vpop.f32.mrb[0].mxu0
    %5375 = vmatprep.mubr.bf16.mxu0 %v3114
    %5376 = vmatmul.mubr.bf16.gmra.mrb[0].mxu0 %v3110
    %v5377 = vpop.f32.mrb[0].mxu0
    %v5378 = vadd.f32 %v4913, %v5377
    %v5379 = vpop.f32.mrb[0].mxu0
    %v5380 = vpop.f32.mrb[0].mxu0
    %v5381 = vadd.f32 %v4916, %v5380
    %v5382 = vpop.f32.mrb[0].mxu0
    %5383 = vmatprep.mubr.bf16.mxu0 %v3126
    %5384 = vmatmul.mubr.bf16.gmra.mrb[0].mxu0 %v3122
    %v5385 = vpop.f32.mrb[0].mxu0
    %v5386 = vadd.f32 %v4921, %v5385
    %v5387 = vpop.f32.mrb[0].mxu0
    %v5388 = vpop.f32.mrb[0].mxu0
    %v5389 = vadd.f32 %v4924, %v5388
    %v5390 = vpop.f32.mrb[0].mxu0
    %5391 = vmatprep.mubr.bf16.mxu0 %v3138
    %5392 = vmatmul.mubr.bf16.gmra.mrb[0].mxu0 %v3134
    %v5393 = vpop.f32.mrb[0].mxu0
    %v5394 = vadd.f32 %v4929, %v5393
    %v5395 = vpop.f32.mrb[0].mxu0
    %v5396 = vpop.f32.mrb[0].mxu0
    %v5397 = vadd.f32 %v4932, %v5396
    %v5398 = vpop.f32.mrb[0].mxu0
    %5399 = vmatprep.mubr.bf16.mxu0 %v3150
    %5400 = vmatmul.mubr.bf16.gmra.mrb[0].mxu0 %v3146
    %v5401 = vpop.f32.mrb[0].mxu0
    %v5402 = vadd.f32 %v4937, %v5401
    %v5403 = vpop.f32.mrb[0].mxu0
    %v5404 = vpop.f32.mrb[0].mxu0
    %v5405 = vadd.f32 %v4940, %v5404
    %v5406 = vpop.f32.mrb[0].mxu0
    %5407 = vmatprep.mubr.bf16.mxu0 %v3162
    %5408 = vmatmul.mubr.bf16.gmra.mrb[0].mxu0 %v3158
    %v5409 = vpop.f32.mrb[0].mxu0
    %v5410 = vadd.f32 %v4945, %v5409
    %v5411 = vpop.f32.mrb[0].mxu0
    %v5412 = vpop.f32.mrb[0].mxu0
    %v5413 = vadd.f32 %v4948, %v5412
    %v5414 = vpop.f32.mrb[0].mxu0
    %5415 = vmatprep.mubr.bf16.mxu0 %v3174
    %5416 = vmatmul.mubr.bf16.gmra.mrb[0].mxu0 %v3170
    %v5417 = vpop.f32.mrb[0].mxu0
    %v5418 = vadd.f32 %v4953, %v5417
    %v5419 = vpop.f32.mrb[0].mxu0
    %v5420 = vpop.f32.mrb[0].mxu0
    %v5421 = vadd.f32 %v4956, %v5420
    %v5422 = vpop.f32.mrb[0].mxu0
    %5423 = vmatprep.mubr.bf16.mxu0 %v3186
    %5424 = vmatmul.mubr.bf16.gmra.mrb[0].mxu0 %v3182
    %v5425 = vpop.f32.mrb[0].mxu0
    %v5426 = vadd.f32 %v4961, %v5425
    %v5427 = vpop.f32.mrb[0].mxu0
    %v5428 = vpop.f32.mrb[0].mxu0
    %v5429 = vadd.f32 %v4964, %v5428
    %v5430 = vpop.f32.mrb[0].mxu0
    %5431 = vmatprep.mubr.bf16.mxu0 %v3198
    %5432 = vmatmul.mubr.bf16.gmra.mrb[0].mxu0 %v3194
    %v5433 = vpop.f32.mrb[0].mxu0
    %v5434 = vadd.f32 %v4969, %v5433
    %v5435 = vpop.f32.mrb[0].mxu0
    %v5436 = vpop.f32.mrb[0].mxu0
    %v5437 = vadd.f32 %v4972, %v5436
    %v5438 = vpop.f32.mrb[0].mxu0
    %5439 = vmatprep.mubr.bf16.mxu0 %v3210
    %5440 = vmatmul.mubr.bf16.gmra.mrb[0].mxu0 %v3206
    %v5441 = vpop.f32.mrb[0].mxu0
    %v5442 = vadd.f32 %v4977, %v5441
    %v5443 = vpop.f32.mrb[0].mxu0
    %v5444 = vpop.f32.mrb[0].mxu0
    %v5445 = vadd.f32 %v4980, %v5444
    %v5446 = vpop.f32.mrb[0].mxu0
    %5447 = vmatprep.mubr.bf16.mxu0 %v3222
    %5448 = vmatmul.mubr.bf16.gmra.mrb[0].mxu0 %v3218
    %v5449 = vpop.f32.mrb[0].mxu0
    %v5450 = vadd.f32 %v4985, %v5449
    %v5451 = vpop.f32.mrb[0].mxu0
    %v5452 = vpop.f32.mrb[0].mxu0
    %v5453 = vadd.f32 %v4988, %v5452
    %v5454 = vpop.f32.mrb[0].mxu0
    %5455 = vmatprep.mubr.bf16.mxu0 %v3234
    %5456 = vmatmul.mubr.bf16.gmra.mrb[0].mxu0 %v3230
    %v5457 = vpop.f32.mrb[0].mxu0
    %v5458 = vadd.f32 %v4993, %v5457
    %v5459 = vpop.f32.mrb[0].mxu0
    %v5460 = vpop.f32.mrb[0].mxu0
    %v5461 = vadd.f32 %v4996, %v5460
    %v5462 = vpop.f32.mrb[0].mxu0
    %5463 = vmatprep.mubr.bf16.mxu0 %v3246
    %5464 = vmatmul.mubr.bf16.gmra.mrb[0].mxu0 %v3242
    %v5465 = vpop.f32.mrb[0].mxu0
    %v5466 = vadd.f32 %v5001, %v5465
    %v5467 = vpop.f32.mrb[0].mxu0
    %v5468 = vpop.f32.mrb[0].mxu0
    %v5469 = vadd.f32 %v5004, %v5468
    %v5470 = vpop.f32.mrb[0].mxu0
    %5471 = vmatprep.mubr.bf16.mxu0 %v3258
    %5472 = vmatmul.mubr.bf16.gmra.mrb[0].mxu0 %v3254
    %v5473 = vpop.f32.mrb[0].mxu0
    %v5474 = vadd.f32 %v5009, %v5473
    %v5475 = vpop.f32.mrb[0].mxu0
    %v5476 = vpop.f32.mrb[0].mxu0
    %v5477 = vadd.f32 %v5012, %v5476
    %v5478 = vpop.f32.mrb[0].mxu0
    %5479 = vmatprep.mubr.bf16.mxu0 %v3270
    %5480 = vmatmul.mubr.bf16.gmra.mrb[0].mxu0 %v3266
    %v5481 = vpop.f32.mrb[0].mxu0
    %v5482 = vadd.f32 %v5017, %v5481
    %v5483 = vpop.f32.mrb[0].mxu0
    %v5484 = vpop.f32.mrb[0].mxu0
    %v5485 = vadd.f32 %v5020, %v5484
    %v5486 = vpop.f32.mrb[0].mxu0
    %5487 = vmatprep.mubr.bf16.mxu0 %v3282
    %5488 = vmatmul.mubr.bf16.gmra.mrb[0].mxu0 %v3278
    %v5489 = vpop.f32.mrb[0].mxu0
    %v5490 = vadd.f32 %v5025, %v5489
    %v5491 = vpop.f32.mrb[0].mxu0
    %v5492 = vpop.f32.mrb[0].mxu0
    %v5493 = vadd.f32 %v5028, %v5492
    %v5494 = vpop.f32.mrb[0].mxu0
    %5495 = vmatprep.mubr.bf16.mxu0 %v3294
    %5496 = vmatmul.mubr.bf16.gmra.mrb[0].mxu0 %v3290
    %v5497 = vpop.f32.mrb[0].mxu0
    %v5498 = vadd.f32 %v5033, %v5497
    %v5499 = vpop.f32.mrb[0].mxu0
    %v5500 = vpop.f32.mrb[0].mxu0
    %v5501 = vadd.f32 %v5036, %v5500
    %v5502 = vpop.f32.mrb[0].mxu0
    %5503 = vmatprep.mubr.bf16.mxu0 %v3306
    %5504 = vmatmul.mubr.bf16.gmra.mrb[0].mxu0 %v3302
    %v5505 = vpop.f32.mrb[0].mxu0
    %v5506 = vadd.f32 %v5041, %v5505
    %v5507 = vpop.f32.mrb[0].mxu0
    %v5508 = vpop.f32.mrb[0].mxu0
    %v5509 = vadd.f32 %v5044, %v5508
    %v5510 = vpop.f32.mrb[0].mxu0
    %5511 = vmatprep.mubr.bf16.mxu0 %v3318
    %5512 = vmatmul.mubr.bf16.gmra.mrb[0].mxu0 %v3314
    %v5513 = vpop.f32.mrb[0].mxu0
    %v5514 = vadd.f32 %v5049, %v5513
    %v5515 = vpop.f32.mrb[0].mxu0
    %v5516 = vpop.f32.mrb[0].mxu0
    %v5517 = vadd.f32 %v5052, %v5516
    %v5518 = vpop.f32.mrb[0].mxu0
    %5519 = vmatprep.mubr.bf16.mxu0 %v3330
    %5520 = vmatmul.mubr.bf16.gmra.mrb[0].mxu0 %v3326
    %v5521 = vpop.f32.mrb[0].mxu0
    %v5522 = vadd.f32 %v5057, %v5521
    %v5523 = vpop.f32.mrb[0].mxu0
    %v5524 = vpop.f32.mrb[0].mxu0
    %v5525 = vadd.f32 %v5060, %v5524
    %v5526 = vpop.f32.mrb[0].mxu0
    %5527 = vmatprep.mubr.bf16.mxu0 %v3342
    %5528 = vmatmul.mubr.bf16.gmra.mrb[0].mxu0 %v3338
    %v5529 = vpop.f32.mrb[0].mxu0
    %v5530 = vadd.f32 %v5065, %v5529
    %v5531 = vpop.f32.mrb[0].mxu0
    %v5532 = vpop.f32.mrb[0].mxu0
    %v5533 = vadd.f32 %v5068, %v5532
    %v5534 = vpop.f32.mrb[0].mxu0
    %5535 = vmatprep.mubr.bf16.mxu0 %v3354
    %5536 = vmatmul.mubr.bf16.gmra.mrb[0].mxu0 %v3350
    %v5537 = vpop.f32.mrb[0].mxu0
    %v5538 = vadd.f32 %v5073, %v5537
    %v5539 = vpop.f32.mrb[0].mxu0
    %v5540 = vpop.f32.mrb[0].mxu0
    %v5541 = vadd.f32 %v5076, %v5540
    %v5542 = vpop.f32.mrb[0].mxu0
    %5543 = vmatprep.mubr.bf16.mxu0 %v3366
    %5544 = vmatmul.mubr.bf16.gmra.mrb[0].mxu0 %v3362
    %v5545 = vpop.f32.mrb[0].mxu0
    %v5546 = vadd.f32 %v5081, %v5545
    %v5547 = vpop.f32.mrb[0].mxu0
    %v5548 = vpop.f32.mrb[0].mxu0
    %v5549 = vadd.f32 %v5084, %v5548
    %v5550 = vpop.f32.mrb[0].mxu0
    %5551 = vmatprep.mubr.bf16.mxu0 %v3378
    %5552 = vmatmul.mubr.bf16.gmra.mrb[0].mxu0 %v3374
    %v5553 = vpop.f32.mrb[0].mxu0
    %v5554 = vadd.f32 %v5089, %v5553
    %v5555 = vpop.f32.mrb[0].mxu0
    %v5556 = vpop.f32.mrb[0].mxu0
    %v5557 = vadd.f32 %v5092, %v5556
    %v5558 = vpop.f32.mrb[0].mxu0
    %5559 = vmatprep.mubr.bf16.mxu0 %v3390
    %5560 = vmatmul.mubr.bf16.gmra.mrb[0].mxu0 %v3386
    %v5561 = vpop.f32.mrb[0].mxu0
    %v5562 = vadd.f32 %v5097, %v5561
    %v5563 = vpop.f32.mrb[0].mxu0
    %v5564 = vpop.f32.mrb[0].mxu0
    %v5565 = vadd.f32 %v5100, %v5564
    %v5566 = vpop.f32.mrb[0].mxu0
    %5567 = vmatprep.mubr.bf16.mxu0 %v3402
    %5568 = vmatmul.mubr.bf16.gmra.mrb[0].mxu0 %v3398
    %v5569 = vpop.f32.mrb[0].mxu0
    %v5570 = vadd.f32 %v5105, %v5569
    %v5571 = vpop.f32.mrb[0].mxu0
    %v5572 = vpop.f32.mrb[0].mxu0
    %v5573 = vadd.f32 %v5108, %v5572
    %v5574 = vpop.f32.mrb[0].mxu0
    %5575 = vmatprep.mubr.bf16.mxu0 %v3414
    %5576 = vmatmul.mubr.bf16.gmra.mrb[0].mxu0 %v3410
    %v5577 = vpop.f32.mrb[0].mxu0
    %v5578 = vadd.f32 %v5113, %v5577
    %v5579 = vpop.f32.mrb[0].mxu0
    %v5580 = vpop.f32.mrb[0].mxu0
    %v5581 = vadd.f32 %v5116, %v5580
    %v5582 = vpop.f32.mrb[0].mxu0
    %5583 = vmatprep.mubr.bf16.mxu0 %v3426
    %5584 = vmatmul.mubr.bf16.gmra.mrb[0].mxu0 %v3422
    %v5585 = vpop.f32.mrb[0].mxu0
    %v5586 = vadd.f32 %v5121, %v5585
    %v5587 = vpop.f32.mrb[0].mxu0
    %v5588 = vpop.f32.mrb[0].mxu0
    %v5589 = vadd.f32 %v5124, %v5588
    %v5590 = vpop.f32.mrb[0].mxu0
    %5591 = vmatprep.mubr.bf16.mxu0 %v3438
    %5592 = vmatmul.mubr.bf16.gmra.mrb[0].mxu0 %v3434
    %v5593 = vpop.f32.mrb[0].mxu0
    %v5594 = vadd.f32 %v5129, %v5593
    %v5595 = vpop.f32.mrb[0].mxu0
    %v5596 = vpop.f32.mrb[0].mxu0
    %v5597 = vadd.f32 %v5132, %v5596
    %v5598 = vpop.f32.mrb[0].mxu0
    %5599 = vmatprep.mubr.bf16.mxu0 %v3450
    %5600 = vmatmul.mubr.bf16.gmra.mrb[0].mxu0 %v3446
    %v5601 = vpop.f32.mrb[0].mxu0
    %v5602 = vadd.f32 %v5137, %v5601
    %v5603 = vpop.f32.mrb[0].mxu0
    %v5604 = vpop.f32.mrb[0].mxu0
    %v5605 = vadd.f32 %v5140, %v5604
    %v5606 = vpop.f32.mrb[0].mxu0
    %5607 = vmatprep.mubr.bf16.mxu0 %v3462
    %5608 = vmatmul.mubr.bf16.gmra.mrb[0].mxu0 %v3458
    %v5609 = vpop.f32.mrb[0].mxu0
    %v5610 = vadd.f32 %v5145, %v5609
    %v5611 = vpop.f32.mrb[0].mxu0
    %v5612 = vpop.f32.mrb[0].mxu0
    %v5613 = vadd.f32 %v5148, %v5612
    %v5614 = vpop.f32.mrb[0].mxu0
    %5615 = vmatprep.mubr.bf16.mxu0 %v3474
    %5616 = vmatmul.mubr.bf16.gmra.mrb[0].mxu0 %v3470
    %v5617 = vpop.f32.mrb[0].mxu0
    %v5618 = vadd.f32 %v5153, %v5617
    %v5619 = vpop.f32.mrb[0].mxu0
    %v5620 = vpop.f32.mrb[0].mxu0
    %v5621 = vadd.f32 %v5156, %v5620
    %v5622 = vpop.f32.mrb[0].mxu0
    %5623 = vmatprep.mubr.bf16.mxu0 %v3486
    %5624 = vmatmul.mubr.bf16.gmra.mrb[0].mxu0 %v3482
    %v5625 = vpop.f32.mrb[0].mxu0
    %v5626 = vadd.f32 %v5161, %v5625
    %v5627 = vpop.f32.mrb[0].mxu0
    %v5628 = vpop.f32.mrb[0].mxu0
    %v5629 = vadd.f32 %v5164, %v5628
    %v5630 = vpop.f32.mrb[0].mxu0
    %5631 = vmatprep.mubr.bf16.mxu0 %v3498
    %5632 = vmatmul.mubr.bf16.gmra.mrb[0].mxu0 %v3494
    %v5633 = vpop.f32.mrb[0].mxu0
    %v5634 = vadd.f32 %v5169, %v5633
    %v5635 = vpop.f32.mrb[0].mxu0
    %v5636 = vpop.f32.mrb[0].mxu0
    %v5637 = vadd.f32 %v5172, %v5636
    %v5638 = vpop.f32.mrb[0].mxu0
    %5639 = vmatprep.mubr.bf16.mxu0 %v3507
    %5640 = vmatmul.mubr.bf16.gmra.mrb[0].mxu0 %v3503
    %v5641 = vpop.f32.mrb[0].mxu0
    %v5642 = vadd.f32 %v5177, %v5641
    %v5643 = vpop.f32.mrb[0].mxu0
    %v5644 = vpop.f32.mrb[0].mxu0
    %v5645 = vadd.f32 %v5180, %v5644
    %v5646 = vpop.f32.mrb[0].mxu0
    %5647 = vdwg.mxu0
    %5648 = vmatprep.subr.bf16.mxu0 0
    %5649 = vmatpush1.bf16.msra.mxu0 %v4157
    %5650 = vmatprep.subr.bf16.mxu0 0
    %5651 = vmatpush1.bf16.msra.mxu0 %v4158
    %5652 = vmatprep.subr.bf16.mxu0 0
    %5653 = vmatpush1.bf16.msra.mxu0 %v4159
    %5654 = vmatprep.subr.bf16.mxu0 0
    %5655 = vmatpush1.bf16.msra.mxu0 %v4160
    %5656 = vmatprep.subr.bf16.mxu0 0
    %5657 = vmatpush1.bf16.msra.mxu0 %v4161
    %5658 = vmatprep.subr.bf16.mxu0 0
    %5659 = vmatpush1.bf16.msra.mxu0 %v4162
    %5660 = vmatprep.subr.bf16.mxu0 0
    %5661 = vmatpush1.bf16.msra.mxu0 %v4163
    %5662 = vmatprep.subr.bf16.mxu0 0
    %5663 = vmatpush1.bf16.msra.mxu0 %v4164
    %5664 = vmatprep.subr.bf16.mxu0 0
    %5665 = vmatpush1.bf16.msra.mxu0 %v4165
    %5666 = vmatprep.subr.bf16.mxu0 0
    %5667 = vmatpush1.bf16.msra.mxu0 %v4166
    %5668 = vmatprep.subr.bf16.mxu0 0
    %5669 = vmatpush1.bf16.msra.mxu0 %v4167
    %5670 = vmatprep.subr.bf16.mxu0 0
    %5671 = vmatpush1.bf16.msra.mxu0 %v4168
    %5672 = vmatprep.subr.bf16.mxu0 0
    %5673 = vmatpush1.bf16.msra.mxu0 %v4169
    %5674 = vmatprep.subr.bf16.mxu0 0
    %5675 = vmatpush1.bf16.msra.mxu0 %v4170
    %5676 = vmatprep.subr.bf16.mxu0 0
    %5677 = vmatpush1.bf16.msra.mxu0 %v4171
    %5678 = vmatprep.subr.bf16.mxu0 0
    %5679 = vmatpush1.bf16.msra.mxu0 %v4172
    %5680 = vmatprep.mubr.bf16.mxu0 %v1735
    %5681 = vmatmul.mubr.bf16.gmra.mrb[0].mxu0 %v1727
    %v5682 = vpop.f32.mrb[0].mxu0
    %v5683 = vadd.f32 %v5218, %v5682
    %v5684 = vpop.f32.mrb[0].mxu0
    %v5685 = vpop.f32.mrb[0].mxu0
    %v5686 = vadd.f32 %v5221, %v5685
    %v5687 = vpop.f32.mrb[0].mxu0
    %5688 = vmatprep.mubr.bf16.mxu0 %v1754
    %5689 = vmatmul.mubr.bf16.gmra.mrb[0].mxu0 %v1746
    %v5690 = vpop.f32.mrb[0].mxu0
    %v5691 = vadd.f32 %v5226, %v5690
    %v5692 = vpop.f32.mrb[0].mxu0
    %v5693 = vpop.f32.mrb[0].mxu0
    %v5694 = vadd.f32 %v5229, %v5693
    %v5695 = vpop.f32.mrb[0].mxu0
    %5696 = vmatprep.mubr.bf16.mxu0 %v1773
    %5697 = vmatmul.mubr.bf16.gmra.mrb[0].mxu0 %v1765
    %v5698 = vpop.f32.mrb[0].mxu0
    %v5699 = vadd.f32 %v5234, %v5698
    %v5700 = vpop.f32.mrb[0].mxu0
    %v5701 = vpop.f32.mrb[0].mxu0
    %v5702 = vadd.f32 %v5237, %v5701
    %v5703 = vpop.f32.mrb[0].mxu0
    %5704 = vmatprep.mubr.bf16.mxu0 %v1792
    %5705 = vmatmul.mubr.bf16.gmra.mrb[0].mxu0 %v1784
    %v5706 = vpop.f32.mrb[0].mxu0
    %v5707 = vadd.f32 %v5242, %v5706
    %v5708 = vpop.f32.mrb[0].mxu0
    %v5709 = vpop.f32.mrb[0].mxu0
    %v5710 = vadd.f32 %v5245, %v5709
    %v5711 = vpop.f32.mrb[0].mxu0
    %5712 = vmatprep.mubr.bf16.mxu0 %v1811
    %5713 = vmatmul.mubr.bf16.gmra.mrb[0].mxu0 %v1803
    %v5714 = vpop.f32.mrb[0].mxu0
    %v5715 = vadd.f32 %v5250, %v5714
    %v5716 = vpop.f32.mrb[0].mxu0
    %v5717 = vpop.f32.mrb[0].mxu0
    %v5718 = vadd.f32 %v5253, %v5717
    %v5719 = vpop.f32.mrb[0].mxu0
    %5720 = vmatprep.mubr.bf16.mxu0 %v1830
    %5721 = vmatmul.mubr.bf16.gmra.mrb[0].mxu0 %v1822
    %v5722 = vpop.f32.mrb[0].mxu0
    %v5723 = vadd.f32 %v5258, %v5722
    %v5724 = vpop.f32.mrb[0].mxu0
    %v5725 = vpop.f32.mrb[0].mxu0
    %v5726 = vadd.f32 %v5261, %v5725
    %v5727 = vpop.f32.mrb[0].mxu0
    %5728 = vmatprep.mubr.bf16.mxu0 %v1849
    %5729 = vmatmul.mubr.bf16.gmra.mrb[0].mxu0 %v1841
    %v5730 = vpop.f32.mrb[0].mxu0
    %v5731 = vadd.f32 %v5266, %v5730
    %v5732 = vpop.f32.mrb[0].mxu0
    %v5733 = vpop.f32.mrb[0].mxu0
    %v5734 = vadd.f32 %v5269, %v5733
    %v5735 = vpop.f32.mrb[0].mxu0
    %5736 = vmatprep.mubr.bf16.mxu0 %v1868
    %5737 = vmatmul.mubr.bf16.gmra.mrb[0].mxu0 %v1860
    %v5738 = vpop.f32.mrb[0].mxu0
    %v5739 = vadd.f32 %v5274, %v5738
    %v5740 = vpop.f32.mrb[0].mxu0
    %v5741 = vpop.f32.mrb[0].mxu0
    %v5742 = vadd.f32 %v5277, %v5741
    %v5743 = vpop.f32.mrb[0].mxu0
    %5744 = vmatprep.mubr.bf16.mxu0 %v1887
    %5745 = vmatmul.mubr.bf16.gmra.mrb[0].mxu0 %v1879
    %v5746 = vpop.f32.mrb[0].mxu0
    %v5747 = vadd.f32 %v5282, %v5746
    %v5748 = vpop.f32.mrb[0].mxu0
    %v5749 = vpop.f32.mrb[0].mxu0
    %v5750 = vadd.f32 %v5285, %v5749
    %v5751 = vpop.f32.mrb[0].mxu0
    %5752 = vmatprep.mubr.bf16.mxu0 %v1906
    %5753 = vmatmul.mubr.bf16.gmra.mrb[0].mxu0 %v1898
    %v5754 = vpop.f32.mrb[0].mxu0
    %v5755 = vadd.f32 %v5290, %v5754
    %v5756 = vpop.f32.mrb[0].mxu0
    %v5757 = vpop.f32.mrb[0].mxu0
    %v5758 = vadd.f32 %v5293, %v5757
    %v5759 = vpop.f32.mrb[0].mxu0
    %5760 = vmatprep.mubr.bf16.mxu0 %v1925
    %5761 = vmatmul.mubr.bf16.gmra.mrb[0].mxu0 %v1917
    %v5762 = vpop.f32.mrb[0].mxu0
    %v5763 = vadd.f32 %v5298, %v5762
    %v5764 = vpop.f32.mrb[0].mxu0
    %v5765 = vpop.f32.mrb[0].mxu0
    %v5766 = vadd.f32 %v5301, %v5765
    %v5767 = vpop.f32.mrb[0].mxu0
    %5768 = vmatprep.mubr.bf16.mxu0 %v1944
    %5769 = vmatmul.mubr.bf16.gmra.mrb[0].mxu0 %v1936
    %v5770 = vpop.f32.mrb[0].mxu0
    %v5771 = vadd.f32 %v5306, %v5770
    %v5772 = vpop.f32.mrb[0].mxu0
    %v5773 = vpop.f32.mrb[0].mxu0
    %v5774 = vadd.f32 %v5309, %v5773
    %v5775 = vpop.f32.mrb[0].mxu0
    %5776 = vmatprep.mubr.bf16.mxu0 %v1963
    %5777 = vmatmul.mubr.bf16.gmra.mrb[0].mxu0 %v1955
    %v5778 = vpop.f32.mrb[0].mxu0
    %v5779 = vadd.f32 %v5314, %v5778
    %v5780 = vpop.f32.mrb[0].mxu0
    %v5781 = vpop.f32.mrb[0].mxu0
    %v5782 = vadd.f32 %v5317, %v5781
    %v5783 = vpop.f32.mrb[0].mxu0
    %5784 = vmatprep.mubr.bf16.mxu0 %v1982
    %5785 = vmatmul.mubr.bf16.gmra.mrb[0].mxu0 %v1974
    %v5786 = vpop.f32.mrb[0].mxu0
    %v5787 = vadd.f32 %v5322, %v5786
    %v5788 = vpop.f32.mrb[0].mxu0
    %v5789 = vpop.f32.mrb[0].mxu0
    %v5790 = vadd.f32 %v5325, %v5789
    %v5791 = vpop.f32.mrb[0].mxu0
    %5792 = vmatprep.mubr.bf16.mxu0 %v2001
    %5793 = vmatmul.mubr.bf16.gmra.mrb[0].mxu0 %v1993
    %v5794 = vpop.f32.mrb[0].mxu0
    %v5795 = vadd.f32 %v5330, %v5794
    %v5796 = vpop.f32.mrb[0].mxu0
    %v5797 = vpop.f32.mrb[0].mxu0
    %v5798 = vadd.f32 %v5333, %v5797
    %v5799 = vpop.f32.mrb[0].mxu0
    %5800 = vmatprep.mubr.bf16.mxu0 %v2020
    %5801 = vmatmul.mubr.bf16.gmra.mrb[0].mxu0 %v2012
    %v5802 = vpop.f32.mrb[0].mxu0
    %v5803 = vadd.f32 %v5338, %v5802
    %v5804 = vpop.f32.mrb[0].mxu0
    %v5805 = vpop.f32.mrb[0].mxu0
    %v5806 = vadd.f32 %v5341, %v5805
    %v5807 = vpop.f32.mrb[0].mxu0
    %5808 = vmatprep.mubr.bf16.mxu0 %v2039
    %5809 = vmatmul.mubr.bf16.gmra.mrb[0].mxu0 %v2031
    %v5810 = vpop.f32.mrb[0].mxu0
    %v5811 = vadd.f32 %v5346, %v5810
    %v5812 = vpop.f32.mrb[0].mxu0
    %v5813 = vpop.f32.mrb[0].mxu0
    %v5814 = vadd.f32 %v5349, %v5813
    %v5815 = vpop.f32.mrb[0].mxu0
    %5816 = vmatprep.mubr.bf16.mxu0 %v2058
    %5817 = vmatmul.mubr.bf16.gmra.mrb[0].mxu0 %v2050
    %v5818 = vpop.f32.mrb[0].mxu0
    %v5819 = vadd.f32 %v5354, %v5818
    %v5820 = vpop.f32.mrb[0].mxu0
    %v5821 = vpop.f32.mrb[0].mxu0
    %v5822 = vadd.f32 %v5357, %v5821
    %v5823 = vpop.f32.mrb[0].mxu0
    %5824 = vmatprep.mubr.bf16.mxu0 %v2077
    %5825 = vmatmul.mubr.bf16.gmra.mrb[0].mxu0 %v2069
    %v5826 = vpop.f32.mrb[0].mxu0
    %v5827 = vadd.f32 %v5362, %v5826
    %v5828 = vpop.f32.mrb[0].mxu0
    %v5829 = vpop.f32.mrb[0].mxu0
    %v5830 = vadd.f32 %v5365, %v5829
    %v5831 = vpop.f32.mrb[0].mxu0
    %5832 = vmatprep.mubr.bf16.mxu0 %v2096
    %5833 = vmatmul.mubr.bf16.gmra.mrb[0].mxu0 %v2088
    %v5834 = vpop.f32.mrb[0].mxu0
    %v5835 = vadd.f32 %v5370, %v5834
    %v5836 = vpop.f32.mrb[0].mxu0
    %v5837 = vpop.f32.mrb[0].mxu0
    %v5838 = vadd.f32 %v5373, %v5837
    %v5839 = vpop.f32.mrb[0].mxu0
    %5840 = vmatprep.mubr.bf16.mxu0 %v2115
    %5841 = vmatmul.mubr.bf16.gmra.mrb[0].mxu0 %v2107
    %v5842 = vpop.f32.mrb[0].mxu0
    %v5843 = vadd.f32 %v5378, %v5842
    %v5844 = vpop.f32.mrb[0].mxu0
    %v5845 = vpop.f32.mrb[0].mxu0
    %v5846 = vadd.f32 %v5381, %v5845
    %v5847 = vpop.f32.mrb[0].mxu0
    %5848 = vmatprep.mubr.bf16.mxu0 %v2134
    %5849 = vmatmul.mubr.bf16.gmra.mrb[0].mxu0 %v2126
    %v5850 = vpop.f32.mrb[0].mxu0
    %v5851 = vadd.f32 %v5386, %v5850
    %v5852 = vpop.f32.mrb[0].mxu0
    %v5853 = vpop.f32.mrb[0].mxu0
    %v5854 = vadd.f32 %v5389, %v5853
    %v5855 = vpop.f32.mrb[0].mxu0
    %5856 = vmatprep.mubr.bf16.mxu0 %v2153
    %5857 = vmatmul.mubr.bf16.gmra.mrb[0].mxu0 %v2145
    %v5858 = vpop.f32.mrb[0].mxu0
    %v5859 = vadd.f32 %v5394, %v5858
    %v5860 = vpop.f32.mrb[0].mxu0
    %v5861 = vpop.f32.mrb[0].mxu0
    %v5862 = vadd.f32 %v5397, %v5861
    %v5863 = vpop.f32.mrb[0].mxu0
    %5864 = vmatprep.mubr.bf16.mxu0 %v2172
    %5865 = vmatmul.mubr.bf16.gmra.mrb[0].mxu0 %v2164
    %v5866 = vpop.f32.mrb[0].mxu0
    %v5867 = vadd.f32 %v5402, %v5866
    %v5868 = vpop.f32.mrb[0].mxu0
    %v5869 = vpop.f32.mrb[0].mxu0
    %v5870 = vadd.f32 %v5405, %v5869
    %v5871 = vpop.f32.mrb[0].mxu0
    %5872 = vmatprep.mubr.bf16.mxu0 %v2191
    %5873 = vmatmul.mubr.bf16.gmra.mrb[0].mxu0 %v2183
    %v5874 = vpop.f32.mrb[0].mxu0
    %v5875 = vadd.f32 %v5410, %v5874
    %v5876 = vpop.f32.mrb[0].mxu0
    %v5877 = vpop.f32.mrb[0].mxu0
    %v5878 = vadd.f32 %v5413, %v5877
    %v5879 = vpop.f32.mrb[0].mxu0
    %5880 = vmatprep.mubr.bf16.mxu0 %v2210
    %5881 = vmatmul.mubr.bf16.gmra.mrb[0].mxu0 %v2202
    %v5882 = vpop.f32.mrb[0].mxu0
    %v5883 = vadd.f32 %v5418, %v5882
    %v5884 = vpop.f32.mrb[0].mxu0
    %v5885 = vpop.f32.mrb[0].mxu0
    %v5886 = vadd.f32 %v5421, %v5885
    %v5887 = vpop.f32.mrb[0].mxu0
    %5888 = vmatprep.mubr.bf16.mxu0 %v2229
    %5889 = vmatmul.mubr.bf16.gmra.mrb[0].mxu0 %v2221
    %v5890 = vpop.f32.mrb[0].mxu0
    %v5891 = vadd.f32 %v5426, %v5890
    %v5892 = vpop.f32.mrb[0].mxu0
    %v5893 = vpop.f32.mrb[0].mxu0
    %v5894 = vadd.f32 %v5429, %v5893
    %v5895 = vpop.f32.mrb[0].mxu0
    %5896 = vmatprep.mubr.bf16.mxu0 %v2248
    %5897 = vmatmul.mubr.bf16.gmra.mrb[0].mxu0 %v2240
    %v5898 = vpop.f32.mrb[0].mxu0
    %v5899 = vadd.f32 %v5434, %v5898
    %v5900 = vpop.f32.mrb[0].mxu0
    %v5901 = vpop.f32.mrb[0].mxu0
    %v5902 = vadd.f32 %v5437, %v5901
    %v5903 = vpop.f32.mrb[0].mxu0
    %5904 = vmatprep.mubr.bf16.mxu0 %v2267
    %5905 = vmatmul.mubr.bf16.gmra.mrb[0].mxu0 %v2259
    %v5906 = vpop.f32.mrb[0].mxu0
    %v5907 = vadd.f32 %v5442, %v5906
    %v5908 = vpop.f32.mrb[0].mxu0
    %v5909 = vpop.f32.mrb[0].mxu0
    %v5910 = vadd.f32 %v5445, %v5909
    %v5911 = vpop.f32.mrb[0].mxu0
    %5912 = vmatprep.mubr.bf16.mxu0 %v2286
    %5913 = vmatmul.mubr.bf16.gmra.mrb[0].mxu0 %v2278
    %v5914 = vpop.f32.mrb[0].mxu0
    %v5915 = vadd.f32 %v5450, %v5914
    %v5916 = vpop.f32.mrb[0].mxu0
    %v5917 = vpop.f32.mrb[0].mxu0
    %v5918 = vadd.f32 %v5453, %v5917
    %v5919 = vpop.f32.mrb[0].mxu0
    %5920 = vmatprep.mubr.bf16.mxu0 %v2305
    %5921 = vmatmul.mubr.bf16.gmra.mrb[0].mxu0 %v2297
    %v5922 = vpop.f32.mrb[0].mxu0
    %v5923 = vadd.f32 %v5458, %v5922
    %v5924 = vpop.f32.mrb[0].mxu0
    %v5925 = vpop.f32.mrb[0].mxu0
    %v5926 = vadd.f32 %v5461, %v5925
    %v5927 = vpop.f32.mrb[0].mxu0
    %5928 = vmatprep.mubr.bf16.mxu0 %v2324
    %5929 = vmatmul.mubr.bf16.gmra.mrb[0].mxu0 %v2316
    %v5930 = vpop.f32.mrb[0].mxu0
    %v5931 = vadd.f32 %v5466, %v5930
    %v5932 = vpop.f32.mrb[0].mxu0
    %v5933 = vpop.f32.mrb[0].mxu0
    %v5934 = vadd.f32 %v5469, %v5933
    %v5935 = vpop.f32.mrb[0].mxu0
    %5936 = vmatprep.mubr.bf16.mxu0 %v2343
    %5937 = vmatmul.mubr.bf16.gmra.mrb[0].mxu0 %v2335
    %v5938 = vpop.f32.mrb[0].mxu0
    %v5939 = vadd.f32 %v5474, %v5938
    %v5940 = vpop.f32.mrb[0].mxu0
    %v5941 = vpop.f32.mrb[0].mxu0
    %v5942 = vadd.f32 %v5477, %v5941
    %v5943 = vpop.f32.mrb[0].mxu0
    %5944 = vmatprep.mubr.bf16.mxu0 %v2362
    %5945 = vmatmul.mubr.bf16.gmra.mrb[0].mxu0 %v2354
    %v5946 = vpop.f32.mrb[0].mxu0
    %v5947 = vadd.f32 %v5482, %v5946
    %v5948 = vpop.f32.mrb[0].mxu0
    %v5949 = vpop.f32.mrb[0].mxu0
    %v5950 = vadd.f32 %v5485, %v5949
    %v5951 = vpop.f32.mrb[0].mxu0
    %5952 = vmatprep.mubr.bf16.mxu0 %v2381
    %5953 = vmatmul.mubr.bf16.gmra.mrb[0].mxu0 %v2373
    %v5954 = vpop.f32.mrb[0].mxu0
    %v5955 = vadd.f32 %v5490, %v5954
    %v5956 = vpop.f32.mrb[0].mxu0
    %v5957 = vpop.f32.mrb[0].mxu0
    %v5958 = vadd.f32 %v5493, %v5957
    %v5959 = vpop.f32.mrb[0].mxu0
    %5960 = vmatprep.mubr.bf16.mxu0 %v2400
    %5961 = vmatmul.mubr.bf16.gmra.mrb[0].mxu0 %v2392
    %v5962 = vpop.f32.mrb[0].mxu0
    %v5963 = vadd.f32 %v5498, %v5962
    %v5964 = vpop.f32.mrb[0].mxu0
    %v5965 = vpop.f32.mrb[0].mxu0
    %v5966 = vadd.f32 %v5501, %v5965
    %v5967 = vpop.f32.mrb[0].mxu0
    %5968 = vmatprep.mubr.bf16.mxu0 %v2419
    %5969 = vmatmul.mubr.bf16.gmra.mrb[0].mxu0 %v2411
    %v5970 = vpop.f32.mrb[0].mxu0
    %v5971 = vadd.f32 %v5506, %v5970
    %v5972 = vpop.f32.mrb[0].mxu0
    %v5973 = vpop.f32.mrb[0].mxu0
    %v5974 = vadd.f32 %v5509, %v5973
    %v5975 = vpop.f32.mrb[0].mxu0
    %5976 = vmatprep.mubr.bf16.mxu0 %v2438
    %5977 = vmatmul.mubr.bf16.gmra.mrb[0].mxu0 %v2430
    %v5978 = vpop.f32.mrb[0].mxu0
    %v5979 = vadd.f32 %v5514, %v5978
    %v5980 = vpop.f32.mrb[0].mxu0
    %v5981 = vpop.f32.mrb[0].mxu0
    %v5982 = vadd.f32 %v5517, %v5981
    %v5983 = vpop.f32.mrb[0].mxu0
    %5984 = vmatprep.mubr.bf16.mxu0 %v2457
    %5985 = vmatmul.mubr.bf16.gmra.mrb[0].mxu0 %v2449
    %v5986 = vpop.f32.mrb[0].mxu0
    %v5987 = vadd.f32 %v5522, %v5986
    %v5988 = vpop.f32.mrb[0].mxu0
    %v5989 = vpop.f32.mrb[0].mxu0
    %v5990 = vadd.f32 %v5525, %v5989
    %v5991 = vpop.f32.mrb[0].mxu0
    %5992 = vmatprep.mubr.bf16.mxu0 %v2476
    %5993 = vmatmul.mubr.bf16.gmra.mrb[0].mxu0 %v2468
    %v5994 = vpop.f32.mrb[0].mxu0
    %v5995 = vadd.f32 %v5530, %v5994
    %v5996 = vpop.f32.mrb[0].mxu0
    %v5997 = vpop.f32.mrb[0].mxu0
    %v5998 = vadd.f32 %v5533, %v5997
    %v5999 = vpop.f32.mrb[0].mxu0
    %6000 = vmatprep.mubr.bf16.mxu0 %v2495
    %6001 = vmatmul.mubr.bf16.gmra.mrb[0].mxu0 %v2487
    %v6002 = vpop.f32.mrb[0].mxu0
    %v6003 = vadd.f32 %v5538, %v6002
    %v6004 = vpop.f32.mrb[0].mxu0
    %v6005 = vpop.f32.mrb[0].mxu0
    %v6006 = vadd.f32 %v5541, %v6005
    %v6007 = vpop.f32.mrb[0].mxu0
    %6008 = vmatprep.mubr.bf16.mxu0 %v2514
    %6009 = vmatmul.mubr.bf16.gmra.mrb[0].mxu0 %v2506
    %v6010 = vpop.f32.mrb[0].mxu0
    %v6011 = vadd.f32 %v5546, %v6010
    %v6012 = vpop.f32.mrb[0].mxu0
    %v6013 = vpop.f32.mrb[0].mxu0
    %v6014 = vadd.f32 %v5549, %v6013
    %v6015 = vpop.f32.mrb[0].mxu0
    %6016 = vmatprep.mubr.bf16.mxu0 %v2533
    %6017 = vmatmul.mubr.bf16.gmra.mrb[0].mxu0 %v2525
    %v6018 = vpop.f32.mrb[0].mxu0
    %v6019 = vadd.f32 %v5554, %v6018
    %v6020 = vpop.f32.mrb[0].mxu0
    %v6021 = vpop.f32.mrb[0].mxu0
    %v6022 = vadd.f32 %v5557, %v6021
    %v6023 = vpop.f32.mrb[0].mxu0
    %6024 = vmatprep.mubr.bf16.mxu0 %v2552
    %6025 = vmatmul.mubr.bf16.gmra.mrb[0].mxu0 %v2544
    %v6026 = vpop.f32.mrb[0].mxu0
    %v6027 = vadd.f32 %v5562, %v6026
    %v6028 = vpop.f32.mrb[0].mxu0
    %v6029 = vpop.f32.mrb[0].mxu0
    %v6030 = vadd.f32 %v5565, %v6029
    %v6031 = vpop.f32.mrb[0].mxu0
    %6032 = vmatprep.mubr.bf16.mxu0 %v2571
    %6033 = vmatmul.mubr.bf16.gmra.mrb[0].mxu0 %v2563
    %v6034 = vpop.f32.mrb[0].mxu0
    %v6035 = vadd.f32 %v5570, %v6034
    %v6036 = vpop.f32.mrb[0].mxu0
    %v6037 = vpop.f32.mrb[0].mxu0
    %v6038 = vadd.f32 %v5573, %v6037
    %v6039 = vpop.f32.mrb[0].mxu0
    %6040 = vmatprep.mubr.bf16.mxu0 %v2590
    %6041 = vmatmul.mubr.bf16.gmra.mrb[0].mxu0 %v2582
    %v6042 = vpop.f32.mrb[0].mxu0
    %v6043 = vadd.f32 %v5578, %v6042
    %v6044 = vpop.f32.mrb[0].mxu0
    %v6045 = vpop.f32.mrb[0].mxu0
    %v6046 = vadd.f32 %v5581, %v6045
    %v6047 = vpop.f32.mrb[0].mxu0
    %6048 = vmatprep.mubr.bf16.mxu0 %v2609
    %6049 = vmatmul.mubr.bf16.gmra.mrb[0].mxu0 %v2601
    %v6050 = vpop.f32.mrb[0].mxu0
    %v6051 = vadd.f32 %v5586, %v6050
    %v6052 = vpop.f32.mrb[0].mxu0
    %v6053 = vpop.f32.mrb[0].mxu0
    %v6054 = vadd.f32 %v5589, %v6053
    %v6055 = vpop.f32.mrb[0].mxu0
    %6056 = vmatprep.mubr.bf16.mxu0 %v2628
    %6057 = vmatmul.mubr.bf16.gmra.mrb[0].mxu0 %v2620
    %v6058 = vpop.f32.mrb[0].mxu0
    %v6059 = vadd.f32 %v5594, %v6058
    %v6060 = vpop.f32.mrb[0].mxu0
    %v6061 = vpop.f32.mrb[0].mxu0
    %v6062 = vadd.f32 %v5597, %v6061
    %v6063 = vpop.f32.mrb[0].mxu0
    %6064 = vmatprep.mubr.bf16.mxu0 %v2647
    %6065 = vmatmul.mubr.bf16.gmra.mrb[0].mxu0 %v2639
    %v6066 = vpop.f32.mrb[0].mxu0
    %v6067 = vadd.f32 %v5602, %v6066
    %v6068 = vpop.f32.mrb[0].mxu0
    %v6069 = vpop.f32.mrb[0].mxu0
    %v6070 = vadd.f32 %v5605, %v6069
    %v6071 = vpop.f32.mrb[0].mxu0
    %6072 = vmatprep.mubr.bf16.mxu0 %v2666
    %6073 = vmatmul.mubr.bf16.gmra.mrb[0].mxu0 %v2658
    %v6074 = vpop.f32.mrb[0].mxu0
    %v6075 = vadd.f32 %v5610, %v6074
    %v6076 = vpop.f32.mrb[0].mxu0
    %v6077 = vpop.f32.mrb[0].mxu0
    %v6078 = vadd.f32 %v5613, %v6077
    %v6079 = vpop.f32.mrb[0].mxu0
    %6080 = vmatprep.mubr.bf16.mxu0 %v2680
    %6081 = vmatmul.mubr.bf16.gmra.mrb[0].mxu0 %v2676
    %v6082 = vpop.f32.mrb[0].mxu0
    %v6083 = vadd.f32 %v5618, %v6082
    %v6084 = vpop.f32.mrb[0].mxu0
    %v6085 = vpop.f32.mrb[0].mxu0
    %v6086 = vadd.f32 %v5621, %v6085
    %v6087 = vpop.f32.mrb[0].mxu0
    %6088 = vmatprep.mubr.bf16.mxu0 %v1657
    %6089 = vmatmul.mubr.bf16.gmra.mrb[0].mxu0 %v1645
    %v6090 = vpop.f32.mrb[0].mxu0
    %v6091 = vadd.f32 %v5626, %v6090
    %v6092 = vpop.f32.mrb[0].mxu0
    %v6093 = vpop.f32.mrb[0].mxu0
    %v6094 = vadd.f32 %v5629, %v6093
    %v6095 = vpop.f32.mrb[0].mxu0
    %6096 = vmatprep.mubr.bf16.mxu0 %v2847
    %6097 = vmatmul.mubr.bf16.gmra.mrb[0].mxu0 %v2843
    %v6098 = vpop.f32.mrb[0].mxu0
    %v6099 = vadd.f32 %v5634, %v6098
    %v6100 = vpop.f32.mrb[0].mxu0
    %v6101 = vpop.f32.mrb[0].mxu0
    %v6102 = vadd.f32 %v5637, %v6101
    %v6103 = vpop.f32.mrb[0].mxu0
    %6104 = vmatprep.mubr.bf16.mxu0 %v1716
    %6105 = vmatmul.mubr.bf16.gmra.mrb[0].mxu0 %v1708
    %v6106 = vpop.f32.mrb[0].mxu0
    %v6107 = vadd.f32 %v5642, %v6106
    %v6108 = vpop.f32.mrb[0].mxu0
    %v6109 = vpop.f32.mrb[0].mxu0
    %v6110 = vadd.f32 %v5645, %v6109
    %v6111 = vpop.f32.mrb[0].mxu0
    %6112 = vdwg.mxu0
    %6113 = vmatprep.subr.bf16.mxu0 0
    %6114 = vmatpush1.bf16.msra.mxu0 %v4173
    %6115 = vmatprep.subr.bf16.mxu0 0
    %6116 = vmatpush1.bf16.msra.mxu0 %v4174
    %6117 = vmatprep.subr.bf16.mxu0 0
    %6118 = vmatpush1.bf16.msra.mxu0 %v4175
    %6119 = vmatprep.subr.bf16.mxu0 0
    %6120 = vmatpush1.bf16.msra.mxu0 %v4176
    %6121 = vmatprep.subr.bf16.mxu0 0
    %6122 = vmatpush1.bf16.msra.mxu0 %v4177
    %6123 = vmatprep.subr.bf16.mxu0 0
    %6124 = vmatpush1.bf16.msra.mxu0 %v4178
    %6125 = vmatprep.subr.bf16.mxu0 0
    %6126 = vmatpush1.bf16.msra.mxu0 %v4179
    %6127 = vmatprep.subr.bf16.mxu0 0
    %6128 = vmatpush1.bf16.msra.mxu0 %v4180
    %6129 = vmatprep.subr.bf16.mxu0 0
    %6130 = vmatpush1.bf16.msra.mxu0 0
    %6131 = vmatprep.subr.bf16.mxu0 0
    %6132 = vmatpush1.bf16.msra.mxu0 0
    %6133 = vmatprep.subr.bf16.mxu0 0
    %6134 = vmatpush1.bf16.msra.mxu0 0
    %6135 = vmatprep.subr.bf16.mxu0 0
    %6136 = vmatpush1.bf16.msra.mxu0 0
    %6137 = vmatprep.subr.bf16.mxu0 0
    %6138 = vmatpush1.bf16.msra.mxu0 0
    %6139 = vmatprep.subr.bf16.mxu0 0
    %6140 = vmatpush1.bf16.msra.mxu0 0
    %6141 = vmatprep.subr.bf16.mxu0 0
    %6142 = vmatpush1.bf16.msra.mxu0 0
    %6143 = vmatprep.subr.bf16.mxu0 0
    %6144 = vmatpush1.bf16.msra.mxu0 0
    %6145 = vmatprep.mubr.bf16.mxu0 0
    %6146 = vmatmul.mubr.bf16.gmra.mrb[0].mxu0 %v1743
    %v6147 = vpop.f32.mrb[0].mxu0
    %v6148 = vadd.f32 %v5683, %v6147
    %v6149 = vpop.f32.mrb[0].mxu0
    %v6150 = vpop.f32.mrb[0].mxu0
    %v6151 = vadd.f32 %v5686, %v6150
    %v6152 = vpop.f32.mrb[0].mxu0
    %6153 = vmatprep.mubr.bf16.mxu0 0
    %6154 = vmatmul.mubr.bf16.gmra.mrb[0].mxu0 %v1762
    %v6155 = vpop.f32.mrb[0].mxu0
    %v6156 = vadd.f32 %v5691, %v6155
    %v6157 = vpop.f32.mrb[0].mxu0
    %v6158 = vpop.f32.mrb[0].mxu0
    %v6159 = vadd.f32 %v5694, %v6158
    %v6160 = vpop.f32.mrb[0].mxu0
    %6161 = vmatprep.mubr.bf16.mxu0 0
    %6162 = vmatmul.mubr.bf16.gmra.mrb[0].mxu0 %v1781
    %v6163 = vpop.f32.mrb[0].mxu0
    %v6164 = vadd.f32 %v5699, %v6163
    %v6165 = vpop.f32.mrb[0].mxu0
    %v6166 = vpop.f32.mrb[0].mxu0
    %v6167 = vadd.f32 %v5702, %v6166
    %v6168 = vpop.f32.mrb[0].mxu0
    %6169 = vmatprep.mubr.bf16.mxu0 0
    %6170 = vmatmul.mubr.bf16.gmra.mrb[0].mxu0 %v1800
    %v6171 = vpop.f32.mrb[0].mxu0
    %v6172 = vadd.f32 %v5707, %v6171
    %v6173 = vpop.f32.mrb[0].mxu0
    %v6174 = vpop.f32.mrb[0].mxu0
    %v6175 = vadd.f32 %v5710, %v6174
    %v6176 = vpop.f32.mrb[0].mxu0
    %6177 = vmatprep.mubr.bf16.mxu0 0
    %6178 = vmatmul.mubr.bf16.gmra.mrb[0].mxu0 %v1819
    %v6179 = vpop.f32.mrb[0].mxu0
    %v6180 = vadd.f32 %v5715, %v6179
    %v6181 = vpop.f32.mrb[0].mxu0
    %v6182 = vpop.f32.mrb[0].mxu0
    %v6183 = vadd.f32 %v5718, %v6182
    %v6184 = vpop.f32.mrb[0].mxu0
    %6185 = vmatprep.mubr.bf16.mxu0 0
    %6186 = vmatmul.mubr.bf16.gmra.mrb[0].mxu0 %v1838
    %v6187 = vpop.f32.mrb[0].mxu0
    %v6188 = vadd.f32 %v5723, %v6187
    %v6189 = vpop.f32.mrb[0].mxu0
    %v6190 = vpop.f32.mrb[0].mxu0
    %v6191 = vadd.f32 %v5726, %v6190
    %v6192 = vpop.f32.mrb[0].mxu0
    %6193 = vmatprep.mubr.bf16.mxu0 0
    %6194 = vmatmul.mubr.bf16.gmra.mrb[0].mxu0 %v1857
    %v6195 = vpop.f32.mrb[0].mxu0
    %v6196 = vadd.f32 %v5731, %v6195
    %v6197 = vpop.f32.mrb[0].mxu0
    %v6198 = vpop.f32.mrb[0].mxu0
    %v6199 = vadd.f32 %v5734, %v6198
    %v6200 = vpop.f32.mrb[0].mxu0
    %6201 = vmatprep.mubr.bf16.mxu0 0
    %6202 = vmatmul.mubr.bf16.gmra.mrb[0].mxu0 %v1876
    %v6203 = vpop.f32.mrb[0].mxu0
    %v6204 = vadd.f32 %v5739, %v6203
    %v6205 = vpop.f32.mrb[0].mxu0
    %v6206 = vpop.f32.mrb[0].mxu0
    %v6207 = vadd.f32 %v5742, %v6206
    %v6208 = vpop.f32.mrb[0].mxu0
    %6209 = vmatprep.mubr.bf16.mxu0 0
    %6210 = vmatmul.mubr.bf16.gmra.mrb[0].mxu0 %v1895
    %v6211 = vpop.f32.mrb[0].mxu0
    %v6212 = vadd.f32 %v5747, %v6211
    %v6213 = vpop.f32.mrb[0].mxu0
    %v6214 = vpop.f32.mrb[0].mxu0
    %v6215 = vadd.f32 %v5750, %v6214
    %v6216 = vpop.f32.mrb[0].mxu0
    %6217 = vmatprep.mubr.bf16.mxu0 0
    %6218 = vmatmul.mubr.bf16.gmra.mrb[0].mxu0 %v1914
    %v6219 = vpop.f32.mrb[0].mxu0
    %v6220 = vadd.f32 %v5755, %v6219
    %v6221 = vpop.f32.mrb[0].mxu0
    %v6222 = vpop.f32.mrb[0].mxu0
    %v6223 = vadd.f32 %v5758, %v6222
    %v6224 = vpop.f32.mrb[0].mxu0
    %6225 = vmatprep.mubr.bf16.mxu0 0
    %6226 = vmatmul.mubr.bf16.gmra.mrb[0].mxu0 %v1933
    %v6227 = vpop.f32.mrb[0].mxu0
    %v6228 = vadd.f32 %v5763, %v6227
    %v6229 = vpop.f32.mrb[0].mxu0
    %v6230 = vpop.f32.mrb[0].mxu0
    %v6231 = vadd.f32 %v5766, %v6230
    %v6232 = vpop.f32.mrb[0].mxu0
    %6233 = vmatprep.mubr.bf16.mxu0 0
    %6234 = vmatmul.mubr.bf16.gmra.mrb[0].mxu0 %v1952
    %v6235 = vpop.f32.mrb[0].mxu0
    %v6236 = vadd.f32 %v5771, %v6235
    %v6237 = vpop.f32.mrb[0].mxu0
    %v6238 = vpop.f32.mrb[0].mxu0
    %v6239 = vadd.f32 %v5774, %v6238
    %v6240 = vpop.f32.mrb[0].mxu0
    %6241 = vmatprep.mubr.bf16.mxu0 0
    %6242 = vmatmul.mubr.bf16.gmra.mrb[0].mxu0 %v1971
    %v6243 = vpop.f32.mrb[0].mxu0
    %v6244 = vadd.f32 %v5779, %v6243
    %v6245 = vpop.f32.mrb[0].mxu0
    %v6246 = vpop.f32.mrb[0].mxu0
    %v6247 = vadd.f32 %v5782, %v6246
    %v6248 = vpop.f32.mrb[0].mxu0
    %6249 = vmatprep.mubr.bf16.mxu0 0
    %6250 = vmatmul.mubr.bf16.gmra.mrb[0].mxu0 %v1990
    %v6251 = vpop.f32.mrb[0].mxu0
    %v6252 = vadd.f32 %v5787, %v6251
    %v6253 = vpop.f32.mrb[0].mxu0
    %v6254 = vpop.f32.mrb[0].mxu0
    %v6255 = vadd.f32 %v5790, %v6254
    %v6256 = vpop.f32.mrb[0].mxu0
    %6257 = vmatprep.mubr.bf16.mxu0 0
    %6258 = vmatmul.mubr.bf16.gmra.mrb[0].mxu0 %v2009
    %v6259 = vpop.f32.mrb[0].mxu0
    %v6260 = vadd.f32 %v5795, %v6259
    %v6261 = vpop.f32.mrb[0].mxu0
    %v6262 = vpop.f32.mrb[0].mxu0
    %v6263 = vadd.f32 %v5798, %v6262
    %v6264 = vpop.f32.mrb[0].mxu0
    %6265 = vmatprep.mubr.bf16.mxu0 0
    %6266 = vmatmul.mubr.bf16.gmra.mrb[0].mxu0 %v2028
    %v6267 = vpop.f32.mrb[0].mxu0
    %v6268 = vadd.f32 %v5803, %v6267
    %v6269 = vpop.f32.mrb[0].mxu0
    %v6270 = vpop.f32.mrb[0].mxu0
    %v6271 = vadd.f32 %v5806, %v6270
    %v6272 = vpop.f32.mrb[0].mxu0
    %6273 = vmatprep.mubr.bf16.mxu0 0
    %6274 = vmatmul.mubr.bf16.gmra.mrb[0].mxu0 %v2047
    %v6275 = vpop.f32.mrb[0].mxu0
    %v6276 = vadd.f32 %v5811, %v6275
    %v6277 = vpop.f32.mrb[0].mxu0
    %v6278 = vpop.f32.mrb[0].mxu0
    %v6279 = vadd.f32 %v5814, %v6278
    %v6280 = vpop.f32.mrb[0].mxu0
    %6281 = vmatprep.mubr.bf16.mxu0 0
    %6282 = vmatmul.mubr.bf16.gmra.mrb[0].mxu0 %v2066
    %v6283 = vpop.f32.mrb[0].mxu0
    %v6284 = vadd.f32 %v5819, %v6283
    %v6285 = vpop.f32.mrb[0].mxu0
    %v6286 = vpop.f32.mrb[0].mxu0
    %v6287 = vadd.f32 %v5822, %v6286
    %v6288 = vpop.f32.mrb[0].mxu0
    %6289 = vmatprep.mubr.bf16.mxu0 0
    %6290 = vmatmul.mubr.bf16.gmra.mrb[0].mxu0 %v2085
    %v6291 = vpop.f32.mrb[0].mxu0
    %v6292 = vadd.f32 %v5827, %v6291
    %v6293 = vpop.f32.mrb[0].mxu0
    %v6294 = vpop.f32.mrb[0].mxu0
    %v6295 = vadd.f32 %v5830, %v6294
    %v6296 = vpop.f32.mrb[0].mxu0
    %6297 = vmatprep.mubr.bf16.mxu0 0
    %6298 = vmatmul.mubr.bf16.gmra.mrb[0].mxu0 %v2104
    %v6299 = vpop.f32.mrb[0].mxu0
    %v6300 = vadd.f32 %v5835, %v6299
    %v6301 = vpop.f32.mrb[0].mxu0
    %v6302 = vpop.f32.mrb[0].mxu0
    %v6303 = vadd.f32 %v5838, %v6302
    %v6304 = vpop.f32.mrb[0].mxu0
    %6305 = vmatprep.mubr.bf16.mxu0 0
    %6306 = vmatmul.mubr.bf16.gmra.mrb[0].mxu0 %v2123
    %v6307 = vpop.f32.mrb[0].mxu0
    %v6308 = vadd.f32 %v5843, %v6307
    %v6309 = vpop.f32.mrb[0].mxu0
    %v6310 = vpop.f32.mrb[0].mxu0
    %v6311 = vadd.f32 %v5846, %v6310
    %v6312 = vpop.f32.mrb[0].mxu0
    %6313 = vmatprep.mubr.bf16.mxu0 0
    %6314 = vmatmul.mubr.bf16.gmra.mrb[0].mxu0 %v2142
    %v6315 = vpop.f32.mrb[0].mxu0
    %v6316 = vadd.f32 %v5851, %v6315
    %v6317 = vpop.f32.mrb[0].mxu0
    %v6318 = vpop.f32.mrb[0].mxu0
    %v6319 = vadd.f32 %v5854, %v6318
    %v6320 = vpop.f32.mrb[0].mxu0
    %6321 = vmatprep.mubr.bf16.mxu0 0
    %6322 = vmatmul.mubr.bf16.gmra.mrb[0].mxu0 %v2161
    %v6323 = vpop.f32.mrb[0].mxu0
    %v6324 = vadd.f32 %v5859, %v6323
    %v6325 = vpop.f32.mrb[0].mxu0
    %v6326 = vpop.f32.mrb[0].mxu0
    %v6327 = vadd.f32 %v5862, %v6326
    %v6328 = vpop.f32.mrb[0].mxu0
    %6329 = vmatprep.mubr.bf16.mxu0 0
    %6330 = vmatmul.mubr.bf16.gmra.mrb[0].mxu0 %v2180
    %v6331 = vpop.f32.mrb[0].mxu0
    %v6332 = vadd.f32 %v5867, %v6331
    %v6333 = vpop.f32.mrb[0].mxu0
    %v6334 = vpop.f32.mrb[0].mxu0
    %v6335 = vadd.f32 %v5870, %v6334
    %v6336 = vpop.f32.mrb[0].mxu0
    %6337 = vmatprep.mubr.bf16.mxu0 0
    %6338 = vmatmul.mubr.bf16.gmra.mrb[0].mxu0 %v2199
    %v6339 = vpop.f32.mrb[0].mxu0
    %v6340 = vadd.f32 %v5875, %v6339
    %v6341 = vpop.f32.mrb[0].mxu0
    %v6342 = vpop.f32.mrb[0].mxu0
    %v6343 = vadd.f32 %v5878, %v6342
    %v6344 = vpop.f32.mrb[0].mxu0
    %6345 = vmatprep.mubr.bf16.mxu0 0
    %6346 = vmatmul.mubr.bf16.gmra.mrb[0].mxu0 %v2218
    %v6347 = vpop.f32.mrb[0].mxu0
    %v6348 = vadd.f32 %v5883, %v6347
    %v6349 = vpop.f32.mrb[0].mxu0
    %v6350 = vpop.f32.mrb[0].mxu0
    %v6351 = vadd.f32 %v5886, %v6350
    %v6352 = vpop.f32.mrb[0].mxu0
    %6353 = vmatprep.mubr.bf16.mxu0 0
    %6354 = vmatmul.mubr.bf16.gmra.mrb[0].mxu0 %v2237
    %v6355 = vpop.f32.mrb[0].mxu0
    %v6356 = vadd.f32 %v5891, %v6355
    %v6357 = vpop.f32.mrb[0].mxu0
    %v6358 = vpop.f32.mrb[0].mxu0
    %v6359 = vadd.f32 %v5894, %v6358
    %v6360 = vpop.f32.mrb[0].mxu0
    %6361 = vmatprep.mubr.bf16.mxu0 0
    %6362 = vmatmul.mubr.bf16.gmra.mrb[0].mxu0 %v2256
    %v6363 = vpop.f32.mrb[0].mxu0
    %v6364 = vadd.f32 %v5899, %v6363
    %v6365 = vpop.f32.mrb[0].mxu0
    %v6366 = vpop.f32.mrb[0].mxu0
    %v6367 = vadd.f32 %v5902, %v6366
    %v6368 = vpop.f32.mrb[0].mxu0
    %6369 = vmatprep.mubr.bf16.mxu0 0
    %6370 = vmatmul.mubr.bf16.gmra.mrb[0].mxu0 %v2275
    %v6371 = vpop.f32.mrb[0].mxu0
    %v6372 = vadd.f32 %v5907, %v6371
    %v6373 = vpop.f32.mrb[0].mxu0
    %v6374 = vpop.f32.mrb[0].mxu0
    %v6375 = vadd.f32 %v5910, %v6374
    %v6376 = vpop.f32.mrb[0].mxu0
    %6377 = vmatprep.mubr.bf16.mxu0 0
    %6378 = vmatmul.mubr.bf16.gmra.mrb[0].mxu0 %v2294
    %v6379 = vpop.f32.mrb[0].mxu0
    %v6380 = vadd.f32 %v5915, %v6379
    %v6381 = vpop.f32.mrb[0].mxu0
    %v6382 = vpop.f32.mrb[0].mxu0
    %v6383 = vadd.f32 %v5918, %v6382
    %v6384 = vpop.f32.mrb[0].mxu0
    %6385 = vmatprep.mubr.bf16.mxu0 0
    %6386 = vmatmul.mubr.bf16.gmra.mrb[0].mxu0 %v2313
    %v6387 = vpop.f32.mrb[0].mxu0
    %v6388 = vadd.f32 %v5923, %v6387
    %v6389 = vpop.f32.mrb[0].mxu0
    %v6390 = vpop.f32.mrb[0].mxu0
    %v6391 = vadd.f32 %v5926, %v6390
    %v6392 = vpop.f32.mrb[0].mxu0
    %6393 = vmatprep.mubr.bf16.mxu0 0
    %6394 = vmatmul.mubr.bf16.gmra.mrb[0].mxu0 %v2332
    %v6395 = vpop.f32.mrb[0].mxu0
    %v6396 = vadd.f32 %v5931, %v6395
    %v6397 = vpop.f32.mrb[0].mxu0
    %v6398 = vpop.f32.mrb[0].mxu0
    %v6399 = vadd.f32 %v5934, %v6398
    %v6400 = vpop.f32.mrb[0].mxu0
    %6401 = vmatprep.mubr.bf16.mxu0 0
    %6402 = vmatmul.mubr.bf16.gmra.mrb[0].mxu0 %v2351
    %v6403 = vpop.f32.mrb[0].mxu0
    %v6404 = vadd.f32 %v5939, %v6403
    %v6405 = vpop.f32.mrb[0].mxu0
    %v6406 = vpop.f32.mrb[0].mxu0
    %v6407 = vadd.f32 %v5942, %v6406
    %v6408 = vpop.f32.mrb[0].mxu0
    %6409 = vmatprep.mubr.bf16.mxu0 0
    %6410 = vmatmul.mubr.bf16.gmra.mrb[0].mxu0 %v2370
    %v6411 = vpop.f32.mrb[0].mxu0
    %v6412 = vadd.f32 %v5947, %v6411
    %v6413 = vpop.f32.mrb[0].mxu0
    %v6414 = vpop.f32.mrb[0].mxu0
    %v6415 = vadd.f32 %v5950, %v6414
    %v6416 = vpop.f32.mrb[0].mxu0
    %6417 = vmatprep.mubr.bf16.mxu0 0
    %6418 = vmatmul.mubr.bf16.gmra.mrb[0].mxu0 %v2389
    %v6419 = vpop.f32.mrb[0].mxu0
    %v6420 = vadd.f32 %v5955, %v6419
    %v6421 = vpop.f32.mrb[0].mxu0
    %v6422 = vpop.f32.mrb[0].mxu0
    %v6423 = vadd.f32 %v5958, %v6422
    %v6424 = vpop.f32.mrb[0].mxu0
    %6425 = vmatprep.mubr.bf16.mxu0 0
    %6426 = vmatmul.mubr.bf16.gmra.mrb[0].mxu0 %v2408
    %v6427 = vpop.f32.mrb[0].mxu0
    %v6428 = vadd.f32 %v5963, %v6427
    %v6429 = vpop.f32.mrb[0].mxu0
    %v6430 = vpop.f32.mrb[0].mxu0
    %v6431 = vadd.f32 %v5966, %v6430
    %v6432 = vpop.f32.mrb[0].mxu0
    %6433 = vmatprep.mubr.bf16.mxu0 0
    %6434 = vmatmul.mubr.bf16.gmra.mrb[0].mxu0 %v2427
    %v6435 = vpop.f32.mrb[0].mxu0
    %v6436 = vadd.f32 %v5971, %v6435
    %v6437 = vpop.f32.mrb[0].mxu0
    %v6438 = vpop.f32.mrb[0].mxu0
    %v6439 = vadd.f32 %v5974, %v6438
    %v6440 = vpop.f32.mrb[0].mxu0
    %6441 = vmatprep.mubr.bf16.mxu0 0
    %6442 = vmatmul.mubr.bf16.gmra.mrb[0].mxu0 %v2446
    %v6443 = vpop.f32.mrb[0].mxu0
    %v6444 = vadd.f32 %v5979, %v6443
    %v6445 = vpop.f32.mrb[0].mxu0
    %v6446 = vpop.f32.mrb[0].mxu0
    %v6447 = vadd.f32 %v5982, %v6446
    %v6448 = vpop.f32.mrb[0].mxu0
    %6449 = vmatprep.mubr.bf16.mxu0 0
    %6450 = vmatmul.mubr.bf16.gmra.mrb[0].mxu0 %v2465
    %v6451 = vpop.f32.mrb[0].mxu0
    %v6452 = vadd.f32 %v5987, %v6451
    %v6453 = vpop.f32.mrb[0].mxu0
    %v6454 = vpop.f32.mrb[0].mxu0
    %v6455 = vadd.f32 %v5990, %v6454
    %v6456 = vpop.f32.mrb[0].mxu0
    %6457 = vmatprep.mubr.bf16.mxu0 0
    %6458 = vmatmul.mubr.bf16.gmra.mrb[0].mxu0 %v2484
    %v6459 = vpop.f32.mrb[0].mxu0
    %v6460 = vadd.f32 %v5995, %v6459
    %v6461 = vpop.f32.mrb[0].mxu0
    %v6462 = vpop.f32.mrb[0].mxu0
    %v6463 = vadd.f32 %v5998, %v6462
    %v6464 = vpop.f32.mrb[0].mxu0
    %6465 = vmatprep.mubr.bf16.mxu0 0
    %6466 = vmatmul.mubr.bf16.gmra.mrb[0].mxu0 %v2503
    %v6467 = vpop.f32.mrb[0].mxu0
    %v6468 = vadd.f32 %v6003, %v6467
    %v6469 = vpop.f32.mrb[0].mxu0
    %v6470 = vpop.f32.mrb[0].mxu0
    %v6471 = vadd.f32 %v6006, %v6470
    %v6472 = vpop.f32.mrb[0].mxu0
    %6473 = vmatprep.mubr.bf16.mxu0 0
    %6474 = vmatmul.mubr.bf16.gmra.mrb[0].mxu0 %v2522
    %v6475 = vpop.f32.mrb[0].mxu0
    %v6476 = vadd.f32 %v6011, %v6475
    %v6477 = vpop.f32.mrb[0].mxu0
    %v6478 = vpop.f32.mrb[0].mxu0
    %v6479 = vadd.f32 %v6014, %v6478
    %v6480 = vpop.f32.mrb[0].mxu0
    %6481 = vmatprep.mubr.bf16.mxu0 0
    %6482 = vmatmul.mubr.bf16.gmra.mrb[0].mxu0 %v2541
    %v6483 = vpop.f32.mrb[0].mxu0
    %v6484 = vadd.f32 %v6019, %v6483
    %v6485 = vpop.f32.mrb[0].mxu0
    %v6486 = vpop.f32.mrb[0].mxu0
    %v6487 = vadd.f32 %v6022, %v6486
    %v6488 = vpop.f32.mrb[0].mxu0
    %6489 = vmatprep.mubr.bf16.mxu0 0
    %6490 = vmatmul.mubr.bf16.gmra.mrb[0].mxu0 %v2560
    %v6491 = vpop.f32.mrb[0].mxu0
    %v6492 = vadd.f32 %v6027, %v6491
    %v6493 = vpop.f32.mrb[0].mxu0
    %v6494 = vpop.f32.mrb[0].mxu0
    %v6495 = vadd.f32 %v6030, %v6494
    %v6496 = vpop.f32.mrb[0].mxu0
    %6497 = vmatprep.mubr.bf16.mxu0 0
    %6498 = vmatmul.mubr.bf16.gmra.mrb[0].mxu0 %v2579
    %v6499 = vpop.f32.mrb[0].mxu0
    %v6500 = vadd.f32 %v6035, %v6499
    %v6501 = vpop.f32.mrb[0].mxu0
    %v6502 = vpop.f32.mrb[0].mxu0
    %v6503 = vadd.f32 %v6038, %v6502
    %v6504 = vpop.f32.mrb[0].mxu0
    %6505 = vmatprep.mubr.bf16.mxu0 0
    %6506 = vmatmul.mubr.bf16.gmra.mrb[0].mxu0 %v2598
    %v6507 = vpop.f32.mrb[0].mxu0
    %v6508 = vadd.f32 %v6043, %v6507
    %v6509 = vpop.f32.mrb[0].mxu0
    %v6510 = vpop.f32.mrb[0].mxu0
    %v6511 = vadd.f32 %v6046, %v6510
    %v6512 = vpop.f32.mrb[0].mxu0
    %6513 = vmatprep.mubr.bf16.mxu0 0
    %6514 = vmatmul.mubr.bf16.gmra.mrb[0].mxu0 %v2617
    %v6515 = vpop.f32.mrb[0].mxu0
    %v6516 = vadd.f32 %v6051, %v6515
    %v6517 = vpop.f32.mrb[0].mxu0
    %v6518 = vpop.f32.mrb[0].mxu0
    %v6519 = vadd.f32 %v6054, %v6518
    %v6520 = vpop.f32.mrb[0].mxu0
    %6521 = vmatprep.mubr.bf16.mxu0 0
    %6522 = vmatmul.mubr.bf16.gmra.mrb[0].mxu0 %v2636
    %v6523 = vpop.f32.mrb[0].mxu0
    %v6524 = vadd.f32 %v6059, %v6523
    %v6525 = vpop.f32.mrb[0].mxu0
    %v6526 = vpop.f32.mrb[0].mxu0
    %v6527 = vadd.f32 %v6062, %v6526
    %v6528 = vpop.f32.mrb[0].mxu0
    %6529 = vmatprep.mubr.bf16.mxu0 0
    %6530 = vmatmul.mubr.bf16.gmra.mrb[0].mxu0 %v2655
    %v6531 = vpop.f32.mrb[0].mxu0
    %v6532 = vadd.f32 %v6067, %v6531
    %v6533 = vpop.f32.mrb[0].mxu0
    %v6534 = vpop.f32.mrb[0].mxu0
    %v6535 = vadd.f32 %v6070, %v6534
    %v6536 = vpop.f32.mrb[0].mxu0
    %6537 = vmatprep.mubr.bf16.mxu0 0
    %6538 = vmatmul.mubr.bf16.gmra.mrb[0].mxu0 %v2674
    %v6539 = vpop.f32.mrb[0].mxu0
    %v6540 = vadd.f32 %v6075, %v6539
    %v6541 = vpop.f32.mrb[0].mxu0
    %v6542 = vpop.f32.mrb[0].mxu0
    %v6543 = vadd.f32 %v6078, %v6542
    %v6544 = vpop.f32.mrb[0].mxu0
    %6545 = vmatprep.mubr.bf16.mxu0 0
    %6546 = vmatmul.mubr.bf16.gmra.mrb[0].mxu0 %v2684
    %v6547 = vpop.f32.mrb[0].mxu0
    %v6548 = vadd.f32 %v6083, %v6547
    %v6549 = vpop.f32.mrb[0].mxu0
    %v6550 = vpop.f32.mrb[0].mxu0
    %v6551 = vadd.f32 %v6086, %v6550
    %v6552 = vpop.f32.mrb[0].mxu0
    %6553 = vmatprep.mubr.bf16.mxu0 0
    %6554 = vmatmul.mubr.bf16.gmra.mrb[0].mxu0 %v1669
    %v6555 = vpop.f32.mrb[0].mxu0
    %v6556 = vadd.f32 %v6091, %v6555
    %v6557 = vpop.f32.mrb[0].mxu0
    %v6558 = vpop.f32.mrb[0].mxu0
    %v6559 = vadd.f32 %v6094, %v6558
    %v6560 = vpop.f32.mrb[0].mxu0
    %6561 = vmatprep.mubr.bf16.mxu0 0
    %6562 = vmatmul.mubr.bf16.gmra.mrb[0].mxu0 %v2851
    %v6563 = vpop.f32.mrb[0].mxu0
    %v6564 = vadd.f32 %v6099, %v6563
    %v6565 = vpop.f32.mrb[0].mxu0
    %v6566 = vpop.f32.mrb[0].mxu0
    %v6567 = vadd.f32 %v6102, %v6566
    %v6568 = vpop.f32.mrb[0].mxu0
    %6569 = vmatprep.mubr.bf16.mxu0 0
    %6570 = vmatmul.mubr.bf16.gmra.mrb[0].mxu0 %v1724
    %v6571 = vpop.f32.mrb[0].mxu0
    %v6572 = vadd.f32 %v6107, %v6571
    %v6573 = vpop.f32.mrb[0].mxu0
    %v6574 = vpop.f32.mrb[0].mxu0
    %v6575 = vadd.f32 %v6110, %v6574
    %v6576 = vpop.f32.mrb[0].mxu0
    %6577 = vdwg.mxu0
    %v6578 = vmax.f32 %v6148, 0.0
    %v6579 = vmax.f32 %v6151, 0.0
    %v6580 = vmax.f32 %v6156, 0.0
    %v6581 = vmax.f32 %v6159, 0.0
    %v6582 = vmax.f32 %v6164, 0.0
    %v6583 = vmax.f32 %v6167, 0.0
    %v6584 = vmax.f32 %v6172, 0.0
    %v6585 = vmax.f32 %v6175, 0.0
    %v6586 = vmax.f32 %v6180, 0.0
    %v6587 = vmax.f32 %v6183, 0.0
    %v6588 = vmax.f32 %v6188, 0.0
    %v6589 = vmax.f32 %v6191, 0.0
    %v6590 = vmax.f32 %v6196, 0.0
    %v6591 = vmax.f32 %v6199, 0.0
    %v6592 = vmax.f32 %v6204, 0.0
    %v6593 = vmax.f32 %v6207, 0.0
    %v6594 = vmax.f32 %v6212, 0.0
    %v6595 = vmax.f32 %v6215, 0.0
    %v6596 = vmax.f32 %v6220, 0.0
    %v6597 = vmax.f32 %v6223, 0.0
    %v6598 = vmax.f32 %v6228, 0.0
    %v6599 = vmax.f32 %v6231, 0.0
    %v6600 = vmax.f32 %v6236, 0.0
    %v6601 = vmax.f32 %v6239, 0.0
    %v6602 = vmax.f32 %v6244, 0.0
    %v6603 = vmax.f32 %v6247, 0.0
    %v6604 = vmax.f32 %v6252, 0.0
    %v6605 = vmax.f32 %v6255, 0.0
    %v6606 = vmax.f32 %v6260, 0.0
    %v6607 = vmax.f32 %v6263, 0.0
    %v6608 = vmax.f32 %v6268, 0.0
    %v6609 = vmax.f32 %v6271, 0.0
    %v6610 = vmax.f32 %v6276, 0.0
    %v6611 = vmax.f32 %v6279, 0.0
    %v6612 = vmax.f32 %v6284, 0.0
    %v6613 = vmax.f32 %v6287, 0.0
    %v6614 = vmax.f32 %v6292, 0.0
    %v6615 = vmax.f32 %v6295, 0.0
    %v6616 = vmax.f32 %v6300, 0.0
    %v6617 = vmax.f32 %v6303, 0.0
    %v6618 = vmax.f32 %v6308, 0.0
    %v6619 = vmax.f32 %v6311, 0.0
    %v6620 = vmax.f32 %v6316, 0.0
    %v6621 = vmax.f32 %v6319, 0.0
    %v6622 = vmax.f32 %v6324, 0.0
    %v6623 = vmax.f32 %v6327, 0.0
    %v6624 = vmax.f32 %v6332, 0.0
    %v6625 = vmax.f32 %v6335, 0.0
    %v6626 = vmax.f32 %v6340, 0.0
    %v6627 = vmax.f32 %v6343, 0.0
    %v6628 = vmax.f32 %v6348, 0.0
    %v6629 = vmax.f32 %v6351, 0.0
    %v6630 = vmax.f32 %v6356, 0.0
    %v6631 = vmax.f32 %v6359, 0.0
    %v6632 = vmax.f32 %v6364, 0.0
    %v6633 = vmax.f32 %v6367, 0.0
    %v6634 = vmax.f32 %v6372, 0.0
    %v6635 = vmax.f32 %v6375, 0.0
    %v6636 = vmax.f32 %v6380, 0.0
    %v6637 = vmax.f32 %v6383, 0.0
    %v6638 = vmax.f32 %v6388, 0.0
    %v6639 = vmax.f32 %v6391, 0.0
    %v6640 = vmax.f32 %v6396, 0.0
    %v6641 = vmax.f32 %v6399, 0.0
    %v6642 = vmax.f32 %v6404, 0.0
    %v6643 = vmax.f32 %v6407, 0.0
    %v6644 = vmax.f32 %v6412, 0.0
    %v6645 = vmax.f32 %v6415, 0.0
    %v6646 = vmax.f32 %v6420, 0.0
    %v6647 = vmax.f32 %v6423, 0.0
    %v6648 = vmax.f32 %v6428, 0.0
    %v6649 = vmax.f32 %v6431, 0.0
    %v6650 = vmax.f32 %v6436, 0.0
    %v6651 = vmax.f32 %v6439, 0.0
    %v6652 = vmax.f32 %v6444, 0.0
    %v6653 = vmax.f32 %v6447, 0.0
    %v6654 = vmax.f32 %v6452, 0.0
    %v6655 = vmax.f32 %v6455, 0.0
    %v6656 = vmax.f32 %v6460, 0.0
    %v6657 = vmax.f32 %v6463, 0.0
    %v6658 = vmax.f32 %v6468, 0.0
    %v6659 = vmax.f32 %v6471, 0.0
    %v6660 = vmax.f32 %v6476, 0.0
    %v6661 = vmax.f32 %v6479, 0.0
    %v6662 = vmax.f32 %v6484, 0.0
    %v6663 = vmax.f32 %v6487, 0.0
    %v6664 = vmax.f32 %v6492, 0.0
    %v6665 = vmax.f32 %v6495, 0.0
    %v6666 = vmax.f32 %v6500, 0.0
    %v6667 = vmax.f32 %v6503, 0.0
    %v6668 = vmax.f32 %v6508, 0.0
    %v6669 = vmax.f32 %v6511, 0.0
    %v6670 = vmax.f32 %v6516, 0.0
    %v6671 = vmax.f32 %v6519, 0.0
    %v6672 = vmax.f32 %v6524, 0.0
    %v6673 = vmax.f32 %v6527, 0.0
    %v6674 = vmax.f32 %v6532, 0.0
    %v6675 = vmax.f32 %v6535, 0.0
    %v6676 = vmax.f32 %v6540, 0.0
    %v6677 = vmax.f32 %v6543, 0.0
    %v6678 = vmax.f32 %v6548, 0.0
    %v6679 = vmax.f32 %v6551, 0.0
    %v6680 = vmax.f32 %v6556, 0.0
    %v6681 = vmax.f32 %v6559, 0.0
    %v6682 = vmax.f32 %v6564, 0.0
    %v6683 = vmax.f32 %v6567, 0.0
    %v6684 = vmax.f32 %v6572, 0.0
    %v6685 = vmax.f32 %v6575, 0.0
    %v6686 = vpack.c.bf16 %v6579, %v6578
    %v6687 = vpack.c.bf16 %v6581, %v6580
    %v6688 = vpack.c.bf16 %v6583, %v6582
    %v6689 = vpack.c.bf16 %v6585, %v6584
    %v6690 = vpack.c.bf16 %v6587, %v6586
    %v6691 = vpack.c.bf16 %v6589, %v6588
    %v6692 = vpack.c.bf16 %v6591, %v6590
    %v6693 = vpack.c.bf16 %v6593, %v6592
    %v6694 = vpack.c.bf16 %v6595, %v6594
    %v6695 = vpack.c.bf16 %v6597, %v6596
    %v6696 = vpack.c.bf16 %v6599, %v6598
    %v6697 = vpack.c.bf16 %v6601, %v6600
    %v6698 = vpack.c.bf16 %v6603, %v6602
    %v6699 = vpack.c.bf16 %v6605, %v6604
    %v6700 = vpack.c.bf16 %v6607, %v6606
    %v6701 = vpack.c.bf16 %v6609, %v6608
    %v6702 = vpack.c.bf16 %v6611, %v6610
    %v6703 = vpack.c.bf16 %v6613, %v6612
    %v6704 = vpack.c.bf16 %v6615, %v6614
    %v6705 = vpack.c.bf16 %v6617, %v6616
    %v6706 = vpack.c.bf16 %v6619, %v6618
    %v6707 = vpack.c.bf16 %v6621, %v6620
    %v6708 = vpack.c.bf16 %v6623, %v6622
    %v6709 = vpack.c.bf16 %v6625, %v6624
    %v6710 = vpack.c.bf16 %v6627, %v6626
    %v6711 = vpack.c.bf16 %v6629, %v6628
    %v6712 = vpack.c.bf16 %v6631, %v6630
    %v6713 = vpack.c.bf16 %v6633, %v6632
    %v6714 = vpack.c.bf16 %v6635, %v6634
    %v6715 = vpack.c.bf16 %v6637, %v6636
    %v6716 = vpack.c.bf16 %v6639, %v6638
    %v6717 = vpack.c.bf16 %v6641, %v6640
    %v6718 = vpack.c.bf16 %v6643, %v6642
    %v6719 = vpack.c.bf16 %v6645, %v6644
    %v6720 = vpack.c.bf16 %v6647, %v6646
    %v6721 = vpack.c.bf16 %v6649, %v6648
    %v6722 = vpack.c.bf16 %v6651, %v6650
    %v6723 = vpack.c.bf16 %v6653, %v6652
    %v6724 = vpack.c.bf16 %v6655, %v6654
    %v6725 = vpack.c.bf16 %v6657, %v6656
    %v6726 = vpack.c.bf16 %v6659, %v6658
    %v6727 = vpack.c.bf16 %v6661, %v6660
    %v6728 = vpack.c.bf16 %v6663, %v6662
    %v6729 = vpack.c.bf16 %v6665, %v6664
    %v6730 = vpack.c.bf16 %v6667, %v6666
    %v6731 = vpack.c.bf16 %v6669, %v6668
    %v6732 = vpack.c.bf16 %v6671, %v6670
    %v6733 = vpack.c.bf16 %v6673, %v6672
    %v6734 = vpack.c.bf16 %v6675, %v6674
    %v6735 = vpack.c.bf16 %v6677, %v6676
    %v6736 = vpack.c.bf16 %v6679, %v6678
    %v6737 = vpack.c.bf16 %v6681, %v6680
    %v6738 = vpack.c.bf16 %v6683, %v6682
    %v6739 = vpack.c.bf16 %v6685, %v6684
    %v6740 = vld [vmem:[#allocation8] sm:$0xf]
    %v6741 = vld [vmem:[#allocation8 + $0x4] sm:$0xf]
    %v6742 = vld [vmem:[#allocation8 + $0x8] sm:$0xf]
    %v6743 = vld [vmem:[#allocation8 + $0xc] sm:$0xf]
    %v6744 = vld [vmem:[#allocation8 + $0x10] sm:$0xf]
    %v6745 = vld [vmem:[#allocation8 + $0x14] sm:$0xf]
    %v6746 = vld [vmem:[#allocation8 + $0x18] sm:$0xf]
    %v6747 = vld [vmem:[#allocation8 + $0x1c] sm:$0xf]
    %v6748 = vld [vmem:[#allocation8 + $0x20] sm:$0xf]
    %v6749 = vld [vmem:[#allocation8 + $0x24] sm:$0xf]
    %v6750 = vld [vmem:[#allocation8 + $0x28] sm:$0xf]
    %v6751 = vld [vmem:[#allocation8 + $0x2c] sm:$0xf]
    %v6752 = vld [vmem:[#allocation8 + $0x30] sm:$0xf]
    %v6753 = vld [vmem:[#allocation8 + $0x34] sm:$0xf]
    %v6754 = vld [vmem:[#allocation8 + $0x38] sm:$0xf]
    %v6755 = vld [vmem:[#allocation8 + $0x3c] sm:$0xf]
    %v6756 = vld [vmem:[%s5] sm:$0x1]
    %v6758 = vlaneseq
    %v6759 = vshrl.u32 %v6758, 7
    %v6760 = vsub.s32 0, %v6759
    %v6761 = vrot.slane %v6756, %v6760
    %v6779 = vunpack.c.l.b16 %v6740
    %v6780 = vunpack.c.l.b16 %v6741
    %v6781 = vunpack.c.l.b16 %v6742
    %v6782 = vunpack.c.l.b16 %v6743
    %v6783 = vunpack.c.l.b16 %v6744
    %v6784 = vunpack.c.l.b16 %v6745
    %v6785 = vunpack.c.l.b16 %v6746
    %v6786 = vunpack.c.l.b16 %v6747
    %v6787 = vunpack.c.l.b16 %v6748
    %v6788 = vunpack.c.l.b16 %v6749
    %v6789 = vunpack.c.l.b16 %v6750
    %v6790 = vunpack.c.l.b16 %v6751
    %v6791 = vunpack.c.l.b16 %v6752
    %v6792 = vunpack.c.l.b16 %v6753
    %v6793 = vunpack.c.l.b16 %v6754
    %v6794 = vunpack.c.l.b16 %v6755
    %v6795 = vpack.c.b16 %v6780, %v6779
    %v6796 = vpack.c.b16 %v6782, %v6781
    %v6797 = vpack.c.b16 %v6784, %v6783
    %v6798 = vpack.c.b16 %v6786, %v6785
    %v6799 = vpack.c.b16 %v6788, %v6787
    %v6800 = vpack.c.b16 %v6790, %v6789
    %v6801 = vpack.c.b16 %v6792, %v6791
    %v6802 = vpack.c.b16 %v6794, %v6793
    %6811 = vmatprep.subr.bf16.mxu0 0
    %6812 = vmatpush1.bf16.msra.mxu0 %v6795
    %6813 = vmatprep.subr.bf16.mxu0 0
    %6814 = vmatpush1.bf16.msra.mxu0 %v6796
    %6815 = vmatprep.subr.bf16.mxu0 0
    %6816 = vmatpush1.bf16.msra.mxu0 %v6797
    %6817 = vmatprep.subr.bf16.mxu0 0
    %6818 = vmatpush1.bf16.msra.mxu0 %v6798
    %6819 = vmatprep.subr.bf16.mxu0 0
    %6820 = vmatpush1.bf16.msra.mxu0 %v6799
    %6821 = vmatprep.subr.bf16.mxu0 0
    %6822 = vmatpush1.bf16.msra.mxu0 %v6800
    %6823 = vmatprep.subr.bf16.mxu0 0
    %6824 = vmatpush1.bf16.msra.mxu0 %v6801
    %6825 = vmatprep.subr.bf16.mxu0 0
    %6826 = vmatpush1.bf16.msra.mxu0 %v6802
    %6827 = vmatprep.subr.bf16.mxu0 0
    %6828 = vmatpush1.bf16.msra.mxu0 0
    %6829 = vmatprep.subr.bf16.mxu0 0
    %6830 = vmatpush1.bf16.msra.mxu0 0
    %6831 = vmatprep.subr.bf16.mxu0 0
    %6832 = vmatpush1.bf16.msra.mxu0 0
    %6833 = vmatprep.subr.bf16.mxu0 0
    %6834 = vmatpush1.bf16.msra.mxu0 0
    %6835 = vmatprep.subr.bf16.mxu0 0
    %6836 = vmatpush1.bf16.msra.mxu0 0
    %6837 = vmatprep.subr.bf16.mxu0 0
    %6838 = vmatpush1.bf16.msra.mxu0 0
    %6839 = vmatprep.subr.bf16.mxu0 0
    %6840 = vmatpush1.bf16.msra.mxu0 0
    %6841 = vmatprep.subr.bf16.mxu0 0
    %6842 = vmatpush1.bf16.msra.mxu0 0
    %6843 = vmatprep.mubr.bf16.mxu0 0
    %6844 = vmatmul.mubr.bf16.gmra.mrb[0].mxu0 %v6686
    %v6845 = vpop.f32.mrb[0].mxu0
    %v6846 = vadd.f32 %v6761, %v6845
    %v6847 = vpop.f32.mrb[0].mxu0
    %v6848 = vpop.f32.mrb[0].mxu0
    %v6849 = vadd.f32 %v6761, %v6848
    %v6850 = vpop.f32.mrb[0].mxu0
    %6851 = vmatprep.mubr.bf16.mxu0 0
    %6852 = vmatmul.mubr.bf16.gmra.mrb[0].mxu0 %v6687
    %v6853 = vpop.f32.mrb[0].mxu0
    %v6854 = vadd.f32 %v6761, %v6853
    %v6855 = vpop.f32.mrb[0].mxu0
    %v6856 = vpop.f32.mrb[0].mxu0
    %v6857 = vadd.f32 %v6761, %v6856
    %v6858 = vpop.f32.mrb[0].mxu0
    %6859 = vmatprep.mubr.bf16.mxu0 0
    %6860 = vmatmul.mubr.bf16.gmra.mrb[0].mxu0 %v6688
    %v6861 = vpop.f32.mrb[0].mxu0
    %v6862 = vadd.f32 %v6761, %v6861
    %v6863 = vpop.f32.mrb[0].mxu0
    %v6864 = vpop.f32.mrb[0].mxu0
    %v6865 = vadd.f32 %v6761, %v6864
    %v6866 = vpop.f32.mrb[0].mxu0
    %6867 = vmatprep.mubr.bf16.mxu0 0
    %6868 = vmatmul.mubr.bf16.gmra.mrb[0].mxu0 %v6689
    %v6869 = vpop.f32.mrb[0].mxu0
    %v6870 = vadd.f32 %v6761, %v6869
    %v6871 = vpop.f32.mrb[0].mxu0
    %v6872 = vpop.f32.mrb[0].mxu0
    %v6873 = vadd.f32 %v6761, %v6872
    %v6874 = vpop.f32.mrb[0].mxu0
    %6875 = vmatprep.mubr.bf16.mxu0 0
    %6876 = vmatmul.mubr.bf16.gmra.mrb[0].mxu0 %v6690
    %v6877 = vpop.f32.mrb[0].mxu0
    %v6878 = vadd.f32 %v6761, %v6877
    %v6879 = vpop.f32.mrb[0].mxu0
    %v6880 = vpop.f32.mrb[0].mxu0
    %v6881 = vadd.f32 %v6761, %v6880
    %v6882 = vpop.f32.mrb[0].mxu0
    %6883 = vmatprep.mubr.bf16.mxu0 0
    %6884 = vmatmul.mubr.bf16.gmra.mrb[0].mxu0 %v6691
    %v6885 = vpop.f32.mrb[0].mxu0
    %v6886 = vadd.f32 %v6761, %v6885
    %v6887 = vpop.f32.mrb[0].mxu0
    %v6888 = vpop.f32.mrb[0].mxu0
    %v6889 = vadd.f32 %v6761, %v6888
    %v6890 = vpop.f32.mrb[0].mxu0
    %6891 = vmatprep.mubr.bf16.mxu0 0
    %6892 = vmatmul.mubr.bf16.gmra.mrb[0].mxu0 %v6692
    %v6893 = vpop.f32.mrb[0].mxu0
    %v6894 = vadd.f32 %v6761, %v6893
    %v6895 = vpop.f32.mrb[0].mxu0
    %v6896 = vpop.f32.mrb[0].mxu0
    %v6897 = vadd.f32 %v6761, %v6896
    %v6898 = vpop.f32.mrb[0].mxu0
    %6899 = vmatprep.mubr.bf16.mxu0 0
    %6900 = vmatmul.mubr.bf16.gmra.mrb[0].mxu0 %v6693
    %v6901 = vpop.f32.mrb[0].mxu0
    %v6902 = vadd.f32 %v6761, %v6901
    %v6903 = vpop.f32.mrb[0].mxu0
    %v6904 = vpop.f32.mrb[0].mxu0
    %v6905 = vadd.f32 %v6761, %v6904
    %v6906 = vpop.f32.mrb[0].mxu0
    %6907 = vmatprep.mubr.bf16.mxu0 0
    %6908 = vmatmul.mubr.bf16.gmra.mrb[0].mxu0 %v6694
    %v6909 = vpop.f32.mrb[0].mxu0
    %v6910 = vadd.f32 %v6761, %v6909
    %v6911 = vpop.f32.mrb[0].mxu0
    %v6912 = vpop.f32.mrb[0].mxu0
    %v6913 = vadd.f32 %v6761, %v6912
    %v6914 = vpop.f32.mrb[0].mxu0
    %6915 = vmatprep.mubr.bf16.mxu0 0
    %6916 = vmatmul.mubr.bf16.gmra.mrb[0].mxu0 %v6695
    %v6917 = vpop.f32.mrb[0].mxu0
    %v6918 = vadd.f32 %v6761, %v6917
    %v6919 = vpop.f32.mrb[0].mxu0
    %v6920 = vpop.f32.mrb[0].mxu0
    %v6921 = vadd.f32 %v6761, %v6920
    %v6922 = vpop.f32.mrb[0].mxu0
    %6923 = vmatprep.mubr.bf16.mxu0 0
    %6924 = vmatmul.mubr.bf16.gmra.mrb[0].mxu0 %v6696
    %v6925 = vpop.f32.mrb[0].mxu0
    %v6926 = vadd.f32 %v6761, %v6925
    %v6927 = vpop.f32.mrb[0].mxu0
    %v6928 = vpop.f32.mrb[0].mxu0
    %v6929 = vadd.f32 %v6761, %v6928
    %v6930 = vpop.f32.mrb[0].mxu0
    %6931 = vmatprep.mubr.bf16.mxu0 0
    %6932 = vmatmul.mubr.bf16.gmra.mrb[0].mxu0 %v6697
    %v6933 = vpop.f32.mrb[0].mxu0
    %v6934 = vadd.f32 %v6761, %v6933
    %v6935 = vpop.f32.mrb[0].mxu0
    %v6936 = vpop.f32.mrb[0].mxu0
    %v6937 = vadd.f32 %v6761, %v6936
    %v6938 = vpop.f32.mrb[0].mxu0
    %6939 = vmatprep.mubr.bf16.mxu0 0
    %6940 = vmatmul.mubr.bf16.gmra.mrb[0].mxu0 %v6698
    %v6941 = vpop.f32.mrb[0].mxu0
    %v6942 = vadd.f32 %v6761, %v6941
    %v6943 = vpop.f32.mrb[0].mxu0
    %v6944 = vpop.f32.mrb[0].mxu0
    %v6945 = vadd.f32 %v6761, %v6944
    %v6946 = vpop.f32.mrb[0].mxu0
    %6947 = vmatprep.mubr.bf16.mxu0 0
    %6948 = vmatmul.mubr.bf16.gmra.mrb[0].mxu0 %v6699
    %v6949 = vpop.f32.mrb[0].mxu0
    %v6950 = vadd.f32 %v6761, %v6949
    %v6951 = vpop.f32.mrb[0].mxu0
    %v6952 = vpop.f32.mrb[0].mxu0
    %v6953 = vadd.f32 %v6761, %v6952
    %v6954 = vpop.f32.mrb[0].mxu0
    %6955 = vmatprep.mubr.bf16.mxu0 0
    %6956 = vmatmul.mubr.bf16.gmra.mrb[0].mxu0 %v6700
    %v6957 = vpop.f32.mrb[0].mxu0
    %v6958 = vadd.f32 %v6761, %v6957
    %v6959 = vpop.f32.mrb[0].mxu0
    %v6960 = vpop.f32.mrb[0].mxu0
    %v6961 = vadd.f32 %v6761, %v6960
    %v6962 = vpop.f32.mrb[0].mxu0
    %6963 = vmatprep.mubr.bf16.mxu0 0
    %6964 = vmatmul.mubr.bf16.gmra.mrb[0].mxu0 %v6701
    %v6965 = vpop.f32.mrb[0].mxu0
    %v6966 = vadd.f32 %v6761, %v6965
    %v6967 = vpop.f32.mrb[0].mxu0
    %v6968 = vpop.f32.mrb[0].mxu0
    %v6969 = vadd.f32 %v6761, %v6968
    %v6970 = vpop.f32.mrb[0].mxu0
    %6971 = vmatprep.mubr.bf16.mxu0 0
    %6972 = vmatmul.mubr.bf16.gmra.mrb[0].mxu0 %v6702
    %v6973 = vpop.f32.mrb[0].mxu0
    %v6974 = vadd.f32 %v6761, %v6973
    %v6975 = vpop.f32.mrb[0].mxu0
    %v6976 = vpop.f32.mrb[0].mxu0
    %v6977 = vadd.f32 %v6761, %v6976
    %v6978 = vpop.f32.mrb[0].mxu0
    %6979 = vmatprep.mubr.bf16.mxu0 0
    %6980 = vmatmul.mubr.bf16.gmra.mrb[0].mxu0 %v6703
    %v6981 = vpop.f32.mrb[0].mxu0
    %v6982 = vadd.f32 %v6761, %v6981
    %v6983 = vpop.f32.mrb[0].mxu0
    %v6984 = vpop.f32.mrb[0].mxu0
    %v6985 = vadd.f32 %v6761, %v6984
    %v6986 = vpop.f32.mrb[0].mxu0
    %6987 = vmatprep.mubr.bf16.mxu0 0
    %6988 = vmatmul.mubr.bf16.gmra.mrb[0].mxu0 %v6704
    %v6989 = vpop.f32.mrb[0].mxu0
    %v6990 = vadd.f32 %v6761, %v6989
    %v6991 = vpop.f32.mrb[0].mxu0
    %v6992 = vpop.f32.mrb[0].mxu0
    %v6993 = vadd.f32 %v6761, %v6992
    %v6994 = vpop.f32.mrb[0].mxu0
    %6995 = vmatprep.mubr.bf16.mxu0 0
    %6996 = vmatmul.mubr.bf16.gmra.mrb[0].mxu0 %v6705
    %v6997 = vpop.f32.mrb[0].mxu0
    %v6998 = vadd.f32 %v6761, %v6997
    %v6999 = vpop.f32.mrb[0].mxu0
    %v7000 = vpop.f32.mrb[0].mxu0
    %v7001 = vadd.f32 %v6761, %v7000
    %v7002 = vpop.f32.mrb[0].mxu0
    %7003 = vmatprep.mubr.bf16.mxu0 0
    %7004 = vmatmul.mubr.bf16.gmra.mrb[0].mxu0 %v6706
    %v7005 = vpop.f32.mrb[0].mxu0
    %v7006 = vadd.f32 %v6761, %v7005
    %v7007 = vpop.f32.mrb[0].mxu0
    %v7008 = vpop.f32.mrb[0].mxu0
    %v7009 = vadd.f32 %v6761, %v7008
    %v7010 = vpop.f32.mrb[0].mxu0
    %7011 = vmatprep.mubr.bf16.mxu0 0
    %7012 = vmatmul.mubr.bf16.gmra.mrb[0].mxu0 %v6707
    %v7013 = vpop.f32.mrb[0].mxu0
    %v7014 = vadd.f32 %v6761, %v7013
    %v7015 = vpop.f32.mrb[0].mxu0
    %v7016 = vpop.f32.mrb[0].mxu0
    %v7017 = vadd.f32 %v6761, %v7016
    %v7018 = vpop.f32.mrb[0].mxu0
    %7019 = vmatprep.mubr.bf16.mxu0 0
    %7020 = vmatmul.mubr.bf16.gmra.mrb[0].mxu0 %v6708
    %v7021 = vpop.f32.mrb[0].mxu0
    %v7022 = vadd.f32 %v6761, %v7021
    %v7023 = vpop.f32.mrb[0].mxu0
    %v7024 = vpop.f32.mrb[0].mxu0
    %v7025 = vadd.f32 %v6761, %v7024
    %v7026 = vpop.f32.mrb[0].mxu0
    %7027 = vmatprep.mubr.bf16.mxu0 0
    %7028 = vmatmul.mubr.bf16.gmra.mrb[0].mxu0 %v6709
    %v7029 = vpop.f32.mrb[0].mxu0
    %v7030 = vadd.f32 %v6761, %v7029
    %v7031 = vpop.f32.mrb[0].mxu0
    %v7032 = vpop.f32.mrb[0].mxu0
    %v7033 = vadd.f32 %v6761, %v7032
    %v7034 = vpop.f32.mrb[0].mxu0
    %7035 = vmatprep.mubr.bf16.mxu0 0
    %7036 = vmatmul.mubr.bf16.gmra.mrb[0].mxu0 %v6710
    %v7037 = vpop.f32.mrb[0].mxu0
    %v7038 = vadd.f32 %v6761, %v7037
    %v7039 = vpop.f32.mrb[0].mxu0
    %v7040 = vpop.f32.mrb[0].mxu0
    %v7041 = vadd.f32 %v6761, %v7040
    %v7042 = vpop.f32.mrb[0].mxu0
    %7043 = vmatprep.mubr.bf16.mxu0 0
    %7044 = vmatmul.mubr.bf16.gmra.mrb[0].mxu0 %v6711
    %v7045 = vpop.f32.mrb[0].mxu0
    %v7046 = vadd.f32 %v6761, %v7045
    %v7047 = vpop.f32.mrb[0].mxu0
    %v7048 = vpop.f32.mrb[0].mxu0
    %v7049 = vadd.f32 %v6761, %v7048
    %v7050 = vpop.f32.mrb[0].mxu0
    %7051 = vmatprep.mubr.bf16.mxu0 0
    %7052 = vmatmul.mubr.bf16.gmra.mrb[0].mxu0 %v6712
    %v7053 = vpop.f32.mrb[0].mxu0
    %v7054 = vadd.f32 %v6761, %v7053
    %v7055 = vpop.f32.mrb[0].mxu0
    %v7056 = vpop.f32.mrb[0].mxu0
    %v7057 = vadd.f32 %v6761, %v7056
    %v7058 = vpop.f32.mrb[0].mxu0
    %7059 = vmatprep.mubr.bf16.mxu0 0
    %7060 = vmatmul.mubr.bf16.gmra.mrb[0].mxu0 %v6713
    %v7061 = vpop.f32.mrb[0].mxu0
    %v7062 = vadd.f32 %v6761, %v7061
    %v7063 = vpop.f32.mrb[0].mxu0
    %v7064 = vpop.f32.mrb[0].mxu0
    %v7065 = vadd.f32 %v6761, %v7064
    %v7066 = vpop.f32.mrb[0].mxu0
    %7067 = vmatprep.mubr.bf16.mxu0 0
    %7068 = vmatmul.mubr.bf16.gmra.mrb[0].mxu0 %v6714
    %v7069 = vpop.f32.mrb[0].mxu0
    %v7070 = vadd.f32 %v6761, %v7069
    %v7071 = vpop.f32.mrb[0].mxu0
    %v7072 = vpop.f32.mrb[0].mxu0
    %v7073 = vadd.f32 %v6761, %v7072
    %v7074 = vpop.f32.mrb[0].mxu0
    %7075 = vmatprep.mubr.bf16.mxu0 0
    %7076 = vmatmul.mubr.bf16.gmra.mrb[0].mxu0 %v6715
    %v7077 = vpop.f32.mrb[0].mxu0
    %v7078 = vadd.f32 %v6761, %v7077
    %v7079 = vpop.f32.mrb[0].mxu0
    %v7080 = vpop.f32.mrb[0].mxu0
    %v7081 = vadd.f32 %v6761, %v7080
    %v7082 = vpop.f32.mrb[0].mxu0
    %7083 = vmatprep.mubr.bf16.mxu0 0
    %7084 = vmatmul.mubr.bf16.gmra.mrb[0].mxu0 %v6716
    %v7085 = vpop.f32.mrb[0].mxu0
    %v7086 = vadd.f32 %v6761, %v7085
    %v7087 = vpop.f32.mrb[0].mxu0
    %v7088 = vpop.f32.mrb[0].mxu0
    %v7089 = vadd.f32 %v6761, %v7088
    %v7090 = vpop.f32.mrb[0].mxu0
    %7091 = vmatprep.mubr.bf16.mxu0 0
    %7092 = vmatmul.mubr.bf16.gmra.mrb[0].mxu0 %v6717
    %v7093 = vpop.f32.mrb[0].mxu0
    %v7094 = vadd.f32 %v6761, %v7093
    %v7095 = vpop.f32.mrb[0].mxu0
    %v7096 = vpop.f32.mrb[0].mxu0
    %v7097 = vadd.f32 %v6761, %v7096
    %v7098 = vpop.f32.mrb[0].mxu0
    %7099 = vmatprep.mubr.bf16.mxu0 0
    %7100 = vmatmul.mubr.bf16.gmra.mrb[0].mxu0 %v6718
    %v7101 = vpop.f32.mrb[0].mxu0
    %v7102 = vadd.f32 %v6761, %v7101
    %v7103 = vpop.f32.mrb[0].mxu0
    %v7104 = vpop.f32.mrb[0].mxu0
    %v7105 = vadd.f32 %v6761, %v7104
    %v7106 = vpop.f32.mrb[0].mxu0
    %7107 = vmatprep.mubr.bf16.mxu0 0
    %7108 = vmatmul.mubr.bf16.gmra.mrb[0].mxu0 %v6719
    %v7109 = vpop.f32.mrb[0].mxu0
    %v7110 = vadd.f32 %v6761, %v7109
    %v7111 = vpop.f32.mrb[0].mxu0
    %v7112 = vpop.f32.mrb[0].mxu0
    %v7113 = vadd.f32 %v6761, %v7112
    %v7114 = vpop.f32.mrb[0].mxu0
    %7115 = vmatprep.mubr.bf16.mxu0 0
    %7116 = vmatmul.mubr.bf16.gmra.mrb[0].mxu0 %v6720
    %v7117 = vpop.f32.mrb[0].mxu0
    %v7118 = vadd.f32 %v6761, %v7117
    %v7119 = vpop.f32.mrb[0].mxu0
    %v7120 = vpop.f32.mrb[0].mxu0
    %v7121 = vadd.f32 %v6761, %v7120
    %v7122 = vpop.f32.mrb[0].mxu0
    %7123 = vmatprep.mubr.bf16.mxu0 0
    %7124 = vmatmul.mubr.bf16.gmra.mrb[0].mxu0 %v6721
    %v7125 = vpop.f32.mrb[0].mxu0
    %v7126 = vadd.f32 %v6761, %v7125
    %v7127 = vpop.f32.mrb[0].mxu0
    %v7128 = vpop.f32.mrb[0].mxu0
    %v7129 = vadd.f32 %v6761, %v7128
    %v7130 = vpop.f32.mrb[0].mxu0
    %7131 = vmatprep.mubr.bf16.mxu0 0
    %7132 = vmatmul.mubr.bf16.gmra.mrb[0].mxu0 %v6722
    %v7133 = vpop.f32.mrb[0].mxu0
    %v7134 = vadd.f32 %v6761, %v7133
    %v7135 = vpop.f32.mrb[0].mxu0
    %v7136 = vpop.f32.mrb[0].mxu0
    %v7137 = vadd.f32 %v6761, %v7136
    %v7138 = vpop.f32.mrb[0].mxu0
    %7139 = vmatprep.mubr.bf16.mxu0 0
    %7140 = vmatmul.mubr.bf16.gmra.mrb[0].mxu0 %v6723
    %v7141 = vpop.f32.mrb[0].mxu0
    %v7142 = vadd.f32 %v6761, %v7141
    %v7143 = vpop.f32.mrb[0].mxu0
    %v7144 = vpop.f32.mrb[0].mxu0
    %v7145 = vadd.f32 %v6761, %v7144
    %v7146 = vpop.f32.mrb[0].mxu0
    %7147 = vmatprep.mubr.bf16.mxu0 0
    %7148 = vmatmul.mubr.bf16.gmra.mrb[0].mxu0 %v6724
    %v7149 = vpop.f32.mrb[0].mxu0
    %v7150 = vadd.f32 %v6761, %v7149
    %v7151 = vpop.f32.mrb[0].mxu0
    %v7152 = vpop.f32.mrb[0].mxu0
    %v7153 = vadd.f32 %v6761, %v7152
    %v7154 = vpop.f32.mrb[0].mxu0
    %7155 = vmatprep.mubr.bf16.mxu0 0
    %7156 = vmatmul.mubr.bf16.gmra.mrb[0].mxu0 %v6725
    %v7157 = vpop.f32.mrb[0].mxu0
    %v7158 = vadd.f32 %v6761, %v7157
    %v7159 = vpop.f32.mrb[0].mxu0
    %v7160 = vpop.f32.mrb[0].mxu0
    %v7161 = vadd.f32 %v6761, %v7160
    %v7162 = vpop.f32.mrb[0].mxu0
    %7163 = vmatprep.mubr.bf16.mxu0 0
    %7164 = vmatmul.mubr.bf16.gmra.mrb[0].mxu0 %v6726
    %v7165 = vpop.f32.mrb[0].mxu0
    %v7166 = vadd.f32 %v6761, %v7165
    %v7167 = vpop.f32.mrb[0].mxu0
    %v7168 = vpop.f32.mrb[0].mxu0
    %v7169 = vadd.f32 %v6761, %v7168
    %v7170 = vpop.f32.mrb[0].mxu0
    %7171 = vmatprep.mubr.bf16.mxu0 0
    %7172 = vmatmul.mubr.bf16.gmra.mrb[0].mxu0 %v6727
    %v7173 = vpop.f32.mrb[0].mxu0
    %v7174 = vadd.f32 %v6761, %v7173
    %v7175 = vpop.f32.mrb[0].mxu0
    %v7176 = vpop.f32.mrb[0].mxu0
    %v7177 = vadd.f32 %v6761, %v7176
    %v7178 = vpop.f32.mrb[0].mxu0
    %7179 = vmatprep.mubr.bf16.mxu0 0
    %7180 = vmatmul.mubr.bf16.gmra.mrb[0].mxu0 %v6728
    %v7181 = vpop.f32.mrb[0].mxu0
    %v7182 = vadd.f32 %v6761, %v7181
    %v7183 = vpop.f32.mrb[0].mxu0
    %v7184 = vpop.f32.mrb[0].mxu0
    %v7185 = vadd.f32 %v6761, %v7184
    %v7186 = vpop.f32.mrb[0].mxu0
    %7187 = vmatprep.mubr.bf16.mxu0 0
    %7188 = vmatmul.mubr.bf16.gmra.mrb[0].mxu0 %v6729
    %v7189 = vpop.f32.mrb[0].mxu0
    %v7190 = vadd.f32 %v6761, %v7189
    %v7191 = vpop.f32.mrb[0].mxu0
    %v7192 = vpop.f32.mrb[0].mxu0
    %v7193 = vadd.f32 %v6761, %v7192
    %v7194 = vpop.f32.mrb[0].mxu0
    %7195 = vmatprep.mubr.bf16.mxu0 0
    %7196 = vmatmul.mubr.bf16.gmra.mrb[0].mxu0 %v6730
    %v7197 = vpop.f32.mrb[0].mxu0
    %v7198 = vadd.f32 %v6761, %v7197
    %v7199 = vpop.f32.mrb[0].mxu0
    %v7200 = vpop.f32.mrb[0].mxu0
    %v7201 = vadd.f32 %v6761, %v7200
    %v7202 = vpop.f32.mrb[0].mxu0
    %7203 = vmatprep.mubr.bf16.mxu0 0
    %7204 = vmatmul.mubr.bf16.gmra.mrb[0].mxu0 %v6731
    %v7205 = vpop.f32.mrb[0].mxu0
    %v7206 = vadd.f32 %v6761, %v7205
    %v7207 = vpop.f32.mrb[0].mxu0
    %v7208 = vpop.f32.mrb[0].mxu0
    %v7209 = vadd.f32 %v6761, %v7208
    %v7210 = vpop.f32.mrb[0].mxu0
    %7211 = vmatprep.mubr.bf16.mxu0 0
    %7212 = vmatmul.mubr.bf16.gmra.mrb[0].mxu0 %v6732
    %v7213 = vpop.f32.mrb[0].mxu0
    %v7214 = vadd.f32 %v6761, %v7213
    %v7215 = vpop.f32.mrb[0].mxu0
    %v7216 = vpop.f32.mrb[0].mxu0
    %v7217 = vadd.f32 %v6761, %v7216
    %v7218 = vpop.f32.mrb[0].mxu0
    %7219 = vmatprep.mubr.bf16.mxu0 0
    %7220 = vmatmul.mubr.bf16.gmra.mrb[0].mxu0 %v6733
    %v7221 = vpop.f32.mrb[0].mxu0
    %v7222 = vadd.f32 %v6761, %v7221
    %v7223 = vpop.f32.mrb[0].mxu0
    %v7224 = vpop.f32.mrb[0].mxu0
    %v7225 = vadd.f32 %v6761, %v7224
    %v7226 = vpop.f32.mrb[0].mxu0
    %7227 = vmatprep.mubr.bf16.mxu0 0
    %7228 = vmatmul.mubr.bf16.gmra.mrb[0].mxu0 %v6734
    %v7229 = vpop.f32.mrb[0].mxu0
    %v7230 = vadd.f32 %v6761, %v7229
    %v7231 = vpop.f32.mrb[0].mxu0
    %v7232 = vpop.f32.mrb[0].mxu0
    %v7233 = vadd.f32 %v6761, %v7232
    %v7234 = vpop.f32.mrb[0].mxu0
    %7235 = vmatprep.mubr.bf16.mxu0 0
    %7236 = vmatmul.mubr.bf16.gmra.mrb[0].mxu0 %v6735
    %v7237 = vpop.f32.mrb[0].mxu0
    %v7238 = vadd.f32 %v6761, %v7237
    %v7239 = vpop.f32.mrb[0].mxu0
    %v7240 = vpop.f32.mrb[0].mxu0
    %v7241 = vadd.f32 %v6761, %v7240
    %v7242 = vpop.f32.mrb[0].mxu0
    %7243 = vmatprep.mubr.bf16.mxu0 0
    %7244 = vmatmul.mubr.bf16.gmra.mrb[0].mxu0 %v6736
    %v7245 = vpop.f32.mrb[0].mxu0
    %v7246 = vadd.f32 %v6761, %v7245
    %v7247 = vpop.f32.mrb[0].mxu0
    %v7248 = vpop.f32.mrb[0].mxu0
    %v7249 = vadd.f32 %v6761, %v7248
    %v7250 = vpop.f32.mrb[0].mxu0
    %7251 = vmatprep.mubr.bf16.mxu0 0
    %7252 = vmatmul.mubr.bf16.gmra.mrb[0].mxu0 %v6737
    %v7253 = vpop.f32.mrb[0].mxu0
    %v7254 = vadd.f32 %v6761, %v7253
    %v7255 = vpop.f32.mrb[0].mxu0
    %v7256 = vpop.f32.mrb[0].mxu0
    %v7257 = vadd.f32 %v6761, %v7256
    %v7258 = vpop.f32.mrb[0].mxu0
    %7259 = vmatprep.mubr.bf16.mxu0 0
    %7260 = vmatmul.mubr.bf16.gmra.mrb[0].mxu0 %v6738
    %v7261 = vpop.f32.mrb[0].mxu0
    %v7262 = vadd.f32 %v6761, %v7261
    %v7263 = vpop.f32.mrb[0].mxu0
    %v7264 = vpop.f32.mrb[0].mxu0
    %v7265 = vadd.f32 %v6761, %v7264
    %v7266 = vpop.f32.mrb[0].mxu0
    %7267 = vmatprep.mubr.bf16.mxu0 0
    %7268 = vmatmul.mubr.bf16.gmra.mrb[0].mxu0 %v6739
    %v7269 = vpop.f32.mrb[0].mxu0
    %v7270 = vadd.f32 %v6761, %v7269
    %v7271 = vpop.f32.mrb[0].mxu0
    %v7272 = vpop.f32.mrb[0].mxu0
    %v7273 = vadd.f32 %v6761, %v7272
    %v7274 = vpop.f32.mrb[0].mxu0
    %7275 = vdwg.mxu0
    %v7276 = vadd.f32 %v6846, %v80
    %v7277 = vadd.f32 %v6849, %v81
    %v7278 = vadd.f32 %v6854, %v82
    %v7279 = vadd.f32 %v6857, %v83
    %v7280 = vadd.f32 %v6862, %v84
    %v7281 = vadd.f32 %v6865, %v85
    %v7282 = vadd.f32 %v6870, %v86
    %v7283 = vadd.f32 %v6873, %v87
    %v7284 = vadd.f32 %v6878, %v88
    %v7285 = vadd.f32 %v6881, %v89
    %v7286 = vadd.f32 %v6886, %v90
    %v7287 = vadd.f32 %v6889, %v91
    %v7288 = vadd.f32 %v6894, %v92
    %v7289 = vadd.f32 %v6897, %v93
    %v7290 = vadd.f32 %v6902, %v94
    %v7291 = vadd.f32 %v6905, %v95
    %v7292 = vadd.f32 %v6910, %v96
    %v7293 = vadd.f32 %v6913, %v97
    %v7294 = vadd.f32 %v6918, %v98
    %v7295 = vadd.f32 %v6921, %v99
    %v7296 = vadd.f32 %v6926, %v100
    %v7297 = vadd.f32 %v6929, %v101
    %v7298 = vadd.f32 %v6934, %v102
    %v7299 = vadd.f32 %v6937, %v103
    %v7300 = vadd.f32 %v6942, %v104
    %v7301 = vadd.f32 %v6945, %v105
    %v7302 = vadd.f32 %v6950, %v106
    %v7303 = vadd.f32 %v6953, %v107
    %v7304 = vadd.f32 %v6958, %v108
    %v7305 = vadd.f32 %v6961, %v109
    %v7306 = vadd.f32 %v6966, %v110
    %v7307 = vadd.f32 %v6969, %v111
    %v7308 = vadd.f32 %v6974, %v112
    %v7309 = vadd.f32 %v6977, %v113
    %v7310 = vadd.f32 %v6982, %v114
    %v7311 = vadd.f32 %v6985, %v115
    %v7312 = vadd.f32 %v6990, %v116
    %v7313 = vadd.f32 %v6993, %v117
    %v7314 = vadd.f32 %v6998, %v118
    %v7315 = vadd.f32 %v7001, %v119
    %v7316 = vadd.f32 %v7006, %v120
    %v7317 = vadd.f32 %v7009, %v121
    %v7318 = vadd.f32 %v7014, %v122
    %v7319 = vadd.f32 %v7017, %v123
    %v7320 = vadd.f32 %v7022, %v124
    %v7321 = vadd.f32 %v7025, %v125
    %v7322 = vadd.f32 %v7030, %v126
    %v7323 = vadd.f32 %v7033, %v127
    %v7324 = vadd.f32 %v7038, %v128
    %v7325 = vadd.f32 %v7041, %v129
    %v7326 = vadd.f32 %v7046, %v130
    %v7327 = vadd.f32 %v7049, %v131
    %v7328 = vadd.f32 %v7054, %v132
    %v7329 = vadd.f32 %v7057, %v133
    %v7330 = vadd.f32 %v7062, %v134
    %v7331 = vadd.f32 %v7065, %v135
    %v7332 = vadd.f32 %v7070, %v136
    %v7333 = vadd.f32 %v7073, %v137
    %v7334 = vadd.f32 %v7078, %v138
    %v7335 = vadd.f32 %v7081, %v139
    %v7336 = vadd.f32 %v7086, %v140
    %v7337 = vadd.f32 %v7089, %v141
    %v7338 = vadd.f32 %v7094, %v142
    %v7339 = vadd.f32 %v7097, %v143
    %v7340 = vadd.f32 %v7102, %v144
    %v7341 = vadd.f32 %v7105, %v145
    %v7342 = vadd.f32 %v7110, %v146
    %v7343 = vadd.f32 %v7113, %v147
    %v7344 = vadd.f32 %v7118, %v148
    %v7345 = vadd.f32 %v7121, %v149
    %v7346 = vadd.f32 %v7126, %v150
    %v7347 = vadd.f32 %v7129, %v151
    %v7348 = vadd.f32 %v7134, %v152
    %v7349 = vadd.f32 %v7137, %v153
    %v7350 = vadd.f32 %v7142, %v154
    %v7351 = vadd.f32 %v7145, %v155
    %v7352 = vadd.f32 %v7150, %v156
    %v7353 = vadd.f32 %v7153, %v157
    %v7354 = vadd.f32 %v7158, %v158
    %v7355 = vadd.f32 %v7161, %v159
    %v7356 = vadd.f32 %v7166, %v160
    %v7357 = vadd.f32 %v7169, %v161
    %v7358 = vadd.f32 %v7174, %v162
    %v7359 = vadd.f32 %v7177, %v163
    %v7360 = vadd.f32 %v7182, %v164
    %v7361 = vadd.f32 %v7185, %v165
    %v7362 = vadd.f32 %v7190, %v166
    %v7363 = vadd.f32 %v7193, %v167
    %v7364 = vadd.f32 %v7198, %v168
    %v7365 = vadd.f32 %v7201, %v169
    %v7366 = vadd.f32 %v7206, %v170
    %v7367 = vadd.f32 %v7209, %v171
    %v7368 = vadd.f32 %v7214, %v172
    %v7369 = vadd.f32 %v7217, %v173
    %v7370 = vadd.f32 %v7222, %v174
    %v7371 = vadd.f32 %v7225, %v175
    %v7372 = vadd.f32 %v7230, %v176
    %v7373 = vadd.f32 %v7233, %v177
    %v7374 = vadd.f32 %v7238, %v178
    %v7375 = vadd.f32 %v7241, %v179
    %v7376 = vadd.f32 %v7246, %v180
    %v7377 = vadd.f32 %v7249, %v181
    %v7378 = vadd.f32 %v7254, %v182
    %v7379 = vadd.f32 %v7257, %v183
    %v7380 = vadd.f32 %v7262, %v184
    %v7381 = vadd.f32 %v7265, %v185
    %v7382 = vadd.f32 %v7270, %v186
    %v7383 = vadd.f32 %v7273, %v187
    %v7384 = vmax.f32 %v7276, 0.0
    %v7385 = vmax.f32 %v7277, 0.0
    %v7386 = vmax.f32 %v7278, 0.0
    %v7387 = vmax.f32 %v7279, 0.0
    %v7388 = vmax.f32 %v7280, 0.0
    %v7389 = vmax.f32 %v7281, 0.0
    %v7390 = vmax.f32 %v7282, 0.0
    %v7391 = vmax.f32 %v7283, 0.0
    %v7392 = vmax.f32 %v7284, 0.0
    %v7393 = vmax.f32 %v7285, 0.0
    %v7394 = vmax.f32 %v7286, 0.0
    %v7395 = vmax.f32 %v7287, 0.0
    %v7396 = vmax.f32 %v7288, 0.0
    %v7397 = vmax.f32 %v7289, 0.0
    %v7398 = vmax.f32 %v7290, 0.0
    %v7399 = vmax.f32 %v7291, 0.0
    %v7400 = vmax.f32 %v7292, 0.0
    %v7401 = vmax.f32 %v7293, 0.0
    %v7402 = vmax.f32 %v7294, 0.0
    %v7403 = vmax.f32 %v7295, 0.0
    %v7404 = vmax.f32 %v7296, 0.0
    %v7405 = vmax.f32 %v7297, 0.0
    %v7406 = vmax.f32 %v7298, 0.0
    %v7407 = vmax.f32 %v7299, 0.0
    %v7408 = vmax.f32 %v7300, 0.0
    %v7409 = vmax.f32 %v7301, 0.0
    %v7410 = vmax.f32 %v7302, 0.0
    %v7411 = vmax.f32 %v7303, 0.0
    %v7412 = vmax.f32 %v7304, 0.0
    %v7413 = vmax.f32 %v7305, 0.0
    %v7414 = vmax.f32 %v7306, 0.0
    %v7415 = vmax.f32 %v7307, 0.0
    %v7416 = vmax.f32 %v7308, 0.0
    %v7417 = vmax.f32 %v7309, 0.0
    %v7418 = vmax.f32 %v7310, 0.0
    %v7419 = vmax.f32 %v7311, 0.0
    %v7420 = vmax.f32 %v7312, 0.0
    %v7421 = vmax.f32 %v7313, 0.0
    %v7422 = vmax.f32 %v7314, 0.0
    %v7423 = vmax.f32 %v7315, 0.0
    %v7424 = vmax.f32 %v7316, 0.0
    %v7425 = vmax.f32 %v7317, 0.0
    %v7426 = vmax.f32 %v7318, 0.0
    %v7427 = vmax.f32 %v7319, 0.0
    %v7428 = vmax.f32 %v7320, 0.0
    %v7429 = vmax.f32 %v7321, 0.0
    %v7430 = vmax.f32 %v7322, 0.0
    %v7431 = vmax.f32 %v7323, 0.0
    %v7432 = vmax.f32 %v7324, 0.0
    %v7433 = vmax.f32 %v7325, 0.0
    %v7434 = vmax.f32 %v7326, 0.0
    %v7435 = vmax.f32 %v7327, 0.0
    %v7436 = vmax.f32 %v7328, 0.0
    %v7437 = vmax.f32 %v7329, 0.0
    %v7438 = vmax.f32 %v7330, 0.0
    %v7439 = vmax.f32 %v7331, 0.0
    %v7440 = vmax.f32 %v7332, 0.0
    %v7441 = vmax.f32 %v7333, 0.0
    %v7442 = vmax.f32 %v7334, 0.0
    %v7443 = vmax.f32 %v7335, 0.0
    %v7444 = vmax.f32 %v7336, 0.0
    %v7445 = vmax.f32 %v7337, 0.0
    %v7446 = vmax.f32 %v7338, 0.0
    %v7447 = vmax.f32 %v7339, 0.0
    %v7448 = vmax.f32 %v7340, 0.0
    %v7449 = vmax.f32 %v7341, 0.0
    %v7450 = vmax.f32 %v7342, 0.0
    %v7451 = vmax.f32 %v7343, 0.0
    %v7452 = vmax.f32 %v7344, 0.0
    %v7453 = vmax.f32 %v7345, 0.0
    %v7454 = vmax.f32 %v7346, 0.0
    %v7455 = vmax.f32 %v7347, 0.0
    %v7456 = vmax.f32 %v7348, 0.0
    %v7457 = vmax.f32 %v7349, 0.0
    %v7458 = vmax.f32 %v7350, 0.0
    %v7459 = vmax.f32 %v7351, 0.0
    %v7460 = vmax.f32 %v7352, 0.0
    %v7461 = vmax.f32 %v7353, 0.0
    %v7462 = vmax.f32 %v7354, 0.0
    %v7463 = vmax.f32 %v7355, 0.0
    %v7464 = vmax.f32 %v7356, 0.0
    %v7465 = vmax.f32 %v7357, 0.0
    %v7466 = vmax.f32 %v7358, 0.0
    %v7467 = vmax.f32 %v7359, 0.0
    %v7468 = vmax.f32 %v7360, 0.0
    %v7469 = vmax.f32 %v7361, 0.0
    %v7470 = vmax.f32 %v7362, 0.0
    %v7471 = vmax.f32 %v7363, 0.0
    %v7472 = vmax.f32 %v7364, 0.0
    %v7473 = vmax.f32 %v7365, 0.0
    %v7474 = vmax.f32 %v7366, 0.0
    %v7475 = vmax.f32 %v7367, 0.0
    %v7476 = vmax.f32 %v7368, 0.0
    %v7477 = vmax.f32 %v7369, 0.0
    %v7478 = vmax.f32 %v7370, 0.0
    %v7479 = vmax.f32 %v7371, 0.0
    %v7480 = vmax.f32 %v7372, 0.0
    %v7481 = vmax.f32 %v7373, 0.0
    %v7482 = vmax.f32 %v7374, 0.0
    %v7483 = vmax.f32 %v7375, 0.0
    %v7484 = vmax.f32 %v7376, 0.0
    %v7485 = vmax.f32 %v7377, 0.0
    %v7486 = vmax.f32 %v7378, 0.0
    %v7487 = vmax.f32 %v7379, 0.0
    %v7488 = vmax.f32 %v7380, 0.0
    %v7489 = vmax.f32 %v7381, 0.0
    %v7490 = vmax.f32 %v7382, 0.0
    %v7491 = vmax.f32 %v7383, 0.0
    %7492 = vst [vmem:[#allocation10] sm:$0xff] %v7384
    %7493 = vst [vmem:[#allocation10 + $0x8] sm:$0xff] %v7385
    %7494 = vst [vmem:[#allocation10 + $0x10] sm:$0xff] %v7386
    %7495 = vst [vmem:[#allocation10 + $0x18] sm:$0xff] %v7387
    %7496 = vst [vmem:[#allocation10 + $0x20] sm:$0xff] %v7388
    %7497 = vst [vmem:[#allocation10 + $0x28] sm:$0xff] %v7389
    %7498 = vst [vmem:[#allocation10 + $0x30] sm:$0xff] %v7390
    %7499 = vst [vmem:[#allocation10 + $0x38] sm:$0xff] %v7391
    %7500 = vst [vmem:[#allocation10 + $0x40] sm:$0xff] %v7392
    %7501 = vst [vmem:[#allocation10 + $0x48] sm:$0xff] %v7393
    %7502 = vst [vmem:[#allocation10 + $0x50] sm:$0xff] %v7394
    %7503 = vst [vmem:[#allocation10 + $0x58] sm:$0xff] %v7395
    %7504 = vst [vmem:[#allocation10 + $0x60] sm:$0xff] %v7396
    %7505 = vst [vmem:[#allocation10 + $0x68] sm:$0xff] %v7397
    %7506 = vst [vmem:[#allocation10 + $0x70] sm:$0xff] %v7398
    %7507 = vst [vmem:[#allocation10 + $0x78] sm:$0xff] %v7399
    %7508 = vst [vmem:[#allocation10 + $0x80] sm:$0xff] %v7400
    %7509 = vst [vmem:[#allocation10 + $0x88] sm:$0xff] %v7401
    %7510 = vst [vmem:[#allocation10 + $0x90] sm:$0xff] %v7402
    %7511 = vst [vmem:[#allocation10 + $0x98] sm:$0xff] %v7403
    %7512 = vst [vmem:[#allocation10 + $0xa0] sm:$0xff] %v7404
    %7513 = vst [vmem:[#allocation10 + $0xa8] sm:$0xff] %v7405
    %7514 = vst [vmem:[#allocation10 + $0xb0] sm:$0xff] %v7406
    %7515 = vst [vmem:[#allocation10 + $0xb8] sm:$0xff] %v7407
    %7516 = vst [vmem:[#allocation10 + $0xc0] sm:$0xff] %v7408
    %7517 = vst [vmem:[#allocation10 + $0xc8] sm:$0xff] %v7409
    %7518 = vst [vmem:[#allocation10 + $0xd0] sm:$0xff] %v7410
    %7519 = vst [vmem:[#allocation10 + $0xd8] sm:$0xff] %v7411
    %7520 = vst [vmem:[#allocation10 + $0xe0] sm:$0xff] %v7412
    %7521 = vst [vmem:[#allocation10 + $0xe8] sm:$0xff] %v7413
    %7522 = vst [vmem:[#allocation10 + $0xf0] sm:$0xff] %v7414
    %7523 = vst [vmem:[#allocation10 + $0xf8] sm:$0xff] %v7415
    %7524 = vst [vmem:[#allocation10 + $0x100] sm:$0xff] %v7416
    %7525 = vst [vmem:[#allocation10 + $0x108] sm:$0xff] %v7417
    %7526 = vst [vmem:[#allocation10 + $0x110] sm:$0xff] %v7418
    %7527 = vst [vmem:[#allocation10 + $0x118] sm:$0xff] %v7419
    %7528 = vst [vmem:[#allocation10 + $0x120] sm:$0xff] %v7420
    %7529 = vst [vmem:[#allocation10 + $0x128] sm:$0xff] %v7421
    %7530 = vst [vmem:[#allocation10 + $0x130] sm:$0xff] %v7422
    %7531 = vst [vmem:[#allocation10 + $0x138] sm:$0xff] %v7423
    %7532 = vst [vmem:[#allocation10 + $0x140] sm:$0xff] %v7424
    %7533 = vst [vmem:[#allocation10 + $0x148] sm:$0xff] %v7425
    %7534 = vst [vmem:[#allocation10 + $0x150] sm:$0xff] %v7426
    %7535 = vst [vmem:[#allocation10 + $0x158] sm:$0xff] %v7427
    %7536 = vst [vmem:[#allocation10 + $0x160] sm:$0xff] %v7428
    %7537 = vst [vmem:[#allocation10 + $0x168] sm:$0xff] %v7429
    %7538 = vst [vmem:[#allocation10 + $0x170] sm:$0xff] %v7430
    %7539 = vst [vmem:[#allocation10 + $0x178] sm:$0xff] %v7431
    %7540 = vst [vmem:[#allocation10 + $0x180] sm:$0xff] %v7432
    %7541 = vst [vmem:[#allocation10 + $0x188] sm:$0xff] %v7433
    %7542 = vst [vmem:[#allocation10 + $0x190] sm:$0xff] %v7434
    %7543 = vst [vmem:[#allocation10 + $0x198] sm:$0xff] %v7435
    %7544 = vst [vmem:[#allocation10 + $0x1a0] sm:$0xff] %v7436
    %7545 = vst [vmem:[#allocation10 + $0x1a8] sm:$0xff] %v7437
    %7546 = vst [vmem:[#allocation10 + $0x1b0] sm:$0xff] %v7438
    %7547 = vst [vmem:[#allocation10 + $0x1b8] sm:$0xff] %v7439
    %7548 = vst [vmem:[#allocation10 + $0x1c0] sm:$0xff] %v7440
    %7549 = vst [vmem:[#allocation10 + $0x1c8] sm:$0xff] %v7441
    %7550 = vst [vmem:[#allocation10 + $0x1d0] sm:$0xff] %v7442
    %7551 = vst [vmem:[#allocation10 + $0x1d8] sm:$0xff] %v7443
    %7552 = vst [vmem:[#allocation10 + $0x1e0] sm:$0xff] %v7444
    %7553 = vst [vmem:[#allocation10 + $0x1e8] sm:$0xff] %v7445
    %7554 = vst [vmem:[#allocation10 + $0x1f0] sm:$0xff] %v7446
    %7555 = vst [vmem:[#allocation10 + $0x1f8] sm:$0xff] %v7447
    %7556 = vst [vmem:[#allocation10 + $0x200] sm:$0xff] %v7448
    %7557 = vst [vmem:[#allocation10 + $0x208] sm:$0xff] %v7449
    %7558 = vst [vmem:[#allocation10 + $0x210] sm:$0xff] %v7450
    %7559 = vst [vmem:[#allocation10 + $0x218] sm:$0xff] %v7451
    %7560 = vst [vmem:[#allocation10 + $0x220] sm:$0xff] %v7452
    %7561 = vst [vmem:[#allocation10 + $0x228] sm:$0xff] %v7453
    %7562 = vst [vmem:[#allocation10 + $0x230] sm:$0xff] %v7454
    %7563 = vst [vmem:[#allocation10 + $0x238] sm:$0xff] %v7455
    %7564 = vst [vmem:[#allocation10 + $0x240] sm:$0xff] %v7456
    %7565 = vst [vmem:[#allocation10 + $0x248] sm:$0xff] %v7457
    %7566 = vst [vmem:[#allocation10 + $0x250] sm:$0xff] %v7458
    %7567 = vst [vmem:[#allocation10 + $0x258] sm:$0xff] %v7459
    %7568 = vst [vmem:[#allocation10 + $0x260] sm:$0xff] %v7460
    %7569 = vst [vmem:[#allocation10 + $0x268] sm:$0xff] %v7461
    %7570 = vst [vmem:[#allocation10 + $0x270] sm:$0xff] %v7462
    %7571 = vst [vmem:[#allocation10 + $0x278] sm:$0xff] %v7463
    %7572 = vst [vmem:[#allocation10 + $0x280] sm:$0xff] %v7464
    %7573 = vst [vmem:[#allocation10 + $0x288] sm:$0xff] %v7465
    %7574 = vst [vmem:[#allocation10 + $0x290] sm:$0xff] %v7466
    %7575 = vst [vmem:[#allocation10 + $0x298] sm:$0xff] %v7467
    %7576 = vst [vmem:[#allocation10 + $0x2a0] sm:$0xff] %v7468
    %7577 = vst [vmem:[#allocation10 + $0x2a8] sm:$0xff] %v7469
    %7578 = vst [vmem:[#allocation10 + $0x2b0] sm:$0xff] %v7470
    %7579 = vst [vmem:[#allocation10 + $0x2b8] sm:$0xff] %v7471
    %7580 = vst [vmem:[#allocation10 + $0x2c0] sm:$0xff] %v7472
    %7581 = vst [vmem:[#allocation10 + $0x2c8] sm:$0xff] %v7473
    %7582 = vst [vmem:[#allocation10 + $0x2d0] sm:$0xff] %v7474
    %7583 = vst [vmem:[#allocation10 + $0x2d8] sm:$0xff] %v7475
    %7584 = vst [vmem:[#allocation10 + $0x2e0] sm:$0xff] %v7476
    %7585 = vst [vmem:[#allocation10 + $0x2e8] sm:$0xff] %v7477
    %7586 = vst [vmem:[#allocation10 + $0x2f0] sm:$0xff] %v7478
    %7587 = vst [vmem:[#allocation10 + $0x2f8] sm:$0xff] %v7479
    %7588 = vst [vmem:[#allocation10 + $0x300] sm:$0xff] %v7480
    %7589 = vst [vmem:[#allocation10 + $0x308] sm:$0xff] %v7481
    %7590 = vst [vmem:[#allocation10 + $0x310] sm:$0xff] %v7482
    %7591 = vst [vmem:[#allocation10 + $0x318] sm:$0xff] %v7483
    %7592 = vst [vmem:[#allocation10 + $0x320] sm:$0xff] %v7484
    %7593 = vst [vmem:[#allocation10 + $0x328] sm:$0xff] %v7485
    %7594 = vst [vmem:[#allocation10 + $0x330] sm:$0xff] %v7486
    %7595 = vst [vmem:[#allocation10 + $0x338] sm:$0xff] %v7487
    %7596 = vst [vmem:[#allocation10 + $0x340] sm:$0xff] %v7488
    %7597 = vst [vmem:[#allocation10 + $0x348] sm:$0xff] %v7489
    %7598 = vst [vmem:[#allocation10 + $0x350] sm:$0xff] %v7490
    %7599 = vst [vmem:[#allocation10 + $0x358] sm:$0xff] %v7491
    // Predicated region
    $region42: #{tpu_custom_call.1} parent=1 // pred_check
      _
    $region43: #{tpu_custom_call.1} parent=1 // pred_check_branch
      %7601 = sbr.rel (0) target = $region45
    $region44: #{tpu_custom_call.1} parent=1 // pred_region
      %s7603 = ssub.s32 13824, 13824
      %7604 = vsyncadd [#allocation4], %s7603
      %s7605 = sshll.u32 [#allocation10], 4
      %s7606 = int_to_ptr.vmem [resolvable:$true] %s7605
      %7611 = dma.vmem_to_hbm [thread:$0]  %s7606, 13824, %s6, [#allocation4], 128, 128, 8
    $region45: #{tpu_custom_call.1} parent=1 // pred_fallthru
      _
    // Predicated region
    $region46: #{tpu_custom_call.1} parent=1 // pred_check
      _
    $region47: #{tpu_custom_call.1} parent=1 // pred_check_branch
      %7613 = sbr.rel (0) target = $region49
    $region48: #{tpu_custom_call.1} parent=1 // pred_region
      %7614 = dma.done [#allocation4], 13824
    $region49: #{tpu_custom_call.1} parent=1 // pred_fallthru
      _
    %7615 = vsyncpa [#allocation3], 1
    %7616 = vsyncpa [#allocation6], 1
    %7617 = vsyncpa [#allocation9], 1
    %7618 = vsyncpa [#allocation4], 1

</llo_original>
